<compile_context>
chip_gen: v7x
topology: tpu7x:2x2x1
jax: 0.10.0
libtpu: 0.0.40
codegen_flags: <defaults>
</compile_context>

<pallas_src>
import functools

import jax
import jax.numpy as jnp
from jax.experimental import pallas as pl
from jax.experimental.pallas import tpu as pltpu


_DTYPE = jnp.bfloat16            # MXU input dtype (f32 accumulation everywhere)


def _pick_vmem_limit():
    """Generation-aware scoped-VMEM limit (v7x: 64 MiB phys, v5e/v6e: 128)."""
    default = 48 * 1024 * 1024
    try:
        info = pltpu.get_tpu_info()
        cap = getattr(info, "vmem_capacity_bytes", None)
        if not cap:
            return default
        return int(min(max(cap - 12 * 1024 * 1024, 32 * 1024 * 1024),
                       100 * 1024 * 1024))
    except Exception:
        return default


_VMEM_LIMIT = _pick_vmem_limit()


# ------------------------- tiling helpers -----------------------------------

def _round_up(x, m):
    return (x + m - 1) // m * m


def _tile_and_pad(dim, target, align):
    """Pick a tile (multiple of `align`, or the full dim) and padded extent."""
    if dim >= target:
        tile = target
    elif dim < align or dim % align == 0:
        tile = dim                      # full-extent block is always legal
    else:
        tile = _round_up(dim, align)
    return tile, _round_up(dim, tile)


def _pad2(x, rows, cols):
    r, c = x.shape
    if r == rows and c == cols:
        return x
    return jnp.pad(x, ((0, rows - r), (0, cols - c)))


# ------------------- fused GEMM (1x1x1 conv + BN bias + residual + ReLU) ----

def _make_gemm_kernel(relu, has_residual):
    def kernel(*refs):
        if has_residual:
            a_ref, b_ref, c_ref, r_ref, o_ref, acc_ref = refs
        else:
            a_ref, b_ref, c_ref, o_ref, acc_ref = refs
            r_ref = None
        k = pl.program_id(2)

        @pl.when(k == 0)
        def _():
            acc_ref[...] = jnp.zeros_like(acc_ref)

        acc_ref[...] += jnp.dot(a_ref[...], b_ref[...],
                                preferred_element_type=jnp.float32)

        @pl.when(k == pl.num_programs(2) - 1)
        def _():
            y = acc_ref[...] + c_ref[...]
            if has_residual:
                y = y + r_ref[...].astype(jnp.float32)
            if relu:
                y = jnp.maximum(y, 0.0)
            o_ref[...] = y.astype(o_ref.dtype)

    return kernel


@functools.partial(jax.jit, static_argnames=("relu", "out_dtype"))
def fused_matmul(a, b, bias, residual=None, *, relu=False, out_dtype=None):
    """[relu]((a @ b) + bias [+ residual]); M/N/K tiled, f32 accumulator."""
    M, K = a.shape
    _, N = b.shape
    out_dtype = out_dtype or _DTYPE

    tm, Mp = _tile_and_pad(M, 1024, 16)
    tn, Np = _tile_and_pad(N, 512, 128)
    tk, Kp = _tile_and_pad(K, 2048, 128)     # full K for every layer here
    # v7x has 2 TensorCores: keep >=2 blocks along a parallel axis if we can.
    if Mp // tm == 1 and Np // tn == 1 and M >= 512:
        tm = _round_up((M + 1) // 2, 16)
        Mp = _round_up(M, tm)

    a_p = _pad2(a.astype(_DTYPE), Mp, Kp)
    b_p = _pad2(b.astype(_DTYPE), Kp, Np)
    c_p = _pad2(bias.reshape(1, N).astype(jnp.float32), 1, Np)

    in_specs = [pl.BlockSpec((tm, tk), lambda i, j, k: (i, k)),
                pl.BlockSpec((tk, tn), lambda i, j, k: (k, j)),
                pl.BlockSpec((1, tn), lambda i, j, k: (0, j))]
    args = [a_p, b_p, c_p]
    if residual is not None:
        in_specs.append(pl.BlockSpec((tm, tn), lambda i, j, k: (i, j)))
        args.append(_pad2(residual.astype(_DTYPE), Mp, Np))

    out = pl.pallas_call(
        _make_gemm_kernel(relu, residual is not None),
        out_shape=jax.ShapeDtypeStruct((Mp, Np), out_dtype),
        grid=(Mp // tm, Np // tn, Kp // tk),
        in_specs=in_specs,
        out_specs=pl.BlockSpec((tm, tn), lambda i, j, k: (i, j)),
        scratch_shapes=[pltpu.VMEM((tm, tn), jnp.float32)],
        compiler_params=pltpu.CompilerParams(
            dimension_semantics=("parallel", "parallel", "arbitrary"),
            vmem_limit_bytes=_VMEM_LIMIT),
    )(*args)
    if (Mp, Np) != (M, N):
        out = out[:M, :N]
    return out


# ------------------- direct (no-im2col) 3-D conv + fused bias/ReLU ----------

def _make_direct_conv_kernel(n_batch, kh, kw, sw, wo, relu):
    n_x = kh * sw                    # one ref per (H tap, W phase)

    def kernel(*refs):
        x_refs = refs[:n_x]
        w_ref, b_ref, o_ref, acc_ref = refs[n_x:]
        it = pl.program_id(2)

        @pl.when(it == 0)
        def _():
            acc_ref[...] = jnp.zeros_like(acc_ref)

        # Sum all (ih, iw) tap contributions locally; one accumulator update
        # per batch row per grid step.
        for n in range(n_batch):
            part = None
            for ih in range(kh):
                for iw in range(kw):
                    x_ref = x_refs[ih * sw + (iw % sw)]
                    off = iw // sw
                    a = x_ref[0, 0, n, off:off + wo, :]          # (wo, cin)
                    d = jnp.dot(a, w_ref[0, ih, iw],
                                preferred_element_type=jnp.float32)
                    part = d if part is None else part + d
            acc_ref[n] += part

        @pl.when(it == pl.num_programs(2) - 1)
        def _():
            y = acc_ref[...] + b_ref[...]                        # (N, wo, cout)
            if relu:
                y = jnp.maximum(y, 0.0)
            o_ref[0, 0] = y.astype(o_ref.dtype)

    return kernel


@functools.partial(jax.jit, static_argnames=("stride", "padding", "relu"))
def conv3d_direct(x, w, bias, *, stride, padding, relu):
    """Direct 3-D conv + fused bias (+ ReLU); BN scale pre-folded into w.

    x: canonical (T, H, N, W, Cin); w: (kT, kH, kW, Cin, Cout) bf16.
    kT is a grid axis (weight blocked per tap), kH taps come from kh shifted
    index_maps on the same padded input, kW taps are contiguous static slices
    of sw W-phase views -> no im2col / per-tap HBM copies, no strided loads.
    """
    kt, kh, kw, cin, cout = w.shape
    st, sh, sw = stride
    pt, ph, pw = padding
    T, H, N, W, _ = x.shape

    # Pad the contraction (channel) axis to a multiple of 16 (bf16 packing).
    cpad = -cin % 16
    if cpad:
        x = jnp.pad(x, ((0, 0),) * 4 + ((0, cpad),))
        w = jnp.pad(w, ((0, 0),) * 3 + ((0, cpad), (0, 0)))
        cin += cpad

    xp = jnp.pad(x.astype(_DTYPE),
                 ((pt, pt), (ph, ph), (0, 0), (pw, pw), (0, 0)))
    Tp, Hp, Wp = T + 2 * pt, H + 2 * ph, W + 2 * pw
    To = (Tp - kt) // st + 1
    Ho = (Hp - kh) // sh + 1
    Wo = (Wp - kw) // sw + 1

    # W-phase decomposition: phase p holds columns p, p+sw, p+2*sw, ... so each
    # kW tap is a contiguous slice [iw//sw : iw//sw + Wo] of phase (iw % sw).
    if sw == 1:
        phases, Wph = [xp], Wp
    else:
        wpad = -Wp % sw
        if wpad:
            xp = jnp.pad(xp, ((0, 0), (0, 0), (0, 0), (0, wpad), (0, 0)))
        Wph = (Wp + wpad) // sw
        phases = [xp[:, :, :, p::sw, :] for p in range(sw)]

    w_b = w.astype(_DTYPE)
    b2 = bias.reshape(1, cout).astype(jnp.float32)

    def xmap(ih):
        return lambda to, ho, it, _ih=ih: (to * st + it, ho * sh + _ih, 0, 0, 0)

    in_specs = [pl.BlockSpec((1, 1, N, Wph, cin), xmap(ih))
                for ih in range(kh) for _ in range(sw)]
    in_specs += [pl.BlockSpec((1, kh, kw, cin, cout),      # per-kt-tap weight
                              lambda to, ho, it: (it, 0, 0, 0, 0)),
                 pl.BlockSpec((1, cout), lambda to, ho, it: (0, 0))]
    args = [phases[p] for _ in range(kh) for p in range(sw)] + [w_b, b2]

    out = pl.pallas_call(
        _make_direct_conv_kernel(N, kh, kw, sw, Wo, relu),
        out_shape=jax.ShapeDtypeStruct((To, Ho, N, Wo, cout), _DTYPE),
        grid=(To, Ho, kt),
        in_specs=in_specs,
        out_specs=pl.BlockSpec((1, 1, N, Wo, cout),
                               lambda to, ho, it: (to, ho, 0, 0, 0)),
        scratch_shapes=[pltpu.VMEM((N, Wo, cout), jnp.float32)],
        compiler_params=pltpu.CompilerParams(
            dimension_semantics=("parallel", "parallel", "arbitrary"),
            vmem_limit_bytes=_VMEM_LIMIT),
    )(*args)
    return out


@functools.partial(jax.jit, static_argnames=("stride", "relu"))
def conv1x1_bn(x, w, bias, residual=None, *, stride=(1, 1, 1), relu=False):
    """1x1x1 conv (+bias +residual +ReLU): pure fused GEMM; w is (Cin, Cout)."""
    st, sh, sw = stride
    if (st, sh, sw) != (1, 1, 1):
        x = x[::st, ::sh, :, ::sw, :]
    T, H, N, W, C = x.shape
    cout = w.shape[-1]
    a = x.reshape(T * H * N * W, C)
    r = (residual.reshape(T * H * N * W, cout)
         if residual is not None else None)
    y = fused_matmul(a, w, bias, r, relu=relu)
    return y.reshape(T, H, N, W, cout)


# ------------------------- max pool / mean reductions -----------------------

def _make_maxpool_kernel(kh, kw, sw, wo):
    n_x = kh * sw

    def kernel(*refs):
        x_refs = refs[:n_x]
        o_ref = refs[n_x]
        m = None
        for ih in range(kh):
            for iw in range(kw):
                x_ref = x_refs[ih * sw + (iw % sw)]
                off = iw // sw
                t = x_ref[0, 0, :, off:off + wo, :]
                m = t if m is None else jnp.maximum(m, t)
        o_ref[0, 0] = m

    return kernel


@functools.partial(jax.jit, static_argnames=("ksize", "stride", "padding"))
def maxpool3d(x, *, ksize, stride, padding):
    """Spatial max pool: window max computed in-kernel from shifted/phase views
    of the padded input (no HBM tap copies)."""
    kt, kh, kw = ksize
    st, sh, sw = stride
    pt, ph, pw = padding
    assert kt == 1 and st == 1 and pt == 0, "only spatial pooling is used"
    T, H, N, W, C = x.shape
    xp = jnp.pad(x, ((0, 0), (ph, ph), (0, 0), (pw, pw), (0, 0)),
                 constant_values=-jnp.inf)
    Hp, Wp = H + 2 * ph, W + 2 * pw
    Ho = (Hp - kh) // sh + 1
    Wo = (Wp - kw) // sw + 1

    if sw == 1:
        phases, Wph = [xp], Wp
    else:
        wpad = -Wp % sw
        if wpad:
            xp = jnp.pad(xp, ((0, 0), (0, 0), (0, 0), (0, wpad), (0, 0)),
                         constant_values=-jnp.inf)
        Wph = (Wp + wpad) // sw
        phases = [xp[:, :, :, p::sw, :] for p in range(sw)]

    def xmap(ih):
        return lambda t, ho, _ih=ih: (t, ho * sh + _ih, 0, 0, 0)

    in_specs = [pl.BlockSpec((1, 1, N, Wph, C), xmap(ih))
                for ih in range(kh) for _ in range(sw)]
    args = [phases[p] for _ in range(kh) for p in range(sw)]

    out = pl.pallas_call(
        _make_maxpool_kernel(kh, kw, sw, Wo),
        out_shape=jax.ShapeDtypeStruct((T, Ho, N, Wo, C), x.dtype),
        grid=(T, Ho),
        in_specs=in_specs,
        out_specs=pl.BlockSpec((1, 1, N, Wo, C), lambda t, ho: (t, ho, 0, 0, 0)),
        compiler_params=pltpu.CompilerParams(
            dimension_semantics=("parallel", "parallel"),
            vmem_limit_bytes=_VMEM_LIMIT),
    )(*args)
    return out


def _mean_axis1_kernel(x_ref, o_ref):
    o_ref[...] = jnp.mean(x_ref[...].astype(jnp.float32), axis=1)


@jax.jit
def mean_axis1(x):
    """(M, R, C) -> (M, C) mean over axis 1, row-tiled."""
    M, R, C = x.shape
    row_bytes = max(1, R * C * x.dtype.itemsize)
    target = max(8, min(512, _round_up((4 << 20) // row_bytes, 8)))
    tm, Mp = _tile_and_pad(M, target, 8)
    if Mp != M:
        x = jnp.pad(x, ((0, Mp - M), (0, 0), (0, 0)))
    out = pl.pallas_call(
        _mean_axis1_kernel,
        out_shape=jax.ShapeDtypeStruct((Mp, C), jnp.float32),
        grid=(Mp // tm,),
        in_specs=[pl.BlockSpec((tm, R, C), lambda i: (i, 0, 0))],
        out_specs=pl.BlockSpec((tm, C), lambda i: (i, 0)),
        compiler_params=pltpu.CompilerParams(
            dimension_semantics=("parallel",),
            vmem_limit_bytes=_VMEM_LIMIT),
    )(x)
    return out[:M] if Mp != M else out


# ------------------------- parameters ---------------------------------------

_EXPANSION = 4
_BLOCKS = (3, 8, 36, 3)          # ResNet-152 block counts
_BN_EPS = 1e-5


def _conv_w(key, kt, kh, kw, cin, cout):
    fan_in = kt * kh * kw * cin
    return (jax.random.normal(key, (kt, kh, kw, cin, cout), jnp.float32)
            * jnp.sqrt(2.0 / fan_in))


def _bn_folded(key, c):
    k1, k2, k3, k4 = jax.random.split(key, 4)
    gamma = 1.0 + 0.1 * jax.random.normal(k1, (c,), jnp.float32)
    beta = 0.1 * jax.random.normal(k2, (c,), jnp.float32)
    mean = 0.1 * jax.random.normal(k3, (c,), jnp.float32)
    var = 1.0 + 0.1 * jax.random.uniform(k4, (c,), jnp.float32)
    scale = gamma / jnp.sqrt(var + _BN_EPS)
    bias = beta - mean * scale
    return scale, bias


def _folded_conv(key_w, key_bn, kt, kh, kw, cin, cout):
    """Conv weight with the BN scale folded in (pre-cast bf16) + f32 bias."""
    w = _conv_w(key_w, kt, kh, kw, cin, cout)
    scale, bias = _bn_folded(key_bn, cout)
    return (w * scale).astype(_DTYPE), bias


def init_params(key, *, width=8, in_ch=3, num_classes=10):
    keys = iter(jax.random.split(key, 512))
    nk = lambda: next(keys)
    params = {}
    params['conv1_w'], params['bn1_b'] = _folded_conv(nk(), nk(), 3, 7, 7,
                                                      in_ch, width)
    inplanes = width
    layer_strides = ((1, 1, 1), (1, 2, 2), (1, 2, 2), (1, 2, 2))
    layers = []
    for li, n_blocks in enumerate(_BLOCKS):
        planes = width * (2 ** li)
        blocks = []
        for bi in range(n_blocks):
            stride = layer_strides[li] if bi == 0 else (1, 1, 1)
            p = {'stride': stride}
            w, b = _folded_conv(nk(), nk(), 1, 1, 1, inplanes, planes)
            p['conv1_w'], p['bn1_b'] = w.reshape(inplanes, planes), b
            p['conv2_w'], p['bn2_b'] = _folded_conv(nk(), nk(), 3, 3, 3,
                                                    planes, planes)
            w, b = _folded_conv(nk(), nk(), 1, 1, 1, planes,
                                planes * _EXPANSION)
            p['conv3_w'], p['bn3_b'] = w.reshape(planes,
                                                 planes * _EXPANSION), b
            if stride != (1, 1, 1) or inplanes != planes * _EXPANSION:
                w, b = _folded_conv(nk(), nk(), 1, 1, 1, inplanes,
                                    planes * _EXPANSION)
                p['ds_w'], p['ds_b'] = w.reshape(inplanes,
                                                 planes * _EXPANSION), b
            blocks.append(p)
            inplanes = planes * _EXPANSION
        layers.append(blocks)
    params['layers'] = layers
    params['cls_w'] = (jax.random.normal(nk(), (inplanes, num_classes),
                                         jnp.float32)
                       * jnp.sqrt(1.0 / inplanes)).astype(_DTYPE)
    params['cls_b'] = 0.01 * jax.random.normal(nk(), (num_classes,),
                                               jnp.float32)
    return params


# ------------------------- forward pass -------------------------------------

def _bottleneck(x, p):
    stride = p['stride']
    out = conv1x1_bn(x, p['conv1_w'], p['bn1_b'], relu=True)
    out = conv3d_direct(out, p['conv2_w'], p['bn2_b'],
                        stride=stride, padding=(1, 1, 1), relu=True)
    if 'ds_w' in p:
        # TODO(synk): fold the downsample stride into the GEMM's A index_map
        # instead of an XLA strided gather (minor bandwidth saving).
        identity = conv1x1_bn(x, p['ds_w'], p['ds_b'], stride=stride,
                              relu=False)
    else:
        identity = x
    # conv3 + bias + residual add + ReLU fused into one GEMM epilogue.
    return conv1x1_bn(out, p['conv3_w'], p['bn3_b'], residual=identity,
                      relu=True)


def resnet152_checkpointed_forward(params, x_ncdhw):
    """Matches ResNet152Checkpointed.forward; input [N, C, T, H, W] (NCDHW)."""
    # checkpoint_sequential only affects memory, not math -> plain composition.
    # NCDHW -> canonical (T, H, N, W, C), bf16 activations.
    x = jnp.transpose(x_ncdhw, (2, 3, 0, 4, 1)).astype(_DTYPE)
    # features = conv1 -> bn1 -> relu -> maxpool -> layer1..layer4
    x = conv3d_direct(x, params['conv1_w'], params['bn1_b'],
                      stride=(1, 2, 2), padding=(1, 3, 3), relu=True)
    x = maxpool3d(x, ksize=(1, 3, 3), stride=(1, 2, 2), padding=(0, 1, 1))
    for layer in params['layers']:
        for block in layer:
            x = _bottleneck(x, block)
    # avgpool: AdaptiveAvgPool3d((None, 1, 1)) -> average over H, W, keep time.
    T, H, N, W, C = x.shape
    feat = jnp.transpose(x, (2, 0, 1, 3, 4)).reshape(N * T, H * W, C)
    pooled = mean_axis1(feat)                                   # (N*T, C) f32
    # classifier: Conv3d(C, num_classes, 1) == dense over channels per (n, t).
    logits = fused_matmul(pooled, params['cls_w'], params['cls_b'],
                          relu=False, out_dtype=jnp.float32)
    num_classes = params['cls_w'].shape[1]
    logits = logits.reshape(N, T, num_classes)
    # torch: x.squeeze(3).squeeze(3).mean(2) -> mean of per-frame logits over T
    return mean_axis1(logits)                                   # [N, classes]


if __name__ == "__main__":
    root = jax.random.PRNGKey(0)
    pkey, xkey = jax.random.split(root)
    # Width scaled down (64 -> 8) for a small synthetic run; structure
    # (3x7x7 stem, maxpool, bottleneck layers [3, 8, 36, 3]) is ResNet-152.
    params = init_params(pkey, width=8, in_ch=3, num_classes=10)
    # Small video clip: batch=2, channels=3, frames=8, 32x32 spatial (NCDHW).
    x = jax.random.normal(xkey, (2, 3, 8, 32, 32), jnp.float32)
    out = resnet152_checkpointed_forward(params, x)
    out = jax.block_until_ready(out)
    assert out.shape == (2, 10), out.shape
    assert bool(jnp.all(jnp.isfinite(out)))
    print("KERNEL_OK")
</pallas_src>

<mosaic_0001>
module attributes {stable_mosaic.version = 11 : i64} {
  func.func @kernel(%arg0: i32, %arg1: i32, %arg2: i32, %arg3: memref<1x1x2x19x16xbf16, #tpu.memory_space<vmem>>, %arg4: memref<1x1x2x19x16xbf16, #tpu.memory_space<vmem>>, %arg5: memref<1x1x2x19x16xbf16, #tpu.memory_space<vmem>>, %arg6: memref<1x1x2x19x16xbf16, #tpu.memory_space<vmem>>, %arg7: memref<1x1x2x19x16xbf16, #tpu.memory_space<vmem>>, %arg8: memref<1x1x2x19x16xbf16, #tpu.memory_space<vmem>>, %arg9: memref<1x1x2x19x16xbf16, #tpu.memory_space<vmem>>, %arg10: memref<1x1x2x19x16xbf16, #tpu.memory_space<vmem>>, %arg11: memref<1x1x2x19x16xbf16, #tpu.memory_space<vmem>>, %arg12: memref<1x1x2x19x16xbf16, #tpu.memory_space<vmem>>, %arg13: memref<1x1x2x19x16xbf16, #tpu.memory_space<vmem>>, %arg14: memref<1x1x2x19x16xbf16, #tpu.memory_space<vmem>>, %arg15: memref<1x1x2x19x16xbf16, #tpu.memory_space<vmem>>, %arg16: memref<1x1x2x19x16xbf16, #tpu.memory_space<vmem>>, %arg17: memref<1x7x7x16x8xbf16, #tpu.memory_space<vmem>>, %arg18: memref<1x8xf32, #tpu.memory_space<vmem>>, %arg19: memref<1x1x2x16x8xbf16, #tpu.memory_space<vmem>>, %arg20: memref<2x16x8xf32, #tpu.memory_space<vmem>>) attributes {dimension_semantics = [#tpu.dimension_semantics<parallel>, #tpu.dimension_semantics<parallel>, #tpu.dimension_semantics<arbitrary>], iteration_bounds = array<i64: 8, 16, 3>, scalar_prefetch = 0 : i64, scratch_operands = 1 : i64, tpu.core_type = #tpu.core_type<tc>, window_params = [{transform_indices = @transform_0, window_bounds = array<i64: 1, 1, 2, 19, 16>}, {transform_indices = @transform_1, window_bounds = array<i64: 1, 1, 2, 19, 16>}, {transform_indices = @transform_2, window_bounds = array<i64: 1, 1, 2, 19, 16>}, {transform_indices = @transform_3, window_bounds = array<i64: 1, 1, 2, 19, 16>}, {transform_indices = @transform_4, window_bounds = array<i64: 1, 1, 2, 19, 16>}, {transform_indices = @transform_5, window_bounds = array<i64: 1, 1, 2, 19, 16>}, {transform_indices = @transform_6, window_bounds = array<i64: 1, 1, 2, 19, 16>}, {transform_indices = @transform_7, window_bounds = array<i64: 1, 1, 2, 19, 16>}, {transform_indices = @transform_8, window_bounds = array<i64: 1, 1, 2, 19, 16>}, {transform_indices = @transform_9, window_bounds = array<i64: 1, 1, 2, 19, 16>}, {transform_indices = @transform_10, window_bounds = array<i64: 1, 1, 2, 19, 16>}, {transform_indices = @transform_11, window_bounds = array<i64: 1, 1, 2, 19, 16>}, {transform_indices = @transform_12, window_bounds = array<i64: 1, 1, 2, 19, 16>}, {transform_indices = @transform_13, window_bounds = array<i64: 1, 1, 2, 19, 16>}, {transform_indices = @transform_14, window_bounds = array<i64: 1, 7, 7, 16, 8>}, {pipeline_mode = #tpu.pipeline_mode<synchronous>, transform_indices = @transform_15, window_bounds = array<i64: 1, 8>}, {transform_indices = @transform_16, window_bounds = array<i64: 1, 1, 2, 16, 8>}]} {
    %c0_i32 = arith.constant 0 : i32
    %0 = arith.cmpi eq, %arg2, %c0_i32 : i32
    %1 = arith.extui %0 : i1 to i32
    %c0_i32_0 = arith.constant 0 : i32
    %2 = arith.cmpi ne, %1, %c0_i32_0 : i32
    scf.if %2 {
      %cst_1084 = arith.constant 0.000000e+00 : f32
      %604 = vector.broadcast %cst_1084 : f32 to vector<2x16x8xf32>
      %c0_1085 = arith.constant 0 : index
      %c0_1086 = arith.constant 0 : index
      %c0_1087 = arith.constant 0 : index
      %605 = vector.load %arg20[%c0_1085, %c0_1086, %c0_1087] : memref<2x16x8xf32, #tpu.memory_space<vmem>>, vector<2x16x8xf32>
      tpu.vector_store %arg20[%c0_1085, %c0_1086, %c0_1087], %604 {strides = array<i32>} : memref<2x16x8xf32, #tpu.memory_space<vmem>>, vector<2x16x8xf32>,
    } else {
    }
    %c0 = arith.constant 0 : index
    %c0_1 = arith.constant 0 : index
    %c0_2 = arith.constant 0 : index
    %c0_3 = arith.constant 0 : index
    %c0_4 = arith.constant 0 : index
    %3 = vector.load %arg3[%c0, %c0_1, %c0_2, %c0_3, %c0_4] : memref<1x1x2x19x16xbf16, #tpu.memory_space<vmem>>, vector<1x1x1x16x16xbf16>
    %4 = vector.shape_cast %3 : vector<1x1x1x16x16xbf16> to vector<16x16xbf16>
    %c0_5 = arith.constant 0 : index
    %c0_6 = arith.constant 0 : index
    %c0_7 = arith.constant 0 : index
    %c0_8 = arith.constant 0 : index
    %c0_9 = arith.constant 0 : index
    %5 = vector.load %arg17[%c0_5, %c0_6, %c0_7, %c0_8, %c0_9] : memref<1x7x7x16x8xbf16, #tpu.memory_space<vmem>>, vector<1x1x1x16x8xbf16>
    %6 = vector.shape_cast %5 : vector<1x1x1x16x8xbf16> to vector<16x8xbf16>
    %cst = arith.constant dense<0.000000e+00> : vector<16x8xf32>
    %7 = tpu.matmul %4, %6, %cst {dimension_numbers = #tpu.dot_dimension_numbers<[1], [0], [0], [1], [0, 0, 1, 1], [], []>} : vector<16x16xbf16>, vector<16x8xbf16>, vector<16x8xf32> -> vector<16x8xf32>
    %c0_10 = arith.constant 0 : index
    %c0_11 = arith.constant 0 : index
    %c0_12 = arith.constant 0 : index
    %c0_13 = arith.constant 0 : index
    %c0_14 = arith.constant 0 : index
    %8 = vector.load %arg4[%c0_10, %c0_11, %c0_12, %c0_13, %c0_14] : memref<1x1x2x19x16xbf16, #tpu.memory_space<vmem>>, vector<1x1x1x16x16xbf16>
    %9 = vector.shape_cast %8 : vector<1x1x1x16x16xbf16> to vector<16x16xbf16>
    %c0_15 = arith.constant 0 : index
    %c0_16 = arith.constant 0 : index
    %c1 = arith.constant 1 : index
    %c0_17 = arith.constant 0 : index
    %c0_18 = arith.constant 0 : index
    %10 = vector.load %arg17[%c0_15, %c0_16, %c1, %c0_17, %c0_18] : memref<1x7x7x16x8xbf16, #tpu.memory_space<vmem>>, vector<1x1x1x16x8xbf16>
    %11 = vector.shape_cast %10 : vector<1x1x1x16x8xbf16> to vector<16x8xbf16>
    %cst_19 = arith.constant dense<0.000000e+00> : vector<16x8xf32>
    %12 = tpu.matmul %9, %11, %cst_19 {dimension_numbers = #tpu.dot_dimension_numbers<[1], [0], [0], [1], [0, 0, 1, 1], [], []>} : vector<16x16xbf16>, vector<16x8xbf16>, vector<16x8xf32> -> vector<16x8xf32>
    %13 = arith.addf %7, %12 : vector<16x8xf32>
    %c0_20 = arith.constant 0 : index
    %c0_21 = arith.constant 0 : index
    %c0_22 = arith.constant 0 : index
    %c1_23 = arith.constant 1 : index
    %c0_24 = arith.constant 0 : index
    %14 = vector.load %arg3[%c0_20, %c0_21, %c0_22, %c1_23, %c0_24] : memref<1x1x2x19x16xbf16, #tpu.memory_space<vmem>>, vector<1x1x1x16x16xbf16>
    %15 = vector.shape_cast %14 : vector<1x1x1x16x16xbf16> to vector<16x16xbf16>
    %c0_25 = arith.constant 0 : index
    %c0_26 = arith.constant 0 : index
    %c2 = arith.constant 2 : index
    %c0_27 = arith.constant 0 : index
    %c0_28 = arith.constant 0 : index
    %16 = vector.load %arg17[%c0_25, %c0_26, %c2, %c0_27, %c0_28] : memref<1x7x7x16x8xbf16, #tpu.memory_space<vmem>>, vector<1x1x1x16x8xbf16>
    %17 = vector.shape_cast %16 : vector<1x1x1x16x8xbf16> to vector<16x8xbf16>
    %cst_29 = arith.constant dense<0.000000e+00> : vector<16x8xf32>
    %18 = tpu.matmul %15, %17, %cst_29 {dimension_numbers = #tpu.dot_dimension_numbers<[1], [0], [0], [1], [0, 0, 1, 1], [], []>} : vector<16x16xbf16>, vector<16x8xbf16>, vector<16x8xf32> -> vector<16x8xf32>
    %19 = arith.addf %13, %18 : vector<16x8xf32>
    %c0_30 = arith.constant 0 : index
    %c0_31 = arith.constant 0 : index
    %c0_32 = arith.constant 0 : index
    %c1_33 = arith.constant 1 : index
    %c0_34 = arith.constant 0 : index
    %20 = vector.load %arg4[%c0_30, %c0_31, %c0_32, %c1_33, %c0_34] : memref<1x1x2x19x16xbf16, #tpu.memory_space<vmem>>, vector<1x1x1x16x16xbf16>
    %21 = vector.shape_cast %20 : vector<1x1x1x16x16xbf16> to vector<16x16xbf16>
    %c0_35 = arith.constant 0 : index
    %c0_36 = arith.constant 0 : index
    %c3 = arith.constant 3 : index
    %c0_37 = arith.constant 0 : index
    %c0_38 = arith.constant 0 : index
    %22 = vector.load %arg17[%c0_35, %c0_36, %c3, %c0_37, %c0_38] : memref<1x7x7x16x8xbf16, #tpu.memory_space<vmem>>, vector<1x1x1x16x8xbf16>
    %23 = vector.shape_cast %22 : vector<1x1x1x16x8xbf16> to vector<16x8xbf16>
    %cst_39 = arith.constant dense<0.000000e+00> : vector<16x8xf32>
    %24 = tpu.matmul %21, %23, %cst_39 {dimension_numbers = #tpu.dot_dimension_numbers<[1], [0], [0], [1], [0, 0, 1, 1], [], []>} : vector<16x16xbf16>, vector<16x8xbf16>, vector<16x8xf32> -> vector<16x8xf32>
    %25 = arith.addf %19, %24 : vector<16x8xf32>
    %c0_40 = arith.constant 0 : index
    %c0_41 = arith.constant 0 : index
    %c0_42 = arith.constant 0 : index
    %c2_43 = arith.constant 2 : index
    %c0_44 = arith.constant 0 : index
    %26 = vector.load %arg3[%c0_40, %c0_41, %c0_42, %c2_43, %c0_44] : memref<1x1x2x19x16xbf16, #tpu.memory_space<vmem>>, vector<1x1x1x16x16xbf16>
    %27 = vector.shape_cast %26 : vector<1x1x1x16x16xbf16> to vector<16x16xbf16>
    %c0_45 = arith.constant 0 : index
    %c0_46 = arith.constant 0 : index
    %c4 = arith.constant 4 : index
    %c0_47 = arith.constant 0 : index
    %c0_48 = arith.constant 0 : index
    %28 = vector.load %arg17[%c0_45, %c0_46, %c4, %c0_47, %c0_48] : memref<1x7x7x16x8xbf16, #tpu.memory_space<vmem>>, vector<1x1x1x16x8xbf16>
    %29 = vector.shape_cast %28 : vector<1x1x1x16x8xbf16> to vector<16x8xbf16>
    %cst_49 = arith.constant dense<0.000000e+00> : vector<16x8xf32>
    %30 = tpu.matmul %27, %29, %cst_49 {dimension_numbers = #tpu.dot_dimension_numbers<[1], [0], [0], [1], [0, 0, 1, 1], [], []>} : vector<16x16xbf16>, vector<16x8xbf16>, vector<16x8xf32> -> vector<16x8xf32>
    %31 = arith.addf %25, %30 : vector<16x8xf32>
    %c0_50 = arith.constant 0 : index
    %c0_51 = arith.constant 0 : index
    %c0_52 = arith.constant 0 : index
    %c2_53 = arith.constant 2 : index
    %c0_54 = arith.constant 0 : index
    %32 = vector.load %arg4[%c0_50, %c0_51, %c0_52, %c2_53, %c0_54] : memref<1x1x2x19x16xbf16, #tpu.memory_space<vmem>>, vector<1x1x1x16x16xbf16>
    %33 = vector.shape_cast %32 : vector<1x1x1x16x16xbf16> to vector<16x16xbf16>
    %c0_55 = arith.constant 0 : index
    %c0_56 = arith.constant 0 : index
    %c5 = arith.constant 5 : index
    %c0_57 = arith.constant 0 : index
    %c0_58 = arith.constant 0 : index
    %34 = vector.load %arg17[%c0_55, %c0_56, %c5, %c0_57, %c0_58] : memref<1x7x7x16x8xbf16, #tpu.memory_space<vmem>>, vector<1x1x1x16x8xbf16>
    %35 = vector.shape_cast %34 : vector<1x1x1x16x8xbf16> to vector<16x8xbf16>
    %cst_59 = arith.constant dense<0.000000e+00> : vector<16x8xf32>
    %36 = tpu.matmul %33, %35, %cst_59 {dimension_numbers = #tpu.dot_dimension_numbers<[1], [0], [0], [1], [0, 0, 1, 1], [], []>} : vector<16x16xbf16>, vector<16x8xbf16>, vector<16x8xf32> -> vector<16x8xf32>
    %37 = arith.addf %31, %36 : vector<16x8xf32>
    %c0_60 = arith.constant 0 : index
    %c0_61 = arith.constant 0 : index
    %c0_62 = arith.constant 0 : index
    %c3_63 = arith.constant 3 : index
    %c0_64 = arith.constant 0 : index
    %38 = vector.load %arg3[%c0_60, %c0_61, %c0_62, %c3_63, %c0_64] : memref<1x1x2x19x16xbf16, #tpu.memory_space<vmem>>, vector<1x1x1x16x16xbf16>
    %39 = vector.shape_cast %38 : vector<1x1x1x16x16xbf16> to vector<16x16xbf16>
    %c0_65 = arith.constant 0 : index
    %c0_66 = arith.constant 0 : index
    %c6 = arith.constant 6 : index
    %c0_67 = arith.constant 0 : index
    %c0_68 = arith.constant 0 : index
    %40 = vector.load %arg17[%c0_65, %c0_66, %c6, %c0_67, %c0_68] : memref<1x7x7x16x8xbf16, #tpu.memory_space<vmem>>, vector<1x1x1x16x8xbf16>
    %41 = vector.shape_cast %40 : vector<1x1x1x16x8xbf16> to vector<16x8xbf16>
    %cst_69 = arith.constant dense<0.000000e+00> : vector<16x8xf32>
    %42 = tpu.matmul %39, %41, %cst_69 {dimension_numbers = #tpu.dot_dimension_numbers<[1], [0], [0], [1], [0, 0, 1, 1], [], []>} : vector<16x16xbf16>, vector<16x8xbf16>, vector<16x8xf32> -> vector<16x8xf32>
    %43 = arith.addf %37, %42 : vector<16x8xf32>
    %c0_70 = arith.constant 0 : index
    %c0_71 = arith.constant 0 : index
    %c0_72 = arith.constant 0 : index
    %c0_73 = arith.constant 0 : index
    %c0_74 = arith.constant 0 : index
    %44 = vector.load %arg5[%c0_70, %c0_71, %c0_72, %c0_73, %c0_74] : memref<1x1x2x19x16xbf16, #tpu.memory_space<vmem>>, vector<1x1x1x16x16xbf16>
    %45 = vector.shape_cast %44 : vector<1x1x1x16x16xbf16> to vector<16x16xbf16>
    %c0_75 = arith.constant 0 : index
    %c1_76 = arith.constant 1 : index
    %c0_77 = arith.constant 0 : index
    %c0_78 = arith.constant 0 : index
    %c0_79 = arith.constant 0 : index
    %46 = vector.load %arg17[%c0_75, %c1_76, %c0_77, %c0_78, %c0_79] : memref<1x7x7x16x8xbf16, #tpu.memory_space<vmem>>, vector<1x1x1x16x8xbf16>
    %47 = vector.shape_cast %46 : vector<1x1x1x16x8xbf16> to vector<16x8xbf16>
    %cst_80 = arith.constant dense<0.000000e+00> : vector<16x8xf32>
    %48 = tpu.matmul %45, %47, %cst_80 {dimension_numbers = #tpu.dot_dimension_numbers<[1], [0], [0], [1], [0, 0, 1, 1], [], []>} : vector<16x16xbf16>, vector<16x8xbf16>, vector<16x8xf32> -> vector<16x8xf32>
    %49 = arith.addf %43, %48 : vector<16x8xf32>
    %c0_81 = arith.constant 0 : index
    %c0_82 = arith.constant 0 : index
    %c0_83 = arith.constant 0 : index
    %c0_84 = arith.constant 0 : index
    %c0_85 = arith.constant 0 : index
    %50 = vector.load %arg6[%c0_81, %c0_82, %c0_83, %c0_84, %c0_85] : memref<1x1x2x19x16xbf16, #tpu.memory_space<vmem>>, vector<1x1x1x16x16xbf16>
    %51 = vector.shape_cast %50 : vector<1x1x1x16x16xbf16> to vector<16x16xbf16>
    %c0_86 = arith.constant 0 : index
    %c1_87 = arith.constant 1 : index
    %c1_88 = arith.constant 1 : index
    %c0_89 = arith.constant 0 : index
    %c0_90 = arith.constant 0 : index
    %52 = vector.load %arg17[%c0_86, %c1_87, %c1_88, %c0_89, %c0_90] : memref<1x7x7x16x8xbf16, #tpu.memory_space<vmem>>, vector<1x1x1x16x8xbf16>
    %53 = vector.shape_cast %52 : vector<1x1x1x16x8xbf16> to vector<16x8xbf16>
    %cst_91 = arith.constant dense<0.000000e+00> : vector<16x8xf32>
    %54 = tpu.matmul %51, %53, %cst_91 {dimension_numbers = #tpu.dot_dimension_numbers<[1], [0], [0], [1], [0, 0, 1, 1], [], []>} : vector<16x16xbf16>, vector<16x8xbf16>, vector<16x8xf32> -> vector<16x8xf32>
    %55 = arith.addf %49, %54 : vector<16x8xf32>
    %c0_92 = arith.constant 0 : index
    %c0_93 = arith.constant 0 : index
    %c0_94 = arith.constant 0 : index
    %c1_95 = arith.constant 1 : index
    %c0_96 = arith.constant 0 : index
    %56 = vector.load %arg5[%c0_92, %c0_93, %c0_94, %c1_95, %c0_96] : memref<1x1x2x19x16xbf16, #tpu.memory_space<vmem>>, vector<1x1x1x16x16xbf16>
    %57 = vector.shape_cast %56 : vector<1x1x1x16x16xbf16> to vector<16x16xbf16>
    %c0_97 = arith.constant 0 : index
    %c1_98 = arith.constant 1 : index
    %c2_99 = arith.constant 2 : index
    %c0_100 = arith.constant 0 : index
    %c0_101 = arith.constant 0 : index
    %58 = vector.load %arg17[%c0_97, %c1_98, %c2_99, %c0_100, %c0_101] : memref<1x7x7x16x8xbf16, #tpu.memory_space<vmem>>, vector<1x1x1x16x8xbf16>
    %59 = vector.shape_cast %58 : vector<1x1x1x16x8xbf16> to vector<16x8xbf16>
    %cst_102 = arith.constant dense<0.000000e+00> : vector<16x8xf32>
    %60 = tpu.matmul %57, %59, %cst_102 {dimension_numbers = #tpu.dot_dimension_numbers<[1], [0], [0], [1], [0, 0, 1, 1], [], []>} : vector<16x16xbf16>, vector<16x8xbf16>, vector<16x8xf32> -> vector<16x8xf32>
    %61 = arith.addf %55, %60 : vector<16x8xf32>
    %c0_103 = arith.constant 0 : index
    %c0_104 = arith.constant 0 : index
    %c0_105 = arith.constant 0 : index
    %c1_106 = arith.constant 1 : index
    %c0_107 = arith.constant 0 : index
    %62 = vector.load %arg6[%c0_103, %c0_104, %c0_105, %c1_106, %c0_107] : memref<1x1x2x19x16xbf16, #tpu.memory_space<vmem>>, vector<1x1x1x16x16xbf16>
    %63 = vector.shape_cast %62 : vector<1x1x1x16x16xbf16> to vector<16x16xbf16>
    %c0_108 = arith.constant 0 : index
    %c1_109 = arith.constant 1 : index
    %c3_110 = arith.constant 3 : index
    %c0_111 = arith.constant 0 : index
    %c0_112 = arith.constant 0 : index
    %64 = vector.load %arg17[%c0_108, %c1_109, %c3_110, %c0_111, %c0_112] : memref<1x7x7x16x8xbf16, #tpu.memory_space<vmem>>, vector<1x1x1x16x8xbf16>
    %65 = vector.shape_cast %64 : vector<1x1x1x16x8xbf16> to vector<16x8xbf16>
    %cst_113 = arith.constant dense<0.000000e+00> : vector<16x8xf32>
    %66 = tpu.matmul %63, %65, %cst_113 {dimension_numbers = #tpu.dot_dimension_numbers<[1], [0], [0], [1], [0, 0, 1, 1], [], []>} : vector<16x16xbf16>, vector<16x8xbf16>, vector<16x8xf32> -> vector<16x8xf32>
    %67 = arith.addf %61, %66 : vector<16x8xf32>
    %c0_114 = arith.constant 0 : index
    %c0_115 = arith.constant 0 : index
    %c0_116 = arith.constant 0 : index
    %c2_117 = arith.constant 2 : index
    %c0_118 = arith.constant 0 : index
    %68 = vector.load %arg5[%c0_114, %c0_115, %c0_116, %c2_117, %c0_118] : memref<1x1x2x19x16xbf16, #tpu.memory_space<vmem>>, vector<1x1x1x16x16xbf16>
    %69 = vector.shape_cast %68 : vector<1x1x1x16x16xbf16> to vector<16x16xbf16>
    %c0_119 = arith.constant 0 : index
    %c1_120 = arith.constant 1 : index
    %c4_121 = arith.constant 4 : index
    %c0_122 = arith.constant 0 : index
    %c0_123 = arith.constant 0 : index
    %70 = vector.load %arg17[%c0_119, %c1_120, %c4_121, %c0_122, %c0_123] : memref<1x7x7x16x8xbf16, #tpu.memory_space<vmem>>, vector<1x1x1x16x8xbf16>
    %71 = vector.shape_cast %70 : vector<1x1x1x16x8xbf16> to vector<16x8xbf16>
    %cst_124 = arith.constant dense<0.000000e+00> : vector<16x8xf32>
    %72 = tpu.matmul %69, %71, %cst_124 {dimension_numbers = #tpu.dot_dimension_numbers<[1], [0], [0], [1], [0, 0, 1, 1], [], []>} : vector<16x16xbf16>, vector<16x8xbf16>, vector<16x8xf32> -> vector<16x8xf32>
    %73 = arith.addf %67, %72 : vector<16x8xf32>
    %c0_125 = arith.constant 0 : index
    %c0_126 = arith.constant 0 : index
    %c0_127 = arith.constant 0 : index
    %c2_128 = arith.constant 2 : index
    %c0_129 = arith.constant 0 : index
    %74 = vector.load %arg6[%c0_125, %c0_126, %c0_127, %c2_128, %c0_129] : memref<1x1x2x19x16xbf16, #tpu.memory_space<vmem>>, vector<1x1x1x16x16xbf16>
    %75 = vector.shape_cast %74 : vector<1x1x1x16x16xbf16> to vector<16x16xbf16>
    %c0_130 = arith.constant 0 : index
    %c1_131 = arith.constant 1 : index
    %c5_132 = arith.constant 5 : index
    %c0_133 = arith.constant 0 : index
    %c0_134 = arith.constant 0 : index
    %76 = vector.load %arg17[%c0_130, %c1_131, %c5_132, %c0_133, %c0_134] : memref<1x7x7x16x8xbf16, #tpu.memory_space<vmem>>, vector<1x1x1x16x8xbf16>
    %77 = vector.shape_cast %76 : vector<1x1x1x16x8xbf16> to vector<16x8xbf16>
    %cst_135 = arith.constant dense<0.000000e+00> : vector<16x8xf32>
    %78 = tpu.matmul %75, %77, %cst_135 {dimension_numbers = #tpu.dot_dimension_numbers<[1], [0], [0], [1], [0, 0, 1, 1], [], []>} : vector<16x16xbf16>, vector<16x8xbf16>, vector<16x8xf32> -> vector<16x8xf32>
    %79 = arith.addf %73, %78 : vector<16x8xf32>
    %c0_136 = arith.constant 0 : index
    %c0_137 = arith.constant 0 : index
    %c0_138 = arith.constant 0 : index
    %c3_139 = arith.constant 3 : index
    %c0_140 = arith.constant 0 : index
    %80 = vector.load %arg5[%c0_136, %c0_137, %c0_138, %c3_139, %c0_140] : memref<1x1x2x19x16xbf16, #tpu.memory_space<vmem>>, vector<1x1x1x16x16xbf16>
    %81 = vector.shape_cast %80 : vector<1x1x1x16x16xbf16> to vector<16x16xbf16>
    %c0_141 = arith.constant 0 : index
    %c1_142 = arith.constant 1 : index
    %c6_143 = arith.constant 6 : index
    %c0_144 = arith.constant 0 : index
    %c0_145 = arith.constant 0 : index
    %82 = vector.load %arg17[%c0_141, %c1_142, %c6_143, %c0_144, %c0_145] : memref<1x7x7x16x8xbf16, #tpu.memory_space<vmem>>, vector<1x1x1x16x8xbf16>
    %83 = vector.shape_cast %82 : vector<1x1x1x16x8xbf16> to vector<16x8xbf16>
    %cst_146 = arith.constant dense<0.000000e+00> : vector<16x8xf32>
    %84 = tpu.matmul %81, %83, %cst_146 {dimension_numbers = #tpu.dot_dimension_numbers<[1], [0], [0], [1], [0, 0, 1, 1], [], []>} : vector<16x16xbf16>, vector<16x8xbf16>, vector<16x8xf32> -> vector<16x8xf32>
    %85 = arith.addf %79, %84 : vector<16x8xf32>
    %c0_147 = arith.constant 0 : index
    %c0_148 = arith.constant 0 : index
    %c0_149 = arith.constant 0 : index
    %c0_150 = arith.constant 0 : index
    %c0_151 = arith.constant 0 : index
    %86 = vector.load %arg7[%c0_147, %c0_148, %c0_149, %c0_150, %c0_151] : memref<1x1x2x19x16xbf16, #tpu.memory_space<vmem>>, vector<1x1x1x16x16xbf16>
    %87 = vector.shape_cast %86 : vector<1x1x1x16x16xbf16> to vector<16x16xbf16>
    %c0_152 = arith.constant 0 : index
    %c2_153 = arith.constant 2 : index
    %c0_154 = arith.constant 0 : index
    %c0_155 = arith.constant 0 : index
    %c0_156 = arith.constant 0 : index
    %88 = vector.load %arg17[%c0_152, %c2_153, %c0_154, %c0_155, %c0_156] : memref<1x7x7x16x8xbf16, #tpu.memory_space<vmem>>, vector<1x1x1x16x8xbf16>
    %89 = vector.shape_cast %88 : vector<1x1x1x16x8xbf16> to vector<16x8xbf16>
    %cst_157 = arith.constant dense<0.000000e+00> : vector<16x8xf32>
    %90 = tpu.matmul %87, %89, %cst_157 {dimension_numbers = #tpu.dot_dimension_numbers<[1], [0], [0], [1], [0, 0, 1, 1], [], []>} : vector<16x16xbf16>, vector<16x8xbf16>, vector<16x8xf32> -> vector<16x8xf32>
    %91 = arith.addf %85, %90 : vector<16x8xf32>
    %c0_158 = arith.constant 0 : index
    %c0_159 = arith.constant 0 : index
    %c0_160 = arith.constant 0 : index
    %c0_161 = arith.constant 0 : index
    %c0_162 = arith.constant 0 : index
    %92 = vector.load %arg8[%c0_158, %c0_159, %c0_160, %c0_161, %c0_162] : memref<1x1x2x19x16xbf16, #tpu.memory_space<vmem>>, vector<1x1x1x16x16xbf16>
    %93 = vector.shape_cast %92 : vector<1x1x1x16x16xbf16> to vector<16x16xbf16>
    %c0_163 = arith.constant 0 : index
    %c2_164 = arith.constant 2 : index
    %c1_165 = arith.constant 1 : index
    %c0_166 = arith.constant 0 : index
    %c0_167 = arith.constant 0 : index
    %94 = vector.load %arg17[%c0_163, %c2_164, %c1_165, %c0_166, %c0_167] : memref<1x7x7x16x8xbf16, #tpu.memory_space<vmem>>, vector<1x1x1x16x8xbf16>
    %95 = vector.shape_cast %94 : vector<1x1x1x16x8xbf16> to vector<16x8xbf16>
    %cst_168 = arith.constant dense<0.000000e+00> : vector<16x8xf32>
    %96 = tpu.matmul %93, %95, %cst_168 {dimension_numbers = #tpu.dot_dimension_numbers<[1], [0], [0], [1], [0, 0, 1, 1], [], []>} : vector<16x16xbf16>, vector<16x8xbf16>, vector<16x8xf32> -> vector<16x8xf32>
    %97 = arith.addf %91, %96 : vector<16x8xf32>
    %c0_169 = arith.constant 0 : index
    %c0_170 = arith.constant 0 : index
    %c0_171 = arith.constant 0 : index
    %c1_172 = arith.constant 1 : index
    %c0_173 = arith.constant 0 : index
    %98 = vector.load %arg7[%c0_169, %c0_170, %c0_171, %c1_172, %c0_173] : memref<1x1x2x19x16xbf16, #tpu.memory_space<vmem>>, vector<1x1x1x16x16xbf16>
    %99 = vector.shape_cast %98 : vector<1x1x1x16x16xbf16> to vector<16x16xbf16>
    %c0_174 = arith.constant 0 : index
    %c2_175 = arith.constant 2 : index
    %c2_176 = arith.constant 2 : index
    %c0_177 = arith.constant 0 : index
    %c0_178 = arith.constant 0 : index
    %100 = vector.load %arg17[%c0_174, %c2_175, %c2_176, %c0_177, %c0_178] : memref<1x7x7x16x8xbf16, #tpu.memory_space<vmem>>, vector<1x1x1x16x8xbf16>
    %101 = vector.shape_cast %100 : vector<1x1x1x16x8xbf16> to vector<16x8xbf16>
    %cst_179 = arith.constant dense<0.000000e+00> : vector<16x8xf32>
    %102 = tpu.matmul %99, %101, %cst_179 {dimension_numbers = #tpu.dot_dimension_numbers<[1], [0], [0], [1], [0, 0, 1, 1], [], []>} : vector<16x16xbf16>, vector<16x8xbf16>, vector<16x8xf32> -> vector<16x8xf32>
    %103 = arith.addf %97, %102 : vector<16x8xf32>
    %c0_180 = arith.constant 0 : index
    %c0_181 = arith.constant 0 : index
    %c0_182 = arith.constant 0 : index
    %c1_183 = arith.constant 1 : index
    %c0_184 = arith.constant 0 : index
    %104 = vector.load %arg8[%c0_180, %c0_181, %c0_182, %c1_183, %c0_184] : memref<1x1x2x19x16xbf16, #tpu.memory_space<vmem>>, vector<1x1x1x16x16xbf16>
    %105 = vector.shape_cast %104 : vector<1x1x1x16x16xbf16> to vector<16x16xbf16>
    %c0_185 = arith.constant 0 : index
    %c2_186 = arith.constant 2 : index
    %c3_187 = arith.constant 3 : index
    %c0_188 = arith.constant 0 : index
    %c0_189 = arith.constant 0 : index
    %106 = vector.load %arg17[%c0_185, %c2_186, %c3_187, %c0_188, %c0_189] : memref<1x7x7x16x8xbf16, #tpu.memory_space<vmem>>, vector<1x1x1x16x8xbf16>
    %107 = vector.shape_cast %106 : vector<1x1x1x16x8xbf16> to vector<16x8xbf16>
    %cst_190 = arith.constant dense<0.000000e+00> : vector<16x8xf32>
    %108 = tpu.matmul %105, %107, %cst_190 {dimension_numbers = #tpu.dot_dimension_numbers<[1], [0], [0], [1], [0, 0, 1, 1], [], []>} : vector<16x16xbf16>, vector<16x8xbf16>, vector<16x8xf32> -> vector<16x8xf32>
    %109 = arith.addf %103, %108 : vector<16x8xf32>
    %c0_191 = arith.constant 0 : index
    %c0_192 = arith.constant 0 : index
    %c0_193 = arith.constant 0 : index
    %c2_194 = arith.constant 2 : index
    %c0_195 = arith.constant 0 : index
    %110 = vector.load %arg7[%c0_191, %c0_192, %c0_193, %c2_194, %c0_195] : memref<1x1x2x19x16xbf16, #tpu.memory_space<vmem>>, vector<1x1x1x16x16xbf16>
    %111 = vector.shape_cast %110 : vector<1x1x1x16x16xbf16> to vector<16x16xbf16>
    %c0_196 = arith.constant 0 : index
    %c2_197 = arith.constant 2 : index
    %c4_198 = arith.constant 4 : index
    %c0_199 = arith.constant 0 : index
    %c0_200 = arith.constant 0 : index
    %112 = vector.load %arg17[%c0_196, %c2_197, %c4_198, %c0_199, %c0_200] : memref<1x7x7x16x8xbf16, #tpu.memory_space<vmem>>, vector<1x1x1x16x8xbf16>
    %113 = vector.shape_cast %112 : vector<1x1x1x16x8xbf16> to vector<16x8xbf16>
    %cst_201 = arith.constant dense<0.000000e+00> : vector<16x8xf32>
    %114 = tpu.matmul %111, %113, %cst_201 {dimension_numbers = #tpu.dot_dimension_numbers<[1], [0], [0], [1], [0, 0, 1, 1], [], []>} : vector<16x16xbf16>, vector<16x8xbf16>, vector<16x8xf32> -> vector<16x8xf32>
    %115 = arith.addf %109, %114 : vector<16x8xf32>
    %c0_202 = arith.constant 0 : index
    %c0_203 = arith.constant 0 : index
    %c0_204 = arith.constant 0 : index
    %c2_205 = arith.constant 2 : index
    %c0_206 = arith.constant 0 : index
    %116 = vector.load %arg8[%c0_202, %c0_203, %c0_204, %c2_205, %c0_206] : memref<1x1x2x19x16xbf16, #tpu.memory_space<vmem>>, vector<1x1x1x16x16xbf16>
    %117 = vector.shape_cast %116 : vector<1x1x1x16x16xbf16> to vector<16x16xbf16>
    %c0_207 = arith.constant 0 : index
    %c2_208 = arith.constant 2 : index
    %c5_209 = arith.constant 5 : index
    %c0_210 = arith.constant 0 : index
    %c0_211 = arith.constant 0 : index
    %118 = vector.load %arg17[%c0_207, %c2_208, %c5_209, %c0_210, %c0_211] : memref<1x7x7x16x8xbf16, #tpu.memory_space<vmem>>, vector<1x1x1x16x8xbf16>
    %119 = vector.shape_cast %118 : vector<1x1x1x16x8xbf16> to vector<16x8xbf16>
    %cst_212 = arith.constant dense<0.000000e+00> : vector<16x8xf32>
    %120 = tpu.matmul %117, %119, %cst_212 {dimension_numbers = #tpu.dot_dimension_numbers<[1], [0], [0], [1], [0, 0, 1, 1], [], []>} : vector<16x16xbf16>, vector<16x8xbf16>, vector<16x8xf32> -> vector<16x8xf32>
    %121 = arith.addf %115, %120 : vector<16x8xf32>
    %c0_213 = arith.constant 0 : index
    %c0_214 = arith.constant 0 : index
    %c0_215 = arith.constant 0 : index
    %c3_216 = arith.constant 3 : index
    %c0_217 = arith.constant 0 : index
    %122 = vector.load %arg7[%c0_213, %c0_214, %c0_215, %c3_216, %c0_217] : memref<1x1x2x19x16xbf16, #tpu.memory_space<vmem>>, vector<1x1x1x16x16xbf16>
    %123 = vector.shape_cast %122 : vector<1x1x1x16x16xbf16> to vector<16x16xbf16>
    %c0_218 = arith.constant 0 : index
    %c2_219 = arith.constant 2 : index
    %c6_220 = arith.constant 6 : index
    %c0_221 = arith.constant 0 : index
    %c0_222 = arith.constant 0 : index
    %124 = vector.load %arg17[%c0_218, %c2_219, %c6_220, %c0_221, %c0_222] : memref<1x7x7x16x8xbf16, #tpu.memory_space<vmem>>, vector<1x1x1x16x8xbf16>
    %125 = vector.shape_cast %124 : vector<1x1x1x16x8xbf16> to vector<16x8xbf16>
    %cst_223 = arith.constant dense<0.000000e+00> : vector<16x8xf32>
    %126 = tpu.matmul %123, %125, %cst_223 {dimension_numbers = #tpu.dot_dimension_numbers<[1], [0], [0], [1], [0, 0, 1, 1], [], []>} : vector<16x16xbf16>, vector<16x8xbf16>, vector<16x8xf32> -> vector<16x8xf32>
    %127 = arith.addf %121, %126 : vector<16x8xf32>
    %c0_224 = arith.constant 0 : index
    %c0_225 = arith.constant 0 : index
    %c0_226 = arith.constant 0 : index
    %c0_227 = arith.constant 0 : index
    %c0_228 = arith.constant 0 : index
    %128 = vector.load %arg9[%c0_224, %c0_225, %c0_226, %c0_227, %c0_228] : memref<1x1x2x19x16xbf16, #tpu.memory_space<vmem>>, vector<1x1x1x16x16xbf16>
    %129 = vector.shape_cast %128 : vector<1x1x1x16x16xbf16> to vector<16x16xbf16>
    %c0_229 = arith.constant 0 : index
    %c3_230 = arith.constant 3 : index
    %c0_231 = arith.constant 0 : index
    %c0_232 = arith.constant 0 : index
    %c0_233 = arith.constant 0 : index
    %130 = vector.load %arg17[%c0_229, %c3_230, %c0_231, %c0_232, %c0_233] : memref<1x7x7x16x8xbf16, #tpu.memory_space<vmem>>, vector<1x1x1x16x8xbf16>
    %131 = vector.shape_cast %130 : vector<1x1x1x16x8xbf16> to vector<16x8xbf16>
    %cst_234 = arith.constant dense<0.000000e+00> : vector<16x8xf32>
    %132 = tpu.matmul %129, %131, %cst_234 {dimension_numbers = #tpu.dot_dimension_numbers<[1], [0], [0], [1], [0, 0, 1, 1], [], []>} : vector<16x16xbf16>, vector<16x8xbf16>, vector<16x8xf32> -> vector<16x8xf32>
    %133 = arith.addf %127, %132 : vector<16x8xf32>
    %c0_235 = arith.constant 0 : index
    %c0_236 = arith.constant 0 : index
    %c0_237 = arith.constant 0 : index
    %c0_238 = arith.constant 0 : index
    %c0_239 = arith.constant 0 : index
    %134 = vector.load %arg10[%c0_235, %c0_236, %c0_237, %c0_238, %c0_239] : memref<1x1x2x19x16xbf16, #tpu.memory_space<vmem>>, vector<1x1x1x16x16xbf16>
    %135 = vector.shape_cast %134 : vector<1x1x1x16x16xbf16> to vector<16x16xbf16>
    %c0_240 = arith.constant 0 : index
    %c3_241 = arith.constant 3 : index
    %c1_242 = arith.constant 1 : index
    %c0_243 = arith.constant 0 : index
    %c0_244 = arith.constant 0 : index
    %136 = vector.load %arg17[%c0_240, %c3_241, %c1_242, %c0_243, %c0_244] : memref<1x7x7x16x8xbf16, #tpu.memory_space<vmem>>, vector<1x1x1x16x8xbf16>
    %137 = vector.shape_cast %136 : vector<1x1x1x16x8xbf16> to vector<16x8xbf16>
    %cst_245 = arith.constant dense<0.000000e+00> : vector<16x8xf32>
    %138 = tpu.matmul %135, %137, %cst_245 {dimension_numbers = #tpu.dot_dimension_numbers<[1], [0], [0], [1], [0, 0, 1, 1], [], []>} : vector<16x16xbf16>, vector<16x8xbf16>, vector<16x8xf32> -> vector<16x8xf32>
    %139 = arith.addf %133, %138 : vector<16x8xf32>
    %c0_246 = arith.constant 0 : index
    %c0_247 = arith.constant 0 : index
    %c0_248 = arith.constant 0 : index
    %c1_249 = arith.constant 1 : index
    %c0_250 = arith.constant 0 : index
    %140 = vector.load %arg9[%c0_246, %c0_247, %c0_248, %c1_249, %c0_250] : memref<1x1x2x19x16xbf16, #tpu.memory_space<vmem>>, vector<1x1x1x16x16xbf16>
    %141 = vector.shape_cast %140 : vector<1x1x1x16x16xbf16> to vector<16x16xbf16>
    %c0_251 = arith.constant 0 : index
    %c3_252 = arith.constant 3 : index
    %c2_253 = arith.constant 2 : index
    %c0_254 = arith.constant 0 : index
    %c0_255 = arith.constant 0 : index
    %142 = vector.load %arg17[%c0_251, %c3_252, %c2_253, %c0_254, %c0_255] : memref<1x7x7x16x8xbf16, #tpu.memory_space<vmem>>, vector<1x1x1x16x8xbf16>
    %143 = vector.shape_cast %142 : vector<1x1x1x16x8xbf16> to vector<16x8xbf16>
    %cst_256 = arith.constant dense<0.000000e+00> : vector<16x8xf32>
    %144 = tpu.matmul %141, %143, %cst_256 {dimension_numbers = #tpu.dot_dimension_numbers<[1], [0], [0], [1], [0, 0, 1, 1], [], []>} : vector<16x16xbf16>, vector<16x8xbf16>, vector<16x8xf32> -> vector<16x8xf32>
    %145 = arith.addf %139, %144 : vector<16x8xf32>
    %c0_257 = arith.constant 0 : index
    %c0_258 = arith.constant 0 : index
    %c0_259 = arith.constant 0 : index
    %c1_260 = arith.constant 1 : index
    %c0_261 = arith.constant 0 : index
    %146 = vector.load %arg10[%c0_257, %c0_258, %c0_259, %c1_260, %c0_261] : memref<1x1x2x19x16xbf16, #tpu.memory_space<vmem>>, vector<1x1x1x16x16xbf16>
    %147 = vector.shape_cast %146 : vector<1x1x1x16x16xbf16> to vector<16x16xbf16>
    %c0_262 = arith.constant 0 : index
    %c3_263 = arith.constant 3 : index
    %c3_264 = arith.constant 3 : index
    %c0_265 = arith.constant 0 : index
    %c0_266 = arith.constant 0 : index
    %148 = vector.load %arg17[%c0_262, %c3_263, %c3_264, %c0_265, %c0_266] : memref<1x7x7x16x8xbf16, #tpu.memory_space<vmem>>, vector<1x1x1x16x8xbf16>
    %149 = vector.shape_cast %148 : vector<1x1x1x16x8xbf16> to vector<16x8xbf16>
    %cst_267 = arith.constant dense<0.000000e+00> : vector<16x8xf32>
    %150 = tpu.matmul %147, %149, %cst_267 {dimension_numbers = #tpu.dot_dimension_numbers<[1], [0], [0], [1], [0, 0, 1, 1], [], []>} : vector<16x16xbf16>, vector<16x8xbf16>, vector<16x8xf32> -> vector<16x8xf32>
    %151 = arith.addf %145, %150 : vector<16x8xf32>
    %c0_268 = arith.constant 0 : index
    %c0_269 = arith.constant 0 : index
    %c0_270 = arith.constant 0 : index
    %c2_271 = arith.constant 2 : index
    %c0_272 = arith.constant 0 : index
    %152 = vector.load %arg9[%c0_268, %c0_269, %c0_270, %c2_271, %c0_272] : memref<1x1x2x19x16xbf16, #tpu.memory_space<vmem>>, vector<1x1x1x16x16xbf16>
    %153 = vector.shape_cast %152 : vector<1x1x1x16x16xbf16> to vector<16x16xbf16>
    %c0_273 = arith.constant 0 : index
    %c3_274 = arith.constant 3 : index
    %c4_275 = arith.constant 4 : index
    %c0_276 = arith.constant 0 : index
    %c0_277 = arith.constant 0 : index
    %154 = vector.load %arg17[%c0_273, %c3_274, %c4_275, %c0_276, %c0_277] : memref<1x7x7x16x8xbf16, #tpu.memory_space<vmem>>, vector<1x1x1x16x8xbf16>
    %155 = vector.shape_cast %154 : vector<1x1x1x16x8xbf16> to vector<16x8xbf16>
    %cst_278 = arith.constant dense<0.000000e+00> : vector<16x8xf32>
    %156 = tpu.matmul %153, %155, %cst_278 {dimension_numbers = #tpu.dot_dimension_numbers<[1], [0], [0], [1], [0, 0, 1, 1], [], []>} : vector<16x16xbf16>, vector<16x8xbf16>, vector<16x8xf32> -> vector<16x8xf32>
    %157 = arith.addf %151, %156 : vector<16x8xf32>
    %c0_279 = arith.constant 0 : index
    %c0_280 = arith.constant 0 : index
    %c0_281 = arith.constant 0 : index
    %c2_282 = arith.constant 2 : index
    %c0_283 = arith.constant 0 : index
    %158 = vector.load %arg10[%c0_279, %c0_280, %c0_281, %c2_282, %c0_283] : memref<1x1x2x19x16xbf16, #tpu.memory_space<vmem>>, vector<1x1x1x16x16xbf16>
    %159 = vector.shape_cast %158 : vector<1x1x1x16x16xbf16> to vector<16x16xbf16>
    %c0_284 = arith.constant 0 : index
    %c3_285 = arith.constant 3 : index
    %c5_286 = arith.constant 5 : index
    %c0_287 = arith.constant 0 : index
    %c0_288 = arith.constant 0 : index
    %160 = vector.load %arg17[%c0_284, %c3_285, %c5_286, %c0_287, %c0_288] : memref<1x7x7x16x8xbf16, #tpu.memory_space<vmem>>, vector<1x1x1x16x8xbf16>
    %161 = vector.shape_cast %160 : vector<1x1x1x16x8xbf16> to vector<16x8xbf16>
    %cst_289 = arith.constant dense<0.000000e+00> : vector<16x8xf32>
    %162 = tpu.matmul %159, %161, %cst_289 {dimension_numbers = #tpu.dot_dimension_numbers<[1], [0], [0], [1], [0, 0, 1, 1], [], []>} : vector<16x16xbf16>, vector<16x8xbf16>, vector<16x8xf32> -> vector<16x8xf32>
    %163 = arith.addf %157, %162 : vector<16x8xf32>
    %c0_290 = arith.constant 0 : index
    %c0_291 = arith.constant 0 : index
    %c0_292 = arith.constant 0 : index
    %c3_293 = arith.constant 3 : index
    %c0_294 = arith.constant 0 : index
    %164 = vector.load %arg9[%c0_290, %c0_291, %c0_292, %c3_293, %c0_294] : memref<1x1x2x19x16xbf16, #tpu.memory_space<vmem>>, vector<1x1x1x16x16xbf16>
    %165 = vector.shape_cast %164 : vector<1x1x1x16x16xbf16> to vector<16x16xbf16>
    %c0_295 = arith.constant 0 : index
    %c3_296 = arith.constant 3 : index
    %c6_297 = arith.constant 6 : index
    %c0_298 = arith.constant 0 : index
    %c0_299 = arith.constant 0 : index
    %166 = vector.load %arg17[%c0_295, %c3_296, %c6_297, %c0_298, %c0_299] : memref<1x7x7x16x8xbf16, #tpu.memory_space<vmem>>, vector<1x1x1x16x8xbf16>
    %167 = vector.shape_cast %166 : vector<1x1x1x16x8xbf16> to vector<16x8xbf16>
    %cst_300 = arith.constant dense<0.000000e+00> : vector<16x8xf32>
    %168 = tpu.matmul %165, %167, %cst_300 {dimension_numbers = #tpu.dot_dimension_numbers<[1], [0], [0], [1], [0, 0, 1, 1], [], []>} : vector<16x16xbf16>, vector<16x8xbf16>, vector<16x8xf32> -> vector<16x8xf32>
    %169 = arith.addf %163, %168 : vector<16x8xf32>
    %c0_301 = arith.constant 0 : index
    %c0_302 = arith.constant 0 : index
    %c0_303 = arith.constant 0 : index
    %c0_304 = arith.constant 0 : index
    %c0_305 = arith.constant 0 : index
    %170 = vector.load %arg11[%c0_301, %c0_302, %c0_303, %c0_304, %c0_305] : memref<1x1x2x19x16xbf16, #tpu.memory_space<vmem>>, vector<1x1x1x16x16xbf16>
    %171 = vector.shape_cast %170 : vector<1x1x1x16x16xbf16> to vector<16x16xbf16>
    %c0_306 = arith.constant 0 : index
    %c4_307 = arith.constant 4 : index
    %c0_308 = arith.constant 0 : index
    %c0_309 = arith.constant 0 : index
    %c0_310 = arith.constant 0 : index
    %172 = vector.load %arg17[%c0_306, %c4_307, %c0_308, %c0_309, %c0_310] : memref<1x7x7x16x8xbf16, #tpu.memory_space<vmem>>, vector<1x1x1x16x8xbf16>
    %173 = vector.shape_cast %172 : vector<1x1x1x16x8xbf16> to vector<16x8xbf16>
    %cst_311 = arith.constant dense<0.000000e+00> : vector<16x8xf32>
    %174 = tpu.matmul %171, %173, %cst_311 {dimension_numbers = #tpu.dot_dimension_numbers<[1], [0], [0], [1], [0, 0, 1, 1], [], []>} : vector<16x16xbf16>, vector<16x8xbf16>, vector<16x8xf32> -> vector<16x8xf32>
    %175 = arith.addf %169, %174 : vector<16x8xf32>
    %c0_312 = arith.constant 0 : index
    %c0_313 = arith.constant 0 : index
    %c0_314 = arith.constant 0 : index
    %c0_315 = arith.constant 0 : index
    %c0_316 = arith.constant 0 : index
    %176 = vector.load %arg12[%c0_312, %c0_313, %c0_314, %c0_315, %c0_316] : memref<1x1x2x19x16xbf16, #tpu.memory_space<vmem>>, vector<1x1x1x16x16xbf16>
    %177 = vector.shape_cast %176 : vector<1x1x1x16x16xbf16> to vector<16x16xbf16>
    %c0_317 = arith.constant 0 : index
    %c4_318 = arith.constant 4 : index
    %c1_319 = arith.constant 1 : index
    %c0_320 = arith.constant 0 : index
    %c0_321 = arith.constant 0 : index
    %178 = vector.load %arg17[%c0_317, %c4_318, %c1_319, %c0_320, %c0_321] : memref<1x7x7x16x8xbf16, #tpu.memory_space<vmem>>, vector<1x1x1x16x8xbf16>
    %179 = vector.shape_cast %178 : vector<1x1x1x16x8xbf16> to vector<16x8xbf16>
    %cst_322 = arith.constant dense<0.000000e+00> : vector<16x8xf32>
    %180 = tpu.matmul %177, %179, %cst_322 {dimension_numbers = #tpu.dot_dimension_numbers<[1], [0], [0], [1], [0, 0, 1, 1], [], []>} : vector<16x16xbf16>, vector<16x8xbf16>, vector<16x8xf32> -> vector<16x8xf32>
    %181 = arith.addf %175, %180 : vector<16x8xf32>
    %c0_323 = arith.constant 0 : index
    %c0_324 = arith.constant 0 : index
    %c0_325 = arith.constant 0 : index
    %c1_326 = arith.constant 1 : index
    %c0_327 = arith.constant 0 : index
    %182 = vector.load %arg11[%c0_323, %c0_324, %c0_325, %c1_326, %c0_327] : memref<1x1x2x19x16xbf16, #tpu.memory_space<vmem>>, vector<1x1x1x16x16xbf16>
    %183 = vector.shape_cast %182 : vector<1x1x1x16x16xbf16> to vector<16x16xbf16>
    %c0_328 = arith.constant 0 : index
    %c4_329 = arith.constant 4 : index
    %c2_330 = arith.constant 2 : index
    %c0_331 = arith.constant 0 : index
    %c0_332 = arith.constant 0 : index
    %184 = vector.load %arg17[%c0_328, %c4_329, %c2_330, %c0_331, %c0_332] : memref<1x7x7x16x8xbf16, #tpu.memory_space<vmem>>, vector<1x1x1x16x8xbf16>
    %185 = vector.shape_cast %184 : vector<1x1x1x16x8xbf16> to vector<16x8xbf16>
    %cst_333 = arith.constant dense<0.000000e+00> : vector<16x8xf32>
    %186 = tpu.matmul %183, %185, %cst_333 {dimension_numbers = #tpu.dot_dimension_numbers<[1], [0], [0], [1], [0, 0, 1, 1], [], []>} : vector<16x16xbf16>, vector<16x8xbf16>, vector<16x8xf32> -> vector<16x8xf32>
    %187 = arith.addf %181, %186 : vector<16x8xf32>
    %c0_334 = arith.constant 0 : index
    %c0_335 = arith.constant 0 : index
    %c0_336 = arith.constant 0 : index
    %c1_337 = arith.constant 1 : index
    %c0_338 = arith.constant 0 : index
    %188 = vector.load %arg12[%c0_334, %c0_335, %c0_336, %c1_337, %c0_338] : memref<1x1x2x19x16xbf16, #tpu.memory_space<vmem>>, vector<1x1x1x16x16xbf16>
    %189 = vector.shape_cast %188 : vector<1x1x1x16x16xbf16> to vector<16x16xbf16>
    %c0_339 = arith.constant 0 : index
    %c4_340 = arith.constant 4 : index
    %c3_341 = arith.constant 3 : index
    %c0_342 = arith.constant 0 : index
    %c0_343 = arith.constant 0 : index
    %190 = vector.load %arg17[%c0_339, %c4_340, %c3_341, %c0_342, %c0_343] : memref<1x7x7x16x8xbf16, #tpu.memory_space<vmem>>, vector<1x1x1x16x8xbf16>
    %191 = vector.shape_cast %190 : vector<1x1x1x16x8xbf16> to vector<16x8xbf16>
    %cst_344 = arith.constant dense<0.000000e+00> : vector<16x8xf32>
    %192 = tpu.matmul %189, %191, %cst_344 {dimension_numbers = #tpu.dot_dimension_numbers<[1], [0], [0], [1], [0, 0, 1, 1], [], []>} : vector<16x16xbf16>, vector<16x8xbf16>, vector<16x8xf32> -> vector<16x8xf32>
    %193 = arith.addf %187, %192 : vector<16x8xf32>
    %c0_345 = arith.constant 0 : index
    %c0_346 = arith.constant 0 : index
    %c0_347 = arith.constant 0 : index
    %c2_348 = arith.constant 2 : index
    %c0_349 = arith.constant 0 : index
    %194 = vector.load %arg11[%c0_345, %c0_346, %c0_347, %c2_348, %c0_349] : memref<1x1x2x19x16xbf16, #tpu.memory_space<vmem>>, vector<1x1x1x16x16xbf16>
    %195 = vector.shape_cast %194 : vector<1x1x1x16x16xbf16> to vector<16x16xbf16>
    %c0_350 = arith.constant 0 : index
    %c4_351 = arith.constant 4 : index
    %c4_352 = arith.constant 4 : index
    %c0_353 = arith.constant 0 : index
    %c0_354 = arith.constant 0 : index
    %196 = vector.load %arg17[%c0_350, %c4_351, %c4_352, %c0_353, %c0_354] : memref<1x7x7x16x8xbf16, #tpu.memory_space<vmem>>, vector<1x1x1x16x8xbf16>
    %197 = vector.shape_cast %196 : vector<1x1x1x16x8xbf16> to vector<16x8xbf16>
    %cst_355 = arith.constant dense<0.000000e+00> : vector<16x8xf32>
    %198 = tpu.matmul %195, %197, %cst_355 {dimension_numbers = #tpu.dot_dimension_numbers<[1], [0], [0], [1], [0, 0, 1, 1], [], []>} : vector<16x16xbf16>, vector<16x8xbf16>, vector<16x8xf32> -> vector<16x8xf32>
    %199 = arith.addf %193, %198 : vector<16x8xf32>
    %c0_356 = arith.constant 0 : index
    %c0_357 = arith.constant 0 : index
    %c0_358 = arith.constant 0 : index
    %c2_359 = arith.constant 2 : index
    %c0_360 = arith.constant 0 : index
    %200 = vector.load %arg12[%c0_356, %c0_357, %c0_358, %c2_359, %c0_360] : memref<1x1x2x19x16xbf16, #tpu.memory_space<vmem>>, vector<1x1x1x16x16xbf16>
    %201 = vector.shape_cast %200 : vector<1x1x1x16x16xbf16> to vector<16x16xbf16>
    %c0_361 = arith.constant 0 : index
    %c4_362 = arith.constant 4 : index
    %c5_363 = arith.constant 5 : index
    %c0_364 = arith.constant 0 : index
    %c0_365 = arith.constant 0 : index
    %202 = vector.load %arg17[%c0_361, %c4_362, %c5_363, %c0_364, %c0_365] : memref<1x7x7x16x8xbf16, #tpu.memory_space<vmem>>, vector<1x1x1x16x8xbf16>
    %203 = vector.shape_cast %202 : vector<1x1x1x16x8xbf16> to vector<16x8xbf16>
    %cst_366 = arith.constant dense<0.000000e+00> : vector<16x8xf32>
    %204 = tpu.matmul %201, %203, %cst_366 {dimension_numbers = #tpu.dot_dimension_numbers<[1], [0], [0], [1], [0, 0, 1, 1], [], []>} : vector<16x16xbf16>, vector<16x8xbf16>, vector<16x8xf32> -> vector<16x8xf32>
    %205 = arith.addf %199, %204 : vector<16x8xf32>
    %c0_367 = arith.constant 0 : index
    %c0_368 = arith.constant 0 : index
    %c0_369 = arith.constant 0 : index
    %c3_370 = arith.constant 3 : index
    %c0_371 = arith.constant 0 : index
    %206 = vector.load %arg11[%c0_367, %c0_368, %c0_369, %c3_370, %c0_371] : memref<1x1x2x19x16xbf16, #tpu.memory_space<vmem>>, vector<1x1x1x16x16xbf16>
    %207 = vector.shape_cast %206 : vector<1x1x1x16x16xbf16> to vector<16x16xbf16>
    %c0_372 = arith.constant 0 : index
    %c4_373 = arith.constant 4 : index
    %c6_374 = arith.constant 6 : index
    %c0_375 = arith.constant 0 : index
    %c0_376 = arith.constant 0 : index
    %208 = vector.load %arg17[%c0_372, %c4_373, %c6_374, %c0_375, %c0_376] : memref<1x7x7x16x8xbf16, #tpu.memory_space<vmem>>, vector<1x1x1x16x8xbf16>
    %209 = vector.shape_cast %208 : vector<1x1x1x16x8xbf16> to vector<16x8xbf16>
    %cst_377 = arith.constant dense<0.000000e+00> : vector<16x8xf32>
    %210 = tpu.matmul %207, %209, %cst_377 {dimension_numbers = #tpu.dot_dimension_numbers<[1], [0], [0], [1], [0, 0, 1, 1], [], []>} : vector<16x16xbf16>, vector<16x8xbf16>, vector<16x8xf32> -> vector<16x8xf32>
    %211 = arith.addf %205, %210 : vector<16x8xf32>
    %c0_378 = arith.constant 0 : index
    %c0_379 = arith.constant 0 : index
    %c0_380 = arith.constant 0 : index
    %c0_381 = arith.constant 0 : index
    %c0_382 = arith.constant 0 : index
    %212 = vector.load %arg13[%c0_378, %c0_379, %c0_380, %c0_381, %c0_382] : memref<1x1x2x19x16xbf16, #tpu.memory_space<vmem>>, vector<1x1x1x16x16xbf16>
    %213 = vector.shape_cast %212 : vector<1x1x1x16x16xbf16> to vector<16x16xbf16>
    %c0_383 = arith.constant 0 : index
    %c5_384 = arith.constant 5 : index
    %c0_385 = arith.constant 0 : index
    %c0_386 = arith.constant 0 : index
    %c0_387 = arith.constant 0 : index
    %214 = vector.load %arg17[%c0_383, %c5_384, %c0_385, %c0_386, %c0_387] : memref<1x7x7x16x8xbf16, #tpu.memory_space<vmem>>, vector<1x1x1x16x8xbf16>
    %215 = vector.shape_cast %214 : vector<1x1x1x16x8xbf16> to vector<16x8xbf16>
    %cst_388 = arith.constant dense<0.000000e+00> : vector<16x8xf32>
    %216 = tpu.matmul %213, %215, %cst_388 {dimension_numbers = #tpu.dot_dimension_numbers<[1], [0], [0], [1], [0, 0, 1, 1], [], []>} : vector<16x16xbf16>, vector<16x8xbf16>, vector<16x8xf32> -> vector<16x8xf32>
    %217 = arith.addf %211, %216 : vector<16x8xf32>
    %c0_389 = arith.constant 0 : index
    %c0_390 = arith.constant 0 : index
    %c0_391 = arith.constant 0 : index
    %c0_392 = arith.constant 0 : index
    %c0_393 = arith.constant 0 : index
    %218 = vector.load %arg14[%c0_389, %c0_390, %c0_391, %c0_392, %c0_393] : memref<1x1x2x19x16xbf16, #tpu.memory_space<vmem>>, vector<1x1x1x16x16xbf16>
    %219 = vector.shape_cast %218 : vector<1x1x1x16x16xbf16> to vector<16x16xbf16>
    %c0_394 = arith.constant 0 : index
    %c5_395 = arith.constant 5 : index
    %c1_396 = arith.constant 1 : index
    %c0_397 = arith.constant 0 : index
    %c0_398 = arith.constant 0 : index
    %220 = vector.load %arg17[%c0_394, %c5_395, %c1_396, %c0_397, %c0_398] : memref<1x7x7x16x8xbf16, #tpu.memory_space<vmem>>, vector<1x1x1x16x8xbf16>
    %221 = vector.shape_cast %220 : vector<1x1x1x16x8xbf16> to vector<16x8xbf16>
    %cst_399 = arith.constant dense<0.000000e+00> : vector<16x8xf32>
    %222 = tpu.matmul %219, %221, %cst_399 {dimension_numbers = #tpu.dot_dimension_numbers<[1], [0], [0], [1], [0, 0, 1, 1], [], []>} : vector<16x16xbf16>, vector<16x8xbf16>, vector<16x8xf32> -> vector<16x8xf32>
    %223 = arith.addf %217, %222 : vector<16x8xf32>
    %c0_400 = arith.constant 0 : index
    %c0_401 = arith.constant 0 : index
    %c0_402 = arith.constant 0 : index
    %c1_403 = arith.constant 1 : index
    %c0_404 = arith.constant 0 : index
    %224 = vector.load %arg13[%c0_400, %c0_401, %c0_402, %c1_403, %c0_404] : memref<1x1x2x19x16xbf16, #tpu.memory_space<vmem>>, vector<1x1x1x16x16xbf16>
    %225 = vector.shape_cast %224 : vector<1x1x1x16x16xbf16> to vector<16x16xbf16>
    %c0_405 = arith.constant 0 : index
    %c5_406 = arith.constant 5 : index
    %c2_407 = arith.constant 2 : index
    %c0_408 = arith.constant 0 : index
    %c0_409 = arith.constant 0 : index
    %226 = vector.load %arg17[%c0_405, %c5_406, %c2_407, %c0_408, %c0_409] : memref<1x7x7x16x8xbf16, #tpu.memory_space<vmem>>, vector<1x1x1x16x8xbf16>
    %227 = vector.shape_cast %226 : vector<1x1x1x16x8xbf16> to vector<16x8xbf16>
    %cst_410 = arith.constant dense<0.000000e+00> : vector<16x8xf32>
    %228 = tpu.matmul %225, %227, %cst_410 {dimension_numbers = #tpu.dot_dimension_numbers<[1], [0], [0], [1], [0, 0, 1, 1], [], []>} : vector<16x16xbf16>, vector<16x8xbf16>, vector<16x8xf32> -> vector<16x8xf32>
    %229 = arith.addf %223, %228 : vector<16x8xf32>
    %c0_411 = arith.constant 0 : index
    %c0_412 = arith.constant 0 : index
    %c0_413 = arith.constant 0 : index
    %c1_414 = arith.constant 1 : index
    %c0_415 = arith.constant 0 : index
    %230 = vector.load %arg14[%c0_411, %c0_412, %c0_413, %c1_414, %c0_415] : memref<1x1x2x19x16xbf16, #tpu.memory_space<vmem>>, vector<1x1x1x16x16xbf16>
    %231 = vector.shape_cast %230 : vector<1x1x1x16x16xbf16> to vector<16x16xbf16>
    %c0_416 = arith.constant 0 : index
    %c5_417 = arith.constant 5 : index
    %c3_418 = arith.constant 3 : index
    %c0_419 = arith.constant 0 : index
    %c0_420 = arith.constant 0 : index
    %232 = vector.load %arg17[%c0_416, %c5_417, %c3_418, %c0_419, %c0_420] : memref<1x7x7x16x8xbf16, #tpu.memory_space<vmem>>, vector<1x1x1x16x8xbf16>
    %233 = vector.shape_cast %232 : vector<1x1x1x16x8xbf16> to vector<16x8xbf16>
    %cst_421 = arith.constant dense<0.000000e+00> : vector<16x8xf32>
    %234 = tpu.matmul %231, %233, %cst_421 {dimension_numbers = #tpu.dot_dimension_numbers<[1], [0], [0], [1], [0, 0, 1, 1], [], []>} : vector<16x16xbf16>, vector<16x8xbf16>, vector<16x8xf32> -> vector<16x8xf32>
    %235 = arith.addf %229, %234 : vector<16x8xf32>
    %c0_422 = arith.constant 0 : index
    %c0_423 = arith.constant 0 : index
    %c0_424 = arith.constant 0 : index
    %c2_425 = arith.constant 2 : index
    %c0_426 = arith.constant 0 : index
    %236 = vector.load %arg13[%c0_422, %c0_423, %c0_424, %c2_425, %c0_426] : memref<1x1x2x19x16xbf16, #tpu.memory_space<vmem>>, vector<1x1x1x16x16xbf16>
    %237 = vector.shape_cast %236 : vector<1x1x1x16x16xbf16> to vector<16x16xbf16>
    %c0_427 = arith.constant 0 : index
    %c5_428 = arith.constant 5 : index
    %c4_429 = arith.constant 4 : index
    %c0_430 = arith.constant 0 : index
    %c0_431 = arith.constant 0 : index
    %238 = vector.load %arg17[%c0_427, %c5_428, %c4_429, %c0_430, %c0_431] : memref<1x7x7x16x8xbf16, #tpu.memory_space<vmem>>, vector<1x1x1x16x8xbf16>
    %239 = vector.shape_cast %238 : vector<1x1x1x16x8xbf16> to vector<16x8xbf16>
    %cst_432 = arith.constant dense<0.000000e+00> : vector<16x8xf32>
    %240 = tpu.matmul %237, %239, %cst_432 {dimension_numbers = #tpu.dot_dimension_numbers<[1], [0], [0], [1], [0, 0, 1, 1], [], []>} : vector<16x16xbf16>, vector<16x8xbf16>, vector<16x8xf32> -> vector<16x8xf32>
    %241 = arith.addf %235, %240 : vector<16x8xf32>
    %c0_433 = arith.constant 0 : index
    %c0_434 = arith.constant 0 : index
    %c0_435 = arith.constant 0 : index
    %c2_436 = arith.constant 2 : index
    %c0_437 = arith.constant 0 : index
    %242 = vector.load %arg14[%c0_433, %c0_434, %c0_435, %c2_436, %c0_437] : memref<1x1x2x19x16xbf16, #tpu.memory_space<vmem>>, vector<1x1x1x16x16xbf16>
    %243 = vector.shape_cast %242 : vector<1x1x1x16x16xbf16> to vector<16x16xbf16>
    %c0_438 = arith.constant 0 : index
    %c5_439 = arith.constant 5 : index
    %c5_440 = arith.constant 5 : index
    %c0_441 = arith.constant 0 : index
    %c0_442 = arith.constant 0 : index
    %244 = vector.load %arg17[%c0_438, %c5_439, %c5_440, %c0_441, %c0_442] : memref<1x7x7x16x8xbf16, #tpu.memory_space<vmem>>, vector<1x1x1x16x8xbf16>
    %245 = vector.shape_cast %244 : vector<1x1x1x16x8xbf16> to vector<16x8xbf16>
    %cst_443 = arith.constant dense<0.000000e+00> : vector<16x8xf32>
    %246 = tpu.matmul %243, %245, %cst_443 {dimension_numbers = #tpu.dot_dimension_numbers<[1], [0], [0], [1], [0, 0, 1, 1], [], []>} : vector<16x16xbf16>, vector<16x8xbf16>, vector<16x8xf32> -> vector<16x8xf32>
    %247 = arith.addf %241, %246 : vector<16x8xf32>
    %c0_444 = arith.constant 0 : index
    %c0_445 = arith.constant 0 : index
    %c0_446 = arith.constant 0 : index
    %c3_447 = arith.constant 3 : index
    %c0_448 = arith.constant 0 : index
    %248 = vector.load %arg13[%c0_444, %c0_445, %c0_446, %c3_447, %c0_448] : memref<1x1x2x19x16xbf16, #tpu.memory_space<vmem>>, vector<1x1x1x16x16xbf16>
    %249 = vector.shape_cast %248 : vector<1x1x1x16x16xbf16> to vector<16x16xbf16>
    %c0_449 = arith.constant 0 : index
    %c5_450 = arith.constant 5 : index
    %c6_451 = arith.constant 6 : index
    %c0_452 = arith.constant 0 : index
    %c0_453 = arith.constant 0 : index
    %250 = vector.load %arg17[%c0_449, %c5_450, %c6_451, %c0_452, %c0_453] : memref<1x7x7x16x8xbf16, #tpu.memory_space<vmem>>, vector<1x1x1x16x8xbf16>
    %251 = vector.shape_cast %250 : vector<1x1x1x16x8xbf16> to vector<16x8xbf16>
    %cst_454 = arith.constant dense<0.000000e+00> : vector<16x8xf32>
    %252 = tpu.matmul %249, %251, %cst_454 {dimension_numbers = #tpu.dot_dimension_numbers<[1], [0], [0], [1], [0, 0, 1, 1], [], []>} : vector<16x16xbf16>, vector<16x8xbf16>, vector<16x8xf32> -> vector<16x8xf32>
    %253 = arith.addf %247, %252 : vector<16x8xf32>
    %c0_455 = arith.constant 0 : index
    %c0_456 = arith.constant 0 : index
    %c0_457 = arith.constant 0 : index
    %c0_458 = arith.constant 0 : index
    %c0_459 = arith.constant 0 : index
    %254 = vector.load %arg15[%c0_455, %c0_456, %c0_457, %c0_458, %c0_459] : memref<1x1x2x19x16xbf16, #tpu.memory_space<vmem>>, vector<1x1x1x16x16xbf16>
    %255 = vector.shape_cast %254 : vector<1x1x1x16x16xbf16> to vector<16x16xbf16>
    %c0_460 = arith.constant 0 : index
    %c6_461 = arith.constant 6 : index
    %c0_462 = arith.constant 0 : index
    %c0_463 = arith.constant 0 : index
    %c0_464 = arith.constant 0 : index
    %256 = vector.load %arg17[%c0_460, %c6_461, %c0_462, %c0_463, %c0_464] : memref<1x7x7x16x8xbf16, #tpu.memory_space<vmem>>, vector<1x1x1x16x8xbf16>
    %257 = vector.shape_cast %256 : vector<1x1x1x16x8xbf16> to vector<16x8xbf16>
    %cst_465 = arith.constant dense<0.000000e+00> : vector<16x8xf32>
    %258 = tpu.matmul %255, %257, %cst_465 {dimension_numbers = #tpu.dot_dimension_numbers<[1], [0], [0], [1], [0, 0, 1, 1], [], []>} : vector<16x16xbf16>, vector<16x8xbf16>, vector<16x8xf32> -> vector<16x8xf32>
    %259 = arith.addf %253, %258 : vector<16x8xf32>
    %c0_466 = arith.constant 0 : index
    %c0_467 = arith.constant 0 : index
    %c0_468 = arith.constant 0 : index
    %c0_469 = arith.constant 0 : index
    %c0_470 = arith.constant 0 : index
    %260 = vector.load %arg16[%c0_466, %c0_467, %c0_468, %c0_469, %c0_470] : memref<1x1x2x19x16xbf16, #tpu.memory_space<vmem>>, vector<1x1x1x16x16xbf16>
    %261 = vector.shape_cast %260 : vector<1x1x1x16x16xbf16> to vector<16x16xbf16>
    %c0_471 = arith.constant 0 : index
    %c6_472 = arith.constant 6 : index
    %c1_473 = arith.constant 1 : index
    %c0_474 = arith.constant 0 : index
    %c0_475 = arith.constant 0 : index
    %262 = vector.load %arg17[%c0_471, %c6_472, %c1_473, %c0_474, %c0_475] : memref<1x7x7x16x8xbf16, #tpu.memory_space<vmem>>, vector<1x1x1x16x8xbf16>
    %263 = vector.shape_cast %262 : vector<1x1x1x16x8xbf16> to vector<16x8xbf16>
    %cst_476 = arith.constant dense<0.000000e+00> : vector<16x8xf32>
    %264 = tpu.matmul %261, %263, %cst_476 {dimension_numbers = #tpu.dot_dimension_numbers<[1], [0], [0], [1], [0, 0, 1, 1], [], []>} : vector<16x16xbf16>, vector<16x8xbf16>, vector<16x8xf32> -> vector<16x8xf32>
    %265 = arith.addf %259, %264 : vector<16x8xf32>
    %c0_477 = arith.constant 0 : index
    %c0_478 = arith.constant 0 : index
    %c0_479 = arith.constant 0 : index
    %c1_480 = arith.constant 1 : index
    %c0_481 = arith.constant 0 : index
    %266 = vector.load %arg15[%c0_477, %c0_478, %c0_479, %c1_480, %c0_481] : memref<1x1x2x19x16xbf16, #tpu.memory_space<vmem>>, vector<1x1x1x16x16xbf16>
    %267 = vector.shape_cast %266 : vector<1x1x1x16x16xbf16> to vector<16x16xbf16>
    %c0_482 = arith.constant 0 : index
    %c6_483 = arith.constant 6 : index
    %c2_484 = arith.constant 2 : index
    %c0_485 = arith.constant 0 : index
    %c0_486 = arith.constant 0 : index
    %268 = vector.load %arg17[%c0_482, %c6_483, %c2_484, %c0_485, %c0_486] : memref<1x7x7x16x8xbf16, #tpu.memory_space<vmem>>, vector<1x1x1x16x8xbf16>
    %269 = vector.shape_cast %268 : vector<1x1x1x16x8xbf16> to vector<16x8xbf16>
    %cst_487 = arith.constant dense<0.000000e+00> : vector<16x8xf32>
    %270 = tpu.matmul %267, %269, %cst_487 {dimension_numbers = #tpu.dot_dimension_numbers<[1], [0], [0], [1], [0, 0, 1, 1], [], []>} : vector<16x16xbf16>, vector<16x8xbf16>, vector<16x8xf32> -> vector<16x8xf32>
    %271 = arith.addf %265, %270 : vector<16x8xf32>
    %c0_488 = arith.constant 0 : index
    %c0_489 = arith.constant 0 : index
    %c0_490 = arith.constant 0 : index
    %c1_491 = arith.constant 1 : index
    %c0_492 = arith.constant 0 : index
    %272 = vector.load %arg16[%c0_488, %c0_489, %c0_490, %c1_491, %c0_492] : memref<1x1x2x19x16xbf16, #tpu.memory_space<vmem>>, vector<1x1x1x16x16xbf16>
    %273 = vector.shape_cast %272 : vector<1x1x1x16x16xbf16> to vector<16x16xbf16>
    %c0_493 = arith.constant 0 : index
    %c6_494 = arith.constant 6 : index
    %c3_495 = arith.constant 3 : index
    %c0_496 = arith.constant 0 : index
    %c0_497 = arith.constant 0 : index
    %274 = vector.load %arg17[%c0_493, %c6_494, %c3_495, %c0_496, %c0_497] : memref<1x7x7x16x8xbf16, #tpu.memory_space<vmem>>, vector<1x1x1x16x8xbf16>
    %275 = vector.shape_cast %274 : vector<1x1x1x16x8xbf16> to vector<16x8xbf16>
    %cst_498 = arith.constant dense<0.000000e+00> : vector<16x8xf32>
    %276 = tpu.matmul %273, %275, %cst_498 {dimension_numbers = #tpu.dot_dimension_numbers<[1], [0], [0], [1], [0, 0, 1, 1], [], []>} : vector<16x16xbf16>, vector<16x8xbf16>, vector<16x8xf32> -> vector<16x8xf32>
    %277 = arith.addf %271, %276 : vector<16x8xf32>
    %c0_499 = arith.constant 0 : index
    %c0_500 = arith.constant 0 : index
    %c0_501 = arith.constant 0 : index
    %c2_502 = arith.constant 2 : index
    %c0_503 = arith.constant 0 : index
    %278 = vector.load %arg15[%c0_499, %c0_500, %c0_501, %c2_502, %c0_503] : memref<1x1x2x19x16xbf16, #tpu.memory_space<vmem>>, vector<1x1x1x16x16xbf16>
    %279 = vector.shape_cast %278 : vector<1x1x1x16x16xbf16> to vector<16x16xbf16>
    %c0_504 = arith.constant 0 : index
    %c6_505 = arith.constant 6 : index
    %c4_506 = arith.constant 4 : index
    %c0_507 = arith.constant 0 : index
    %c0_508 = arith.constant 0 : index
    %280 = vector.load %arg17[%c0_504, %c6_505, %c4_506, %c0_507, %c0_508] : memref<1x7x7x16x8xbf16, #tpu.memory_space<vmem>>, vector<1x1x1x16x8xbf16>
    %281 = vector.shape_cast %280 : vector<1x1x1x16x8xbf16> to vector<16x8xbf16>
    %cst_509 = arith.constant dense<0.000000e+00> : vector<16x8xf32>
    %282 = tpu.matmul %279, %281, %cst_509 {dimension_numbers = #tpu.dot_dimension_numbers<[1], [0], [0], [1], [0, 0, 1, 1], [], []>} : vector<16x16xbf16>, vector<16x8xbf16>, vector<16x8xf32> -> vector<16x8xf32>
    %283 = arith.addf %277, %282 : vector<16x8xf32>
    %c0_510 = arith.constant 0 : index
    %c0_511 = arith.constant 0 : index
    %c0_512 = arith.constant 0 : index
    %c2_513 = arith.constant 2 : index
    %c0_514 = arith.constant 0 : index
    %284 = vector.load %arg16[%c0_510, %c0_511, %c0_512, %c2_513, %c0_514] : memref<1x1x2x19x16xbf16, #tpu.memory_space<vmem>>, vector<1x1x1x16x16xbf16>
    %285 = vector.shape_cast %284 : vector<1x1x1x16x16xbf16> to vector<16x16xbf16>
    %c0_515 = arith.constant 0 : index
    %c6_516 = arith.constant 6 : index
    %c5_517 = arith.constant 5 : index
    %c0_518 = arith.constant 0 : index
    %c0_519 = arith.constant 0 : index
    %286 = vector.load %arg17[%c0_515, %c6_516, %c5_517, %c0_518, %c0_519] : memref<1x7x7x16x8xbf16, #tpu.memory_space<vmem>>, vector<1x1x1x16x8xbf16>
    %287 = vector.shape_cast %286 : vector<1x1x1x16x8xbf16> to vector<16x8xbf16>
    %cst_520 = arith.constant dense<0.000000e+00> : vector<16x8xf32>
    %288 = tpu.matmul %285, %287, %cst_520 {dimension_numbers = #tpu.dot_dimension_numbers<[1], [0], [0], [1], [0, 0, 1, 1], [], []>} : vector<16x16xbf16>, vector<16x8xbf16>, vector<16x8xf32> -> vector<16x8xf32>
    %289 = arith.addf %283, %288 : vector<16x8xf32>
    %c0_521 = arith.constant 0 : index
    %c0_522 = arith.constant 0 : index
    %c0_523 = arith.constant 0 : index
    %c3_524 = arith.constant 3 : index
    %c0_525 = arith.constant 0 : index
    %290 = vector.load %arg15[%c0_521, %c0_522, %c0_523, %c3_524, %c0_525] : memref<1x1x2x19x16xbf16, #tpu.memory_space<vmem>>, vector<1x1x1x16x16xbf16>
    %291 = vector.shape_cast %290 : vector<1x1x1x16x16xbf16> to vector<16x16xbf16>
    %c0_526 = arith.constant 0 : index
    %c6_527 = arith.constant 6 : index
    %c6_528 = arith.constant 6 : index
    %c0_529 = arith.constant 0 : index
    %c0_530 = arith.constant 0 : index
    %292 = vector.load %arg17[%c0_526, %c6_527, %c6_528, %c0_529, %c0_530] : memref<1x7x7x16x8xbf16, #tpu.memory_space<vmem>>, vector<1x1x1x16x8xbf16>
    %293 = vector.shape_cast %292 : vector<1x1x1x16x8xbf16> to vector<16x8xbf16>
    %cst_531 = arith.constant dense<0.000000e+00> : vector<16x8xf32>
    %294 = tpu.matmul %291, %293, %cst_531 {dimension_numbers = #tpu.dot_dimension_numbers<[1], [0], [0], [1], [0, 0, 1, 1], [], []>} : vector<16x16xbf16>, vector<16x8xbf16>, vector<16x8xf32> -> vector<16x8xf32>
    %295 = arith.addf %289, %294 : vector<16x8xf32>
    %c0_532 = arith.constant 0 : index
    %c0_533 = arith.constant 0 : index
    %c0_534 = arith.constant 0 : index
    %296 = vector.load %arg20[%c0_532, %c0_533, %c0_534] : memref<2x16x8xf32, #tpu.memory_space<vmem>>, vector<1x16x8xf32>
    %297 = vector.shape_cast %296 : vector<1x16x8xf32> to vector<16x8xf32>
    %298 = arith.addf %297, %295 : vector<16x8xf32>
    %c0_535 = arith.constant 0 : index
    %c0_536 = arith.constant 0 : index
    %c0_537 = arith.constant 0 : index
    %299 = vector.load %arg20[%c0_535, %c0_536, %c0_537] : memref<2x16x8xf32, #tpu.memory_space<vmem>>, vector<1x16x8xf32>
    %300 = vector.shape_cast %299 : vector<1x16x8xf32> to vector<16x8xf32>
    %301 = vector.shape_cast %298 : vector<16x8xf32> to vector<1x16x8xf32>
    tpu.vector_store %arg20[%c0_535, %c0_536, %c0_537], %301 {strides = array<i32>} : memref<2x16x8xf32, #tpu.memory_space<vmem>>, vector<1x16x8xf32>,
    %c0_538 = arith.constant 0 : index
    %c0_539 = arith.constant 0 : index
    %c1_540 = arith.constant 1 : index
    %c0_541 = arith.constant 0 : index
    %c0_542 = arith.constant 0 : index
    %302 = vector.load %arg3[%c0_538, %c0_539, %c1_540, %c0_541, %c0_542] : memref<1x1x2x19x16xbf16, #tpu.memory_space<vmem>>, vector<1x1x1x16x16xbf16>
    %303 = vector.shape_cast %302 : vector<1x1x1x16x16xbf16> to vector<16x16xbf16>
    %c0_543 = arith.constant 0 : index
    %c0_544 = arith.constant 0 : index
    %c0_545 = arith.constant 0 : index
    %c0_546 = arith.constant 0 : index
    %c0_547 = arith.constant 0 : index
    %304 = vector.load %arg17[%c0_543, %c0_544, %c0_545, %c0_546, %c0_547] : memref<1x7x7x16x8xbf16, #tpu.memory_space<vmem>>, vector<1x1x1x16x8xbf16>
    %305 = vector.shape_cast %304 : vector<1x1x1x16x8xbf16> to vector<16x8xbf16>
    %cst_548 = arith.constant dense<0.000000e+00> : vector<16x8xf32>
    %306 = tpu.matmul %303, %305, %cst_548 {dimension_numbers = #tpu.dot_dimension_numbers<[1], [0], [0], [1], [0, 0, 1, 1], [], []>} : vector<16x16xbf16>, vector<16x8xbf16>, vector<16x8xf32> -> vector<16x8xf32>
    %c0_549 = arith.constant 0 : index
    %c0_550 = arith.constant 0 : index
    %c1_551 = arith.constant 1 : index
    %c0_552 = arith.constant 0 : index
    %c0_553 = arith.constant 0 : index
    %307 = vector.load %arg4[%c0_549, %c0_550, %c1_551, %c0_552, %c0_553] : memref<1x1x2x19x16xbf16, #tpu.memory_space<vmem>>, vector<1x1x1x16x16xbf16>
    %308 = vector.shape_cast %307 : vector<1x1x1x16x16xbf16> to vector<16x16xbf16>
    %c0_554 = arith.constant 0 : index
    %c0_555 = arith.constant 0 : index
    %c1_556 = arith.constant 1 : index
    %c0_557 = arith.constant 0 : index
    %c0_558 = arith.constant 0 : index
    %309 = vector.load %arg17[%c0_554, %c0_555, %c1_556, %c0_557, %c0_558] : memref<1x7x7x16x8xbf16, #tpu.memory_space<vmem>>, vector<1x1x1x16x8xbf16>
    %310 = vector.shape_cast %309 : vector<1x1x1x16x8xbf16> to vector<16x8xbf16>
    %cst_559 = arith.constant dense<0.000000e+00> : vector<16x8xf32>
    %311 = tpu.matmul %308, %310, %cst_559 {dimension_numbers = #tpu.dot_dimension_numbers<[1], [0], [0], [1], [0, 0, 1, 1], [], []>} : vector<16x16xbf16>, vector<16x8xbf16>, vector<16x8xf32> -> vector<16x8xf32>
    %312 = arith.addf %306, %311 : vector<16x8xf32>
    %c0_560 = arith.constant 0 : index
    %c0_561 = arith.constant 0 : index
    %c1_562 = arith.constant 1 : index
    %c1_563 = arith.constant 1 : index
    %c0_564 = arith.constant 0 : index
    %313 = vector.load %arg3[%c0_560, %c0_561, %c1_562, %c1_563, %c0_564] : memref<1x1x2x19x16xbf16, #tpu.memory_space<vmem>>, vector<1x1x1x16x16xbf16>
    %314 = vector.shape_cast %313 : vector<1x1x1x16x16xbf16> to vector<16x16xbf16>
    %c0_565 = arith.constant 0 : index
    %c0_566 = arith.constant 0 : index
    %c2_567 = arith.constant 2 : index
    %c0_568 = arith.constant 0 : index
    %c0_569 = arith.constant 0 : index
    %315 = vector.load %arg17[%c0_565, %c0_566, %c2_567, %c0_568, %c0_569] : memref<1x7x7x16x8xbf16, #tpu.memory_space<vmem>>, vector<1x1x1x16x8xbf16>
    %316 = vector.shape_cast %315 : vector<1x1x1x16x8xbf16> to vector<16x8xbf16>
    %cst_570 = arith.constant dense<0.000000e+00> : vector<16x8xf32>
    %317 = tpu.matmul %314, %316, %cst_570 {dimension_numbers = #tpu.dot_dimension_numbers<[1], [0], [0], [1], [0, 0, 1, 1], [], []>} : vector<16x16xbf16>, vector<16x8xbf16>, vector<16x8xf32> -> vector<16x8xf32>
    %318 = arith.addf %312, %317 : vector<16x8xf32>
    %c0_571 = arith.constant 0 : index
    %c0_572 = arith.constant 0 : index
    %c1_573 = arith.constant 1 : index
    %c1_574 = arith.constant 1 : index
    %c0_575 = arith.constant 0 : index
    %319 = vector.load %arg4[%c0_571, %c0_572, %c1_573, %c1_574, %c0_575] : memref<1x1x2x19x16xbf16, #tpu.memory_space<vmem>>, vector<1x1x1x16x16xbf16>
    %320 = vector.shape_cast %319 : vector<1x1x1x16x16xbf16> to vector<16x16xbf16>
    %c0_576 = arith.constant 0 : index
    %c0_577 = arith.constant 0 : index
    %c3_578 = arith.constant 3 : index
    %c0_579 = arith.constant 0 : index
    %c0_580 = arith.constant 0 : index
    %321 = vector.load %arg17[%c0_576, %c0_577, %c3_578, %c0_579, %c0_580] : memref<1x7x7x16x8xbf16, #tpu.memory_space<vmem>>, vector<1x1x1x16x8xbf16>
    %322 = vector.shape_cast %321 : vector<1x1x1x16x8xbf16> to vector<16x8xbf16>
    %cst_581 = arith.constant dense<0.000000e+00> : vector<16x8xf32>
    %323 = tpu.matmul %320, %322, %cst_581 {dimension_numbers = #tpu.dot_dimension_numbers<[1], [0], [0], [1], [0, 0, 1, 1], [], []>} : vector<16x16xbf16>, vector<16x8xbf16>, vector<16x8xf32> -> vector<16x8xf32>
    %324 = arith.addf %318, %323 : vector<16x8xf32>
    %c0_582 = arith.constant 0 : index
    %c0_583 = arith.constant 0 : index
    %c1_584 = arith.constant 1 : index
    %c2_585 = arith.constant 2 : index
    %c0_586 = arith.constant 0 : index
    %325 = vector.load %arg3[%c0_582, %c0_583, %c1_584, %c2_585, %c0_586] : memref<1x1x2x19x16xbf16, #tpu.memory_space<vmem>>, vector<1x1x1x16x16xbf16>
    %326 = vector.shape_cast %325 : vector<1x1x1x16x16xbf16> to vector<16x16xbf16>
    %c0_587 = arith.constant 0 : index
    %c0_588 = arith.constant 0 : index
    %c4_589 = arith.constant 4 : index
    %c0_590 = arith.constant 0 : index
    %c0_591 = arith.constant 0 : index
    %327 = vector.load %arg17[%c0_587, %c0_588, %c4_589, %c0_590, %c0_591] : memref<1x7x7x16x8xbf16, #tpu.memory_space<vmem>>, vector<1x1x1x16x8xbf16>
    %328 = vector.shape_cast %327 : vector<1x1x1x16x8xbf16> to vector<16x8xbf16>
    %cst_592 = arith.constant dense<0.000000e+00> : vector<16x8xf32>
    %329 = tpu.matmul %326, %328, %cst_592 {dimension_numbers = #tpu.dot_dimension_numbers<[1], [0], [0], [1], [0, 0, 1, 1], [], []>} : vector<16x16xbf16>, vector<16x8xbf16>, vector<16x8xf32> -> vector<16x8xf32>
    %330 = arith.addf %324, %329 : vector<16x8xf32>
    %c0_593 = arith.constant 0 : index
    %c0_594 = arith.constant 0 : index
    %c1_595 = arith.constant 1 : index
    %c2_596 = arith.constant 2 : index
    %c0_597 = arith.constant 0 : index
    %331 = vector.load %arg4[%c0_593, %c0_594, %c1_595, %c2_596, %c0_597] : memref<1x1x2x19x16xbf16, #tpu.memory_space<vmem>>, vector<1x1x1x16x16xbf16>
    %332 = vector.shape_cast %331 : vector<1x1x1x16x16xbf16> to vector<16x16xbf16>
    %c0_598 = arith.constant 0 : index
    %c0_599 = arith.constant 0 : index
    %c5_600 = arith.constant 5 : index
    %c0_601 = arith.constant 0 : index
    %c0_602 = arith.constant 0 : index
    %333 = vector.load %arg17[%c0_598, %c0_599, %c5_600, %c0_601, %c0_602] : memref<1x7x7x16x8xbf16, #tpu.memory_space<vmem>>, vector<1x1x1x16x8xbf16>
    %334 = vector.shape_cast %333 : vector<1x1x1x16x8xbf16> to vector<16x8xbf16>
    %cst_603 = arith.constant dense<0.000000e+00> : vector<16x8xf32>
    %335 = tpu.matmul %332, %334, %cst_603 {dimension_numbers = #tpu.dot_dimension_numbers<[1], [0], [0], [1], [0, 0, 1, 1], [], []>} : vector<16x16xbf16>, vector<16x8xbf16>, vector<16x8xf32> -> vector<16x8xf32>
    %336 = arith.addf %330, %335 : vector<16x8xf32>
    %c0_604 = arith.constant 0 : index
    %c0_605 = arith.constant 0 : index
    %c1_606 = arith.constant 1 : index
    %c3_607 = arith.constant 3 : index
    %c0_608 = arith.constant 0 : index
    %337 = vector.load %arg3[%c0_604, %c0_605, %c1_606, %c3_607, %c0_608] : memref<1x1x2x19x16xbf16, #tpu.memory_space<vmem>>, vector<1x1x1x16x16xbf16>
    %338 = vector.shape_cast %337 : vector<1x1x1x16x16xbf16> to vector<16x16xbf16>
    %c0_609 = arith.constant 0 : index
    %c0_610 = arith.constant 0 : index
    %c6_611 = arith.constant 6 : index
    %c0_612 = arith.constant 0 : index
    %c0_613 = arith.constant 0 : index
    %339 = vector.load %arg17[%c0_609, %c0_610, %c6_611, %c0_612, %c0_613] : memref<1x7x7x16x8xbf16, #tpu.memory_space<vmem>>, vector<1x1x1x16x8xbf16>
    %340 = vector.shape_cast %339 : vector<1x1x1x16x8xbf16> to vector<16x8xbf16>
    %cst_614 = arith.constant dense<0.000000e+00> : vector<16x8xf32>
    %341 = tpu.matmul %338, %340, %cst_614 {dimension_numbers = #tpu.dot_dimension_numbers<[1], [0], [0], [1], [0, 0, 1, 1], [], []>} : vector<16x16xbf16>, vector<16x8xbf16>, vector<16x8xf32> -> vector<16x8xf32>
    %342 = arith.addf %336, %341 : vector<16x8xf32>
    %c0_615 = arith.constant 0 : index
    %c0_616 = arith.constant 0 : index
    %c1_617 = arith.constant 1 : index
    %c0_618 = arith.constant 0 : index
    %c0_619 = arith.constant 0 : index
    %343 = vector.load %arg5[%c0_615, %c0_616, %c1_617, %c0_618, %c0_619] : memref<1x1x2x19x16xbf16, #tpu.memory_space<vmem>>, vector<1x1x1x16x16xbf16>
    %344 = vector.shape_cast %343 : vector<1x1x1x16x16xbf16> to vector<16x16xbf16>
    %c0_620 = arith.constant 0 : index
    %c1_621 = arith.constant 1 : index
    %c0_622 = arith.constant 0 : index
    %c0_623 = arith.constant 0 : index
    %c0_624 = arith.constant 0 : index
    %345 = vector.load %arg17[%c0_620, %c1_621, %c0_622, %c0_623, %c0_624] : memref<1x7x7x16x8xbf16, #tpu.memory_space<vmem>>, vector<1x1x1x16x8xbf16>
    %346 = vector.shape_cast %345 : vector<1x1x1x16x8xbf16> to vector<16x8xbf16>
    %cst_625 = arith.constant dense<0.000000e+00> : vector<16x8xf32>
    %347 = tpu.matmul %344, %346, %cst_625 {dimension_numbers = #tpu.dot_dimension_numbers<[1], [0], [0], [1], [0, 0, 1, 1], [], []>} : vector<16x16xbf16>, vector<16x8xbf16>, vector<16x8xf32> -> vector<16x8xf32>
    %348 = arith.addf %342, %347 : vector<16x8xf32>
    %c0_626 = arith.constant 0 : index
    %c0_627 = arith.constant 0 : index
    %c1_628 = arith.constant 1 : index
    %c0_629 = arith.constant 0 : index
    %c0_630 = arith.constant 0 : index
    %349 = vector.load %arg6[%c0_626, %c0_627, %c1_628, %c0_629, %c0_630] : memref<1x1x2x19x16xbf16, #tpu.memory_space<vmem>>, vector<1x1x1x16x16xbf16>
    %350 = vector.shape_cast %349 : vector<1x1x1x16x16xbf16> to vector<16x16xbf16>
    %c0_631 = arith.constant 0 : index
    %c1_632 = arith.constant 1 : index
    %c1_633 = arith.constant 1 : index
    %c0_634 = arith.constant 0 : index
    %c0_635 = arith.constant 0 : index
    %351 = vector.load %arg17[%c0_631, %c1_632, %c1_633, %c0_634, %c0_635] : memref<1x7x7x16x8xbf16, #tpu.memory_space<vmem>>, vector<1x1x1x16x8xbf16>
    %352 = vector.shape_cast %351 : vector<1x1x1x16x8xbf16> to vector<16x8xbf16>
    %cst_636 = arith.constant dense<0.000000e+00> : vector<16x8xf32>
    %353 = tpu.matmul %350, %352, %cst_636 {dimension_numbers = #tpu.dot_dimension_numbers<[1], [0], [0], [1], [0, 0, 1, 1], [], []>} : vector<16x16xbf16>, vector<16x8xbf16>, vector<16x8xf32> -> vector<16x8xf32>
    %354 = arith.addf %348, %353 : vector<16x8xf32>
    %c0_637 = arith.constant 0 : index
    %c0_638 = arith.constant 0 : index
    %c1_639 = arith.constant 1 : index
    %c1_640 = arith.constant 1 : index
    %c0_641 = arith.constant 0 : index
    %355 = vector.load %arg5[%c0_637, %c0_638, %c1_639, %c1_640, %c0_641] : memref<1x1x2x19x16xbf16, #tpu.memory_space<vmem>>, vector<1x1x1x16x16xbf16>
    %356 = vector.shape_cast %355 : vector<1x1x1x16x16xbf16> to vector<16x16xbf16>
    %c0_642 = arith.constant 0 : index
    %c1_643 = arith.constant 1 : index
    %c2_644 = arith.constant 2 : index
    %c0_645 = arith.constant 0 : index
    %c0_646 = arith.constant 0 : index
    %357 = vector.load %arg17[%c0_642, %c1_643, %c2_644, %c0_645, %c0_646] : memref<1x7x7x16x8xbf16, #tpu.memory_space<vmem>>, vector<1x1x1x16x8xbf16>
    %358 = vector.shape_cast %357 : vector<1x1x1x16x8xbf16> to vector<16x8xbf16>
    %cst_647 = arith.constant dense<0.000000e+00> : vector<16x8xf32>
    %359 = tpu.matmul %356, %358, %cst_647 {dimension_numbers = #tpu.dot_dimension_numbers<[1], [0], [0], [1], [0, 0, 1, 1], [], []>} : vector<16x16xbf16>, vector<16x8xbf16>, vector<16x8xf32> -> vector<16x8xf32>
    %360 = arith.addf %354, %359 : vector<16x8xf32>
    %c0_648 = arith.constant 0 : index
    %c0_649 = arith.constant 0 : index
    %c1_650 = arith.constant 1 : index
    %c1_651 = arith.constant 1 : index
    %c0_652 = arith.constant 0 : index
    %361 = vector.load %arg6[%c0_648, %c0_649, %c1_650, %c1_651, %c0_652] : memref<1x1x2x19x16xbf16, #tpu.memory_space<vmem>>, vector<1x1x1x16x16xbf16>
    %362 = vector.shape_cast %361 : vector<1x1x1x16x16xbf16> to vector<16x16xbf16>
    %c0_653 = arith.constant 0 : index
    %c1_654 = arith.constant 1 : index
    %c3_655 = arith.constant 3 : index
    %c0_656 = arith.constant 0 : index
    %c0_657 = arith.constant 0 : index
    %363 = vector.load %arg17[%c0_653, %c1_654, %c3_655, %c0_656, %c0_657] : memref<1x7x7x16x8xbf16, #tpu.memory_space<vmem>>, vector<1x1x1x16x8xbf16>
    %364 = vector.shape_cast %363 : vector<1x1x1x16x8xbf16> to vector<16x8xbf16>
    %cst_658 = arith.constant dense<0.000000e+00> : vector<16x8xf32>
    %365 = tpu.matmul %362, %364, %cst_658 {dimension_numbers = #tpu.dot_dimension_numbers<[1], [0], [0], [1], [0, 0, 1, 1], [], []>} : vector<16x16xbf16>, vector<16x8xbf16>, vector<16x8xf32> -> vector<16x8xf32>
    %366 = arith.addf %360, %365 : vector<16x8xf32>
    %c0_659 = arith.constant 0 : index
    %c0_660 = arith.constant 0 : index
    %c1_661 = arith.constant 1 : index
    %c2_662 = arith.constant 2 : index
    %c0_663 = arith.constant 0 : index
    %367 = vector.load %arg5[%c0_659, %c0_660, %c1_661, %c2_662, %c0_663] : memref<1x1x2x19x16xbf16, #tpu.memory_space<vmem>>, vector<1x1x1x16x16xbf16>
    %368 = vector.shape_cast %367 : vector<1x1x1x16x16xbf16> to vector<16x16xbf16>
    %c0_664 = arith.constant 0 : index
    %c1_665 = arith.constant 1 : index
    %c4_666 = arith.constant 4 : index
    %c0_667 = arith.constant 0 : index
    %c0_668 = arith.constant 0 : index
    %369 = vector.load %arg17[%c0_664, %c1_665, %c4_666, %c0_667, %c0_668] : memref<1x7x7x16x8xbf16, #tpu.memory_space<vmem>>, vector<1x1x1x16x8xbf16>
    %370 = vector.shape_cast %369 : vector<1x1x1x16x8xbf16> to vector<16x8xbf16>
    %cst_669 = arith.constant dense<0.000000e+00> : vector<16x8xf32>
    %371 = tpu.matmul %368, %370, %cst_669 {dimension_numbers = #tpu.dot_dimension_numbers<[1], [0], [0], [1], [0, 0, 1, 1], [], []>} : vector<16x16xbf16>, vector<16x8xbf16>, vector<16x8xf32> -> vector<16x8xf32>
    %372 = arith.addf %366, %371 : vector<16x8xf32>
    %c0_670 = arith.constant 0 : index
    %c0_671 = arith.constant 0 : index
    %c1_672 = arith.constant 1 : index
    %c2_673 = arith.constant 2 : index
    %c0_674 = arith.constant 0 : index
    %373 = vector.load %arg6[%c0_670, %c0_671, %c1_672, %c2_673, %c0_674] : memref<1x1x2x19x16xbf16, #tpu.memory_space<vmem>>, vector<1x1x1x16x16xbf16>
    %374 = vector.shape_cast %373 : vector<1x1x1x16x16xbf16> to vector<16x16xbf16>
    %c0_675 = arith.constant 0 : index
    %c1_676 = arith.constant 1 : index
    %c5_677 = arith.constant 5 : index
    %c0_678 = arith.constant 0 : index
    %c0_679 = arith.constant 0 : index
    %375 = vector.load %arg17[%c0_675, %c1_676, %c5_677, %c0_678, %c0_679] : memref<1x7x7x16x8xbf16, #tpu.memory_space<vmem>>, vector<1x1x1x16x8xbf16>
    %376 = vector.shape_cast %375 : vector<1x1x1x16x8xbf16> to vector<16x8xbf16>
    %cst_680 = arith.constant dense<0.000000e+00> : vector<16x8xf32>
    %377 = tpu.matmul %374, %376, %cst_680 {dimension_numbers = #tpu.dot_dimension_numbers<[1], [0], [0], [1], [0, 0, 1, 1], [], []>} : vector<16x16xbf16>, vector<16x8xbf16>, vector<16x8xf32> -> vector<16x8xf32>
    %378 = arith.addf %372, %377 : vector<16x8xf32>
    %c0_681 = arith.constant 0 : index
    %c0_682 = arith.constant 0 : index
    %c1_683 = arith.constant 1 : index
    %c3_684 = arith.constant 3 : index
    %c0_685 = arith.constant 0 : index
    %379 = vector.load %arg5[%c0_681, %c0_682, %c1_683, %c3_684, %c0_685] : memref<1x1x2x19x16xbf16, #tpu.memory_space<vmem>>, vector<1x1x1x16x16xbf16>
    %380 = vector.shape_cast %379 : vector<1x1x1x16x16xbf16> to vector<16x16xbf16>
    %c0_686 = arith.constant 0 : index
    %c1_687 = arith.constant 1 : index
    %c6_688 = arith.constant 6 : index
    %c0_689 = arith.constant 0 : index
    %c0_690 = arith.constant 0 : index
    %381 = vector.load %arg17[%c0_686, %c1_687, %c6_688, %c0_689, %c0_690] : memref<1x7x7x16x8xbf16, #tpu.memory_space<vmem>>, vector<1x1x1x16x8xbf16>
    %382 = vector.shape_cast %381 : vector<1x1x1x16x8xbf16> to vector<16x8xbf16>
    %cst_691 = arith.constant dense<0.000000e+00> : vector<16x8xf32>
    %383 = tpu.matmul %380, %382, %cst_691 {dimension_numbers = #tpu.dot_dimension_numbers<[1], [0], [0], [1], [0, 0, 1, 1], [], []>} : vector<16x16xbf16>, vector<16x8xbf16>, vector<16x8xf32> -> vector<16x8xf32>
    %384 = arith.addf %378, %383 : vector<16x8xf32>
    %c0_692 = arith.constant 0 : index
    %c0_693 = arith.constant 0 : index
    %c1_694 = arith.constant 1 : index
    %c0_695 = arith.constant 0 : index
    %c0_696 = arith.constant 0 : index
    %385 = vector.load %arg7[%c0_692, %c0_693, %c1_694, %c0_695, %c0_696] : memref<1x1x2x19x16xbf16, #tpu.memory_space<vmem>>, vector<1x1x1x16x16xbf16>
    %386 = vector.shape_cast %385 : vector<1x1x1x16x16xbf16> to vector<16x16xbf16>
    %c0_697 = arith.constant 0 : index
    %c2_698 = arith.constant 2 : index
    %c0_699 = arith.constant 0 : index
    %c0_700 = arith.constant 0 : index
    %c0_701 = arith.constant 0 : index
    %387 = vector.load %arg17[%c0_697, %c2_698, %c0_699, %c0_700, %c0_701] : memref<1x7x7x16x8xbf16, #tpu.memory_space<vmem>>, vector<1x1x1x16x8xbf16>
    %388 = vector.shape_cast %387 : vector<1x1x1x16x8xbf16> to vector<16x8xbf16>
    %cst_702 = arith.constant dense<0.000000e+00> : vector<16x8xf32>
    %389 = tpu.matmul %386, %388, %cst_702 {dimension_numbers = #tpu.dot_dimension_numbers<[1], [0], [0], [1], [0, 0, 1, 1], [], []>} : vector<16x16xbf16>, vector<16x8xbf16>, vector<16x8xf32> -> vector<16x8xf32>
    %390 = arith.addf %384, %389 : vector<16x8xf32>
    %c0_703 = arith.constant 0 : index
    %c0_704 = arith.constant 0 : index
    %c1_705 = arith.constant 1 : index
    %c0_706 = arith.constant 0 : index
    %c0_707 = arith.constant 0 : index
    %391 = vector.load %arg8[%c0_703, %c0_704, %c1_705, %c0_706, %c0_707] : memref<1x1x2x19x16xbf16, #tpu.memory_space<vmem>>, vector<1x1x1x16x16xbf16>
    %392 = vector.shape_cast %391 : vector<1x1x1x16x16xbf16> to vector<16x16xbf16>
    %c0_708 = arith.constant 0 : index
    %c2_709 = arith.constant 2 : index
    %c1_710 = arith.constant 1 : index
    %c0_711 = arith.constant 0 : index
    %c0_712 = arith.constant 0 : index
    %393 = vector.load %arg17[%c0_708, %c2_709, %c1_710, %c0_711, %c0_712] : memref<1x7x7x16x8xbf16, #tpu.memory_space<vmem>>, vector<1x1x1x16x8xbf16>
    %394 = vector.shape_cast %393 : vector<1x1x1x16x8xbf16> to vector<16x8xbf16>
    %cst_713 = arith.constant dense<0.000000e+00> : vector<16x8xf32>
    %395 = tpu.matmul %392, %394, %cst_713 {dimension_numbers = #tpu.dot_dimension_numbers<[1], [0], [0], [1], [0, 0, 1, 1], [], []>} : vector<16x16xbf16>, vector<16x8xbf16>, vector<16x8xf32> -> vector<16x8xf32>
    %396 = arith.addf %390, %395 : vector<16x8xf32>
    %c0_714 = arith.constant 0 : index
    %c0_715 = arith.constant 0 : index
    %c1_716 = arith.constant 1 : index
    %c1_717 = arith.constant 1 : index
    %c0_718 = arith.constant 0 : index
    %397 = vector.load %arg7[%c0_714, %c0_715, %c1_716, %c1_717, %c0_718] : memref<1x1x2x19x16xbf16, #tpu.memory_space<vmem>>, vector<1x1x1x16x16xbf16>
    %398 = vector.shape_cast %397 : vector<1x1x1x16x16xbf16> to vector<16x16xbf16>
    %c0_719 = arith.constant 0 : index
    %c2_720 = arith.constant 2 : index
    %c2_721 = arith.constant 2 : index
    %c0_722 = arith.constant 0 : index
    %c0_723 = arith.constant 0 : index
    %399 = vector.load %arg17[%c0_719, %c2_720, %c2_721, %c0_722, %c0_723] : memref<1x7x7x16x8xbf16, #tpu.memory_space<vmem>>, vector<1x1x1x16x8xbf16>
    %400 = vector.shape_cast %399 : vector<1x1x1x16x8xbf16> to vector<16x8xbf16>
    %cst_724 = arith.constant dense<0.000000e+00> : vector<16x8xf32>
    %401 = tpu.matmul %398, %400, %cst_724 {dimension_numbers = #tpu.dot_dimension_numbers<[1], [0], [0], [1], [0, 0, 1, 1], [], []>} : vector<16x16xbf16>, vector<16x8xbf16>, vector<16x8xf32> -> vector<16x8xf32>
    %402 = arith.addf %396, %401 : vector<16x8xf32>
    %c0_725 = arith.constant 0 : index
    %c0_726 = arith.constant 0 : index
    %c1_727 = arith.constant 1 : index
    %c1_728 = arith.constant 1 : index
    %c0_729 = arith.constant 0 : index
    %403 = vector.load %arg8[%c0_725, %c0_726, %c1_727, %c1_728, %c0_729] : memref<1x1x2x19x16xbf16, #tpu.memory_space<vmem>>, vector<1x1x1x16x16xbf16>
    %404 = vector.shape_cast %403 : vector<1x1x1x16x16xbf16> to vector<16x16xbf16>
    %c0_730 = arith.constant 0 : index
    %c2_731 = arith.constant 2 : index
    %c3_732 = arith.constant 3 : index
    %c0_733 = arith.constant 0 : index
    %c0_734 = arith.constant 0 : index
    %405 = vector.load %arg17[%c0_730, %c2_731, %c3_732, %c0_733, %c0_734] : memref<1x7x7x16x8xbf16, #tpu.memory_space<vmem>>, vector<1x1x1x16x8xbf16>
    %406 = vector.shape_cast %405 : vector<1x1x1x16x8xbf16> to vector<16x8xbf16>
    %cst_735 = arith.constant dense<0.000000e+00> : vector<16x8xf32>
    %407 = tpu.matmul %404, %406, %cst_735 {dimension_numbers = #tpu.dot_dimension_numbers<[1], [0], [0], [1], [0, 0, 1, 1], [], []>} : vector<16x16xbf16>, vector<16x8xbf16>, vector<16x8xf32> -> vector<16x8xf32>
    %408 = arith.addf %402, %407 : vector<16x8xf32>
    %c0_736 = arith.constant 0 : index
    %c0_737 = arith.constant 0 : index
    %c1_738 = arith.constant 1 : index
    %c2_739 = arith.constant 2 : index
    %c0_740 = arith.constant 0 : index
    %409 = vector.load %arg7[%c0_736, %c0_737, %c1_738, %c2_739, %c0_740] : memref<1x1x2x19x16xbf16, #tpu.memory_space<vmem>>, vector<1x1x1x16x16xbf16>
    %410 = vector.shape_cast %409 : vector<1x1x1x16x16xbf16> to vector<16x16xbf16>
    %c0_741 = arith.constant 0 : index
    %c2_742 = arith.constant 2 : index
    %c4_743 = arith.constant 4 : index
    %c0_744 = arith.constant 0 : index
    %c0_745 = arith.constant 0 : index
    %411 = vector.load %arg17[%c0_741, %c2_742, %c4_743, %c0_744, %c0_745] : memref<1x7x7x16x8xbf16, #tpu.memory_space<vmem>>, vector<1x1x1x16x8xbf16>
    %412 = vector.shape_cast %411 : vector<1x1x1x16x8xbf16> to vector<16x8xbf16>
    %cst_746 = arith.constant dense<0.000000e+00> : vector<16x8xf32>
    %413 = tpu.matmul %410, %412, %cst_746 {dimension_numbers = #tpu.dot_dimension_numbers<[1], [0], [0], [1], [0, 0, 1, 1], [], []>} : vector<16x16xbf16>, vector<16x8xbf16>, vector<16x8xf32> -> vector<16x8xf32>
    %414 = arith.addf %408, %413 : vector<16x8xf32>
    %c0_747 = arith.constant 0 : index
    %c0_748 = arith.constant 0 : index
    %c1_749 = arith.constant 1 : index
    %c2_750 = arith.constant 2 : index
    %c0_751 = arith.constant 0 : index
    %415 = vector.load %arg8[%c0_747, %c0_748, %c1_749, %c2_750, %c0_751] : memref<1x1x2x19x16xbf16, #tpu.memory_space<vmem>>, vector<1x1x1x16x16xbf16>
    %416 = vector.shape_cast %415 : vector<1x1x1x16x16xbf16> to vector<16x16xbf16>
    %c0_752 = arith.constant 0 : index
    %c2_753 = arith.constant 2 : index
    %c5_754 = arith.constant 5 : index
    %c0_755 = arith.constant 0 : index
    %c0_756 = arith.constant 0 : index
    %417 = vector.load %arg17[%c0_752, %c2_753, %c5_754, %c0_755, %c0_756] : memref<1x7x7x16x8xbf16, #tpu.memory_space<vmem>>, vector<1x1x1x16x8xbf16>
    %418 = vector.shape_cast %417 : vector<1x1x1x16x8xbf16> to vector<16x8xbf16>
    %cst_757 = arith.constant dense<0.000000e+00> : vector<16x8xf32>
    %419 = tpu.matmul %416, %418, %cst_757 {dimension_numbers = #tpu.dot_dimension_numbers<[1], [0], [0], [1], [0, 0, 1, 1], [], []>} : vector<16x16xbf16>, vector<16x8xbf16>, vector<16x8xf32> -> vector<16x8xf32>
    %420 = arith.addf %414, %419 : vector<16x8xf32>
    %c0_758 = arith.constant 0 : index
    %c0_759 = arith.constant 0 : index
    %c1_760 = arith.constant 1 : index
    %c3_761 = arith.constant 3 : index
    %c0_762 = arith.constant 0 : index
    %421 = vector.load %arg7[%c0_758, %c0_759, %c1_760, %c3_761, %c0_762] : memref<1x1x2x19x16xbf16, #tpu.memory_space<vmem>>, vector<1x1x1x16x16xbf16>
    %422 = vector.shape_cast %421 : vector<1x1x1x16x16xbf16> to vector<16x16xbf16>
    %c0_763 = arith.constant 0 : index
    %c2_764 = arith.constant 2 : index
    %c6_765 = arith.constant 6 : index
    %c0_766 = arith.constant 0 : index
    %c0_767 = arith.constant 0 : index
    %423 = vector.load %arg17[%c0_763, %c2_764, %c6_765, %c0_766, %c0_767] : memref<1x7x7x16x8xbf16, #tpu.memory_space<vmem>>, vector<1x1x1x16x8xbf16>
    %424 = vector.shape_cast %423 : vector<1x1x1x16x8xbf16> to vector<16x8xbf16>
    %cst_768 = arith.constant dense<0.000000e+00> : vector<16x8xf32>
    %425 = tpu.matmul %422, %424, %cst_768 {dimension_numbers = #tpu.dot_dimension_numbers<[1], [0], [0], [1], [0, 0, 1, 1], [], []>} : vector<16x16xbf16>, vector<16x8xbf16>, vector<16x8xf32> -> vector<16x8xf32>
    %426 = arith.addf %420, %425 : vector<16x8xf32>
    %c0_769 = arith.constant 0 : index
    %c0_770 = arith.constant 0 : index
    %c1_771 = arith.constant 1 : index
    %c0_772 = arith.constant 0 : index
    %c0_773 = arith.constant 0 : index
    %427 = vector.load %arg9[%c0_769, %c0_770, %c1_771, %c0_772, %c0_773] : memref<1x1x2x19x16xbf16, #tpu.memory_space<vmem>>, vector<1x1x1x16x16xbf16>
    %428 = vector.shape_cast %427 : vector<1x1x1x16x16xbf16> to vector<16x16xbf16>
    %c0_774 = arith.constant 0 : index
    %c3_775 = arith.constant 3 : index
    %c0_776 = arith.constant 0 : index
    %c0_777 = arith.constant 0 : index
    %c0_778 = arith.constant 0 : index
    %429 = vector.load %arg17[%c0_774, %c3_775, %c0_776, %c0_777, %c0_778] : memref<1x7x7x16x8xbf16, #tpu.memory_space<vmem>>, vector<1x1x1x16x8xbf16>
    %430 = vector.shape_cast %429 : vector<1x1x1x16x8xbf16> to vector<16x8xbf16>
    %cst_779 = arith.constant dense<0.000000e+00> : vector<16x8xf32>
    %431 = tpu.matmul %428, %430, %cst_779 {dimension_numbers = #tpu.dot_dimension_numbers<[1], [0], [0], [1], [0, 0, 1, 1], [], []>} : vector<16x16xbf16>, vector<16x8xbf16>, vector<16x8xf32> -> vector<16x8xf32>
    %432 = arith.addf %426, %431 : vector<16x8xf32>
    %c0_780 = arith.constant 0 : index
    %c0_781 = arith.constant 0 : index
    %c1_782 = arith.constant 1 : index
    %c0_783 = arith.constant 0 : index
    %c0_784 = arith.constant 0 : index
    %433 = vector.load %arg10[%c0_780, %c0_781, %c1_782, %c0_783, %c0_784] : memref<1x1x2x19x16xbf16, #tpu.memory_space<vmem>>, vector<1x1x1x16x16xbf16>
    %434 = vector.shape_cast %433 : vector<1x1x1x16x16xbf16> to vector<16x16xbf16>
    %c0_785 = arith.constant 0 : index
    %c3_786 = arith.constant 3 : index
    %c1_787 = arith.constant 1 : index
    %c0_788 = arith.constant 0 : index
    %c0_789 = arith.constant 0 : index
    %435 = vector.load %arg17[%c0_785, %c3_786, %c1_787, %c0_788, %c0_789] : memref<1x7x7x16x8xbf16, #tpu.memory_space<vmem>>, vector<1x1x1x16x8xbf16>
    %436 = vector.shape_cast %435 : vector<1x1x1x16x8xbf16> to vector<16x8xbf16>
    %cst_790 = arith.constant dense<0.000000e+00> : vector<16x8xf32>
    %437 = tpu.matmul %434, %436, %cst_790 {dimension_numbers = #tpu.dot_dimension_numbers<[1], [0], [0], [1], [0, 0, 1, 1], [], []>} : vector<16x16xbf16>, vector<16x8xbf16>, vector<16x8xf32> -> vector<16x8xf32>
    %438 = arith.addf %432, %437 : vector<16x8xf32>
    %c0_791 = arith.constant 0 : index
    %c0_792 = arith.constant 0 : index
    %c1_793 = arith.constant 1 : index
    %c1_794 = arith.constant 1 : index
    %c0_795 = arith.constant 0 : index
    %439 = vector.load %arg9[%c0_791, %c0_792, %c1_793, %c1_794, %c0_795] : memref<1x1x2x19x16xbf16, #tpu.memory_space<vmem>>, vector<1x1x1x16x16xbf16>
    %440 = vector.shape_cast %439 : vector<1x1x1x16x16xbf16> to vector<16x16xbf16>
    %c0_796 = arith.constant 0 : index
    %c3_797 = arith.constant 3 : index
    %c2_798 = arith.constant 2 : index
    %c0_799 = arith.constant 0 : index
    %c0_800 = arith.constant 0 : index
    %441 = vector.load %arg17[%c0_796, %c3_797, %c2_798, %c0_799, %c0_800] : memref<1x7x7x16x8xbf16, #tpu.memory_space<vmem>>, vector<1x1x1x16x8xbf16>
    %442 = vector.shape_cast %441 : vector<1x1x1x16x8xbf16> to vector<16x8xbf16>
    %cst_801 = arith.constant dense<0.000000e+00> : vector<16x8xf32>
    %443 = tpu.matmul %440, %442, %cst_801 {dimension_numbers = #tpu.dot_dimension_numbers<[1], [0], [0], [1], [0, 0, 1, 1], [], []>} : vector<16x16xbf16>, vector<16x8xbf16>, vector<16x8xf32> -> vector<16x8xf32>
    %444 = arith.addf %438, %443 : vector<16x8xf32>
    %c0_802 = arith.constant 0 : index
    %c0_803 = arith.constant 0 : index
    %c1_804 = arith.constant 1 : index
    %c1_805 = arith.constant 1 : index
    %c0_806 = arith.constant 0 : index
    %445 = vector.load %arg10[%c0_802, %c0_803, %c1_804, %c1_805, %c0_806] : memref<1x1x2x19x16xbf16, #tpu.memory_space<vmem>>, vector<1x1x1x16x16xbf16>
    %446 = vector.shape_cast %445 : vector<1x1x1x16x16xbf16> to vector<16x16xbf16>
    %c0_807 = arith.constant 0 : index
    %c3_808 = arith.constant 3 : index
    %c3_809 = arith.constant 3 : index
    %c0_810 = arith.constant 0 : index
    %c0_811 = arith.constant 0 : index
    %447 = vector.load %arg17[%c0_807, %c3_808, %c3_809, %c0_810, %c0_811] : memref<1x7x7x16x8xbf16, #tpu.memory_space<vmem>>, vector<1x1x1x16x8xbf16>
    %448 = vector.shape_cast %447 : vector<1x1x1x16x8xbf16> to vector<16x8xbf16>
    %cst_812 = arith.constant dense<0.000000e+00> : vector<16x8xf32>
    %449 = tpu.matmul %446, %448, %cst_812 {dimension_numbers = #tpu.dot_dimension_numbers<[1], [0], [0], [1], [0, 0, 1, 1], [], []>} : vector<16x16xbf16>, vector<16x8xbf16>, vector<16x8xf32> -> vector<16x8xf32>
    %450 = arith.addf %444, %449 : vector<16x8xf32>
    %c0_813 = arith.constant 0 : index
    %c0_814 = arith.constant 0 : index
    %c1_815 = arith.constant 1 : index
    %c2_816 = arith.constant 2 : index
    %c0_817 = arith.constant 0 : index
    %451 = vector.load %arg9[%c0_813, %c0_814, %c1_815, %c2_816, %c0_817] : memref<1x1x2x19x16xbf16, #tpu.memory_space<vmem>>, vector<1x1x1x16x16xbf16>
    %452 = vector.shape_cast %451 : vector<1x1x1x16x16xbf16> to vector<16x16xbf16>
    %c0_818 = arith.constant 0 : index
    %c3_819 = arith.constant 3 : index
    %c4_820 = arith.constant 4 : index
    %c0_821 = arith.constant 0 : index
    %c0_822 = arith.constant 0 : index
    %453 = vector.load %arg17[%c0_818, %c3_819, %c4_820, %c0_821, %c0_822] : memref<1x7x7x16x8xbf16, #tpu.memory_space<vmem>>, vector<1x1x1x16x8xbf16>
    %454 = vector.shape_cast %453 : vector<1x1x1x16x8xbf16> to vector<16x8xbf16>
    %cst_823 = arith.constant dense<0.000000e+00> : vector<16x8xf32>
    %455 = tpu.matmul %452, %454, %cst_823 {dimension_numbers = #tpu.dot_dimension_numbers<[1], [0], [0], [1], [0, 0, 1, 1], [], []>} : vector<16x16xbf16>, vector<16x8xbf16>, vector<16x8xf32> -> vector<16x8xf32>
    %456 = arith.addf %450, %455 : vector<16x8xf32>
    %c0_824 = arith.constant 0 : index
    %c0_825 = arith.constant 0 : index
    %c1_826 = arith.constant 1 : index
    %c2_827 = arith.constant 2 : index
    %c0_828 = arith.constant 0 : index
    %457 = vector.load %arg10[%c0_824, %c0_825, %c1_826, %c2_827, %c0_828] : memref<1x1x2x19x16xbf16, #tpu.memory_space<vmem>>, vector<1x1x1x16x16xbf16>
    %458 = vector.shape_cast %457 : vector<1x1x1x16x16xbf16> to vector<16x16xbf16>
    %c0_829 = arith.constant 0 : index
    %c3_830 = arith.constant 3 : index
    %c5_831 = arith.constant 5 : index
    %c0_832 = arith.constant 0 : index
    %c0_833 = arith.constant 0 : index
    %459 = vector.load %arg17[%c0_829, %c3_830, %c5_831, %c0_832, %c0_833] : memref<1x7x7x16x8xbf16, #tpu.memory_space<vmem>>, vector<1x1x1x16x8xbf16>
    %460 = vector.shape_cast %459 : vector<1x1x1x16x8xbf16> to vector<16x8xbf16>
    %cst_834 = arith.constant dense<0.000000e+00> : vector<16x8xf32>
    %461 = tpu.matmul %458, %460, %cst_834 {dimension_numbers = #tpu.dot_dimension_numbers<[1], [0], [0], [1], [0, 0, 1, 1], [], []>} : vector<16x16xbf16>, vector<16x8xbf16>, vector<16x8xf32> -> vector<16x8xf32>
    %462 = arith.addf %456, %461 : vector<16x8xf32>
    %c0_835 = arith.constant 0 : index
    %c0_836 = arith.constant 0 : index
    %c1_837 = arith.constant 1 : index
    %c3_838 = arith.constant 3 : index
    %c0_839 = arith.constant 0 : index
    %463 = vector.load %arg9[%c0_835, %c0_836, %c1_837, %c3_838, %c0_839] : memref<1x1x2x19x16xbf16, #tpu.memory_space<vmem>>, vector<1x1x1x16x16xbf16>
    %464 = vector.shape_cast %463 : vector<1x1x1x16x16xbf16> to vector<16x16xbf16>
    %c0_840 = arith.constant 0 : index
    %c3_841 = arith.constant 3 : index
    %c6_842 = arith.constant 6 : index
    %c0_843 = arith.constant 0 : index
    %c0_844 = arith.constant 0 : index
    %465 = vector.load %arg17[%c0_840, %c3_841, %c6_842, %c0_843, %c0_844] : memref<1x7x7x16x8xbf16, #tpu.memory_space<vmem>>, vector<1x1x1x16x8xbf16>
    %466 = vector.shape_cast %465 : vector<1x1x1x16x8xbf16> to vector<16x8xbf16>
    %cst_845 = arith.constant dense<0.000000e+00> : vector<16x8xf32>
    %467 = tpu.matmul %464, %466, %cst_845 {dimension_numbers = #tpu.dot_dimension_numbers<[1], [0], [0], [1], [0, 0, 1, 1], [], []>} : vector<16x16xbf16>, vector<16x8xbf16>, vector<16x8xf32> -> vector<16x8xf32>
    %468 = arith.addf %462, %467 : vector<16x8xf32>
    %c0_846 = arith.constant 0 : index
    %c0_847 = arith.constant 0 : index
    %c1_848 = arith.constant 1 : index
    %c0_849 = arith.constant 0 : index
    %c0_850 = arith.constant 0 : index
    %469 = vector.load %arg11[%c0_846, %c0_847, %c1_848, %c0_849, %c0_850] : memref<1x1x2x19x16xbf16, #tpu.memory_space<vmem>>, vector<1x1x1x16x16xbf16>
    %470 = vector.shape_cast %469 : vector<1x1x1x16x16xbf16> to vector<16x16xbf16>
    %c0_851 = arith.constant 0 : index
    %c4_852 = arith.constant 4 : index
    %c0_853 = arith.constant 0 : index
    %c0_854 = arith.constant 0 : index
    %c0_855 = arith.constant 0 : index
    %471 = vector.load %arg17[%c0_851, %c4_852, %c0_853, %c0_854, %c0_855] : memref<1x7x7x16x8xbf16, #tpu.memory_space<vmem>>, vector<1x1x1x16x8xbf16>
    %472 = vector.shape_cast %471 : vector<1x1x1x16x8xbf16> to vector<16x8xbf16>
    %cst_856 = arith.constant dense<0.000000e+00> : vector<16x8xf32>
    %473 = tpu.matmul %470, %472, %cst_856 {dimension_numbers = #tpu.dot_dimension_numbers<[1], [0], [0], [1], [0, 0, 1, 1], [], []>} : vector<16x16xbf16>, vector<16x8xbf16>, vector<16x8xf32> -> vector<16x8xf32>
    %474 = arith.addf %468, %473 : vector<16x8xf32>
    %c0_857 = arith.constant 0 : index
    %c0_858 = arith.constant 0 : index
    %c1_859 = arith.constant 1 : index
    %c0_860 = arith.constant 0 : index
    %c0_861 = arith.constant 0 : index
    %475 = vector.load %arg12[%c0_857, %c0_858, %c1_859, %c0_860, %c0_861] : memref<1x1x2x19x16xbf16, #tpu.memory_space<vmem>>, vector<1x1x1x16x16xbf16>
    %476 = vector.shape_cast %475 : vector<1x1x1x16x16xbf16> to vector<16x16xbf16>
    %c0_862 = arith.constant 0 : index
    %c4_863 = arith.constant 4 : index
    %c1_864 = arith.constant 1 : index
    %c0_865 = arith.constant 0 : index
    %c0_866 = arith.constant 0 : index
    %477 = vector.load %arg17[%c0_862, %c4_863, %c1_864, %c0_865, %c0_866] : memref<1x7x7x16x8xbf16, #tpu.memory_space<vmem>>, vector<1x1x1x16x8xbf16>
    %478 = vector.shape_cast %477 : vector<1x1x1x16x8xbf16> to vector<16x8xbf16>
    %cst_867 = arith.constant dense<0.000000e+00> : vector<16x8xf32>
    %479 = tpu.matmul %476, %478, %cst_867 {dimension_numbers = #tpu.dot_dimension_numbers<[1], [0], [0], [1], [0, 0, 1, 1], [], []>} : vector<16x16xbf16>, vector<16x8xbf16>, vector<16x8xf32> -> vector<16x8xf32>
    %480 = arith.addf %474, %479 : vector<16x8xf32>
    %c0_868 = arith.constant 0 : index
    %c0_869 = arith.constant 0 : index
    %c1_870 = arith.constant 1 : index
    %c1_871 = arith.constant 1 : index
    %c0_872 = arith.constant 0 : index
    %481 = vector.load %arg11[%c0_868, %c0_869, %c1_870, %c1_871, %c0_872] : memref<1x1x2x19x16xbf16, #tpu.memory_space<vmem>>, vector<1x1x1x16x16xbf16>
    %482 = vector.shape_cast %481 : vector<1x1x1x16x16xbf16> to vector<16x16xbf16>
    %c0_873 = arith.constant 0 : index
    %c4_874 = arith.constant 4 : index
    %c2_875 = arith.constant 2 : index
    %c0_876 = arith.constant 0 : index
    %c0_877 = arith.constant 0 : index
    %483 = vector.load %arg17[%c0_873, %c4_874, %c2_875, %c0_876, %c0_877] : memref<1x7x7x16x8xbf16, #tpu.memory_space<vmem>>, vector<1x1x1x16x8xbf16>
    %484 = vector.shape_cast %483 : vector<1x1x1x16x8xbf16> to vector<16x8xbf16>
    %cst_878 = arith.constant dense<0.000000e+00> : vector<16x8xf32>
    %485 = tpu.matmul %482, %484, %cst_878 {dimension_numbers = #tpu.dot_dimension_numbers<[1], [0], [0], [1], [0, 0, 1, 1], [], []>} : vector<16x16xbf16>, vector<16x8xbf16>, vector<16x8xf32> -> vector<16x8xf32>
    %486 = arith.addf %480, %485 : vector<16x8xf32>
    %c0_879 = arith.constant 0 : index
    %c0_880 = arith.constant 0 : index
    %c1_881 = arith.constant 1 : index
    %c1_882 = arith.constant 1 : index
    %c0_883 = arith.constant 0 : index
    %487 = vector.load %arg12[%c0_879, %c0_880, %c1_881, %c1_882, %c0_883] : memref<1x1x2x19x16xbf16, #tpu.memory_space<vmem>>, vector<1x1x1x16x16xbf16>
    %488 = vector.shape_cast %487 : vector<1x1x1x16x16xbf16> to vector<16x16xbf16>
    %c0_884 = arith.constant 0 : index
    %c4_885 = arith.constant 4 : index
    %c3_886 = arith.constant 3 : index
    %c0_887 = arith.constant 0 : index
    %c0_888 = arith.constant 0 : index
    %489 = vector.load %arg17[%c0_884, %c4_885, %c3_886, %c0_887, %c0_888] : memref<1x7x7x16x8xbf16, #tpu.memory_space<vmem>>, vector<1x1x1x16x8xbf16>
    %490 = vector.shape_cast %489 : vector<1x1x1x16x8xbf16> to vector<16x8xbf16>
    %cst_889 = arith.constant dense<0.000000e+00> : vector<16x8xf32>
    %491 = tpu.matmul %488, %490, %cst_889 {dimension_numbers = #tpu.dot_dimension_numbers<[1], [0], [0], [1], [0, 0, 1, 1], [], []>} : vector<16x16xbf16>, vector<16x8xbf16>, vector<16x8xf32> -> vector<16x8xf32>
    %492 = arith.addf %486, %491 : vector<16x8xf32>
    %c0_890 = arith.constant 0 : index
    %c0_891 = arith.constant 0 : index
    %c1_892 = arith.constant 1 : index
    %c2_893 = arith.constant 2 : index
    %c0_894 = arith.constant 0 : index
    %493 = vector.load %arg11[%c0_890, %c0_891, %c1_892, %c2_893, %c0_894] : memref<1x1x2x19x16xbf16, #tpu.memory_space<vmem>>, vector<1x1x1x16x16xbf16>
    %494 = vector.shape_cast %493 : vector<1x1x1x16x16xbf16> to vector<16x16xbf16>
    %c0_895 = arith.constant 0 : index
    %c4_896 = arith.constant 4 : index
    %c4_897 = arith.constant 4 : index
    %c0_898 = arith.constant 0 : index
    %c0_899 = arith.constant 0 : index
    %495 = vector.load %arg17[%c0_895, %c4_896, %c4_897, %c0_898, %c0_899] : memref<1x7x7x16x8xbf16, #tpu.memory_space<vmem>>, vector<1x1x1x16x8xbf16>
    %496 = vector.shape_cast %495 : vector<1x1x1x16x8xbf16> to vector<16x8xbf16>
    %cst_900 = arith.constant dense<0.000000e+00> : vector<16x8xf32>
    %497 = tpu.matmul %494, %496, %cst_900 {dimension_numbers = #tpu.dot_dimension_numbers<[1], [0], [0], [1], [0, 0, 1, 1], [], []>} : vector<16x16xbf16>, vector<16x8xbf16>, vector<16x8xf32> -> vector<16x8xf32>
    %498 = arith.addf %492, %497 : vector<16x8xf32>
    %c0_901 = arith.constant 0 : index
    %c0_902 = arith.constant 0 : index
    %c1_903 = arith.constant 1 : index
    %c2_904 = arith.constant 2 : index
    %c0_905 = arith.constant 0 : index
    %499 = vector.load %arg12[%c0_901, %c0_902, %c1_903, %c2_904, %c0_905] : memref<1x1x2x19x16xbf16, #tpu.memory_space<vmem>>, vector<1x1x1x16x16xbf16>
    %500 = vector.shape_cast %499 : vector<1x1x1x16x16xbf16> to vector<16x16xbf16>
    %c0_906 = arith.constant 0 : index
    %c4_907 = arith.constant 4 : index
    %c5_908 = arith.constant 5 : index
    %c0_909 = arith.constant 0 : index
    %c0_910 = arith.constant 0 : index
    %501 = vector.load %arg17[%c0_906, %c4_907, %c5_908, %c0_909, %c0_910] : memref<1x7x7x16x8xbf16, #tpu.memory_space<vmem>>, vector<1x1x1x16x8xbf16>
    %502 = vector.shape_cast %501 : vector<1x1x1x16x8xbf16> to vector<16x8xbf16>
    %cst_911 = arith.constant dense<0.000000e+00> : vector<16x8xf32>
    %503 = tpu.matmul %500, %502, %cst_911 {dimension_numbers = #tpu.dot_dimension_numbers<[1], [0], [0], [1], [0, 0, 1, 1], [], []>} : vector<16x16xbf16>, vector<16x8xbf16>, vector<16x8xf32> -> vector<16x8xf32>
    %504 = arith.addf %498, %503 : vector<16x8xf32>
    %c0_912 = arith.constant 0 : index
    %c0_913 = arith.constant 0 : index
    %c1_914 = arith.constant 1 : index
    %c3_915 = arith.constant 3 : index
    %c0_916 = arith.constant 0 : index
    %505 = vector.load %arg11[%c0_912, %c0_913, %c1_914, %c3_915, %c0_916] : memref<1x1x2x19x16xbf16, #tpu.memory_space<vmem>>, vector<1x1x1x16x16xbf16>
    %506 = vector.shape_cast %505 : vector<1x1x1x16x16xbf16> to vector<16x16xbf16>
    %c0_917 = arith.constant 0 : index
    %c4_918 = arith.constant 4 : index
    %c6_919 = arith.constant 6 : index
    %c0_920 = arith.constant 0 : index
    %c0_921 = arith.constant 0 : index
    %507 = vector.load %arg17[%c0_917, %c4_918, %c6_919, %c0_920, %c0_921] : memref<1x7x7x16x8xbf16, #tpu.memory_space<vmem>>, vector<1x1x1x16x8xbf16>
    %508 = vector.shape_cast %507 : vector<1x1x1x16x8xbf16> to vector<16x8xbf16>
    %cst_922 = arith.constant dense<0.000000e+00> : vector<16x8xf32>
    %509 = tpu.matmul %506, %508, %cst_922 {dimension_numbers = #tpu.dot_dimension_numbers<[1], [0], [0], [1], [0, 0, 1, 1], [], []>} : vector<16x16xbf16>, vector<16x8xbf16>, vector<16x8xf32> -> vector<16x8xf32>
    %510 = arith.addf %504, %509 : vector<16x8xf32>
    %c0_923 = arith.constant 0 : index
    %c0_924 = arith.constant 0 : index
    %c1_925 = arith.constant 1 : index
    %c0_926 = arith.constant 0 : index
    %c0_927 = arith.constant 0 : index
    %511 = vector.load %arg13[%c0_923, %c0_924, %c1_925, %c0_926, %c0_927] : memref<1x1x2x19x16xbf16, #tpu.memory_space<vmem>>, vector<1x1x1x16x16xbf16>
    %512 = vector.shape_cast %511 : vector<1x1x1x16x16xbf16> to vector<16x16xbf16>
    %c0_928 = arith.constant 0 : index
    %c5_929 = arith.constant 5 : index
    %c0_930 = arith.constant 0 : index
    %c0_931 = arith.constant 0 : index
    %c0_932 = arith.constant 0 : index
    %513 = vector.load %arg17[%c0_928, %c5_929, %c0_930, %c0_931, %c0_932] : memref<1x7x7x16x8xbf16, #tpu.memory_space<vmem>>, vector<1x1x1x16x8xbf16>
    %514 = vector.shape_cast %513 : vector<1x1x1x16x8xbf16> to vector<16x8xbf16>
    %cst_933 = arith.constant dense<0.000000e+00> : vector<16x8xf32>
    %515 = tpu.matmul %512, %514, %cst_933 {dimension_numbers = #tpu.dot_dimension_numbers<[1], [0], [0], [1], [0, 0, 1, 1], [], []>} : vector<16x16xbf16>, vector<16x8xbf16>, vector<16x8xf32> -> vector<16x8xf32>
    %516 = arith.addf %510, %515 : vector<16x8xf32>
    %c0_934 = arith.constant 0 : index
    %c0_935 = arith.constant 0 : index
    %c1_936 = arith.constant 1 : index
    %c0_937 = arith.constant 0 : index
    %c0_938 = arith.constant 0 : index
    %517 = vector.load %arg14[%c0_934, %c0_935, %c1_936, %c0_937, %c0_938] : memref<1x1x2x19x16xbf16, #tpu.memory_space<vmem>>, vector<1x1x1x16x16xbf16>
    %518 = vector.shape_cast %517 : vector<1x1x1x16x16xbf16> to vector<16x16xbf16>
    %c0_939 = arith.constant 0 : index
    %c5_940 = arith.constant 5 : index
    %c1_941 = arith.constant 1 : index
    %c0_942 = arith.constant 0 : index
    %c0_943 = arith.constant 0 : index
    %519 = vector.load %arg17[%c0_939, %c5_940, %c1_941, %c0_942, %c0_943] : memref<1x7x7x16x8xbf16, #tpu.memory_space<vmem>>, vector<1x1x1x16x8xbf16>
    %520 = vector.shape_cast %519 : vector<1x1x1x16x8xbf16> to vector<16x8xbf16>
    %cst_944 = arith.constant dense<0.000000e+00> : vector<16x8xf32>
    %521 = tpu.matmul %518, %520, %cst_944 {dimension_numbers = #tpu.dot_dimension_numbers<[1], [0], [0], [1], [0, 0, 1, 1], [], []>} : vector<16x16xbf16>, vector<16x8xbf16>, vector<16x8xf32> -> vector<16x8xf32>
    %522 = arith.addf %516, %521 : vector<16x8xf32>
    %c0_945 = arith.constant 0 : index
    %c0_946 = arith.constant 0 : index
    %c1_947 = arith.constant 1 : index
    %c1_948 = arith.constant 1 : index
    %c0_949 = arith.constant 0 : index
    %523 = vector.load %arg13[%c0_945, %c0_946, %c1_947, %c1_948, %c0_949] : memref<1x1x2x19x16xbf16, #tpu.memory_space<vmem>>, vector<1x1x1x16x16xbf16>
    %524 = vector.shape_cast %523 : vector<1x1x1x16x16xbf16> to vector<16x16xbf16>
    %c0_950 = arith.constant 0 : index
    %c5_951 = arith.constant 5 : index
    %c2_952 = arith.constant 2 : index
    %c0_953 = arith.constant 0 : index
    %c0_954 = arith.constant 0 : index
    %525 = vector.load %arg17[%c0_950, %c5_951, %c2_952, %c0_953, %c0_954] : memref<1x7x7x16x8xbf16, #tpu.memory_space<vmem>>, vector<1x1x1x16x8xbf16>
    %526 = vector.shape_cast %525 : vector<1x1x1x16x8xbf16> to vector<16x8xbf16>
    %cst_955 = arith.constant dense<0.000000e+00> : vector<16x8xf32>
    %527 = tpu.matmul %524, %526, %cst_955 {dimension_numbers = #tpu.dot_dimension_numbers<[1], [0], [0], [1], [0, 0, 1, 1], [], []>} : vector<16x16xbf16>, vector<16x8xbf16>, vector<16x8xf32> -> vector<16x8xf32>
    %528 = arith.addf %522, %527 : vector<16x8xf32>
    %c0_956 = arith.constant 0 : index
    %c0_957 = arith.constant 0 : index
    %c1_958 = arith.constant 1 : index
    %c1_959 = arith.constant 1 : index
    %c0_960 = arith.constant 0 : index
    %529 = vector.load %arg14[%c0_956, %c0_957, %c1_958, %c1_959, %c0_960] : memref<1x1x2x19x16xbf16, #tpu.memory_space<vmem>>, vector<1x1x1x16x16xbf16>
    %530 = vector.shape_cast %529 : vector<1x1x1x16x16xbf16> to vector<16x16xbf16>
    %c0_961 = arith.constant 0 : index
    %c5_962 = arith.constant 5 : index
    %c3_963 = arith.constant 3 : index
    %c0_964 = arith.constant 0 : index
    %c0_965 = arith.constant 0 : index
    %531 = vector.load %arg17[%c0_961, %c5_962, %c3_963, %c0_964, %c0_965] : memref<1x7x7x16x8xbf16, #tpu.memory_space<vmem>>, vector<1x1x1x16x8xbf16>
    %532 = vector.shape_cast %531 : vector<1x1x1x16x8xbf16> to vector<16x8xbf16>
    %cst_966 = arith.constant dense<0.000000e+00> : vector<16x8xf32>
    %533 = tpu.matmul %530, %532, %cst_966 {dimension_numbers = #tpu.dot_dimension_numbers<[1], [0], [0], [1], [0, 0, 1, 1], [], []>} : vector<16x16xbf16>, vector<16x8xbf16>, vector<16x8xf32> -> vector<16x8xf32>
    %534 = arith.addf %528, %533 : vector<16x8xf32>
    %c0_967 = arith.constant 0 : index
    %c0_968 = arith.constant 0 : index
    %c1_969 = arith.constant 1 : index
    %c2_970 = arith.constant 2 : index
    %c0_971 = arith.constant 0 : index
    %535 = vector.load %arg13[%c0_967, %c0_968, %c1_969, %c2_970, %c0_971] : memref<1x1x2x19x16xbf16, #tpu.memory_space<vmem>>, vector<1x1x1x16x16xbf16>
    %536 = vector.shape_cast %535 : vector<1x1x1x16x16xbf16> to vector<16x16xbf16>
    %c0_972 = arith.constant 0 : index
    %c5_973 = arith.constant 5 : index
    %c4_974 = arith.constant 4 : index
    %c0_975 = arith.constant 0 : index
    %c0_976 = arith.constant 0 : index
    %537 = vector.load %arg17[%c0_972, %c5_973, %c4_974, %c0_975, %c0_976] : memref<1x7x7x16x8xbf16, #tpu.memory_space<vmem>>, vector<1x1x1x16x8xbf16>
    %538 = vector.shape_cast %537 : vector<1x1x1x16x8xbf16> to vector<16x8xbf16>
    %cst_977 = arith.constant dense<0.000000e+00> : vector<16x8xf32>
    %539 = tpu.matmul %536, %538, %cst_977 {dimension_numbers = #tpu.dot_dimension_numbers<[1], [0], [0], [1], [0, 0, 1, 1], [], []>} : vector<16x16xbf16>, vector<16x8xbf16>, vector<16x8xf32> -> vector<16x8xf32>
    %540 = arith.addf %534, %539 : vector<16x8xf32>
    %c0_978 = arith.constant 0 : index
    %c0_979 = arith.constant 0 : index
    %c1_980 = arith.constant 1 : index
    %c2_981 = arith.constant 2 : index
    %c0_982 = arith.constant 0 : index
    %541 = vector.load %arg14[%c0_978, %c0_979, %c1_980, %c2_981, %c0_982] : memref<1x1x2x19x16xbf16, #tpu.memory_space<vmem>>, vector<1x1x1x16x16xbf16>
    %542 = vector.shape_cast %541 : vector<1x1x1x16x16xbf16> to vector<16x16xbf16>
    %c0_983 = arith.constant 0 : index
    %c5_984 = arith.constant 5 : index
    %c5_985 = arith.constant 5 : index
    %c0_986 = arith.constant 0 : index
    %c0_987 = arith.constant 0 : index
    %543 = vector.load %arg17[%c0_983, %c5_984, %c5_985, %c0_986, %c0_987] : memref<1x7x7x16x8xbf16, #tpu.memory_space<vmem>>, vector<1x1x1x16x8xbf16>
    %544 = vector.shape_cast %543 : vector<1x1x1x16x8xbf16> to vector<16x8xbf16>
    %cst_988 = arith.constant dense<0.000000e+00> : vector<16x8xf32>
    %545 = tpu.matmul %542, %544, %cst_988 {dimension_numbers = #tpu.dot_dimension_numbers<[1], [0], [0], [1], [0, 0, 1, 1], [], []>} : vector<16x16xbf16>, vector<16x8xbf16>, vector<16x8xf32> -> vector<16x8xf32>
    %546 = arith.addf %540, %545 : vector<16x8xf32>
    %c0_989 = arith.constant 0 : index
    %c0_990 = arith.constant 0 : index
    %c1_991 = arith.constant 1 : index
    %c3_992 = arith.constant 3 : index
    %c0_993 = arith.constant 0 : index
    %547 = vector.load %arg13[%c0_989, %c0_990, %c1_991, %c3_992, %c0_993] : memref<1x1x2x19x16xbf16, #tpu.memory_space<vmem>>, vector<1x1x1x16x16xbf16>
    %548 = vector.shape_cast %547 : vector<1x1x1x16x16xbf16> to vector<16x16xbf16>
    %c0_994 = arith.constant 0 : index
    %c5_995 = arith.constant 5 : index
    %c6_996 = arith.constant 6 : index
    %c0_997 = arith.constant 0 : index
    %c0_998 = arith.constant 0 : index
    %549 = vector.load %arg17[%c0_994, %c5_995, %c6_996, %c0_997, %c0_998] : memref<1x7x7x16x8xbf16, #tpu.memory_space<vmem>>, vector<1x1x1x16x8xbf16>
    %550 = vector.shape_cast %549 : vector<1x1x1x16x8xbf16> to vector<16x8xbf16>
    %cst_999 = arith.constant dense<0.000000e+00> : vector<16x8xf32>
    %551 = tpu.matmul %548, %550, %cst_999 {dimension_numbers = #tpu.dot_dimension_numbers<[1], [0], [0], [1], [0, 0, 1, 1], [], []>} : vector<16x16xbf16>, vector<16x8xbf16>, vector<16x8xf32> -> vector<16x8xf32>
    %552 = arith.addf %546, %551 : vector<16x8xf32>
    %c0_1000 = arith.constant 0 : index
    %c0_1001 = arith.constant 0 : index
    %c1_1002 = arith.constant 1 : index
    %c0_1003 = arith.constant 0 : index
    %c0_1004 = arith.constant 0 : index
    %553 = vector.load %arg15[%c0_1000, %c0_1001, %c1_1002, %c0_1003, %c0_1004] : memref<1x1x2x19x16xbf16, #tpu.memory_space<vmem>>, vector<1x1x1x16x16xbf16>
    %554 = vector.shape_cast %553 : vector<1x1x1x16x16xbf16> to vector<16x16xbf16>
    %c0_1005 = arith.constant 0 : index
    %c6_1006 = arith.constant 6 : index
    %c0_1007 = arith.constant 0 : index
    %c0_1008 = arith.constant 0 : index
    %c0_1009 = arith.constant 0 : index
    %555 = vector.load %arg17[%c0_1005, %c6_1006, %c0_1007, %c0_1008, %c0_1009] : memref<1x7x7x16x8xbf16, #tpu.memory_space<vmem>>, vector<1x1x1x16x8xbf16>
    %556 = vector.shape_cast %555 : vector<1x1x1x16x8xbf16> to vector<16x8xbf16>
    %cst_1010 = arith.constant dense<0.000000e+00> : vector<16x8xf32>
    %557 = tpu.matmul %554, %556, %cst_1010 {dimension_numbers = #tpu.dot_dimension_numbers<[1], [0], [0], [1], [0, 0, 1, 1], [], []>} : vector<16x16xbf16>, vector<16x8xbf16>, vector<16x8xf32> -> vector<16x8xf32>
    %558 = arith.addf %552, %557 : vector<16x8xf32>
    %c0_1011 = arith.constant 0 : index
    %c0_1012 = arith.constant 0 : index
    %c1_1013 = arith.constant 1 : index
    %c0_1014 = arith.constant 0 : index
    %c0_1015 = arith.constant 0 : index
    %559 = vector.load %arg16[%c0_1011, %c0_1012, %c1_1013, %c0_1014, %c0_1015] : memref<1x1x2x19x16xbf16, #tpu.memory_space<vmem>>, vector<1x1x1x16x16xbf16>
    %560 = vector.shape_cast %559 : vector<1x1x1x16x16xbf16> to vector<16x16xbf16>
    %c0_1016 = arith.constant 0 : index
    %c6_1017 = arith.constant 6 : index
    %c1_1018 = arith.constant 1 : index
    %c0_1019 = arith.constant 0 : index
    %c0_1020 = arith.constant 0 : index
    %561 = vector.load %arg17[%c0_1016, %c6_1017, %c1_1018, %c0_1019, %c0_1020] : memref<1x7x7x16x8xbf16, #tpu.memory_space<vmem>>, vector<1x1x1x16x8xbf16>
    %562 = vector.shape_cast %561 : vector<1x1x1x16x8xbf16> to vector<16x8xbf16>
    %cst_1021 = arith.constant dense<0.000000e+00> : vector<16x8xf32>
    %563 = tpu.matmul %560, %562, %cst_1021 {dimension_numbers = #tpu.dot_dimension_numbers<[1], [0], [0], [1], [0, 0, 1, 1], [], []>} : vector<16x16xbf16>, vector<16x8xbf16>, vector<16x8xf32> -> vector<16x8xf32>
    %564 = arith.addf %558, %563 : vector<16x8xf32>
    %c0_1022 = arith.constant 0 : index
    %c0_1023 = arith.constant 0 : index
    %c1_1024 = arith.constant 1 : index
    %c1_1025 = arith.constant 1 : index
    %c0_1026 = arith.constant 0 : index
    %565 = vector.load %arg15[%c0_1022, %c0_1023, %c1_1024, %c1_1025, %c0_1026] : memref<1x1x2x19x16xbf16, #tpu.memory_space<vmem>>, vector<1x1x1x16x16xbf16>
    %566 = vector.shape_cast %565 : vector<1x1x1x16x16xbf16> to vector<16x16xbf16>
    %c0_1027 = arith.constant 0 : index
    %c6_1028 = arith.constant 6 : index
    %c2_1029 = arith.constant 2 : index
    %c0_1030 = arith.constant 0 : index
    %c0_1031 = arith.constant 0 : index
    %567 = vector.load %arg17[%c0_1027, %c6_1028, %c2_1029, %c0_1030, %c0_1031] : memref<1x7x7x16x8xbf16, #tpu.memory_space<vmem>>, vector<1x1x1x16x8xbf16>
    %568 = vector.shape_cast %567 : vector<1x1x1x16x8xbf16> to vector<16x8xbf16>
    %cst_1032 = arith.constant dense<0.000000e+00> : vector<16x8xf32>
    %569 = tpu.matmul %566, %568, %cst_1032 {dimension_numbers = #tpu.dot_dimension_numbers<[1], [0], [0], [1], [0, 0, 1, 1], [], []>} : vector<16x16xbf16>, vector<16x8xbf16>, vector<16x8xf32> -> vector<16x8xf32>
    %570 = arith.addf %564, %569 : vector<16x8xf32>
    %c0_1033 = arith.constant 0 : index
    %c0_1034 = arith.constant 0 : index
    %c1_1035 = arith.constant 1 : index
    %c1_1036 = arith.constant 1 : index
    %c0_1037 = arith.constant 0 : index
    %571 = vector.load %arg16[%c0_1033, %c0_1034, %c1_1035, %c1_1036, %c0_1037] : memref<1x1x2x19x16xbf16, #tpu.memory_space<vmem>>, vector<1x1x1x16x16xbf16>
    %572 = vector.shape_cast %571 : vector<1x1x1x16x16xbf16> to vector<16x16xbf16>
    %c0_1038 = arith.constant 0 : index
    %c6_1039 = arith.constant 6 : index
    %c3_1040 = arith.constant 3 : index
    %c0_1041 = arith.constant 0 : index
    %c0_1042 = arith.constant 0 : index
    %573 = vector.load %arg17[%c0_1038, %c6_1039, %c3_1040, %c0_1041, %c0_1042] : memref<1x7x7x16x8xbf16, #tpu.memory_space<vmem>>, vector<1x1x1x16x8xbf16>
    %574 = vector.shape_cast %573 : vector<1x1x1x16x8xbf16> to vector<16x8xbf16>
    %cst_1043 = arith.constant dense<0.000000e+00> : vector<16x8xf32>
    %575 = tpu.matmul %572, %574, %cst_1043 {dimension_numbers = #tpu.dot_dimension_numbers<[1], [0], [0], [1], [0, 0, 1, 1], [], []>} : vector<16x16xbf16>, vector<16x8xbf16>, vector<16x8xf32> -> vector<16x8xf32>
    %576 = arith.addf %570, %575 : vector<16x8xf32>
    %c0_1044 = arith.constant 0 : index
    %c0_1045 = arith.constant 0 : index
    %c1_1046 = arith.constant 1 : index
    %c2_1047 = arith.constant 2 : index
    %c0_1048 = arith.constant 0 : index
    %577 = vector.load %arg15[%c0_1044, %c0_1045, %c1_1046, %c2_1047, %c0_1048] : memref<1x1x2x19x16xbf16, #tpu.memory_space<vmem>>, vector<1x1x1x16x16xbf16>
    %578 = vector.shape_cast %577 : vector<1x1x1x16x16xbf16> to vector<16x16xbf16>
    %c0_1049 = arith.constant 0 : index
    %c6_1050 = arith.constant 6 : index
    %c4_1051 = arith.constant 4 : index
    %c0_1052 = arith.constant 0 : index
    %c0_1053 = arith.constant 0 : index
    %579 = vector.load %arg17[%c0_1049, %c6_1050, %c4_1051, %c0_1052, %c0_1053] : memref<1x7x7x16x8xbf16, #tpu.memory_space<vmem>>, vector<1x1x1x16x8xbf16>
    %580 = vector.shape_cast %579 : vector<1x1x1x16x8xbf16> to vector<16x8xbf16>
    %cst_1054 = arith.constant dense<0.000000e+00> : vector<16x8xf32>
    %581 = tpu.matmul %578, %580, %cst_1054 {dimension_numbers = #tpu.dot_dimension_numbers<[1], [0], [0], [1], [0, 0, 1, 1], [], []>} : vector<16x16xbf16>, vector<16x8xbf16>, vector<16x8xf32> -> vector<16x8xf32>
    %582 = arith.addf %576, %581 : vector<16x8xf32>
    %c0_1055 = arith.constant 0 : index
    %c0_1056 = arith.constant 0 : index
    %c1_1057 = arith.constant 1 : index
    %c2_1058 = arith.constant 2 : index
    %c0_1059 = arith.constant 0 : index
    %583 = vector.load %arg16[%c0_1055, %c0_1056, %c1_1057, %c2_1058, %c0_1059] : memref<1x1x2x19x16xbf16, #tpu.memory_space<vmem>>, vector<1x1x1x16x16xbf16>
    %584 = vector.shape_cast %583 : vector<1x1x1x16x16xbf16> to vector<16x16xbf16>
    %c0_1060 = arith.constant 0 : index
    %c6_1061 = arith.constant 6 : index
    %c5_1062 = arith.constant 5 : index
    %c0_1063 = arith.constant 0 : index
    %c0_1064 = arith.constant 0 : index
    %585 = vector.load %arg17[%c0_1060, %c6_1061, %c5_1062, %c0_1063, %c0_1064] : memref<1x7x7x16x8xbf16, #tpu.memory_space<vmem>>, vector<1x1x1x16x8xbf16>
    %586 = vector.shape_cast %585 : vector<1x1x1x16x8xbf16> to vector<16x8xbf16>
    %cst_1065 = arith.constant dense<0.000000e+00> : vector<16x8xf32>
    %587 = tpu.matmul %584, %586, %cst_1065 {dimension_numbers = #tpu.dot_dimension_numbers<[1], [0], [0], [1], [0, 0, 1, 1], [], []>} : vector<16x16xbf16>, vector<16x8xbf16>, vector<16x8xf32> -> vector<16x8xf32>
    %588 = arith.addf %582, %587 : vector<16x8xf32>
    %c0_1066 = arith.constant 0 : index
    %c0_1067 = arith.constant 0 : index
    %c1_1068 = arith.constant 1 : index
    %c3_1069 = arith.constant 3 : index
    %c0_1070 = arith.constant 0 : index
    %589 = vector.load %arg15[%c0_1066, %c0_1067, %c1_1068, %c3_1069, %c0_1070] : memref<1x1x2x19x16xbf16, #tpu.memory_space<vmem>>, vector<1x1x1x16x16xbf16>
    %590 = vector.shape_cast %589 : vector<1x1x1x16x16xbf16> to vector<16x16xbf16>
    %c0_1071 = arith.constant 0 : index
    %c6_1072 = arith.constant 6 : index
    %c6_1073 = arith.constant 6 : index
    %c0_1074 = arith.constant 0 : index
    %c0_1075 = arith.constant 0 : index
    %591 = vector.load %arg17[%c0_1071, %c6_1072, %c6_1073, %c0_1074, %c0_1075] : memref<1x7x7x16x8xbf16, #tpu.memory_space<vmem>>, vector<1x1x1x16x8xbf16>
    %592 = vector.shape_cast %591 : vector<1x1x1x16x8xbf16> to vector<16x8xbf16>
    %cst_1076 = arith.constant dense<0.000000e+00> : vector<16x8xf32>
    %593 = tpu.matmul %590, %592, %cst_1076 {dimension_numbers = #tpu.dot_dimension_numbers<[1], [0], [0], [1], [0, 0, 1, 1], [], []>} : vector<16x16xbf16>, vector<16x8xbf16>, vector<16x8xf32> -> vector<16x8xf32>
    %594 = arith.addf %588, %593 : vector<16x8xf32>
    %c1_1077 = arith.constant 1 : index
    %c0_1078 = arith.constant 0 : index
    %c0_1079 = arith.constant 0 : index
    %595 = vector.load %arg20[%c1_1077, %c0_1078, %c0_1079] : memref<2x16x8xf32, #tpu.memory_space<vmem>>, vector<1x16x8xf32>
    %596 = vector.shape_cast %595 : vector<1x16x8xf32> to vector<16x8xf32>
    %597 = arith.addf %596, %594 : vector<16x8xf32>
    %c1_1080 = arith.constant 1 : index
    %c0_1081 = arith.constant 0 : index
    %c0_1082 = arith.constant 0 : index
    %598 = vector.load %arg20[%c1_1080, %c0_1081, %c0_1082] : memref<2x16x8xf32, #tpu.memory_space<vmem>>, vector<1x16x8xf32>
    %599 = vector.shape_cast %598 : vector<1x16x8xf32> to vector<16x8xf32>
    %600 = vector.shape_cast %597 : vector<16x8xf32> to vector<1x16x8xf32>
    tpu.vector_store %arg20[%c1_1080, %c0_1081, %c0_1082], %600 {strides = array<i32>} : memref<2x16x8xf32, #tpu.memory_space<vmem>>, vector<1x16x8xf32>,
    %c2_i32 = arith.constant 2 : i32
    %601 = arith.cmpi eq, %arg2, %c2_i32 : i32
    %602 = arith.extui %601 : i1 to i32
    %c0_i32_1083 = arith.constant 0 : i32
    %603 = arith.cmpi ne, %602, %c0_i32_1083 : i32
    scf.if %603 {
      %c0_1084 = arith.constant 0 : index
      %c0_1085 = arith.constant 0 : index
      %c0_1086 = arith.constant 0 : index
      %604 = vector.load %arg20[%c0_1084, %c0_1085, %c0_1086] : memref<2x16x8xf32, #tpu.memory_space<vmem>>, vector<2x16x8xf32>
      %c0_1087 = arith.constant 0 : index
      %c0_1088 = arith.constant 0 : index
      %605 = vector.load %arg18[%c0_1087, %c0_1088] : memref<1x8xf32, #tpu.memory_space<vmem>>, vector<1x8xf32>
      %606 = vector.shape_cast %605 : vector<1x8xf32> to vector<1x1x8xf32>
      %607 = vector.broadcast %606 : vector<1x1x8xf32> to vector<2x16x8xf32>
      %608 = arith.addf %604, %607 : vector<2x16x8xf32>
      %cst_1089 = arith.constant 0.000000e+00 : f32
      %609 = vector.broadcast %cst_1089 : f32 to vector<2x16x8xf32>
      %610 = arith.maximumf %608, %609 : vector<2x16x8xf32>
      %611 = arith.truncf %610 : vector<2x16x8xf32> to vector<2x16x8xbf16>
      %c0_1090 = arith.constant 0 : index
      %c0_1091 = arith.constant 0 : index
      %c0_1092 = arith.constant 0 : index
      %c0_1093 = arith.constant 0 : index
      %c0_1094 = arith.constant 0 : index
      %612 = vector.load %arg19[%c0_1090, %c0_1091, %c0_1092, %c0_1093, %c0_1094] : memref<1x1x2x16x8xbf16, #tpu.memory_space<vmem>>, vector<1x1x2x16x8xbf16>
      %613 = vector.shape_cast %612 : vector<1x1x2x16x8xbf16> to vector<2x16x8xbf16>
      %614 = vector.shape_cast %611 : vector<2x16x8xbf16> to vector<1x1x2x16x8xbf16>
      tpu.vector_store %arg19[%c0_1090, %c0_1091, %c0_1092, %c0_1093, %c0_1094], %614 {strides = array<i32>} : memref<1x1x2x16x8xbf16, #tpu.memory_space<vmem>>, vector<1x1x2x16x8xbf16>,
    } else {
    }
    return
  }
  func.func @transform_0(%arg0: i32, %arg1: i32, %arg2: i32) -> (i32, i32, i32, i32, i32) {
    %c1_i32 = arith.constant 1 : i32
    %0 = arith.muli %arg0, %c1_i32 : i32
    %1 = arith.addi %0, %arg2 : i32
    %c2_i32 = arith.constant 2 : i32
    %2 = arith.muli %arg1, %c2_i32 : i32
    %c0_i32 = arith.constant 0 : i32
    %3 = arith.addi %2, %c0_i32 : i32
    %c0_i32_0 = arith.constant 0 : i32
    %c0_i32_1 = arith.constant 0 : i32
    %c0_i32_2 = arith.constant 0 : i32
    %c0_i32_3 = arith.constant 0 : i32
    return %1, %3, %c0_i32_0, %c0_i32_1, %c0_i32_2 : i32, i32, i32, i32, i32
  }
  func.func @transform_1(%arg0: i32, %arg1: i32, %arg2: i32) -> (i32, i32, i32, i32, i32) {
    %c1_i32 = arith.constant 1 : i32
    %0 = arith.muli %arg0, %c1_i32 : i32
    %1 = arith.addi %0, %arg2 : i32
    %c2_i32 = arith.constant 2 : i32
    %2 = arith.muli %arg1, %c2_i32 : i32
    %c0_i32 = arith.constant 0 : i32
    %3 = arith.addi %2, %c0_i32 : i32
    %c0_i32_0 = arith.constant 0 : i32
    %c0_i32_1 = arith.constant 0 : i32
    %c0_i32_2 = arith.constant 0 : i32
    %c0_i32_3 = arith.constant 0 : i32
    return %1, %3, %c0_i32_0, %c0_i32_1, %c0_i32_2 : i32, i32, i32, i32, i32
  }
  func.func @transform_2(%arg0: i32, %arg1: i32, %arg2: i32) -> (i32, i32, i32, i32, i32) {
    %c1_i32 = arith.constant 1 : i32
    %0 = arith.muli %arg0, %c1_i32 : i32
    %1 = arith.addi %0, %arg2 : i32
    %c2_i32 = arith.constant 2 : i32
    %2 = arith.muli %arg1, %c2_i32 : i32
    %c1_i32_0 = arith.constant 1 : i32
    %3 = arith.addi %2, %c1_i32_0 : i32
    %c0_i32 = arith.constant 0 : i32
    %c0_i32_1 = arith.constant 0 : i32
    %c0_i32_2 = arith.constant 0 : i32
    %c0_i32_3 = arith.constant 0 : i32
    return %1, %3, %c0_i32, %c0_i32_1, %c0_i32_2 : i32, i32, i32, i32, i32
  }
  func.func @transform_3(%arg0: i32, %arg1: i32, %arg2: i32) -> (i32, i32, i32, i32, i32) {
    %c1_i32 = arith.constant 1 : i32
    %0 = arith.muli %arg0, %c1_i32 : i32
    %1 = arith.addi %0, %arg2 : i32
    %c2_i32 = arith.constant 2 : i32
    %2 = arith.muli %arg1, %c2_i32 : i32
    %c1_i32_0 = arith.constant 1 : i32
    %3 = arith.addi %2, %c1_i32_0 : i32
    %c0_i32 = arith.constant 0 : i32
    %c0_i32_1 = arith.constant 0 : i32
    %c0_i32_2 = arith.constant 0 : i32
    %c0_i32_3 = arith.constant 0 : i32
    return %1, %3, %c0_i32, %c0_i32_1, %c0_i32_2 : i32, i32, i32, i32, i32
  }
  func.func @transform_4(%arg0: i32, %arg1: i32, %arg2: i32) -> (i32, i32, i32, i32, i32) {
    %c1_i32 = arith.constant 1 : i32
    %0 = arith.muli %arg0, %c1_i32 : i32
    %1 = arith.addi %0, %arg2 : i32
    %c2_i32 = arith.constant 2 : i32
    %2 = arith.muli %arg1, %c2_i32 : i32
    %c2_i32_0 = arith.constant 2 : i32
    %3 = arith.addi %2, %c2_i32_0 : i32
    %c0_i32 = arith.constant 0 : i32
    %c0_i32_1 = arith.constant 0 : i32
    %c0_i32_2 = arith.constant 0 : i32
    %c0_i32_3 = arith.constant 0 : i32
    return %1, %3, %c0_i32, %c0_i32_1, %c0_i32_2 : i32, i32, i32, i32, i32
  }
  func.func @transform_5(%arg0: i32, %arg1: i32, %arg2: i32) -> (i32, i32, i32, i32, i32) {
    %c1_i32 = arith.constant 1 : i32
    %0 = arith.muli %arg0, %c1_i32 : i32
    %1 = arith.addi %0, %arg2 : i32
    %c2_i32 = arith.constant 2 : i32
    %2 = arith.muli %arg1, %c2_i32 : i32
    %c2_i32_0 = arith.constant 2 : i32
    %3 = arith.addi %2, %c2_i32_0 : i32
    %c0_i32 = arith.constant 0 : i32
    %c0_i32_1 = arith.constant 0 : i32
    %c0_i32_2 = arith.constant 0 : i32
    %c0_i32_3 = arith.constant 0 : i32
    return %1, %3, %c0_i32, %c0_i32_1, %c0_i32_2 : i32, i32, i32, i32, i32
  }
  func.func @transform_6(%arg0: i32, %arg1: i32, %arg2: i32) -> (i32, i32, i32, i32, i32) {
    %c1_i32 = arith.constant 1 : i32
    %0 = arith.muli %arg0, %c1_i32 : i32
    %1 = arith.addi %0, %arg2 : i32
    %c2_i32 = arith.constant 2 : i32
    %2 = arith.muli %arg1, %c2_i32 : i32
    %c3_i32 = arith.constant 3 : i32
    %3 = arith.addi %2, %c3_i32 : i32
    %c0_i32 = arith.constant 0 : i32
    %c0_i32_0 = arith.constant 0 : i32
    %c0_i32_1 = arith.constant 0 : i32
    %c0_i32_2 = arith.constant 0 : i32
    return %1, %3, %c0_i32, %c0_i32_0, %c0_i32_1 : i32, i32, i32, i32, i32
  }
  func.func @transform_7(%arg0: i32, %arg1: i32, %arg2: i32) -> (i32, i32, i32, i32, i32) {
    %c1_i32 = arith.constant 1 : i32
    %0 = arith.muli %arg0, %c1_i32 : i32
    %1 = arith.addi %0, %arg2 : i32
    %c2_i32 = arith.constant 2 : i32
    %2 = arith.muli %arg1, %c2_i32 : i32
    %c3_i32 = arith.constant 3 : i32
    %3 = arith.addi %2, %c3_i32 : i32
    %c0_i32 = arith.constant 0 : i32
    %c0_i32_0 = arith.constant 0 : i32
    %c0_i32_1 = arith.constant 0 : i32
    %c0_i32_2 = arith.constant 0 : i32
    return %1, %3, %c0_i32, %c0_i32_0, %c0_i32_1 : i32, i32, i32, i32, i32
  }
  func.func @transform_8(%arg0: i32, %arg1: i32, %arg2: i32) -> (i32, i32, i32, i32, i32) {
    %c1_i32 = arith.constant 1 : i32
    %0 = arith.muli %arg0, %c1_i32 : i32
    %1 = arith.addi %0, %arg2 : i32
    %c2_i32 = arith.constant 2 : i32
    %2 = arith.muli %arg1, %c2_i32 : i32
    %c4_i32 = arith.constant 4 : i32
    %3 = arith.addi %2, %c4_i32 : i32
    %c0_i32 = arith.constant 0 : i32
    %c0_i32_0 = arith.constant 0 : i32
    %c0_i32_1 = arith.constant 0 : i32
    %c0_i32_2 = arith.constant 0 : i32
    return %1, %3, %c0_i32, %c0_i32_0, %c0_i32_1 : i32, i32, i32, i32, i32
  }
  func.func @transform_9(%arg0: i32, %arg1: i32, %arg2: i32) -> (i32, i32, i32, i32, i32) {
    %c1_i32 = arith.constant 1 : i32
    %0 = arith.muli %arg0, %c1_i32 : i32
    %1 = arith.addi %0, %arg2 : i32
    %c2_i32 = arith.constant 2 : i32
    %2 = arith.muli %arg1, %c2_i32 : i32
    %c4_i32 = arith.constant 4 : i32
    %3 = arith.addi %2, %c4_i32 : i32
    %c0_i32 = arith.constant 0 : i32
    %c0_i32_0 = arith.constant 0 : i32
    %c0_i32_1 = arith.constant 0 : i32
    %c0_i32_2 = arith.constant 0 : i32
    return %1, %3, %c0_i32, %c0_i32_0, %c0_i32_1 : i32, i32, i32, i32, i32
  }
  func.func @transform_10(%arg0: i32, %arg1: i32, %arg2: i32) -> (i32, i32, i32, i32, i32) {
    %c1_i32 = arith.constant 1 : i32
    %0 = arith.muli %arg0, %c1_i32 : i32
    %1 = arith.addi %0, %arg2 : i32
    %c2_i32 = arith.constant 2 : i32
    %2 = arith.muli %arg1, %c2_i32 : i32
    %c5_i32 = arith.constant 5 : i32
    %3 = arith.addi %2, %c5_i32 : i32
    %c0_i32 = arith.constant 0 : i32
    %c0_i32_0 = arith.constant 0 : i32
    %c0_i32_1 = arith.constant 0 : i32
    %c0_i32_2 = arith.constant 0 : i32
    return %1, %3, %c0_i32, %c0_i32_0, %c0_i32_1 : i32, i32, i32, i32, i32
  }
  func.func @transform_11(%arg0: i32, %arg1: i32, %arg2: i32) -> (i32, i32, i32, i32, i32) {
    %c1_i32 = arith.constant 1 : i32
    %0 = arith.muli %arg0, %c1_i32 : i32
    %1 = arith.addi %0, %arg2 : i32
    %c2_i32 = arith.constant 2 : i32
    %2 = arith.muli %arg1, %c2_i32 : i32
    %c5_i32 = arith.constant 5 : i32
    %3 = arith.addi %2, %c5_i32 : i32
    %c0_i32 = arith.constant 0 : i32
    %c0_i32_0 = arith.constant 0 : i32
    %c0_i32_1 = arith.constant 0 : i32
    %c0_i32_2 = arith.constant 0 : i32
    return %1, %3, %c0_i32, %c0_i32_0, %c0_i32_1 : i32, i32, i32, i32, i32
  }
  func.func @transform_12(%arg0: i32, %arg1: i32, %arg2: i32) -> (i32, i32, i32, i32, i32) {
    %c1_i32 = arith.constant 1 : i32
    %0 = arith.muli %arg0, %c1_i32 : i32
    %1 = arith.addi %0, %arg2 : i32
    %c2_i32 = arith.constant 2 : i32
    %2 = arith.muli %arg1, %c2_i32 : i32
    %c6_i32 = arith.constant 6 : i32
    %3 = arith.addi %2, %c6_i32 : i32
    %c0_i32 = arith.constant 0 : i32
    %c0_i32_0 = arith.constant 0 : i32
    %c0_i32_1 = arith.constant 0 : i32
    %c0_i32_2 = arith.constant 0 : i32
    return %1, %3, %c0_i32, %c0_i32_0, %c0_i32_1 : i32, i32, i32, i32, i32
  }
  func.func @transform_13(%arg0: i32, %arg1: i32, %arg2: i32) -> (i32, i32, i32, i32, i32) {
    %c1_i32 = arith.constant 1 : i32
    %0 = arith.muli %arg0, %c1_i32 : i32
    %1 = arith.addi %0, %arg2 : i32
    %c2_i32 = arith.constant 2 : i32
    %2 = arith.muli %arg1, %c2_i32 : i32
    %c6_i32 = arith.constant 6 : i32
    %3 = arith.addi %2, %c6_i32 : i32
    %c0_i32 = arith.constant 0 : i32
    %c0_i32_0 = arith.constant 0 : i32
    %c0_i32_1 = arith.constant 0 : i32
    %c0_i32_2 = arith.constant 0 : i32
    return %1, %3, %c0_i32, %c0_i32_0, %c0_i32_1 : i32, i32, i32, i32, i32
  }
  func.func @transform_14(%arg0: i32, %arg1: i32, %arg2: i32) -> (i32, i32, i32, i32, i32) {
    %c0_i32 = arith.constant 0 : i32
    %c0_i32_0 = arith.constant 0 : i32
    %c0_i32_1 = arith.constant 0 : i32
    %c0_i32_2 = arith.constant 0 : i32
    %c0_i32_3 = arith.constant 0 : i32
    return %arg2, %c0_i32, %c0_i32_0, %c0_i32_1, %c0_i32_2 : i32, i32, i32, i32, i32
  }
  func.func @transform_15(%arg0: i32, %arg1: i32, %arg2: i32) -> (i32, i32) {
    %c0_i32 = arith.constant 0 : i32
    %c0_i32_0 = arith.constant 0 : i32
    %c0_i32_1 = arith.constant 0 : i32
    return %c0_i32, %c0_i32_0 : i32, i32
  }
  func.func @transform_16(%arg0: i32, %arg1: i32, %arg2: i32) -> (i32, i32, i32, i32, i32) {
    %c0_i32 = arith.constant 0 : i32
    %c0_i32_0 = arith.constant 0 : i32
    %c0_i32_1 = arith.constant 0 : i32
    %c0_i32_2 = arith.constant 0 : i32
    return %arg0, %arg1, %c0_i32, %c0_i32_0, %c0_i32_1 : i32, i32, i32, i32, i32
  }
}

</mosaic_0001>

<llo_original>
// kernel: conv3d_direct.1
$region0: #{conv3d_direct.1}
  #allocation0 [shape = 'u32[]', space=smem, size = 0x4, offset = 0x4, fixed_abs, tag = 'smem constant byte address 0x4 - core index']
  #allocation1 [shape = 'u32[144,128]{1,0:T(1,128)}', space=vmem, size = 0x12000, scoped, tag = 'internal scratch']
  #allocation2 [shape = 'f32[2,16,8]{2,1,0:T(8,128)}', space=vmem, size = 0x4000, scoped, tag = 'scratch operand']
  %s0 = inlined_call_operand.vmem [shape: bf16[10,38,2,19,16], index: 0, kind: input, shape index: {}, may-alias: {0,2,4,6,8,10,12}]
  %s1 = inlined_call_operand.vmem [shape: bf16[10,38,2,19,16], index: 1, kind: input, shape index: {}, may-alias: {1,3,5,7,9,11,13}]
  %s2 = inlined_call_operand.vmem [shape: bf16[10,38,2,19,16], index: 2, kind: input, shape index: {}, may-alias: {0,2,4,6,8,10,12}]
  %s3 = inlined_call_operand.vmem [shape: bf16[10,38,2,19,16], index: 3, kind: input, shape index: {}, may-alias: {1,3,5,7,9,11,13}]
  %s4 = inlined_call_operand.vmem [shape: bf16[10,38,2,19,16], index: 4, kind: input, shape index: {}, may-alias: {0,2,4,6,8,10,12}]
  %s5 = inlined_call_operand.vmem [shape: bf16[10,38,2,19,16], index: 5, kind: input, shape index: {}, may-alias: {1,3,5,7,9,11,13}]
  %s6 = inlined_call_operand.vmem [shape: bf16[10,38,2,19,16], index: 6, kind: input, shape index: {}, may-alias: {0,2,4,6,8,10,12}]
  %s7 = inlined_call_operand.vmem [shape: bf16[10,38,2,19,16], index: 7, kind: input, shape index: {}, may-alias: {1,3,5,7,9,11,13}]
  %s8 = inlined_call_operand.vmem [shape: bf16[10,38,2,19,16], index: 8, kind: input, shape index: {}, may-alias: {0,2,4,6,8,10,12}]
  %s9 = inlined_call_operand.vmem [shape: bf16[10,38,2,19,16], index: 9, kind: input, shape index: {}, may-alias: {1,3,5,7,9,11,13}]
  %s10 = inlined_call_operand.vmem [shape: bf16[10,38,2,19,16], index: 10, kind: input, shape index: {}, may-alias: {0,2,4,6,8,10,12}]
  %s11 = inlined_call_operand.vmem [shape: bf16[10,38,2,19,16], index: 11, kind: input, shape index: {}, may-alias: {1,3,5,7,9,11,13}]
  %s12 = inlined_call_operand.vmem [shape: bf16[10,38,2,19,16], index: 12, kind: input, shape index: {}, may-alias: {0,2,4,6,8,10,12}]
  %s13 = inlined_call_operand.vmem [shape: bf16[10,38,2,19,16], index: 13, kind: input, shape index: {}, may-alias: {1,3,5,7,9,11,13}]
  %s14 = inlined_call_operand.vmem [shape: bf16[3,7,7,16,8], index: 14, kind: input, shape index: {}]
  %s15 = inlined_call_operand.vmem [shape: f32[1,8], index: 15, kind: input, shape index: {}]
  %s16 = inlined_call_operand.vmem [shape: bf16[8,16,2,16,8], index: 16, kind: output, shape index: {}]
  %s17 = sld [smem:[#allocation0]]
  $region105: #{conv3d_direct.1} parent=0
    _
  %s19 = ssub.s32 1, %s17
  %s20 = scalar_select 0, %s19, %s17
  loop: start=0, step=1, limit=386
  $region2: #{conv3d_direct.1} parent=0 // loop_pre_header
    _
  $region3: #{conv3d_direct.1} parent=0 // loop_header
    %s22 = sphi 0, %s26
    %p23 = scmp.ge.s32.totalorder %s22, 386
    %s29 = sphi 0, %s48
    %s30 = sphi 0, %s44
    %s31 = sphi 0, %s40
    %s32 = sphi 0, %s29
    %s33 = sphi 0, %s30
    %s34 = sphi 0, %s31
    %s35 = sphi 0, %s32
    %s36 = sphi 0, %s33
    %s37 = sphi 0, %s34
    %s57 = sphi 0, %s59
    %s60 = sphi 0, %s57
    %s61 = sphi 0, %s60
    %s77 = sphi 0, %s61
    %s89 = sphi 0, %s91
    %s92 = sphi 0, %s89
    %s93 = sphi 0, %s92
    %s109 = sphi 0, %s93
    %s123 = sphi 0, %s125
    %s126 = sphi 0, %s123
    %s127 = sphi 0, %s126
    %s143 = sphi 0, %s127
    %s157 = sphi 0, %s159
    %s160 = sphi 0, %s157
    %s161 = sphi 0, %s160
    %s177 = sphi 0, %s161
    %s191 = sphi 0, %s193
    %s194 = sphi 0, %s191
    %s195 = sphi 0, %s194
    %s211 = sphi 0, %s195
    %s225 = sphi 0, %s227
    %s228 = sphi 0, %s225
    %s229 = sphi 0, %s228
    %s245 = sphi 0, %s229
    %s259 = sphi 0, %s261
    %s262 = sphi 0, %s259
    %s263 = sphi 0, %s262
    %s279 = sphi 0, %s263
    %s293 = sphi 0, %s295
    %s296 = sphi 0, %s293
    %s297 = sphi 0, %s296
    %s313 = sphi 0, %s297
    %s327 = sphi 0, %s329
    %s330 = sphi 0, %s327
    %s331 = sphi 0, %s330
    %s347 = sphi 0, %s331
    %s361 = sphi 0, %s363
    %s364 = sphi 0, %s361
    %s365 = sphi 0, %s364
    %s381 = sphi 0, %s365
    %s395 = sphi 0, %s397
    %s398 = sphi 0, %s395
    %s399 = sphi 0, %s398
    %s415 = sphi 0, %s399
    %s429 = sphi 0, %s431
    %s432 = sphi 0, %s429
    %s433 = sphi 0, %s432
    %s449 = sphi 0, %s433
    %s463 = sphi 0, %s465
    %s466 = sphi 0, %s463
    %s467 = sphi 0, %s466
    %s483 = sphi 0, %s467
    %s497 = sphi 0, %s499
    %s500 = sphi 0, %s497
    %s501 = sphi 0, %s500
    %s517 = sphi 0, %s501
    %s523 = sphi 0, %s525
    %s526 = sphi 0, %s523
    %s527 = sphi 0, %s526
    %s543 = sphi 0, %s527
    %s547 = sphi 0, %s547
    %s549 = sphi 0, %s547
    %s550 = sphi 0, %s549
    %s564 = sphi 0, %s550
    %s572 = sphi 0, %s574
    %s575 = sphi 0, %s572
    %s576 = sphi 0, %s575
    %s592 = sphi 0, %s576
  $region4: #{conv3d_direct.1} parent=0 // loop_header_branch
    %25 = sbr.rel (%p23) target = $region8
  $region5: #{conv3d_direct.1} parent=0 // loop_body
    %s27 = ssub.s32 %s22, 1
    %s28 = ssub.s32 %s22, 2
    %s38 = sadd.s32 1, %s31
    %p39 = scmp.ge.s32.totalorder %s38, 3
    %s40 = scalar_select %p39, 0, %s38
    %s41 = sadd.s32 1, %s30
    %s42 = scalar_select %p39, %s41, %s30
    %p43 = scmp.ge.s32.totalorder %s42, 16
    %s44 = scalar_select %p43, 0, %s42
    %s45 = sadd.s32 1, %s29
    %s46 = scalar_select %p43, %s45, %s29
    %p47 = scmp.ge.s32.totalorder %s46, 8
    %s48 = scalar_select %p47, 0, %s46
    %s49 = sadd.s32 %s29, %s31
    %s50 = smul.u32 %s30, 2
    %s51 = sadd.s32 %s48, %s40
    %s52 = smul.u32 %s44, 2
    %s53 = ssub.s32 %s49, %s51
    %s54 = ssub.s32 %s50, %s52
    %s55 = sor.u32 %s53, %s54
    %p56 = scmp.eq.s32.totalorder %s55, 0
    %s58 = sadd.s32 %s57, 1
    %s59 = scalar_select %p56, %s57, %s58
    %p62 = pneg %p56
    %p63 = scmp.eq.s32.totalorder %s22, 383
    %p64 = por %p62, %p63
    %p65 = scmp.ne.s32.totalorder %s57, %s60
    %p66 = scmp.eq.s32.totalorder %s22, 0
    %p67 = por %p65, %p66
    %p68 = scmp.ne.s32.totalorder %s57, %s60
    %p69 = scmp.eq.s32.totalorder %s27, 383
    %p70 = por %p68, %p69
    %p71 = scmp.ne.s32.totalorder %s60, %s61
    %p72 = scmp.eq.s32.totalorder %s27, 0
    %p73 = por %p71, %p72
    %p74 = scmp.ne.s32.totalorder %s60, %s61
    %p75 = scmp.eq.s32.totalorder %s28, 383
    %p76 = por %p74, %p75
    %p78 = scmp.ne.s32.totalorder %s61, %s77
    %p79 = scmp.eq.s32.totalorder %s28, 0
    %p80 = por %p78, %p79
    %s81 = sadd.s32 %s29, %s31
    %s82 = smul.u32 %s30, 2
    %s83 = sadd.s32 %s48, %s40
    %s84 = smul.u32 %s44, 2
    %s85 = ssub.s32 %s81, %s83
    %s86 = ssub.s32 %s82, %s84
    %s87 = sor.u32 %s85, %s86
    %p88 = scmp.eq.s32.totalorder %s87, 0
    %s90 = sadd.s32 %s89, 1
    %s91 = scalar_select %p88, %s89, %s90
    %p94 = pneg %p88
    %p95 = scmp.eq.s32.totalorder %s22, 383
    %p96 = por %p94, %p95
    %p97 = scmp.ne.s32.totalorder %s89, %s92
    %p98 = scmp.eq.s32.totalorder %s22, 0
    %p99 = por %p97, %p98
    %p100 = scmp.ne.s32.totalorder %s89, %s92
    %p101 = scmp.eq.s32.totalorder %s27, 383
    %p102 = por %p100, %p101
    %p103 = scmp.ne.s32.totalorder %s92, %s93
    %p104 = scmp.eq.s32.totalorder %s27, 0
    %p105 = por %p103, %p104
    %p106 = scmp.ne.s32.totalorder %s92, %s93
    %p107 = scmp.eq.s32.totalorder %s28, 383
    %p108 = por %p106, %p107
    %p110 = scmp.ne.s32.totalorder %s93, %s109
    %p111 = scmp.eq.s32.totalorder %s28, 0
    %p112 = por %p110, %p111
    %s113 = sadd.s32 %s29, %s31
    %s114 = smul.u32 %s30, 2
    %s115 = sadd.s32 %s114, 1
    %s116 = sadd.s32 %s48, %s40
    %s117 = smul.u32 %s44, 2
    %s118 = sadd.s32 %s117, 1
    %s119 = ssub.s32 %s113, %s116
    %s120 = ssub.s32 %s115, %s118
    %s121 = sor.u32 %s119, %s120
    %p122 = scmp.eq.s32.totalorder %s121, 0
    %s124 = sadd.s32 %s123, 1
    %s125 = scalar_select %p122, %s123, %s124
    %p128 = pneg %p122
    %p129 = scmp.eq.s32.totalorder %s22, 383
    %p130 = por %p128, %p129
    %p131 = scmp.ne.s32.totalorder %s123, %s126
    %p132 = scmp.eq.s32.totalorder %s22, 0
    %p133 = por %p131, %p132
    %p134 = scmp.ne.s32.totalorder %s123, %s126
    %p135 = scmp.eq.s32.totalorder %s27, 383
    %p136 = por %p134, %p135
    %p137 = scmp.ne.s32.totalorder %s126, %s127
    %p138 = scmp.eq.s32.totalorder %s27, 0
    %p139 = por %p137, %p138
    %p140 = scmp.ne.s32.totalorder %s126, %s127
    %p141 = scmp.eq.s32.totalorder %s28, 383
    %p142 = por %p140, %p141
    %p144 = scmp.ne.s32.totalorder %s127, %s143
    %p145 = scmp.eq.s32.totalorder %s28, 0
    %p146 = por %p144, %p145
    %s147 = sadd.s32 %s29, %s31
    %s148 = smul.u32 %s30, 2
    %s149 = sadd.s32 %s148, 1
    %s150 = sadd.s32 %s48, %s40
    %s151 = smul.u32 %s44, 2
    %s152 = sadd.s32 %s151, 1
    %s153 = ssub.s32 %s147, %s150
    %s154 = ssub.s32 %s149, %s152
    %s155 = sor.u32 %s153, %s154
    %p156 = scmp.eq.s32.totalorder %s155, 0
    %s158 = sadd.s32 %s157, 1
    %s159 = scalar_select %p156, %s157, %s158
    %p162 = pneg %p156
    %p163 = scmp.eq.s32.totalorder %s22, 383
    %p164 = por %p162, %p163
    %p165 = scmp.ne.s32.totalorder %s157, %s160
    %p166 = scmp.eq.s32.totalorder %s22, 0
    %p167 = por %p165, %p166
    %p168 = scmp.ne.s32.totalorder %s157, %s160
    %p169 = scmp.eq.s32.totalorder %s27, 383
    %p170 = por %p168, %p169
    %p171 = scmp.ne.s32.totalorder %s160, %s161
    %p172 = scmp.eq.s32.totalorder %s27, 0
    %p173 = por %p171, %p172
    %p174 = scmp.ne.s32.totalorder %s160, %s161
    %p175 = scmp.eq.s32.totalorder %s28, 383
    %p176 = por %p174, %p175
    %p178 = scmp.ne.s32.totalorder %s161, %s177
    %p179 = scmp.eq.s32.totalorder %s28, 0
    %p180 = por %p178, %p179
    %s181 = sadd.s32 %s29, %s31
    %s182 = smul.u32 %s30, 2
    %s183 = sadd.s32 %s182, 2
    %s184 = sadd.s32 %s48, %s40
    %s185 = smul.u32 %s44, 2
    %s186 = sadd.s32 %s185, 2
    %s187 = ssub.s32 %s181, %s184
    %s188 = ssub.s32 %s183, %s186
    %s189 = sor.u32 %s187, %s188
    %p190 = scmp.eq.s32.totalorder %s189, 0
    %s192 = sadd.s32 %s191, 1
    %s193 = scalar_select %p190, %s191, %s192
    %p196 = pneg %p190
    %p197 = scmp.eq.s32.totalorder %s22, 383
    %p198 = por %p196, %p197
    %p199 = scmp.ne.s32.totalorder %s191, %s194
    %p200 = scmp.eq.s32.totalorder %s22, 0
    %p201 = por %p199, %p200
    %p202 = scmp.ne.s32.totalorder %s191, %s194
    %p203 = scmp.eq.s32.totalorder %s27, 383
    %p204 = por %p202, %p203
    %p205 = scmp.ne.s32.totalorder %s194, %s195
    %p206 = scmp.eq.s32.totalorder %s27, 0
    %p207 = por %p205, %p206
    %p208 = scmp.ne.s32.totalorder %s194, %s195
    %p209 = scmp.eq.s32.totalorder %s28, 383
    %p210 = por %p208, %p209
    %p212 = scmp.ne.s32.totalorder %s195, %s211
    %p213 = scmp.eq.s32.totalorder %s28, 0
    %p214 = por %p212, %p213
    %s215 = sadd.s32 %s29, %s31
    %s216 = smul.u32 %s30, 2
    %s217 = sadd.s32 %s216, 2
    %s218 = sadd.s32 %s48, %s40
    %s219 = smul.u32 %s44, 2
    %s220 = sadd.s32 %s219, 2
    %s221 = ssub.s32 %s215, %s218
    %s222 = ssub.s32 %s217, %s220
    %s223 = sor.u32 %s221, %s222
    %p224 = scmp.eq.s32.totalorder %s223, 0
    %s226 = sadd.s32 %s225, 1
    %s227 = scalar_select %p224, %s225, %s226
    %p230 = pneg %p224
    %p231 = scmp.eq.s32.totalorder %s22, 383
    %p232 = por %p230, %p231
    %p233 = scmp.ne.s32.totalorder %s225, %s228
    %p234 = scmp.eq.s32.totalorder %s22, 0
    %p235 = por %p233, %p234
    %p236 = scmp.ne.s32.totalorder %s225, %s228
    %p237 = scmp.eq.s32.totalorder %s27, 383
    %p238 = por %p236, %p237
    %p239 = scmp.ne.s32.totalorder %s228, %s229
    %p240 = scmp.eq.s32.totalorder %s27, 0
    %p241 = por %p239, %p240
    %p242 = scmp.ne.s32.totalorder %s228, %s229
    %p243 = scmp.eq.s32.totalorder %s28, 383
    %p244 = por %p242, %p243
    %p246 = scmp.ne.s32.totalorder %s229, %s245
    %p247 = scmp.eq.s32.totalorder %s28, 0
    %p248 = por %p246, %p247
    %s249 = sadd.s32 %s29, %s31
    %s250 = smul.u32 %s30, 2
    %s251 = sadd.s32 %s250, 3
    %s252 = sadd.s32 %s48, %s40
    %s253 = smul.u32 %s44, 2
    %s254 = sadd.s32 %s253, 3
    %s255 = ssub.s32 %s249, %s252
    %s256 = ssub.s32 %s251, %s254
    %s257 = sor.u32 %s255, %s256
    %p258 = scmp.eq.s32.totalorder %s257, 0
    %s260 = sadd.s32 %s259, 1
    %s261 = scalar_select %p258, %s259, %s260
    %p264 = pneg %p258
    %p265 = scmp.eq.s32.totalorder %s22, 383
    %p266 = por %p264, %p265
    %p267 = scmp.ne.s32.totalorder %s259, %s262
    %p268 = scmp.eq.s32.totalorder %s22, 0
    %p269 = por %p267, %p268
    %p270 = scmp.ne.s32.totalorder %s259, %s262
    %p271 = scmp.eq.s32.totalorder %s27, 383
    %p272 = por %p270, %p271
    %p273 = scmp.ne.s32.totalorder %s262, %s263
    %p274 = scmp.eq.s32.totalorder %s27, 0
    %p275 = por %p273, %p274
    %p276 = scmp.ne.s32.totalorder %s262, %s263
    %p277 = scmp.eq.s32.totalorder %s28, 383
    %p278 = por %p276, %p277
    %p280 = scmp.ne.s32.totalorder %s263, %s279
    %p281 = scmp.eq.s32.totalorder %s28, 0
    %p282 = por %p280, %p281
    %s283 = sadd.s32 %s29, %s31
    %s284 = smul.u32 %s30, 2
    %s285 = sadd.s32 %s284, 3
    %s286 = sadd.s32 %s48, %s40
    %s287 = smul.u32 %s44, 2
    %s288 = sadd.s32 %s287, 3
    %s289 = ssub.s32 %s283, %s286
    %s290 = ssub.s32 %s285, %s288
    %s291 = sor.u32 %s289, %s290
    %p292 = scmp.eq.s32.totalorder %s291, 0
    %s294 = sadd.s32 %s293, 1
    %s295 = scalar_select %p292, %s293, %s294
    %p298 = pneg %p292
    %p299 = scmp.eq.s32.totalorder %s22, 383
    %p300 = por %p298, %p299
    %p301 = scmp.ne.s32.totalorder %s293, %s296
    %p302 = scmp.eq.s32.totalorder %s22, 0
    %p303 = por %p301, %p302
    %p304 = scmp.ne.s32.totalorder %s293, %s296
    %p305 = scmp.eq.s32.totalorder %s27, 383
    %p306 = por %p304, %p305
    %p307 = scmp.ne.s32.totalorder %s296, %s297
    %p308 = scmp.eq.s32.totalorder %s27, 0
    %p309 = por %p307, %p308
    %p310 = scmp.ne.s32.totalorder %s296, %s297
    %p311 = scmp.eq.s32.totalorder %s28, 383
    %p312 = por %p310, %p311
    %p314 = scmp.ne.s32.totalorder %s297, %s313
    %p315 = scmp.eq.s32.totalorder %s28, 0
    %p316 = por %p314, %p315
    %s317 = sadd.s32 %s29, %s31
    %s318 = smul.u32 %s30, 2
    %s319 = sadd.s32 %s318, 4
    %s320 = sadd.s32 %s48, %s40
    %s321 = smul.u32 %s44, 2
    %s322 = sadd.s32 %s321, 4
    %s323 = ssub.s32 %s317, %s320
    %s324 = ssub.s32 %s319, %s322
    %s325 = sor.u32 %s323, %s324
    %p326 = scmp.eq.s32.totalorder %s325, 0
    %s328 = sadd.s32 %s327, 1
    %s329 = scalar_select %p326, %s327, %s328
    %p332 = pneg %p326
    %p333 = scmp.eq.s32.totalorder %s22, 383
    %p334 = por %p332, %p333
    %p335 = scmp.ne.s32.totalorder %s327, %s330
    %p336 = scmp.eq.s32.totalorder %s22, 0
    %p337 = por %p335, %p336
    %p338 = scmp.ne.s32.totalorder %s327, %s330
    %p339 = scmp.eq.s32.totalorder %s27, 383
    %p340 = por %p338, %p339
    %p341 = scmp.ne.s32.totalorder %s330, %s331
    %p342 = scmp.eq.s32.totalorder %s27, 0
    %p343 = por %p341, %p342
    %p344 = scmp.ne.s32.totalorder %s330, %s331
    %p345 = scmp.eq.s32.totalorder %s28, 383
    %p346 = por %p344, %p345
    %p348 = scmp.ne.s32.totalorder %s331, %s347
    %p349 = scmp.eq.s32.totalorder %s28, 0
    %p350 = por %p348, %p349
    %s351 = sadd.s32 %s29, %s31
    %s352 = smul.u32 %s30, 2
    %s353 = sadd.s32 %s352, 4
    %s354 = sadd.s32 %s48, %s40
    %s355 = smul.u32 %s44, 2
    %s356 = sadd.s32 %s355, 4
    %s357 = ssub.s32 %s351, %s354
    %s358 = ssub.s32 %s353, %s356
    %s359 = sor.u32 %s357, %s358
    %p360 = scmp.eq.s32.totalorder %s359, 0
    %s362 = sadd.s32 %s361, 1
    %s363 = scalar_select %p360, %s361, %s362
    %p366 = pneg %p360
    %p367 = scmp.eq.s32.totalorder %s22, 383
    %p368 = por %p366, %p367
    %p369 = scmp.ne.s32.totalorder %s361, %s364
    %p370 = scmp.eq.s32.totalorder %s22, 0
    %p371 = por %p369, %p370
    %p372 = scmp.ne.s32.totalorder %s361, %s364
    %p373 = scmp.eq.s32.totalorder %s27, 383
    %p374 = por %p372, %p373
    %p375 = scmp.ne.s32.totalorder %s364, %s365
    %p376 = scmp.eq.s32.totalorder %s27, 0
    %p377 = por %p375, %p376
    %p378 = scmp.ne.s32.totalorder %s364, %s365
    %p379 = scmp.eq.s32.totalorder %s28, 383
    %p380 = por %p378, %p379
    %p382 = scmp.ne.s32.totalorder %s365, %s381
    %p383 = scmp.eq.s32.totalorder %s28, 0
    %p384 = por %p382, %p383
    %s385 = sadd.s32 %s29, %s31
    %s386 = smul.u32 %s30, 2
    %s387 = sadd.s32 %s386, 5
    %s388 = sadd.s32 %s48, %s40
    %s389 = smul.u32 %s44, 2
    %s390 = sadd.s32 %s389, 5
    %s391 = ssub.s32 %s385, %s388
    %s392 = ssub.s32 %s387, %s390
    %s393 = sor.u32 %s391, %s392
    %p394 = scmp.eq.s32.totalorder %s393, 0
    %s396 = sadd.s32 %s395, 1
    %s397 = scalar_select %p394, %s395, %s396
    %p400 = pneg %p394
    %p401 = scmp.eq.s32.totalorder %s22, 383
    %p402 = por %p400, %p401
    %p403 = scmp.ne.s32.totalorder %s395, %s398
    %p404 = scmp.eq.s32.totalorder %s22, 0
    %p405 = por %p403, %p404
    %p406 = scmp.ne.s32.totalorder %s395, %s398
    %p407 = scmp.eq.s32.totalorder %s27, 383
    %p408 = por %p406, %p407
    %p409 = scmp.ne.s32.totalorder %s398, %s399
    %p410 = scmp.eq.s32.totalorder %s27, 0
    %p411 = por %p409, %p410
    %p412 = scmp.ne.s32.totalorder %s398, %s399
    %p413 = scmp.eq.s32.totalorder %s28, 383
    %p414 = por %p412, %p413
    %p416 = scmp.ne.s32.totalorder %s399, %s415
    %p417 = scmp.eq.s32.totalorder %s28, 0
    %p418 = por %p416, %p417
    %s419 = sadd.s32 %s29, %s31
    %s420 = smul.u32 %s30, 2
    %s421 = sadd.s32 %s420, 5
    %s422 = sadd.s32 %s48, %s40
    %s423 = smul.u32 %s44, 2
    %s424 = sadd.s32 %s423, 5
    %s425 = ssub.s32 %s419, %s422
    %s426 = ssub.s32 %s421, %s424
    %s427 = sor.u32 %s425, %s426
    %p428 = scmp.eq.s32.totalorder %s427, 0
    %s430 = sadd.s32 %s429, 1
    %s431 = scalar_select %p428, %s429, %s430
    %p434 = pneg %p428
    %p435 = scmp.eq.s32.totalorder %s22, 383
    %p436 = por %p434, %p435
    %p437 = scmp.ne.s32.totalorder %s429, %s432
    %p438 = scmp.eq.s32.totalorder %s22, 0
    %p439 = por %p437, %p438
    %p440 = scmp.ne.s32.totalorder %s429, %s432
    %p441 = scmp.eq.s32.totalorder %s27, 383
    %p442 = por %p440, %p441
    %p443 = scmp.ne.s32.totalorder %s432, %s433
    %p444 = scmp.eq.s32.totalorder %s27, 0
    %p445 = por %p443, %p444
    %p446 = scmp.ne.s32.totalorder %s432, %s433
    %p447 = scmp.eq.s32.totalorder %s28, 383
    %p448 = por %p446, %p447
    %p450 = scmp.ne.s32.totalorder %s433, %s449
    %p451 = scmp.eq.s32.totalorder %s28, 0
    %p452 = por %p450, %p451
    %s453 = sadd.s32 %s29, %s31
    %s454 = smul.u32 %s30, 2
    %s455 = sadd.s32 %s454, 6
    %s456 = sadd.s32 %s48, %s40
    %s457 = smul.u32 %s44, 2
    %s458 = sadd.s32 %s457, 6
    %s459 = ssub.s32 %s453, %s456
    %s460 = ssub.s32 %s455, %s458
    %s461 = sor.u32 %s459, %s460
    %p462 = scmp.eq.s32.totalorder %s461, 0
    %s464 = sadd.s32 %s463, 1
    %s465 = scalar_select %p462, %s463, %s464
    %p468 = pneg %p462
    %p469 = scmp.eq.s32.totalorder %s22, 383
    %p470 = por %p468, %p469
    %p471 = scmp.ne.s32.totalorder %s463, %s466
    %p472 = scmp.eq.s32.totalorder %s22, 0
    %p473 = por %p471, %p472
    %p474 = scmp.ne.s32.totalorder %s463, %s466
    %p475 = scmp.eq.s32.totalorder %s27, 383
    %p476 = por %p474, %p475
    %p477 = scmp.ne.s32.totalorder %s466, %s467
    %p478 = scmp.eq.s32.totalorder %s27, 0
    %p479 = por %p477, %p478
    %p480 = scmp.ne.s32.totalorder %s466, %s467
    %p481 = scmp.eq.s32.totalorder %s28, 383
    %p482 = por %p480, %p481
    %p484 = scmp.ne.s32.totalorder %s467, %s483
    %p485 = scmp.eq.s32.totalorder %s28, 0
    %p486 = por %p484, %p485
    %s487 = sadd.s32 %s29, %s31
    %s488 = smul.u32 %s30, 2
    %s489 = sadd.s32 %s488, 6
    %s490 = sadd.s32 %s48, %s40
    %s491 = smul.u32 %s44, 2
    %s492 = sadd.s32 %s491, 6
    %s493 = ssub.s32 %s487, %s490
    %s494 = ssub.s32 %s489, %s492
    %s495 = sor.u32 %s493, %s494
    %p496 = scmp.eq.s32.totalorder %s495, 0
    %s498 = sadd.s32 %s497, 1
    %s499 = scalar_select %p496, %s497, %s498
    %p502 = pneg %p496
    %p503 = scmp.eq.s32.totalorder %s22, 383
    %p504 = por %p502, %p503
    %p505 = scmp.ne.s32.totalorder %s497, %s500
    %p506 = scmp.eq.s32.totalorder %s22, 0
    %p507 = por %p505, %p506
    %p508 = scmp.ne.s32.totalorder %s497, %s500
    %p509 = scmp.eq.s32.totalorder %s27, 383
    %p510 = por %p508, %p509
    %p511 = scmp.ne.s32.totalorder %s500, %s501
    %p512 = scmp.eq.s32.totalorder %s27, 0
    %p513 = por %p511, %p512
    %p514 = scmp.ne.s32.totalorder %s500, %s501
    %p515 = scmp.eq.s32.totalorder %s28, 383
    %p516 = por %p514, %p515
    %p518 = scmp.ne.s32.totalorder %s501, %s517
    %p519 = scmp.eq.s32.totalorder %s28, 0
    %p520 = por %p518, %p519
    %s521 = ssub.s32 %s31, %s40
    %p522 = scmp.eq.s32.totalorder %s521, 0
    %s524 = sadd.s32 %s523, 1
    %s525 = scalar_select %p522, %s523, %s524
    %p528 = pneg %p522
    %p529 = scmp.eq.s32.totalorder %s22, 383
    %p530 = por %p528, %p529
    %p531 = scmp.ne.s32.totalorder %s523, %s526
    %p532 = scmp.eq.s32.totalorder %s22, 0
    %p533 = por %p531, %p532
    %p534 = scmp.ne.s32.totalorder %s523, %s526
    %p535 = scmp.eq.s32.totalorder %s27, 383
    %p536 = por %p534, %p535
    %p537 = scmp.ne.s32.totalorder %s526, %s527
    %p538 = scmp.eq.s32.totalorder %s27, 0
    %p539 = por %p537, %p538
    %p540 = scmp.ne.s32.totalorder %s526, %s527
    %p541 = scmp.eq.s32.totalorder %s28, 383
    %p542 = por %p540, %p541
    %p544 = scmp.ne.s32.totalorder %s527, %s543
    %p545 = scmp.eq.s32.totalorder %s28, 0
    %p546 = por %p544, %p545
    %s548 = sadd.s32 %s547, 1
    %p551 = scmp.eq.s32.totalorder %s22, 383
    %p552 = scmp.ne.s32.totalorder %s547, %s549
    %p553 = scmp.eq.s32.totalorder %s22, 0
    %p554 = por %p552, %p553
    %p555 = scmp.ne.s32.totalorder %s547, %s549
    %p556 = scmp.eq.s32.totalorder %s27, 383
    %p557 = por %p555, %p556
    %p558 = scmp.ne.s32.totalorder %s549, %s550
    %p559 = scmp.eq.s32.totalorder %s27, 0
    %p560 = por %p558, %p559
    %p561 = scmp.ne.s32.totalorder %s549, %s550
    %p562 = scmp.eq.s32.totalorder %s28, 383
    %p563 = por %p561, %p562
    %p565 = scmp.ne.s32.totalorder %s550, %s564
    %p566 = scmp.eq.s32.totalorder %s28, 0
    %p567 = por %p565, %p566
    %s568 = ssub.s32 %s29, %s48
    %s569 = ssub.s32 %s30, %s44
    %s570 = sor.u32 %s568, %s569
    %p571 = scmp.eq.s32.totalorder %s570, 0
    %s573 = sadd.s32 %s572, 1
    %s574 = scalar_select %p571, %s572, %s573
    %p577 = pneg %p571
    %p578 = scmp.eq.s32.totalorder %s22, 383
    %p579 = por %p577, %p578
    %p580 = scmp.ne.s32.totalorder %s572, %s575
    %p581 = scmp.eq.s32.totalorder %s22, 0
    %p582 = por %p580, %p581
    %p583 = scmp.ne.s32.totalorder %s572, %s575
    %p584 = scmp.eq.s32.totalorder %s27, 383
    %p585 = por %p583, %p584
    %p586 = scmp.ne.s32.totalorder %s575, %s576
    %p587 = scmp.eq.s32.totalorder %s27, 0
    %p588 = por %p586, %p587
    %p589 = scmp.ne.s32.totalorder %s575, %s576
    %p590 = scmp.eq.s32.totalorder %s28, 383
    %p591 = por %p589, %p590
    %p593 = scmp.ne.s32.totalorder %s576, %s592
    %p594 = scmp.eq.s32.totalorder %s28, 0
    %p595 = por %p593, %p594
    %p596 = scmp.le.s32.totalorder 1, %s22
    %p597 = scmp.lt.s32.totalorder %s22, 385
    %p598 = pnand %p596, %p597
    %p599 = pneg %p598
    // Predicated region
    $region9: #{conv3d_direct.1} parent=5 // pred_check
      _
    $region10: #{conv3d_direct.1} parent=5 // pred_check_branch
      %601 = sbr.rel (%p598) target = $region12
    $region11: #{conv3d_direct.1} parent=5 // pred_region
      %s602 = ssub.s32 %s22, 1
      // Predicated region
      $region13: #{conv3d_direct.1} parent=11 // pred_check
        %p603 = pneg %p560
      $region14: #{conv3d_direct.1} parent=11 // pred_check_branch
        %605 = sbr.rel (%p603) target = $region16
      $region15: #{conv3d_direct.1} parent=11 // pred_region
        _
      $region16: #{conv3d_direct.1} parent=11 // pred_fallthru
        _
    $region12: #{conv3d_direct.1} parent=5 // pred_fallthru
      _
    %p606 = scmp.lt.s32.totalorder %s22, 384
    // Predicated region
    $region17: #{conv3d_direct.1} parent=5 // pred_check
      %p607 = pneg %p606
    $region18: #{conv3d_direct.1} parent=5 // pred_check_branch
      %609 = sbr.rel (%p607) target = $region20
    $region19: #{conv3d_direct.1} parent=5 // pred_region
      // Predicated region
      $region21: #{conv3d_direct.1} parent=19 // pred_check
        %p610 = pneg %p67
      $region22: #{conv3d_direct.1} parent=19 // pred_check_branch
        %612 = sbr.rel (%p610) target = $region24
      $region23: #{conv3d_direct.1} parent=19 // pred_region
        %s613 = sadd.s32 %s29, %s31
        %s614 = smul.u32 %s30, 2
        %p615 = scmp.lt.s32.totalorder %s613, 9
        %s616 = scalar_select %p615, %s613, 9
        %p617 = scmp.lt.s32.totalorder %s614, 37
        %s618 = scalar_select %p617, %s614, 37
        %s619 = smul.addr %s618, 6
        %s620 = smul.addr %s616, 228
        %s621 = sadd.s32 %s619, %s620
        %s622 = smul.addr %s621, 4
        %s623 = scalar_lea.vmem %s0, %s622
        %s624 = sadd.s32 %s29, %s31
        %s625 = smul.u32 %s30, 2
      $region24: #{conv3d_direct.1} parent=19 // pred_fallthru
        _
      // Predicated region
      $region25: #{conv3d_direct.1} parent=19 // pred_check
        %p626 = pneg %p99
      $region26: #{conv3d_direct.1} parent=19 // pred_check_branch
        %628 = sbr.rel (%p626) target = $region28
      $region27: #{conv3d_direct.1} parent=19 // pred_region
        %s629 = sadd.s32 %s29, %s31
        %s630 = smul.u32 %s30, 2
        %p631 = scmp.lt.s32.totalorder %s629, 9
        %s632 = scalar_select %p631, %s629, 9
        %p633 = scmp.lt.s32.totalorder %s630, 37
        %s634 = scalar_select %p633, %s630, 37
        %s635 = smul.addr %s634, 6
        %s636 = smul.addr %s632, 228
        %s637 = sadd.s32 %s635, %s636
        %s638 = smul.addr %s637, 4
        %s639 = scalar_lea.vmem %s1, %s638
        %s640 = sadd.s32 %s29, %s31
        %s641 = smul.u32 %s30, 2
      $region28: #{conv3d_direct.1} parent=19 // pred_fallthru
        _
      // Predicated region
      $region29: #{conv3d_direct.1} parent=19 // pred_check
        %p642 = pneg %p133
      $region30: #{conv3d_direct.1} parent=19 // pred_check_branch
        %644 = sbr.rel (%p642) target = $region32
      $region31: #{conv3d_direct.1} parent=19 // pred_region
        %s645 = sadd.s32 %s29, %s31
        %s646 = smul.u32 %s30, 2
        %s647 = sadd.s32 %s646, 1
        %p648 = scmp.lt.s32.totalorder %s645, 9
        %s649 = scalar_select %p648, %s645, 9
        %p650 = scmp.lt.s32.totalorder %s647, 37
        %s651 = scalar_select %p650, %s647, 37
        %s652 = smul.addr %s651, 6
        %s653 = smul.addr %s649, 228
        %s654 = sadd.s32 %s652, %s653
        %s655 = smul.addr %s654, 4
        %s656 = scalar_lea.vmem %s2, %s655
        %s657 = sadd.s32 %s29, %s31
        %s658 = smul.u32 %s30, 2
        %s659 = sadd.s32 %s658, 1
      $region32: #{conv3d_direct.1} parent=19 // pred_fallthru
        _
      // Predicated region
      $region33: #{conv3d_direct.1} parent=19 // pred_check
        %p660 = pneg %p167
      $region34: #{conv3d_direct.1} parent=19 // pred_check_branch
        %662 = sbr.rel (%p660) target = $region36
      $region35: #{conv3d_direct.1} parent=19 // pred_region
        %s663 = sadd.s32 %s29, %s31
        %s664 = smul.u32 %s30, 2
        %s665 = sadd.s32 %s664, 1
        %p666 = scmp.lt.s32.totalorder %s663, 9
        %s667 = scalar_select %p666, %s663, 9
        %p668 = scmp.lt.s32.totalorder %s665, 37
        %s669 = scalar_select %p668, %s665, 37
        %s670 = smul.addr %s669, 6
        %s671 = smul.addr %s667, 228
        %s672 = sadd.s32 %s670, %s671
        %s673 = smul.addr %s672, 4
        %s674 = scalar_lea.vmem %s3, %s673
        %s675 = sadd.s32 %s29, %s31
        %s676 = smul.u32 %s30, 2
        %s677 = sadd.s32 %s676, 1
      $region36: #{conv3d_direct.1} parent=19 // pred_fallthru
        _
      // Predicated region
      $region37: #{conv3d_direct.1} parent=19 // pred_check
        %p678 = pneg %p201
      $region38: #{conv3d_direct.1} parent=19 // pred_check_branch
        %680 = sbr.rel (%p678) target = $region40
      $region39: #{conv3d_direct.1} parent=19 // pred_region
        %s681 = sadd.s32 %s29, %s31
        %s682 = smul.u32 %s30, 2
        %s683 = sadd.s32 %s682, 2
        %p684 = scmp.lt.s32.totalorder %s681, 9
        %s685 = scalar_select %p684, %s681, 9
        %p686 = scmp.lt.s32.totalorder %s683, 37
        %s687 = scalar_select %p686, %s683, 37
        %s688 = smul.addr %s687, 6
        %s689 = smul.addr %s685, 228
        %s690 = sadd.s32 %s688, %s689
        %s691 = smul.addr %s690, 4
        %s692 = scalar_lea.vmem %s4, %s691
        %s693 = sadd.s32 %s29, %s31
        %s694 = smul.u32 %s30, 2
        %s695 = sadd.s32 %s694, 2
      $region40: #{conv3d_direct.1} parent=19 // pred_fallthru
        _
      // Predicated region
      $region41: #{conv3d_direct.1} parent=19 // pred_check
        %p696 = pneg %p235
      $region42: #{conv3d_direct.1} parent=19 // pred_check_branch
        %698 = sbr.rel (%p696) target = $region44
      $region43: #{conv3d_direct.1} parent=19 // pred_region
        %s699 = sadd.s32 %s29, %s31
        %s700 = smul.u32 %s30, 2
        %s701 = sadd.s32 %s700, 2
        %p702 = scmp.lt.s32.totalorder %s699, 9
        %s703 = scalar_select %p702, %s699, 9
        %p704 = scmp.lt.s32.totalorder %s701, 37
        %s705 = scalar_select %p704, %s701, 37
        %s706 = smul.addr %s705, 6
        %s707 = smul.addr %s703, 228
        %s708 = sadd.s32 %s706, %s707
        %s709 = smul.addr %s708, 4
        %s710 = scalar_lea.vmem %s5, %s709
        %s711 = sadd.s32 %s29, %s31
        %s712 = smul.u32 %s30, 2
        %s713 = sadd.s32 %s712, 2
      $region44: #{conv3d_direct.1} parent=19 // pred_fallthru
        _
      // Predicated region
      $region45: #{conv3d_direct.1} parent=19 // pred_check
        %p714 = pneg %p269
      $region46: #{conv3d_direct.1} parent=19 // pred_check_branch
        %716 = sbr.rel (%p714) target = $region48
      $region47: #{conv3d_direct.1} parent=19 // pred_region
        %s717 = sadd.s32 %s29, %s31
        %s718 = smul.u32 %s30, 2
        %s719 = sadd.s32 %s718, 3
        %p720 = scmp.lt.s32.totalorder %s717, 9
        %s721 = scalar_select %p720, %s717, 9
        %p722 = scmp.lt.s32.totalorder %s719, 37
        %s723 = scalar_select %p722, %s719, 37
        %s724 = smul.addr %s723, 6
        %s725 = smul.addr %s721, 228
        %s726 = sadd.s32 %s724, %s725
        %s727 = smul.addr %s726, 4
        %s728 = scalar_lea.vmem %s6, %s727
        %s729 = sadd.s32 %s29, %s31
        %s730 = smul.u32 %s30, 2
        %s731 = sadd.s32 %s730, 3
      $region48: #{conv3d_direct.1} parent=19 // pred_fallthru
        _
      // Predicated region
      $region49: #{conv3d_direct.1} parent=19 // pred_check
        %p732 = pneg %p303
      $region50: #{conv3d_direct.1} parent=19 // pred_check_branch
        %734 = sbr.rel (%p732) target = $region52
      $region51: #{conv3d_direct.1} parent=19 // pred_region
        %s735 = sadd.s32 %s29, %s31
        %s736 = smul.u32 %s30, 2
        %s737 = sadd.s32 %s736, 3
        %p738 = scmp.lt.s32.totalorder %s735, 9
        %s739 = scalar_select %p738, %s735, 9
        %p740 = scmp.lt.s32.totalorder %s737, 37
        %s741 = scalar_select %p740, %s737, 37
        %s742 = smul.addr %s741, 6
        %s743 = smul.addr %s739, 228
        %s744 = sadd.s32 %s742, %s743
        %s745 = smul.addr %s744, 4
        %s746 = scalar_lea.vmem %s7, %s745
        %s747 = sadd.s32 %s29, %s31
        %s748 = smul.u32 %s30, 2
        %s749 = sadd.s32 %s748, 3
      $region52: #{conv3d_direct.1} parent=19 // pred_fallthru
        _
      // Predicated region
      $region53: #{conv3d_direct.1} parent=19 // pred_check
        %p750 = pneg %p337
      $region54: #{conv3d_direct.1} parent=19 // pred_check_branch
        %752 = sbr.rel (%p750) target = $region56
      $region55: #{conv3d_direct.1} parent=19 // pred_region
        %s753 = sadd.s32 %s29, %s31
        %s754 = smul.u32 %s30, 2
        %s755 = sadd.s32 %s754, 4
        %p756 = scmp.lt.s32.totalorder %s753, 9
        %s757 = scalar_select %p756, %s753, 9
        %p758 = scmp.lt.s32.totalorder %s755, 37
        %s759 = scalar_select %p758, %s755, 37
        %s760 = smul.addr %s759, 6
        %s761 = smul.addr %s757, 228
        %s762 = sadd.s32 %s760, %s761
        %s763 = smul.addr %s762, 4
        %s764 = scalar_lea.vmem %s8, %s763
        %s765 = sadd.s32 %s29, %s31
        %s766 = smul.u32 %s30, 2
        %s767 = sadd.s32 %s766, 4
      $region56: #{conv3d_direct.1} parent=19 // pred_fallthru
        _
      // Predicated region
      $region57: #{conv3d_direct.1} parent=19 // pred_check
        %p768 = pneg %p371
      $region58: #{conv3d_direct.1} parent=19 // pred_check_branch
        %770 = sbr.rel (%p768) target = $region60
      $region59: #{conv3d_direct.1} parent=19 // pred_region
        %s771 = sadd.s32 %s29, %s31
        %s772 = smul.u32 %s30, 2
        %s773 = sadd.s32 %s772, 4
        %p774 = scmp.lt.s32.totalorder %s771, 9
        %s775 = scalar_select %p774, %s771, 9
        %p776 = scmp.lt.s32.totalorder %s773, 37
        %s777 = scalar_select %p776, %s773, 37
        %s778 = smul.addr %s777, 6
        %s779 = smul.addr %s775, 228
        %s780 = sadd.s32 %s778, %s779
        %s781 = smul.addr %s780, 4
        %s782 = scalar_lea.vmem %s9, %s781
        %s783 = sadd.s32 %s29, %s31
        %s784 = smul.u32 %s30, 2
        %s785 = sadd.s32 %s784, 4
      $region60: #{conv3d_direct.1} parent=19 // pred_fallthru
        _
      // Predicated region
      $region61: #{conv3d_direct.1} parent=19 // pred_check
        %p786 = pneg %p405
      $region62: #{conv3d_direct.1} parent=19 // pred_check_branch
        %788 = sbr.rel (%p786) target = $region64
      $region63: #{conv3d_direct.1} parent=19 // pred_region
        %s789 = sadd.s32 %s29, %s31
        %s790 = smul.u32 %s30, 2
        %s791 = sadd.s32 %s790, 5
        %p792 = scmp.lt.s32.totalorder %s789, 9
        %s793 = scalar_select %p792, %s789, 9
        %p794 = scmp.lt.s32.totalorder %s791, 37
        %s795 = scalar_select %p794, %s791, 37
        %s796 = smul.addr %s795, 6
        %s797 = smul.addr %s793, 228
        %s798 = sadd.s32 %s796, %s797
        %s799 = smul.addr %s798, 4
        %s800 = scalar_lea.vmem %s10, %s799
        %s801 = sadd.s32 %s29, %s31
        %s802 = smul.u32 %s30, 2
        %s803 = sadd.s32 %s802, 5
      $region64: #{conv3d_direct.1} parent=19 // pred_fallthru
        _
      // Predicated region
      $region65: #{conv3d_direct.1} parent=19 // pred_check
        %p804 = pneg %p439
      $region66: #{conv3d_direct.1} parent=19 // pred_check_branch
        %806 = sbr.rel (%p804) target = $region68
      $region67: #{conv3d_direct.1} parent=19 // pred_region
        %s807 = sadd.s32 %s29, %s31
        %s808 = smul.u32 %s30, 2
        %s809 = sadd.s32 %s808, 5
        %p810 = scmp.lt.s32.totalorder %s807, 9
        %s811 = scalar_select %p810, %s807, 9
        %p812 = scmp.lt.s32.totalorder %s809, 37
        %s813 = scalar_select %p812, %s809, 37
        %s814 = smul.addr %s813, 6
        %s815 = smul.addr %s811, 228
        %s816 = sadd.s32 %s814, %s815
        %s817 = smul.addr %s816, 4
        %s818 = scalar_lea.vmem %s11, %s817
        %s819 = sadd.s32 %s29, %s31
        %s820 = smul.u32 %s30, 2
        %s821 = sadd.s32 %s820, 5
      $region68: #{conv3d_direct.1} parent=19 // pred_fallthru
        _
      // Predicated region
      $region69: #{conv3d_direct.1} parent=19 // pred_check
        %p822 = pneg %p473
      $region70: #{conv3d_direct.1} parent=19 // pred_check_branch
        %824 = sbr.rel (%p822) target = $region72
      $region71: #{conv3d_direct.1} parent=19 // pred_region
        %s825 = sadd.s32 %s29, %s31
        %s826 = smul.u32 %s30, 2
        %s827 = sadd.s32 %s826, 6
        %p828 = scmp.lt.s32.totalorder %s825, 9
        %s829 = scalar_select %p828, %s825, 9
        %p830 = scmp.lt.s32.totalorder %s827, 37
        %s831 = scalar_select %p830, %s827, 37
        %s832 = smul.addr %s831, 6
        %s833 = smul.addr %s829, 228
        %s834 = sadd.s32 %s832, %s833
        %s835 = smul.addr %s834, 4
        %s836 = scalar_lea.vmem %s12, %s835
        %s837 = sadd.s32 %s29, %s31
        %s838 = smul.u32 %s30, 2
        %s839 = sadd.s32 %s838, 6
      $region72: #{conv3d_direct.1} parent=19 // pred_fallthru
        _
      // Predicated region
      $region73: #{conv3d_direct.1} parent=19 // pred_check
        %p840 = pneg %p507
      $region74: #{conv3d_direct.1} parent=19 // pred_check_branch
        %842 = sbr.rel (%p840) target = $region76
      $region75: #{conv3d_direct.1} parent=19 // pred_region
        %s843 = sadd.s32 %s29, %s31
        %s844 = smul.u32 %s30, 2
        %s845 = sadd.s32 %s844, 6
        %p846 = scmp.lt.s32.totalorder %s843, 9
        %s847 = scalar_select %p846, %s843, 9
        %p848 = scmp.lt.s32.totalorder %s845, 37
        %s849 = scalar_select %p848, %s845, 37
        %s850 = smul.addr %s849, 6
        %s851 = smul.addr %s847, 228
        %s852 = sadd.s32 %s850, %s851
        %s853 = smul.addr %s852, 4
        %s854 = scalar_lea.vmem %s13, %s853
        %s855 = sadd.s32 %s29, %s31
        %s856 = smul.u32 %s30, 2
        %s857 = sadd.s32 %s856, 6
      $region76: #{conv3d_direct.1} parent=19 // pred_fallthru
        _
      // Predicated region
      $region77: #{conv3d_direct.1} parent=19 // pred_check
        %p858 = pneg %p533
      $region78: #{conv3d_direct.1} parent=19 // pred_check_branch
        %860 = sbr.rel (%p858) target = $region80
      $region79: #{conv3d_direct.1} parent=19 // pred_region
        %p861 = scmp.lt.s32.totalorder %s31, 2
        %s862 = scalar_select %p861, %s31, 2
        %s863 = smul.addr %s862, 98
        %s864 = smul.addr %s863, 4
        %s865 = scalar_lea.vmem %s14, %s864
      $region80: #{conv3d_direct.1} parent=19 // pred_fallthru
        _
    $region20: #{conv3d_direct.1} parent=5 // pred_fallthru
      _
    %p866 = scmp.le.s32.totalorder 1, %s22
    %p867 = scmp.lt.s32.totalorder %s22, 385
    %p868 = pnand %p866, %p867
    %p869 = pneg %p868
    // Predicated region
    $region81: #{conv3d_direct.1} parent=5 // pred_check
      _
    $region82: #{conv3d_direct.1} parent=5 // pred_check_branch
      %871 = sbr.rel (%p868) target = $region84
    $region83: #{conv3d_direct.1} parent=5 // pred_region
      %s872 = ssub.s32 %s22, 1
      %s873 = sadd.s32 %s32, %s34
      %s874 = smul.u32 %s33, 2
      %p875 = scmp.lt.s32.totalorder %s873, 9
      %s876 = scalar_select %p875, %s873, 9
      %p877 = scmp.lt.s32.totalorder %s874, 37
      %s878 = scalar_select %p877, %s874, 37
      %s879 = smul.addr %s878, 6
      %s880 = smul.addr %s876, 228
      %s881 = sadd.s32 %s879, %s880
      %s882 = smul.addr %s881, 4
      %s883 = scalar_lea.vmem %s0, %s882
      %p884 = pneg %p73
      %p885 = pneg %p70
      %s886 = sadd.s32 %s32, %s34
      %s887 = smul.u32 %s33, 2
      %p888 = scmp.lt.s32.totalorder %s886, 9
      %s889 = scalar_select %p888, %s886, 9
      %p890 = scmp.lt.s32.totalorder %s887, 37
      %s891 = scalar_select %p890, %s887, 37
      %s892 = smul.addr %s891, 6
      %s893 = smul.addr %s889, 228
      %s894 = sadd.s32 %s892, %s893
      %s895 = smul.addr %s894, 4
      %s896 = scalar_lea.vmem %s1, %s895
      %p897 = pneg %p105
      %p898 = pneg %p102
      %s899 = sadd.s32 %s32, %s34
      %s900 = smul.u32 %s33, 2
      %s901 = sadd.s32 %s900, 1
      %p902 = scmp.lt.s32.totalorder %s899, 9
      %s903 = scalar_select %p902, %s899, 9
      %p904 = scmp.lt.s32.totalorder %s901, 37
      %s905 = scalar_select %p904, %s901, 37
      %s906 = smul.addr %s905, 6
      %s907 = smul.addr %s903, 228
      %s908 = sadd.s32 %s906, %s907
      %s909 = smul.addr %s908, 4
      %s910 = scalar_lea.vmem %s2, %s909
      %p911 = pneg %p139
      %p912 = pneg %p136
      %s913 = sadd.s32 %s32, %s34
      %s914 = smul.u32 %s33, 2
      %s915 = sadd.s32 %s914, 1
      %p916 = scmp.lt.s32.totalorder %s913, 9
      %s917 = scalar_select %p916, %s913, 9
      %p918 = scmp.lt.s32.totalorder %s915, 37
      %s919 = scalar_select %p918, %s915, 37
      %s920 = smul.addr %s919, 6
      %s921 = smul.addr %s917, 228
      %s922 = sadd.s32 %s920, %s921
      %s923 = smul.addr %s922, 4
      %s924 = scalar_lea.vmem %s3, %s923
      %p925 = pneg %p173
      %p926 = pneg %p170
      %s927 = sadd.s32 %s32, %s34
      %s928 = smul.u32 %s33, 2
      %s929 = sadd.s32 %s928, 2
      %p930 = scmp.lt.s32.totalorder %s927, 9
      %s931 = scalar_select %p930, %s927, 9
      %p932 = scmp.lt.s32.totalorder %s929, 37
      %s933 = scalar_select %p932, %s929, 37
      %s934 = smul.addr %s933, 6
      %s935 = smul.addr %s931, 228
      %s936 = sadd.s32 %s934, %s935
      %s937 = smul.addr %s936, 4
      %s938 = scalar_lea.vmem %s4, %s937
      %p939 = pneg %p207
      %p940 = pneg %p204
      %s941 = sadd.s32 %s32, %s34
      %s942 = smul.u32 %s33, 2
      %s943 = sadd.s32 %s942, 2
      %p944 = scmp.lt.s32.totalorder %s941, 9
      %s945 = scalar_select %p944, %s941, 9
      %p946 = scmp.lt.s32.totalorder %s943, 37
      %s947 = scalar_select %p946, %s943, 37
      %s948 = smul.addr %s947, 6
      %s949 = smul.addr %s945, 228
      %s950 = sadd.s32 %s948, %s949
      %s951 = smul.addr %s950, 4
      %s952 = scalar_lea.vmem %s5, %s951
      %p953 = pneg %p241
      %p954 = pneg %p238
      %s955 = sadd.s32 %s32, %s34
      %s956 = smul.u32 %s33, 2
      %s957 = sadd.s32 %s956, 3
      %p958 = scmp.lt.s32.totalorder %s955, 9
      %s959 = scalar_select %p958, %s955, 9
      %p960 = scmp.lt.s32.totalorder %s957, 37
      %s961 = scalar_select %p960, %s957, 37
      %s962 = smul.addr %s961, 6
      %s963 = smul.addr %s959, 228
      %s964 = sadd.s32 %s962, %s963
      %s965 = smul.addr %s964, 4
      %s966 = scalar_lea.vmem %s6, %s965
      %p967 = pneg %p275
      %p968 = pneg %p272
      %s969 = sadd.s32 %s32, %s34
      %s970 = smul.u32 %s33, 2
      %s971 = sadd.s32 %s970, 3
      %p972 = scmp.lt.s32.totalorder %s969, 9
      %s973 = scalar_select %p972, %s969, 9
      %p974 = scmp.lt.s32.totalorder %s971, 37
      %s975 = scalar_select %p974, %s971, 37
      %s976 = smul.addr %s975, 6
      %s977 = smul.addr %s973, 228
      %s978 = sadd.s32 %s976, %s977
      %s979 = smul.addr %s978, 4
      %s980 = scalar_lea.vmem %s7, %s979
      %p981 = pneg %p309
      %p982 = pneg %p306
      %s983 = sadd.s32 %s32, %s34
      %s984 = smul.u32 %s33, 2
      %s985 = sadd.s32 %s984, 4
      %p986 = scmp.lt.s32.totalorder %s983, 9
      %s987 = scalar_select %p986, %s983, 9
      %p988 = scmp.lt.s32.totalorder %s985, 37
      %s989 = scalar_select %p988, %s985, 37
      %s990 = smul.addr %s989, 6
      %s991 = smul.addr %s987, 228
      %s992 = sadd.s32 %s990, %s991
      %s993 = smul.addr %s992, 4
      %s994 = scalar_lea.vmem %s8, %s993
      %p995 = pneg %p343
      %p996 = pneg %p340
      %s997 = sadd.s32 %s32, %s34
      %s998 = smul.u32 %s33, 2
      %s999 = sadd.s32 %s998, 4
      %p1000 = scmp.lt.s32.totalorder %s997, 9
      %s1001 = scalar_select %p1000, %s997, 9
      %p1002 = scmp.lt.s32.totalorder %s999, 37
      %s1003 = scalar_select %p1002, %s999, 37
      %s1004 = smul.addr %s1003, 6
      %s1005 = smul.addr %s1001, 228
      %s1006 = sadd.s32 %s1004, %s1005
      %s1007 = smul.addr %s1006, 4
      %s1008 = scalar_lea.vmem %s9, %s1007
      %p1009 = pneg %p377
      %p1010 = pneg %p374
      %s1011 = sadd.s32 %s32, %s34
      %s1012 = smul.u32 %s33, 2
      %s1013 = sadd.s32 %s1012, 5
      %p1014 = scmp.lt.s32.totalorder %s1011, 9
      %s1015 = scalar_select %p1014, %s1011, 9
      %p1016 = scmp.lt.s32.totalorder %s1013, 37
      %s1017 = scalar_select %p1016, %s1013, 37
      %s1018 = smul.addr %s1017, 6
      %s1019 = smul.addr %s1015, 228
      %s1020 = sadd.s32 %s1018, %s1019
      %s1021 = smul.addr %s1020, 4
      %s1022 = scalar_lea.vmem %s10, %s1021
      %p1023 = pneg %p411
      %p1024 = pneg %p408
      %s1025 = sadd.s32 %s32, %s34
      %s1026 = smul.u32 %s33, 2
      %s1027 = sadd.s32 %s1026, 5
      %p1028 = scmp.lt.s32.totalorder %s1025, 9
      %s1029 = scalar_select %p1028, %s1025, 9
      %p1030 = scmp.lt.s32.totalorder %s1027, 37
      %s1031 = scalar_select %p1030, %s1027, 37
      %s1032 = smul.addr %s1031, 6
      %s1033 = smul.addr %s1029, 228
      %s1034 = sadd.s32 %s1032, %s1033
      %s1035 = smul.addr %s1034, 4
      %s1036 = scalar_lea.vmem %s11, %s1035
      %p1037 = pneg %p445
      %p1038 = pneg %p442
      %s1039 = sadd.s32 %s32, %s34
      %s1040 = smul.u32 %s33, 2
      %s1041 = sadd.s32 %s1040, 6
      %p1042 = scmp.lt.s32.totalorder %s1039, 9
      %s1043 = scalar_select %p1042, %s1039, 9
      %p1044 = scmp.lt.s32.totalorder %s1041, 37
      %s1045 = scalar_select %p1044, %s1041, 37
      %s1046 = smul.addr %s1045, 6
      %s1047 = smul.addr %s1043, 228
      %s1048 = sadd.s32 %s1046, %s1047
      %s1049 = smul.addr %s1048, 4
      %s1050 = scalar_lea.vmem %s12, %s1049
      %p1051 = pneg %p479
      %p1052 = pneg %p476
      %s1053 = sadd.s32 %s32, %s34
      %s1054 = smul.u32 %s33, 2
      %s1055 = sadd.s32 %s1054, 6
      %p1056 = scmp.lt.s32.totalorder %s1053, 9
      %s1057 = scalar_select %p1056, %s1053, 9
      %p1058 = scmp.lt.s32.totalorder %s1055, 37
      %s1059 = scalar_select %p1058, %s1055, 37
      %s1060 = smul.addr %s1059, 6
      %s1061 = smul.addr %s1057, 228
      %s1062 = sadd.s32 %s1060, %s1061
      %s1063 = smul.addr %s1062, 4
      %s1064 = scalar_lea.vmem %s13, %s1063
      %p1065 = pneg %p513
      %p1066 = pneg %p510
      %p1067 = scmp.lt.s32.totalorder %s34, 2
      %s1068 = scalar_select %p1067, %s34, 2
      %s1069 = smul.addr %s1068, 98
      %s1070 = smul.addr %s1069, 4
      %s1071 = scalar_lea.vmem %s14, %s1070
      %p1072 = pneg %p539
      %p1073 = pneg %p536
      %p1074 = pneg %p560
      %p1075 = pneg %p557
      %p1076 = pneg %p588
      %p1077 = pneg %p585
      %p1078 = scmp.lt.s32.totalorder %s32, 7
      %s1079 = scalar_select %p1078, %s32, 7
      %p1080 = scmp.lt.s32.totalorder %s33, 15
      %s1081 = scalar_select %p1080, %s33, 15
      %s1082 = smul.addr %s1081, 4
      %s1083 = smul.addr %s1079, 64
      %s1084 = sadd.s32 %s1082, %s1083
      %s1085 = smul.addr %s1084, 4
      %s1086 = scalar_lea.vmem %s16, %s1085
      %s1087 = sadd.s32 %s32, %s34
      %s1088 = smul.u32 %s33, 2
      %p1089 = scmp.lt.s32.totalorder %s1087, 9
      %s1090 = scalar_select %p1089, %s1087, 9
      %p1091 = scmp.lt.s32.totalorder %s1088, 37
      %s1092 = scalar_select %p1091, %s1088, 37
      %s1093 = smul.addr %s1092, 6
      %s1094 = smul.addr %s1090, 228
      %s1095 = sadd.s32 %s1093, %s1094
      %s1096 = smul.addr %s1095, 4
      %s1097 = scalar_lea.vmem %s0, %s1096
      %s1098 = sadd.s32 %s32, %s34
      %s1099 = smul.u32 %s33, 2
      %s1100 = sadd.s32 %s32, %s34
      %s1101 = smul.u32 %s33, 2
      %p1102 = scmp.lt.s32.totalorder %s1100, 9
      %s1103 = scalar_select %p1102, %s1100, 9
      %p1104 = scmp.lt.s32.totalorder %s1101, 37
      %s1105 = scalar_select %p1104, %s1101, 37
      %s1106 = smul.addr %s1105, 6
      %s1107 = smul.addr %s1103, 228
      %s1108 = sadd.s32 %s1106, %s1107
      %s1109 = smul.addr %s1108, 4
      %s1110 = scalar_lea.vmem %s1, %s1109
      %s1111 = sadd.s32 %s32, %s34
      %s1112 = smul.u32 %s33, 2
      %s1113 = sadd.s32 %s32, %s34
      %s1114 = smul.u32 %s33, 2
      %s1115 = sadd.s32 %s1114, 1
      %p1116 = scmp.lt.s32.totalorder %s1113, 9
      %s1117 = scalar_select %p1116, %s1113, 9
      %p1118 = scmp.lt.s32.totalorder %s1115, 37
      %s1119 = scalar_select %p1118, %s1115, 37
      %s1120 = smul.addr %s1119, 6
      %s1121 = smul.addr %s1117, 228
      %s1122 = sadd.s32 %s1120, %s1121
      %s1123 = smul.addr %s1122, 4
      %s1124 = scalar_lea.vmem %s2, %s1123
      %s1125 = sadd.s32 %s32, %s34
      %s1126 = smul.u32 %s33, 2
      %s1127 = sadd.s32 %s1126, 1
      %s1128 = sadd.s32 %s32, %s34
      %s1129 = smul.u32 %s33, 2
      %s1130 = sadd.s32 %s1129, 1
      %p1131 = scmp.lt.s32.totalorder %s1128, 9
      %s1132 = scalar_select %p1131, %s1128, 9
      %p1133 = scmp.lt.s32.totalorder %s1130, 37
      %s1134 = scalar_select %p1133, %s1130, 37
      %s1135 = smul.addr %s1134, 6
      %s1136 = smul.addr %s1132, 228
      %s1137 = sadd.s32 %s1135, %s1136
      %s1138 = smul.addr %s1137, 4
      %s1139 = scalar_lea.vmem %s3, %s1138
      %s1140 = sadd.s32 %s32, %s34
      %s1141 = smul.u32 %s33, 2
      %s1142 = sadd.s32 %s1141, 1
      %s1143 = sadd.s32 %s32, %s34
      %s1144 = smul.u32 %s33, 2
      %s1145 = sadd.s32 %s1144, 2
      %p1146 = scmp.lt.s32.totalorder %s1143, 9
      %s1147 = scalar_select %p1146, %s1143, 9
      %p1148 = scmp.lt.s32.totalorder %s1145, 37
      %s1149 = scalar_select %p1148, %s1145, 37
      %s1150 = smul.addr %s1149, 6
      %s1151 = smul.addr %s1147, 228
      %s1152 = sadd.s32 %s1150, %s1151
      %s1153 = smul.addr %s1152, 4
      %s1154 = scalar_lea.vmem %s4, %s1153
      %s1155 = sadd.s32 %s32, %s34
      %s1156 = smul.u32 %s33, 2
      %s1157 = sadd.s32 %s1156, 2
      %s1158 = sadd.s32 %s32, %s34
      %s1159 = smul.u32 %s33, 2
      %s1160 = sadd.s32 %s1159, 2
      %p1161 = scmp.lt.s32.totalorder %s1158, 9
      %s1162 = scalar_select %p1161, %s1158, 9
      %p1163 = scmp.lt.s32.totalorder %s1160, 37
      %s1164 = scalar_select %p1163, %s1160, 37
      %s1165 = smul.addr %s1164, 6
      %s1166 = smul.addr %s1162, 228
      %s1167 = sadd.s32 %s1165, %s1166
      %s1168 = smul.addr %s1167, 4
      %s1169 = scalar_lea.vmem %s5, %s1168
      %s1170 = sadd.s32 %s32, %s34
      %s1171 = smul.u32 %s33, 2
      %s1172 = sadd.s32 %s1171, 2
      %s1173 = sadd.s32 %s32, %s34
      %s1174 = smul.u32 %s33, 2
      %s1175 = sadd.s32 %s1174, 3
      %p1176 = scmp.lt.s32.totalorder %s1173, 9
      %s1177 = scalar_select %p1176, %s1173, 9
      %p1178 = scmp.lt.s32.totalorder %s1175, 37
      %s1179 = scalar_select %p1178, %s1175, 37
      %s1180 = smul.addr %s1179, 6
      %s1181 = smul.addr %s1177, 228
      %s1182 = sadd.s32 %s1180, %s1181
      %s1183 = smul.addr %s1182, 4
      %s1184 = scalar_lea.vmem %s6, %s1183
      %s1185 = sadd.s32 %s32, %s34
      %s1186 = smul.u32 %s33, 2
      %s1187 = sadd.s32 %s1186, 3
      %s1188 = sadd.s32 %s32, %s34
      %s1189 = smul.u32 %s33, 2
      %s1190 = sadd.s32 %s1189, 3
      %p1191 = scmp.lt.s32.totalorder %s1188, 9
      %s1192 = scalar_select %p1191, %s1188, 9
      %p1193 = scmp.lt.s32.totalorder %s1190, 37
      %s1194 = scalar_select %p1193, %s1190, 37
      %s1195 = smul.addr %s1194, 6
      %s1196 = smul.addr %s1192, 228
      %s1197 = sadd.s32 %s1195, %s1196
      %s1198 = smul.addr %s1197, 4
      %s1199 = scalar_lea.vmem %s7, %s1198
      %s1200 = sadd.s32 %s32, %s34
      %s1201 = smul.u32 %s33, 2
      %s1202 = sadd.s32 %s1201, 3
      %s1203 = sadd.s32 %s32, %s34
      %s1204 = smul.u32 %s33, 2
      %s1205 = sadd.s32 %s1204, 4
      %p1206 = scmp.lt.s32.totalorder %s1203, 9
      %s1207 = scalar_select %p1206, %s1203, 9
      %p1208 = scmp.lt.s32.totalorder %s1205, 37
      %s1209 = scalar_select %p1208, %s1205, 37
      %s1210 = smul.addr %s1209, 6
      %s1211 = smul.addr %s1207, 228
      %s1212 = sadd.s32 %s1210, %s1211
      %s1213 = smul.addr %s1212, 4
      %s1214 = scalar_lea.vmem %s8, %s1213
      %s1215 = sadd.s32 %s32, %s34
      %s1216 = smul.u32 %s33, 2
      %s1217 = sadd.s32 %s1216, 4
      %s1218 = sadd.s32 %s32, %s34
      %s1219 = smul.u32 %s33, 2
      %s1220 = sadd.s32 %s1219, 4
      %p1221 = scmp.lt.s32.totalorder %s1218, 9
      %s1222 = scalar_select %p1221, %s1218, 9
      %p1223 = scmp.lt.s32.totalorder %s1220, 37
      %s1224 = scalar_select %p1223, %s1220, 37
      %s1225 = smul.addr %s1224, 6
      %s1226 = smul.addr %s1222, 228
      %s1227 = sadd.s32 %s1225, %s1226
      %s1228 = smul.addr %s1227, 4
      %s1229 = scalar_lea.vmem %s9, %s1228
      %s1230 = sadd.s32 %s32, %s34
      %s1231 = smul.u32 %s33, 2
      %s1232 = sadd.s32 %s1231, 4
      %s1233 = sadd.s32 %s32, %s34
      %s1234 = smul.u32 %s33, 2
      %s1235 = sadd.s32 %s1234, 5
      %p1236 = scmp.lt.s32.totalorder %s1233, 9
      %s1237 = scalar_select %p1236, %s1233, 9
      %p1238 = scmp.lt.s32.totalorder %s1235, 37
      %s1239 = scalar_select %p1238, %s1235, 37
      %s1240 = smul.addr %s1239, 6
      %s1241 = smul.addr %s1237, 228
      %s1242 = sadd.s32 %s1240, %s1241
      %s1243 = smul.addr %s1242, 4
      %s1244 = scalar_lea.vmem %s10, %s1243
      %s1245 = sadd.s32 %s32, %s34
      %s1246 = smul.u32 %s33, 2
      %s1247 = sadd.s32 %s1246, 5
      %s1248 = sadd.s32 %s32, %s34
      %s1249 = smul.u32 %s33, 2
      %s1250 = sadd.s32 %s1249, 5
      %p1251 = scmp.lt.s32.totalorder %s1248, 9
      %s1252 = scalar_select %p1251, %s1248, 9
      %p1253 = scmp.lt.s32.totalorder %s1250, 37
      %s1254 = scalar_select %p1253, %s1250, 37
      %s1255 = smul.addr %s1254, 6
      %s1256 = smul.addr %s1252, 228
      %s1257 = sadd.s32 %s1255, %s1256
      %s1258 = smul.addr %s1257, 4
      %s1259 = scalar_lea.vmem %s11, %s1258
      %s1260 = sadd.s32 %s32, %s34
      %s1261 = smul.u32 %s33, 2
      %s1262 = sadd.s32 %s1261, 5
      %s1263 = sadd.s32 %s32, %s34
      %s1264 = smul.u32 %s33, 2
      %s1265 = sadd.s32 %s1264, 6
      %p1266 = scmp.lt.s32.totalorder %s1263, 9
      %s1267 = scalar_select %p1266, %s1263, 9
      %p1268 = scmp.lt.s32.totalorder %s1265, 37
      %s1269 = scalar_select %p1268, %s1265, 37
      %s1270 = smul.addr %s1269, 6
      %s1271 = smul.addr %s1267, 228
      %s1272 = sadd.s32 %s1270, %s1271
      %s1273 = smul.addr %s1272, 4
      %s1274 = scalar_lea.vmem %s12, %s1273
      %s1275 = sadd.s32 %s32, %s34
      %s1276 = smul.u32 %s33, 2
      %s1277 = sadd.s32 %s1276, 6
      %s1278 = sadd.s32 %s32, %s34
      %s1279 = smul.u32 %s33, 2
      %s1280 = sadd.s32 %s1279, 6
      %p1281 = scmp.lt.s32.totalorder %s1278, 9
      %s1282 = scalar_select %p1281, %s1278, 9
      %p1283 = scmp.lt.s32.totalorder %s1280, 37
      %s1284 = scalar_select %p1283, %s1280, 37
      %s1285 = smul.addr %s1284, 6
      %s1286 = smul.addr %s1282, 228
      %s1287 = sadd.s32 %s1285, %s1286
      %s1288 = smul.addr %s1287, 4
      %s1289 = scalar_lea.vmem %s13, %s1288
      %s1290 = sadd.s32 %s32, %s34
      %s1291 = smul.u32 %s33, 2
      %s1292 = sadd.s32 %s1291, 6
      %p1293 = scmp.lt.s32.totalorder %s34, 2
      %s1294 = scalar_select %p1293, %s34, 2
      %s1295 = smul.addr %s1294, 98
      %s1296 = smul.addr %s1295, 4
      %s1297 = scalar_lea.vmem %s14, %s1296
      %p1298 = scmp.lt.s32.totalorder %s32, 7
      %s1299 = scalar_select %p1298, %s32, 7
      %p1300 = scmp.lt.s32.totalorder %s33, 15
      %s1301 = scalar_select %p1300, %s33, 15
      %s1302 = smul.addr %s1301, 4
      %s1303 = smul.addr %s1299, 64
      %s1304 = sadd.s32 %s1302, %s1303
      %s1305 = smul.addr %s1304, 4
      %s1306 = scalar_lea.vmem %s16, %s1305
      %p1308 = scmp.eq.s32.totalorder %s34, 0
      // Predicated region
      $region85: #{conv3d_direct.1} parent=83 // pred_check
        %p1309 = pneg %p1308
      $region86: #{conv3d_direct.1} parent=83 // pred_check_branch
        %1311 = sbr.rel (%p1309) target = $region88
      $region87: #{conv3d_direct.1} parent=83 // pred_region
        %vm1312 = vcmask 64512
        %1313 = vst.msk [vmem:[#allocation2] sm:$0xff] %vm1312, 0.0
        %1314 = vst.msk [vmem:[#allocation2 + $0x8] sm:$0xff] %vm1312, 0.0
        %1315 = vst.msk [vmem:[#allocation2 + $0x10] sm:$0xff] %vm1312, 0.0
        %1316 = vst.msk [vmem:[#allocation2 + $0x18] sm:$0xff] %vm1312, 0.0
      $region88: #{conv3d_direct.1} parent=83 // pred_fallthru
        _
      %v1317 = vld [vmem:[%s1097] sm:$0xf]
      %v1318 = vld [vmem:[%s1097 + $0x4] sm:$0xf]
      %v1319 = vld [vmem:[%s1297] sm:$0xf]
      %v1320 = vld [vmem:[%s1297 + $0x4] sm:$0xf]
      %v1321 = vld [vmem:[%s1110] sm:$0xf]
      %v1322 = vld [vmem:[%s1110 + $0x4] sm:$0xf]
      %s1323 = scalar_lea.vmem %s1297, 8
      %v1324 = vld [vmem:[%s1323] sm:$0xf]
      %v1325 = vld [vmem:[%s1323 + $0x4] sm:$0xf]
      %v1328 = vunpack.c.l.b16 %v1321
      %v1329 = vunpack.c.l.b16 %v1322
      %v1330 = vpack.c.b16 %v1329, %v1328
      %v1333 = vunpack.c.l.b16 %v1324
      %v1334 = vunpack.c.l.b16 %v1325
      %v1335 = vpack.c.b16 %v1334, %v1333
      %vm1337 = vcmask 130048
      %v1339 = vsel %vm1337, %v1330, 0
      %1341 = vmatprep.subr.bf16.mxu0 0
      %1342 = vmatpush1.bf16.msra.mxu0 %v1335
      %1343 = vmatprep.subr.bf16.mxu0 0
      %1344 = vmatpush1.bf16.msra.mxu0 0
      %1345 = vmatprep.subr.bf16.mxu0 0
      %1346 = vmatpush1.bf16.msra.mxu0 0
      %1347 = vmatprep.subr.bf16.mxu0 0
      %1348 = vmatpush1.bf16.msra.mxu0 0
      %1349 = vmatprep.subr.bf16.mxu0 0
      %1350 = vmatpush1.bf16.msra.mxu0 0
      %1351 = vmatprep.subr.bf16.mxu0 0
      %1352 = vmatpush1.bf16.msra.mxu0 0
      %1353 = vmatprep.subr.bf16.mxu0 0
      %1354 = vmatpush1.bf16.msra.mxu0 0
      %1355 = vmatprep.subr.bf16.mxu0 0
      %1356 = vmatpush1.bf16.msra.mxu0 0
      %1357 = vmatprep.subr.bf16.mxu0 0
      %1358 = vmatpush1.bf16.msra.mxu0 0
      %1359 = vmatprep.subr.bf16.mxu0 0
      %1360 = vmatpush1.bf16.msra.mxu0 0
      %1361 = vmatprep.subr.bf16.mxu0 0
      %1362 = vmatpush1.bf16.msra.mxu0 0
      %1363 = vmatprep.subr.bf16.mxu0 0
      %1364 = vmatpush1.bf16.msra.mxu0 0
      %1365 = vmatprep.subr.bf16.mxu0 0
      %1366 = vmatpush1.bf16.msra.mxu0 0
      %1367 = vmatprep.subr.bf16.mxu0 0
      %1368 = vmatpush1.bf16.msra.mxu0 0
      %1369 = vmatprep.subr.bf16.mxu0 0
      %1370 = vmatpush1.bf16.msra.mxu0 0
      %1371 = vmatprep.subr.bf16.mxu0 0
      %1372 = vmatpush1.bf16.msra.mxu0 0
      %1373 = vmatprep.mubr.bf16.mxu0 0
      %1374 = vmatmul.mubr.bf16.gmra.mrb[0].mxu0 %v1339
      %v1375 = vpop.f32.mrb[0].mxu0
      %v1376 = vadd.f32 0.0, %v1375
      %v1377 = vpop.f32.mrb[0].mxu0
      %v1378 = vpop.f32.mrb[0].mxu0
      %v1379 = vadd.f32 0.0, %v1378
      %v1380 = vpop.f32.mrb[0].mxu0
      %1381 = vdwg.mxu0
      %v1384 = vunpack.c.l.b16 %v1317
      %v1385 = vunpack.c.l.b16 %v1318
      %v1386 = vpack.c.b16 %v1385, %v1384
      %v1389 = vunpack.c.l.b16 %v1319
      %v1390 = vunpack.c.l.b16 %v1320
      %v1391 = vpack.c.b16 %v1390, %v1389
      %v1394 = vsel %vm1337, %v1386, 0
      %1396 = vmatprep.subr.bf16.mxu0 0
      %1397 = vmatpush1.bf16.msra.mxu0 %v1391
      %1398 = vmatprep.subr.bf16.mxu0 0
      %1399 = vmatpush1.bf16.msra.mxu0 0
      %1400 = vmatprep.subr.bf16.mxu0 0
      %1401 = vmatpush1.bf16.msra.mxu0 0
      %1402 = vmatprep.subr.bf16.mxu0 0
      %1403 = vmatpush1.bf16.msra.mxu0 0
      %1404 = vmatprep.subr.bf16.mxu0 0
      %1405 = vmatpush1.bf16.msra.mxu0 0
      %1406 = vmatprep.subr.bf16.mxu0 0
      %1407 = vmatpush1.bf16.msra.mxu0 0
      %1408 = vmatprep.subr.bf16.mxu0 0
      %1409 = vmatpush1.bf16.msra.mxu0 0
      %1410 = vmatprep.subr.bf16.mxu0 0
      %1411 = vmatpush1.bf16.msra.mxu0 0
      %1412 = vmatprep.subr.bf16.mxu0 0
      %1413 = vmatpush1.bf16.msra.mxu0 0
      %1414 = vmatprep.subr.bf16.mxu0 0
      %1415 = vmatpush1.bf16.msra.mxu0 0
      %1416 = vmatprep.subr.bf16.mxu0 0
      %1417 = vmatpush1.bf16.msra.mxu0 0
      %1418 = vmatprep.subr.bf16.mxu0 0
      %1419 = vmatpush1.bf16.msra.mxu0 0
      %1420 = vmatprep.subr.bf16.mxu0 0
      %1421 = vmatpush1.bf16.msra.mxu0 0
      %1422 = vmatprep.subr.bf16.mxu0 0
      %1423 = vmatpush1.bf16.msra.mxu0 0
      %1424 = vmatprep.subr.bf16.mxu0 0
      %1425 = vmatpush1.bf16.msra.mxu0 0
      %1426 = vmatprep.subr.bf16.mxu0 0
      %1427 = vmatpush1.bf16.msra.mxu0 0
      %1428 = vmatprep.mubr.bf16.mxu0 0
      %1429 = vmatmul.mubr.bf16.gmra.mrb[0].mxu0 %v1394
      %v1430 = vpop.f32.mrb[0].mxu0
      %v1431 = vadd.f32 %v1376, %v1430
      %v1432 = vpop.f32.mrb[0].mxu0
      %v1433 = vpop.f32.mrb[0].mxu0
      %v1434 = vadd.f32 %v1379, %v1433
      %v1435 = vpop.f32.mrb[0].mxu0
      %1436 = vdwg.mxu0
      %v1437 = vld [vmem:[%s1097] sm:$0xf]
      %v1438 = vld [vmem:[%s1097 + $0x4] sm:$0xf]
      %v1439 = vld [vmem:[%s1097 + $0x8] sm:$0x1]
      %s1440 = scalar_lea.vmem %s1297, 16
      %v1441 = vld [vmem:[%s1440] sm:$0xf]
      %v1442 = vld [vmem:[%s1440 + $0x4] sm:$0xf]
      %v1446 = vunpack.c.l.b16 %v1437
      %v1447 = vunpack.c.l.b16 %v1438
      %v1448 = vunpack.c.l.b16 %v1439
      %v1449 = vpack.c.b16 %v1447, %v1446
      %v1450 = vpack.c.b16 %v1448, %v1448
      %vm1451 = vsmask.f32 7424
      %v1453 = vshrl.u32 %v1449, 16
      %v1455 = vshll.u32 %v1449, 16
      %v1457 = vrot.slane %v1455, 1
      %v1458 = vor.u32 %v1453, %v1457
      %v1460 = vshll.u32 %v1450, 16
      %v1462 = vrot.slane %v1460, 1
      %v1463 = vsel %vm1451, %v1458, %v1462
      %v1466 = vunpack.c.l.b16 %v1441
      %v1467 = vunpack.c.l.b16 %v1442
      %v1468 = vpack.c.b16 %v1467, %v1466
      %v1471 = vsel %vm1337, %v1463, 0
      %1473 = vmatprep.subr.bf16.mxu0 0
      %1474 = vmatpush1.bf16.msra.mxu0 %v1468
      %1475 = vmatprep.subr.bf16.mxu0 0
      %1476 = vmatpush1.bf16.msra.mxu0 0
      %1477 = vmatprep.subr.bf16.mxu0 0
      %1478 = vmatpush1.bf16.msra.mxu0 0
      %1479 = vmatprep.subr.bf16.mxu0 0
      %1480 = vmatpush1.bf16.msra.mxu0 0
      %1481 = vmatprep.subr.bf16.mxu0 0
      %1482 = vmatpush1.bf16.msra.mxu0 0
      %1483 = vmatprep.subr.bf16.mxu0 0
      %1484 = vmatpush1.bf16.msra.mxu0 0
      %1485 = vmatprep.subr.bf16.mxu0 0
      %1486 = vmatpush1.bf16.msra.mxu0 0
      %1487 = vmatprep.subr.bf16.mxu0 0
      %1488 = vmatpush1.bf16.msra.mxu0 0
      %1489 = vmatprep.subr.bf16.mxu0 0
      %1490 = vmatpush1.bf16.msra.mxu0 0
      %1491 = vmatprep.subr.bf16.mxu0 0
      %1492 = vmatpush1.bf16.msra.mxu0 0
      %1493 = vmatprep.subr.bf16.mxu0 0
      %1494 = vmatpush1.bf16.msra.mxu0 0
      %1495 = vmatprep.subr.bf16.mxu0 0
      %1496 = vmatpush1.bf16.msra.mxu0 0
      %1497 = vmatprep.subr.bf16.mxu0 0
      %1498 = vmatpush1.bf16.msra.mxu0 0
      %1499 = vmatprep.subr.bf16.mxu0 0
      %1500 = vmatpush1.bf16.msra.mxu0 0
      %1501 = vmatprep.subr.bf16.mxu0 0
      %1502 = vmatpush1.bf16.msra.mxu0 0
      %1503 = vmatprep.subr.bf16.mxu0 0
      %1504 = vmatpush1.bf16.msra.mxu0 0
      %1505 = vmatprep.mubr.bf16.mxu0 0
      %1506 = vmatmul.mubr.bf16.gmra.mrb[0].mxu0 %v1471
      %v1507 = vpop.f32.mrb[0].mxu0
      %v1508 = vadd.f32 0.0, %v1507
      %v1509 = vpop.f32.mrb[0].mxu0
      %v1510 = vpop.f32.mrb[0].mxu0
      %v1511 = vadd.f32 0.0, %v1510
      %v1512 = vpop.f32.mrb[0].mxu0
      %1513 = vdwg.mxu0
      %v1514 = vadd.f32 %v1431, %v1508
      %v1515 = vadd.f32 %v1434, %v1511
      %v1516 = vld [vmem:[%s1110] sm:$0xf]
      %v1517 = vld [vmem:[%s1110 + $0x4] sm:$0xf]
      %v1518 = vld [vmem:[%s1110 + $0x8] sm:$0x1]
      %s1519 = scalar_lea.vmem %s1297, 24
      %v1520 = vld [vmem:[%s1519] sm:$0xf]
      %v1521 = vld [vmem:[%s1519 + $0x4] sm:$0xf]
      %v1525 = vunpack.c.l.b16 %v1516
      %v1526 = vunpack.c.l.b16 %v1517
      %v1527 = vunpack.c.l.b16 %v1518
      %v1528 = vpack.c.b16 %v1526, %v1525
      %v1529 = vpack.c.b16 %v1527, %v1527
      %v1531 = vshrl.u32 %v1528, 16
      %v1533 = vshll.u32 %v1528, 16
      %v1535 = vrot.slane %v1533, 1
      %v1536 = vor.u32 %v1531, %v1535
      %v1538 = vshll.u32 %v1529, 16
      %v1540 = vrot.slane %v1538, 1
      %v1541 = vsel %vm1451, %v1536, %v1540
      %v1544 = vunpack.c.l.b16 %v1520
      %v1545 = vunpack.c.l.b16 %v1521
      %v1546 = vpack.c.b16 %v1545, %v1544
      %v1549 = vsel %vm1337, %v1541, 0
      %1551 = vmatprep.subr.bf16.mxu0 0
      %1552 = vmatpush1.bf16.msra.mxu0 %v1546
      %1553 = vmatprep.subr.bf16.mxu0 0
      %1554 = vmatpush1.bf16.msra.mxu0 0
      %1555 = vmatprep.subr.bf16.mxu0 0
      %1556 = vmatpush1.bf16.msra.mxu0 0
      %1557 = vmatprep.subr.bf16.mxu0 0
      %1558 = vmatpush1.bf16.msra.mxu0 0
      %1559 = vmatprep.subr.bf16.mxu0 0
      %1560 = vmatpush1.bf16.msra.mxu0 0
      %1561 = vmatprep.subr.bf16.mxu0 0
      %1562 = vmatpush1.bf16.msra.mxu0 0
      %1563 = vmatprep.subr.bf16.mxu0 0
      %1564 = vmatpush1.bf16.msra.mxu0 0
      %1565 = vmatprep.subr.bf16.mxu0 0
      %1566 = vmatpush1.bf16.msra.mxu0 0
      %1567 = vmatprep.subr.bf16.mxu0 0
      %1568 = vmatpush1.bf16.msra.mxu0 0
      %1569 = vmatprep.subr.bf16.mxu0 0
      %1570 = vmatpush1.bf16.msra.mxu0 0
      %1571 = vmatprep.subr.bf16.mxu0 0
      %1572 = vmatpush1.bf16.msra.mxu0 0
      %1573 = vmatprep.subr.bf16.mxu0 0
      %1574 = vmatpush1.bf16.msra.mxu0 0
      %1575 = vmatprep.subr.bf16.mxu0 0
      %1576 = vmatpush1.bf16.msra.mxu0 0
      %1577 = vmatprep.subr.bf16.mxu0 0
      %1578 = vmatpush1.bf16.msra.mxu0 0
      %1579 = vmatprep.subr.bf16.mxu0 0
      %1580 = vmatpush1.bf16.msra.mxu0 0
      %1581 = vmatprep.subr.bf16.mxu0 0
      %1582 = vmatpush1.bf16.msra.mxu0 0
      %1583 = vmatprep.mubr.bf16.mxu0 0
      %1584 = vmatmul.mubr.bf16.gmra.mrb[0].mxu0 %v1549
      %v1585 = vpop.f32.mrb[0].mxu0
      %v1586 = vadd.f32 0.0, %v1585
      %v1587 = vpop.f32.mrb[0].mxu0
      %v1588 = vpop.f32.mrb[0].mxu0
      %v1589 = vadd.f32 0.0, %v1588
      %v1590 = vpop.f32.mrb[0].mxu0
      %1591 = vdwg.mxu0
      %v1592 = vadd.f32 %v1514, %v1586
      %v1593 = vadd.f32 %v1515, %v1589
      %v1594 = vld [vmem:[%s1097] sm:$0xe]
      %s1595 = scalar_lea.vmem %s1297, 32
      %v1596 = vld [vmem:[%s1595] sm:$0xf]
      %v1597 = vld [vmem:[%s1595 + $0x4] sm:$0xf]
      %v1599 = vunpack.c.l.b16 %v1594
      %v1600 = vpack.c.b16 %v1447, %v1599
      %vm1601 = vcmask 1046528
      %v1602 = vrot.slane %v1600, 1
      %v1603 = vrot.slane %v1450, 1
      %v1604 = vsel %vm1601, %v1602, %v1603
      %v1607 = vunpack.c.l.b16 %v1596
      %v1608 = vunpack.c.l.b16 %v1597
      %v1609 = vpack.c.b16 %v1608, %v1607
      %v1612 = vsel %vm1337, %v1604, 0
      %1614 = vmatprep.subr.bf16.mxu0 0
      %1615 = vmatpush1.bf16.msra.mxu0 %v1609
      %1616 = vmatprep.subr.bf16.mxu0 0
      %1617 = vmatpush1.bf16.msra.mxu0 0
      %1618 = vmatprep.subr.bf16.mxu0 0
      %1619 = vmatpush1.bf16.msra.mxu0 0
      %1620 = vmatprep.subr.bf16.mxu0 0
      %1621 = vmatpush1.bf16.msra.mxu0 0
      %1622 = vmatprep.subr.bf16.mxu0 0
      %1623 = vmatpush1.bf16.msra.mxu0 0
      %1624 = vmatprep.subr.bf16.mxu0 0
      %1625 = vmatpush1.bf16.msra.mxu0 0
      %1626 = vmatprep.subr.bf16.mxu0 0
      %1627 = vmatpush1.bf16.msra.mxu0 0
      %1628 = vmatprep.subr.bf16.mxu0 0
      %1629 = vmatpush1.bf16.msra.mxu0 0
      %1630 = vmatprep.subr.bf16.mxu0 0
      %1631 = vmatpush1.bf16.msra.mxu0 0
      %1632 = vmatprep.subr.bf16.mxu0 0
      %1633 = vmatpush1.bf16.msra.mxu0 0
      %1634 = vmatprep.subr.bf16.mxu0 0
      %1635 = vmatpush1.bf16.msra.mxu0 0
      %1636 = vmatprep.subr.bf16.mxu0 0
      %1637 = vmatpush1.bf16.msra.mxu0 0
      %1638 = vmatprep.subr.bf16.mxu0 0
      %1639 = vmatpush1.bf16.msra.mxu0 0
      %1640 = vmatprep.subr.bf16.mxu0 0
      %1641 = vmatpush1.bf16.msra.mxu0 0
      %1642 = vmatprep.subr.bf16.mxu0 0
      %1643 = vmatpush1.bf16.msra.mxu0 0
      %1644 = vmatprep.subr.bf16.mxu0 0
      %1645 = vmatpush1.bf16.msra.mxu0 0
      %1646 = vmatprep.mubr.bf16.mxu0 0
      %1647 = vmatmul.mubr.bf16.gmra.mrb[0].mxu0 %v1612
      %v1648 = vpop.f32.mrb[0].mxu0
      %v1649 = vadd.f32 0.0, %v1648
      %v1650 = vpop.f32.mrb[0].mxu0
      %v1651 = vpop.f32.mrb[0].mxu0
      %v1652 = vadd.f32 0.0, %v1651
      %v1653 = vpop.f32.mrb[0].mxu0
      %1654 = vdwg.mxu0
      %v1655 = vadd.f32 %v1592, %v1649
      %v1656 = vadd.f32 %v1593, %v1652
      %v1657 = vld [vmem:[%s1110] sm:$0xe]
      %s1658 = scalar_lea.vmem %s1297, 40
      %v1659 = vld [vmem:[%s1658] sm:$0xf]
      %v1660 = vld [vmem:[%s1658 + $0x4] sm:$0xf]
      %v1662 = vunpack.c.l.b16 %v1657
      %v1663 = vpack.c.b16 %v1526, %v1662
      %v1664 = vrot.slane %v1663, 1
      %v1665 = vrot.slane %v1529, 1
      %v1666 = vsel %vm1601, %v1664, %v1665
      %v1669 = vunpack.c.l.b16 %v1659
      %v1670 = vunpack.c.l.b16 %v1660
      %v1671 = vpack.c.b16 %v1670, %v1669
      %v1674 = vsel %vm1337, %v1666, 0
      %1676 = vmatprep.subr.bf16.mxu0 0
      %1677 = vmatpush1.bf16.msra.mxu0 %v1671
      %1678 = vmatprep.subr.bf16.mxu0 0
      %1679 = vmatpush1.bf16.msra.mxu0 0
      %1680 = vmatprep.subr.bf16.mxu0 0
      %1681 = vmatpush1.bf16.msra.mxu0 0
      %1682 = vmatprep.subr.bf16.mxu0 0
      %1683 = vmatpush1.bf16.msra.mxu0 0
      %1684 = vmatprep.subr.bf16.mxu0 0
      %1685 = vmatpush1.bf16.msra.mxu0 0
      %1686 = vmatprep.subr.bf16.mxu0 0
      %1687 = vmatpush1.bf16.msra.mxu0 0
      %1688 = vmatprep.subr.bf16.mxu0 0
      %1689 = vmatpush1.bf16.msra.mxu0 0
      %1690 = vmatprep.subr.bf16.mxu0 0
      %1691 = vmatpush1.bf16.msra.mxu0 0
      %1692 = vmatprep.subr.bf16.mxu0 0
      %1693 = vmatpush1.bf16.msra.mxu0 0
      %1694 = vmatprep.subr.bf16.mxu0 0
      %1695 = vmatpush1.bf16.msra.mxu0 0
      %1696 = vmatprep.subr.bf16.mxu0 0
      %1697 = vmatpush1.bf16.msra.mxu0 0
      %1698 = vmatprep.subr.bf16.mxu0 0
      %1699 = vmatpush1.bf16.msra.mxu0 0
      %1700 = vmatprep.subr.bf16.mxu0 0
      %1701 = vmatpush1.bf16.msra.mxu0 0
      %1702 = vmatprep.subr.bf16.mxu0 0
      %1703 = vmatpush1.bf16.msra.mxu0 0
      %1704 = vmatprep.subr.bf16.mxu0 0
      %1705 = vmatpush1.bf16.msra.mxu0 0
      %1706 = vmatprep.subr.bf16.mxu0 0
      %1707 = vmatpush1.bf16.msra.mxu0 0
      %1708 = vmatprep.mubr.bf16.mxu0 0
      %1709 = vmatmul.mubr.bf16.gmra.mrb[0].mxu0 %v1674
      %v1710 = vpop.f32.mrb[0].mxu0
      %v1711 = vadd.f32 0.0, %v1710
      %v1712 = vpop.f32.mrb[0].mxu0
      %v1713 = vpop.f32.mrb[0].mxu0
      %v1714 = vadd.f32 0.0, %v1713
      %v1715 = vpop.f32.mrb[0].mxu0
      %1716 = vdwg.mxu0
      %v1717 = vadd.f32 %v1655, %v1711
      %v1718 = vadd.f32 %v1656, %v1714
      %v1719 = vld [vmem:[%s1097 + $0x8] sm:$0x3]
      %s1720 = scalar_lea.vmem %s1297, 48
      %v1721 = vld [vmem:[%s1720] sm:$0xf]
      %v1722 = vld [vmem:[%s1720 + $0x4] sm:$0xf]
      %v1724 = vunpack.c.l.b16 %v1719
      %v1725 = vpack.c.b16 %v1724, %v1724
      %vm1726 = vsmask.f32 6400
      %v1728 = vshrl.u32 %v1600, 16
      %v1730 = vrot.slane %v1728, 1
      %v1731 = vshll.u32 %v1600, 16
      %v1733 = vrot.slane %v1731, 2
      %v1734 = vor.u32 %v1730, %v1733
      %v1736 = vshrl.u32 %v1725, 16
      %v1738 = vrot.slane %v1736, 1
      %v1739 = vshll.u32 %v1725, 16
      %v1741 = vrot.slane %v1739, 2
      %v1742 = vor.u32 %v1738, %v1741
      %v1743 = vsel %vm1726, %v1734, %v1742
      %v1746 = vunpack.c.l.b16 %v1721
      %v1747 = vunpack.c.l.b16 %v1722
      %v1748 = vpack.c.b16 %v1747, %v1746
      %v1751 = vsel %vm1337, %v1743, 0
      %1753 = vmatprep.subr.bf16.mxu0 0
      %1754 = vmatpush1.bf16.msra.mxu0 %v1748
      %1755 = vmatprep.subr.bf16.mxu0 0
      %1756 = vmatpush1.bf16.msra.mxu0 0
      %1757 = vmatprep.subr.bf16.mxu0 0
      %1758 = vmatpush1.bf16.msra.mxu0 0
      %1759 = vmatprep.subr.bf16.mxu0 0
      %1760 = vmatpush1.bf16.msra.mxu0 0
      %1761 = vmatprep.subr.bf16.mxu0 0
      %1762 = vmatpush1.bf16.msra.mxu0 0
      %1763 = vmatprep.subr.bf16.mxu0 0
      %1764 = vmatpush1.bf16.msra.mxu0 0
      %1765 = vmatprep.subr.bf16.mxu0 0
      %1766 = vmatpush1.bf16.msra.mxu0 0
      %1767 = vmatprep.subr.bf16.mxu0 0
      %1768 = vmatpush1.bf16.msra.mxu0 0
      %1769 = vmatprep.subr.bf16.mxu0 0
      %1770 = vmatpush1.bf16.msra.mxu0 0
      %1771 = vmatprep.subr.bf16.mxu0 0
      %1772 = vmatpush1.bf16.msra.mxu0 0
      %1773 = vmatprep.subr.bf16.mxu0 0
      %1774 = vmatpush1.bf16.msra.mxu0 0
      %1775 = vmatprep.subr.bf16.mxu0 0
      %1776 = vmatpush1.bf16.msra.mxu0 0
      %1777 = vmatprep.subr.bf16.mxu0 0
      %1778 = vmatpush1.bf16.msra.mxu0 0
      %1779 = vmatprep.subr.bf16.mxu0 0
      %1780 = vmatpush1.bf16.msra.mxu0 0
      %1781 = vmatprep.subr.bf16.mxu0 0
      %1782 = vmatpush1.bf16.msra.mxu0 0
      %1783 = vmatprep.subr.bf16.mxu0 0
      %1784 = vmatpush1.bf16.msra.mxu0 0
      %1785 = vmatprep.mubr.bf16.mxu0 0
      %1786 = vmatmul.mubr.bf16.gmra.mrb[0].mxu0 %v1751
      %v1787 = vpop.f32.mrb[0].mxu0
      %v1788 = vadd.f32 0.0, %v1787
      %v1789 = vpop.f32.mrb[0].mxu0
      %v1790 = vpop.f32.mrb[0].mxu0
      %v1791 = vadd.f32 0.0, %v1790
      %v1792 = vpop.f32.mrb[0].mxu0
      %1793 = vdwg.mxu0
      %v1794 = vadd.f32 %v1717, %v1788
      %v1795 = vadd.f32 %v1718, %v1791
      %v1796 = vld [vmem:[%s1124] sm:$0xf]
      %v1797 = vld [vmem:[%s1124 + $0x4] sm:$0xf]
      %s1798 = scalar_lea.vmem %s1297, 56
      %v1799 = vld [vmem:[%s1798] sm:$0xf]
      %v1800 = vld [vmem:[%s1798 + $0x4] sm:$0xf]
      %v1803 = vunpack.c.l.b16 %v1796
      %v1804 = vunpack.c.l.b16 %v1797
      %v1805 = vpack.c.b16 %v1804, %v1803
      %v1808 = vunpack.c.l.b16 %v1799
      %v1809 = vunpack.c.l.b16 %v1800
      %v1810 = vpack.c.b16 %v1809, %v1808
      %v1813 = vsel %vm1337, %v1805, 0
      %1815 = vmatprep.subr.bf16.mxu0 0
      %1816 = vmatpush1.bf16.msra.mxu0 %v1810
      %1817 = vmatprep.subr.bf16.mxu0 0
      %1818 = vmatpush1.bf16.msra.mxu0 0
      %1819 = vmatprep.subr.bf16.mxu0 0
      %1820 = vmatpush1.bf16.msra.mxu0 0
      %1821 = vmatprep.subr.bf16.mxu0 0
      %1822 = vmatpush1.bf16.msra.mxu0 0
      %1823 = vmatprep.subr.bf16.mxu0 0
      %1824 = vmatpush1.bf16.msra.mxu0 0
      %1825 = vmatprep.subr.bf16.mxu0 0
      %1826 = vmatpush1.bf16.msra.mxu0 0
      %1827 = vmatprep.subr.bf16.mxu0 0
      %1828 = vmatpush1.bf16.msra.mxu0 0
      %1829 = vmatprep.subr.bf16.mxu0 0
      %1830 = vmatpush1.bf16.msra.mxu0 0
      %1831 = vmatprep.subr.bf16.mxu0 0
      %1832 = vmatpush1.bf16.msra.mxu0 0
      %1833 = vmatprep.subr.bf16.mxu0 0
      %1834 = vmatpush1.bf16.msra.mxu0 0
      %1835 = vmatprep.subr.bf16.mxu0 0
      %1836 = vmatpush1.bf16.msra.mxu0 0
      %1837 = vmatprep.subr.bf16.mxu0 0
      %1838 = vmatpush1.bf16.msra.mxu0 0
      %1839 = vmatprep.subr.bf16.mxu0 0
      %1840 = vmatpush1.bf16.msra.mxu0 0
      %1841 = vmatprep.subr.bf16.mxu0 0
      %1842 = vmatpush1.bf16.msra.mxu0 0
      %1843 = vmatprep.subr.bf16.mxu0 0
      %1844 = vmatpush1.bf16.msra.mxu0 0
      %1845 = vmatprep.subr.bf16.mxu0 0
      %1846 = vmatpush1.bf16.msra.mxu0 0
      %1847 = vmatprep.mubr.bf16.mxu0 0
      %1848 = vmatmul.mubr.bf16.gmra.mrb[0].mxu0 %v1813
      %v1849 = vpop.f32.mrb[0].mxu0
      %v1850 = vadd.f32 0.0, %v1849
      %v1851 = vpop.f32.mrb[0].mxu0
      %v1852 = vpop.f32.mrb[0].mxu0
      %v1853 = vadd.f32 0.0, %v1852
      %v1854 = vpop.f32.mrb[0].mxu0
      %1855 = vdwg.mxu0
      %v1856 = vadd.f32 %v1794, %v1850
      %v1857 = vadd.f32 %v1795, %v1853
      %v1858 = vld [vmem:[%s1139] sm:$0xf]
      %v1859 = vld [vmem:[%s1139 + $0x4] sm:$0xf]
      %s1860 = scalar_lea.vmem %s1297, 64
      %v1861 = vld [vmem:[%s1860] sm:$0xf]
      %v1862 = vld [vmem:[%s1860 + $0x4] sm:$0xf]
      %v1865 = vunpack.c.l.b16 %v1858
      %v1866 = vunpack.c.l.b16 %v1859
      %v1867 = vpack.c.b16 %v1866, %v1865
      %v1870 = vunpack.c.l.b16 %v1861
      %v1871 = vunpack.c.l.b16 %v1862
      %v1872 = vpack.c.b16 %v1871, %v1870
      %v1875 = vsel %vm1337, %v1867, 0
      %1877 = vmatprep.subr.bf16.mxu0 0
      %1878 = vmatpush1.bf16.msra.mxu0 %v1872
      %1879 = vmatprep.subr.bf16.mxu0 0
      %1880 = vmatpush1.bf16.msra.mxu0 0
      %1881 = vmatprep.subr.bf16.mxu0 0
      %1882 = vmatpush1.bf16.msra.mxu0 0
      %1883 = vmatprep.subr.bf16.mxu0 0
      %1884 = vmatpush1.bf16.msra.mxu0 0
      %1885 = vmatprep.subr.bf16.mxu0 0
      %1886 = vmatpush1.bf16.msra.mxu0 0
      %1887 = vmatprep.subr.bf16.mxu0 0
      %1888 = vmatpush1.bf16.msra.mxu0 0
      %1889 = vmatprep.subr.bf16.mxu0 0
      %1890 = vmatpush1.bf16.msra.mxu0 0
      %1891 = vmatprep.subr.bf16.mxu0 0
      %1892 = vmatpush1.bf16.msra.mxu0 0
      %1893 = vmatprep.subr.bf16.mxu0 0
      %1894 = vmatpush1.bf16.msra.mxu0 0
      %1895 = vmatprep.subr.bf16.mxu0 0
      %1896 = vmatpush1.bf16.msra.mxu0 0
      %1897 = vmatprep.subr.bf16.mxu0 0
      %1898 = vmatpush1.bf16.msra.mxu0 0
      %1899 = vmatprep.subr.bf16.mxu0 0
      %1900 = vmatpush1.bf16.msra.mxu0 0
      %1901 = vmatprep.subr.bf16.mxu0 0
      %1902 = vmatpush1.bf16.msra.mxu0 0
      %1903 = vmatprep.subr.bf16.mxu0 0
      %1904 = vmatpush1.bf16.msra.mxu0 0
      %1905 = vmatprep.subr.bf16.mxu0 0
      %1906 = vmatpush1.bf16.msra.mxu0 0
      %1907 = vmatprep.subr.bf16.mxu0 0
      %1908 = vmatpush1.bf16.msra.mxu0 0
      %1909 = vmatprep.mubr.bf16.mxu0 0
      %1910 = vmatmul.mubr.bf16.gmra.mrb[0].mxu0 %v1875
      %v1911 = vpop.f32.mrb[0].mxu0
      %v1912 = vadd.f32 0.0, %v1911
      %v1913 = vpop.f32.mrb[0].mxu0
      %v1914 = vpop.f32.mrb[0].mxu0
      %v1915 = vadd.f32 0.0, %v1914
      %v1916 = vpop.f32.mrb[0].mxu0
      %1917 = vdwg.mxu0
      %v1918 = vadd.f32 %v1856, %v1912
      %v1919 = vadd.f32 %v1857, %v1915
      %v1920 = vld [vmem:[%s1124] sm:$0xf]
      %v1921 = vld [vmem:[%s1124 + $0x4] sm:$0xf]
      %v1922 = vld [vmem:[%s1124 + $0x8] sm:$0x1]
      %s1923 = scalar_lea.vmem %s1297, 72
      %v1924 = vld [vmem:[%s1923] sm:$0xf]
      %v1925 = vld [vmem:[%s1923 + $0x4] sm:$0xf]
      %v1929 = vunpack.c.l.b16 %v1920
      %v1930 = vunpack.c.l.b16 %v1921
      %v1931 = vunpack.c.l.b16 %v1922
      %v1932 = vpack.c.b16 %v1930, %v1929
      %v1933 = vpack.c.b16 %v1931, %v1931
      %v1935 = vshrl.u32 %v1932, 16
      %v1937 = vshll.u32 %v1932, 16
      %v1939 = vrot.slane %v1937, 1
      %v1940 = vor.u32 %v1935, %v1939
      %v1942 = vshll.u32 %v1933, 16
      %v1944 = vrot.slane %v1942, 1
      %v1945 = vsel %vm1451, %v1940, %v1944
      %v1948 = vunpack.c.l.b16 %v1924
      %v1949 = vunpack.c.l.b16 %v1925
      %v1950 = vpack.c.b16 %v1949, %v1948
      %v1953 = vsel %vm1337, %v1945, 0
      %1955 = vmatprep.subr.bf16.mxu0 0
      %1956 = vmatpush1.bf16.msra.mxu0 %v1950
      %1957 = vmatprep.subr.bf16.mxu0 0
      %1958 = vmatpush1.bf16.msra.mxu0 0
      %1959 = vmatprep.subr.bf16.mxu0 0
      %1960 = vmatpush1.bf16.msra.mxu0 0
      %1961 = vmatprep.subr.bf16.mxu0 0
      %1962 = vmatpush1.bf16.msra.mxu0 0
      %1963 = vmatprep.subr.bf16.mxu0 0
      %1964 = vmatpush1.bf16.msra.mxu0 0
      %1965 = vmatprep.subr.bf16.mxu0 0
      %1966 = vmatpush1.bf16.msra.mxu0 0
      %1967 = vmatprep.subr.bf16.mxu0 0
      %1968 = vmatpush1.bf16.msra.mxu0 0
      %1969 = vmatprep.subr.bf16.mxu0 0
      %1970 = vmatpush1.bf16.msra.mxu0 0
      %1971 = vmatprep.subr.bf16.mxu0 0
      %1972 = vmatpush1.bf16.msra.mxu0 0
      %1973 = vmatprep.subr.bf16.mxu0 0
      %1974 = vmatpush1.bf16.msra.mxu0 0
      %1975 = vmatprep.subr.bf16.mxu0 0
      %1976 = vmatpush1.bf16.msra.mxu0 0
      %1977 = vmatprep.subr.bf16.mxu0 0
      %1978 = vmatpush1.bf16.msra.mxu0 0
      %1979 = vmatprep.subr.bf16.mxu0 0
      %1980 = vmatpush1.bf16.msra.mxu0 0
      %1981 = vmatprep.subr.bf16.mxu0 0
      %1982 = vmatpush1.bf16.msra.mxu0 0
      %1983 = vmatprep.subr.bf16.mxu0 0
      %1984 = vmatpush1.bf16.msra.mxu0 0
      %1985 = vmatprep.subr.bf16.mxu0 0
      %1986 = vmatpush1.bf16.msra.mxu0 0
      %1987 = vmatprep.mubr.bf16.mxu0 0
      %1988 = vmatmul.mubr.bf16.gmra.mrb[0].mxu0 %v1953
      %v1989 = vpop.f32.mrb[0].mxu0
      %v1990 = vadd.f32 0.0, %v1989
      %v1991 = vpop.f32.mrb[0].mxu0
      %v1992 = vpop.f32.mrb[0].mxu0
      %v1993 = vadd.f32 0.0, %v1992
      %v1994 = vpop.f32.mrb[0].mxu0
      %1995 = vdwg.mxu0
      %v1996 = vadd.f32 %v1918, %v1990
      %v1997 = vadd.f32 %v1919, %v1993
      %v1998 = vld [vmem:[%s1139] sm:$0xf]
      %v1999 = vld [vmem:[%s1139 + $0x4] sm:$0xf]
      %v2000 = vld [vmem:[%s1139 + $0x8] sm:$0x1]
      %s2001 = scalar_lea.vmem %s1297, 80
      %v2002 = vld [vmem:[%s2001] sm:$0xf]
      %v2003 = vld [vmem:[%s2001 + $0x4] sm:$0xf]
      %v2007 = vunpack.c.l.b16 %v1998
      %v2008 = vunpack.c.l.b16 %v1999
      %v2009 = vunpack.c.l.b16 %v2000
      %v2010 = vpack.c.b16 %v2008, %v2007
      %v2011 = vpack.c.b16 %v2009, %v2009
      %v2013 = vshrl.u32 %v2010, 16
      %v2015 = vshll.u32 %v2010, 16
      %v2017 = vrot.slane %v2015, 1
      %v2018 = vor.u32 %v2013, %v2017
      %v2020 = vshll.u32 %v2011, 16
      %v2022 = vrot.slane %v2020, 1
      %v2023 = vsel %vm1451, %v2018, %v2022
      %v2026 = vunpack.c.l.b16 %v2002
      %v2027 = vunpack.c.l.b16 %v2003
      %v2028 = vpack.c.b16 %v2027, %v2026
      %v2031 = vsel %vm1337, %v2023, 0
      %2033 = vmatprep.subr.bf16.mxu0 0
      %2034 = vmatpush1.bf16.msra.mxu0 %v2028
      %2035 = vmatprep.subr.bf16.mxu0 0
      %2036 = vmatpush1.bf16.msra.mxu0 0
      %2037 = vmatprep.subr.bf16.mxu0 0
      %2038 = vmatpush1.bf16.msra.mxu0 0
      %2039 = vmatprep.subr.bf16.mxu0 0
      %2040 = vmatpush1.bf16.msra.mxu0 0
      %2041 = vmatprep.subr.bf16.mxu0 0
      %2042 = vmatpush1.bf16.msra.mxu0 0
      %2043 = vmatprep.subr.bf16.mxu0 0
      %2044 = vmatpush1.bf16.msra.mxu0 0
      %2045 = vmatprep.subr.bf16.mxu0 0
      %2046 = vmatpush1.bf16.msra.mxu0 0
      %2047 = vmatprep.subr.bf16.mxu0 0
      %2048 = vmatpush1.bf16.msra.mxu0 0
      %2049 = vmatprep.subr.bf16.mxu0 0
      %2050 = vmatpush1.bf16.msra.mxu0 0
      %2051 = vmatprep.subr.bf16.mxu0 0
      %2052 = vmatpush1.bf16.msra.mxu0 0
      %2053 = vmatprep.subr.bf16.mxu0 0
      %2054 = vmatpush1.bf16.msra.mxu0 0
      %2055 = vmatprep.subr.bf16.mxu0 0
      %2056 = vmatpush1.bf16.msra.mxu0 0
      %2057 = vmatprep.subr.bf16.mxu0 0
      %2058 = vmatpush1.bf16.msra.mxu0 0
      %2059 = vmatprep.subr.bf16.mxu0 0
      %2060 = vmatpush1.bf16.msra.mxu0 0
      %2061 = vmatprep.subr.bf16.mxu0 0
      %2062 = vmatpush1.bf16.msra.mxu0 0
      %2063 = vmatprep.subr.bf16.mxu0 0
      %2064 = vmatpush1.bf16.msra.mxu0 0
      %2065 = vmatprep.mubr.bf16.mxu0 0
      %2066 = vmatmul.mubr.bf16.gmra.mrb[0].mxu0 %v2031
      %v2067 = vpop.f32.mrb[0].mxu0
      %v2068 = vadd.f32 0.0, %v2067
      %v2069 = vpop.f32.mrb[0].mxu0
      %v2070 = vpop.f32.mrb[0].mxu0
      %v2071 = vadd.f32 0.0, %v2070
      %v2072 = vpop.f32.mrb[0].mxu0
      %2073 = vdwg.mxu0
      %v2074 = vadd.f32 %v1996, %v2068
      %v2075 = vadd.f32 %v1997, %v2071
      %v2076 = vld [vmem:[%s1124] sm:$0xe]
      %s2077 = scalar_lea.vmem %s1297, 88
      %v2078 = vld [vmem:[%s2077] sm:$0xf]
      %v2079 = vld [vmem:[%s2077 + $0x4] sm:$0xf]
      %v2081 = vunpack.c.l.b16 %v2076
      %v2082 = vpack.c.b16 %v1930, %v2081
      %v2083 = vrot.slane %v2082, 1
      %v2084 = vrot.slane %v1933, 1
      %v2085 = vsel %vm1601, %v2083, %v2084
      %v2088 = vunpack.c.l.b16 %v2078
      %v2089 = vunpack.c.l.b16 %v2079
      %v2090 = vpack.c.b16 %v2089, %v2088
      %v2093 = vsel %vm1337, %v2085, 0
      %2095 = vmatprep.subr.bf16.mxu0 0
      %2096 = vmatpush1.bf16.msra.mxu0 %v2090
      %2097 = vmatprep.subr.bf16.mxu0 0
      %2098 = vmatpush1.bf16.msra.mxu0 0
      %2099 = vmatprep.subr.bf16.mxu0 0
      %2100 = vmatpush1.bf16.msra.mxu0 0
      %2101 = vmatprep.subr.bf16.mxu0 0
      %2102 = vmatpush1.bf16.msra.mxu0 0
      %2103 = vmatprep.subr.bf16.mxu0 0
      %2104 = vmatpush1.bf16.msra.mxu0 0
      %2105 = vmatprep.subr.bf16.mxu0 0
      %2106 = vmatpush1.bf16.msra.mxu0 0
      %2107 = vmatprep.subr.bf16.mxu0 0
      %2108 = vmatpush1.bf16.msra.mxu0 0
      %2109 = vmatprep.subr.bf16.mxu0 0
      %2110 = vmatpush1.bf16.msra.mxu0 0
      %2111 = vmatprep.subr.bf16.mxu0 0
      %2112 = vmatpush1.bf16.msra.mxu0 0
      %2113 = vmatprep.subr.bf16.mxu0 0
      %2114 = vmatpush1.bf16.msra.mxu0 0
      %2115 = vmatprep.subr.bf16.mxu0 0
      %2116 = vmatpush1.bf16.msra.mxu0 0
      %2117 = vmatprep.subr.bf16.mxu0 0
      %2118 = vmatpush1.bf16.msra.mxu0 0
      %2119 = vmatprep.subr.bf16.mxu0 0
      %2120 = vmatpush1.bf16.msra.mxu0 0
      %2121 = vmatprep.subr.bf16.mxu0 0
      %2122 = vmatpush1.bf16.msra.mxu0 0
      %2123 = vmatprep.subr.bf16.mxu0 0
      %2124 = vmatpush1.bf16.msra.mxu0 0
      %2125 = vmatprep.subr.bf16.mxu0 0
      %2126 = vmatpush1.bf16.msra.mxu0 0
      %2127 = vmatprep.mubr.bf16.mxu0 0
      %2128 = vmatmul.mubr.bf16.gmra.mrb[0].mxu0 %v2093
      %v2129 = vpop.f32.mrb[0].mxu0
      %v2130 = vadd.f32 0.0, %v2129
      %v2131 = vpop.f32.mrb[0].mxu0
      %v2132 = vpop.f32.mrb[0].mxu0
      %v2133 = vadd.f32 0.0, %v2132
      %v2134 = vpop.f32.mrb[0].mxu0
      %2135 = vdwg.mxu0
      %v2136 = vadd.f32 %v2074, %v2130
      %v2137 = vadd.f32 %v2075, %v2133
      %v2138 = vld [vmem:[%s1139] sm:$0xe]
      %s2139 = scalar_lea.vmem %s1297, 96
      %v2140 = vld [vmem:[%s2139] sm:$0xf]
      %v2141 = vld [vmem:[%s2139 + $0x4] sm:$0xf]
      %v2143 = vunpack.c.l.b16 %v2138
      %v2144 = vpack.c.b16 %v2008, %v2143
      %v2145 = vrot.slane %v2144, 1
      %v2146 = vrot.slane %v2011, 1
      %v2147 = vsel %vm1601, %v2145, %v2146
      %v2150 = vunpack.c.l.b16 %v2140
      %v2151 = vunpack.c.l.b16 %v2141
      %v2152 = vpack.c.b16 %v2151, %v2150
      %v2155 = vsel %vm1337, %v2147, 0
      %2157 = vmatprep.subr.bf16.mxu0 0
      %2158 = vmatpush1.bf16.msra.mxu0 %v2152
      %2159 = vmatprep.subr.bf16.mxu0 0
      %2160 = vmatpush1.bf16.msra.mxu0 0
      %2161 = vmatprep.subr.bf16.mxu0 0
      %2162 = vmatpush1.bf16.msra.mxu0 0
      %2163 = vmatprep.subr.bf16.mxu0 0
      %2164 = vmatpush1.bf16.msra.mxu0 0
      %2165 = vmatprep.subr.bf16.mxu0 0
      %2166 = vmatpush1.bf16.msra.mxu0 0
      %2167 = vmatprep.subr.bf16.mxu0 0
      %2168 = vmatpush1.bf16.msra.mxu0 0
      %2169 = vmatprep.subr.bf16.mxu0 0
      %2170 = vmatpush1.bf16.msra.mxu0 0
      %2171 = vmatprep.subr.bf16.mxu0 0
      %2172 = vmatpush1.bf16.msra.mxu0 0
      %2173 = vmatprep.subr.bf16.mxu0 0
      %2174 = vmatpush1.bf16.msra.mxu0 0
      %2175 = vmatprep.subr.bf16.mxu0 0
      %2176 = vmatpush1.bf16.msra.mxu0 0
      %2177 = vmatprep.subr.bf16.mxu0 0
      %2178 = vmatpush1.bf16.msra.mxu0 0
      %2179 = vmatprep.subr.bf16.mxu0 0
      %2180 = vmatpush1.bf16.msra.mxu0 0
      %2181 = vmatprep.subr.bf16.mxu0 0
      %2182 = vmatpush1.bf16.msra.mxu0 0
      %2183 = vmatprep.subr.bf16.mxu0 0
      %2184 = vmatpush1.bf16.msra.mxu0 0
      %2185 = vmatprep.subr.bf16.mxu0 0
      %2186 = vmatpush1.bf16.msra.mxu0 0
      %2187 = vmatprep.subr.bf16.mxu0 0
      %2188 = vmatpush1.bf16.msra.mxu0 0
      %2189 = vmatprep.mubr.bf16.mxu0 0
      %2190 = vmatmul.mubr.bf16.gmra.mrb[0].mxu0 %v2155
      %v2191 = vpop.f32.mrb[0].mxu0
      %v2192 = vadd.f32 0.0, %v2191
      %v2193 = vpop.f32.mrb[0].mxu0
      %v2194 = vpop.f32.mrb[0].mxu0
      %v2195 = vadd.f32 0.0, %v2194
      %v2196 = vpop.f32.mrb[0].mxu0
      %2197 = vdwg.mxu0
      %v2198 = vadd.f32 %v2136, %v2192
      %v2199 = vadd.f32 %v2137, %v2195
      %v2200 = vld [vmem:[%s1124 + $0x8] sm:$0x3]
      %s2201 = scalar_lea.vmem %s1297, 104
      %v2202 = vld [vmem:[%s2201] sm:$0xf]
      %v2203 = vld [vmem:[%s2201 + $0x4] sm:$0xf]
      %v2205 = vunpack.c.l.b16 %v2200
      %v2206 = vpack.c.b16 %v2205, %v2205
      %v2208 = vshrl.u32 %v2082, 16
      %v2210 = vrot.slane %v2208, 1
      %v2211 = vshll.u32 %v2082, 16
      %v2213 = vrot.slane %v2211, 2
      %v2214 = vor.u32 %v2210, %v2213
      %v2216 = vshrl.u32 %v2206, 16
      %v2218 = vrot.slane %v2216, 1
      %v2219 = vshll.u32 %v2206, 16
      %v2221 = vrot.slane %v2219, 2
      %v2222 = vor.u32 %v2218, %v2221
      %v2223 = vsel %vm1726, %v2214, %v2222
      %v2226 = vunpack.c.l.b16 %v2202
      %v2227 = vunpack.c.l.b16 %v2203
      %v2228 = vpack.c.b16 %v2227, %v2226
      %v2231 = vsel %vm1337, %v2223, 0
      %2233 = vmatprep.subr.bf16.mxu0 0
      %2234 = vmatpush1.bf16.msra.mxu0 %v2228
      %2235 = vmatprep.subr.bf16.mxu0 0
      %2236 = vmatpush1.bf16.msra.mxu0 0
      %2237 = vmatprep.subr.bf16.mxu0 0
      %2238 = vmatpush1.bf16.msra.mxu0 0
      %2239 = vmatprep.subr.bf16.mxu0 0
      %2240 = vmatpush1.bf16.msra.mxu0 0
      %2241 = vmatprep.subr.bf16.mxu0 0
      %2242 = vmatpush1.bf16.msra.mxu0 0
      %2243 = vmatprep.subr.bf16.mxu0 0
      %2244 = vmatpush1.bf16.msra.mxu0 0
      %2245 = vmatprep.subr.bf16.mxu0 0
      %2246 = vmatpush1.bf16.msra.mxu0 0
      %2247 = vmatprep.subr.bf16.mxu0 0
      %2248 = vmatpush1.bf16.msra.mxu0 0
      %2249 = vmatprep.subr.bf16.mxu0 0
      %2250 = vmatpush1.bf16.msra.mxu0 0
      %2251 = vmatprep.subr.bf16.mxu0 0
      %2252 = vmatpush1.bf16.msra.mxu0 0
      %2253 = vmatprep.subr.bf16.mxu0 0
      %2254 = vmatpush1.bf16.msra.mxu0 0
      %2255 = vmatprep.subr.bf16.mxu0 0
      %2256 = vmatpush1.bf16.msra.mxu0 0
      %2257 = vmatprep.subr.bf16.mxu0 0
      %2258 = vmatpush1.bf16.msra.mxu0 0
      %2259 = vmatprep.subr.bf16.mxu0 0
      %2260 = vmatpush1.bf16.msra.mxu0 0
      %2261 = vmatprep.subr.bf16.mxu0 0
      %2262 = vmatpush1.bf16.msra.mxu0 0
      %2263 = vmatprep.subr.bf16.mxu0 0
      %2264 = vmatpush1.bf16.msra.mxu0 0
      %2265 = vmatprep.mubr.bf16.mxu0 0
      %2266 = vmatmul.mubr.bf16.gmra.mrb[0].mxu0 %v2231
      %v2267 = vpop.f32.mrb[0].mxu0
      %v2268 = vadd.f32 0.0, %v2267
      %v2269 = vpop.f32.mrb[0].mxu0
      %v2270 = vpop.f32.mrb[0].mxu0
      %v2271 = vadd.f32 0.0, %v2270
      %v2272 = vpop.f32.mrb[0].mxu0
      %2273 = vdwg.mxu0
      %v2274 = vadd.f32 %v2198, %v2268
      %v2275 = vadd.f32 %v2199, %v2271
      %v2276 = vld [vmem:[%s1154] sm:$0xf]
      %v2277 = vld [vmem:[%s1154 + $0x4] sm:$0xf]
      %s2278 = scalar_lea.vmem %s1297, 112
      %v2279 = vld [vmem:[%s2278] sm:$0xf]
      %v2280 = vld [vmem:[%s2278 + $0x4] sm:$0xf]
      %v2283 = vunpack.c.l.b16 %v2276
      %v2284 = vunpack.c.l.b16 %v2277
      %v2285 = vpack.c.b16 %v2284, %v2283
      %v2288 = vunpack.c.l.b16 %v2279
      %v2289 = vunpack.c.l.b16 %v2280
      %v2290 = vpack.c.b16 %v2289, %v2288
      %v2293 = vsel %vm1337, %v2285, 0
      %2295 = vmatprep.subr.bf16.mxu0 0
      %2296 = vmatpush1.bf16.msra.mxu0 %v2290
      %2297 = vmatprep.subr.bf16.mxu0 0
      %2298 = vmatpush1.bf16.msra.mxu0 0
      %2299 = vmatprep.subr.bf16.mxu0 0
      %2300 = vmatpush1.bf16.msra.mxu0 0
      %2301 = vmatprep.subr.bf16.mxu0 0
      %2302 = vmatpush1.bf16.msra.mxu0 0
      %2303 = vmatprep.subr.bf16.mxu0 0
      %2304 = vmatpush1.bf16.msra.mxu0 0
      %2305 = vmatprep.subr.bf16.mxu0 0
      %2306 = vmatpush1.bf16.msra.mxu0 0
      %2307 = vmatprep.subr.bf16.mxu0 0
      %2308 = vmatpush1.bf16.msra.mxu0 0
      %2309 = vmatprep.subr.bf16.mxu0 0
      %2310 = vmatpush1.bf16.msra.mxu0 0
      %2311 = vmatprep.subr.bf16.mxu0 0
      %2312 = vmatpush1.bf16.msra.mxu0 0
      %2313 = vmatprep.subr.bf16.mxu0 0
      %2314 = vmatpush1.bf16.msra.mxu0 0
      %2315 = vmatprep.subr.bf16.mxu0 0
      %2316 = vmatpush1.bf16.msra.mxu0 0
      %2317 = vmatprep.subr.bf16.mxu0 0
      %2318 = vmatpush1.bf16.msra.mxu0 0
      %2319 = vmatprep.subr.bf16.mxu0 0
      %2320 = vmatpush1.bf16.msra.mxu0 0
      %2321 = vmatprep.subr.bf16.mxu0 0
      %2322 = vmatpush1.bf16.msra.mxu0 0
      %2323 = vmatprep.subr.bf16.mxu0 0
      %2324 = vmatpush1.bf16.msra.mxu0 0
      %2325 = vmatprep.subr.bf16.mxu0 0
      %2326 = vmatpush1.bf16.msra.mxu0 0
      %2327 = vmatprep.mubr.bf16.mxu0 0
      %2328 = vmatmul.mubr.bf16.gmra.mrb[0].mxu0 %v2293
      %v2329 = vpop.f32.mrb[0].mxu0
      %v2330 = vadd.f32 0.0, %v2329
      %v2331 = vpop.f32.mrb[0].mxu0
      %v2332 = vpop.f32.mrb[0].mxu0
      %v2333 = vadd.f32 0.0, %v2332
      %v2334 = vpop.f32.mrb[0].mxu0
      %2335 = vdwg.mxu0
      %v2336 = vadd.f32 %v2274, %v2330
      %v2337 = vadd.f32 %v2275, %v2333
      %v2338 = vld [vmem:[%s1169] sm:$0xf]
      %v2339 = vld [vmem:[%s1169 + $0x4] sm:$0xf]
      %s2340 = scalar_lea.vmem %s1297, 120
      %v2341 = vld [vmem:[%s2340] sm:$0xf]
      %v2342 = vld [vmem:[%s2340 + $0x4] sm:$0xf]
      %v2345 = vunpack.c.l.b16 %v2338
      %v2346 = vunpack.c.l.b16 %v2339
      %v2347 = vpack.c.b16 %v2346, %v2345
      %v2350 = vunpack.c.l.b16 %v2341
      %v2351 = vunpack.c.l.b16 %v2342
      %v2352 = vpack.c.b16 %v2351, %v2350
      %v2355 = vsel %vm1337, %v2347, 0
      %2357 = vmatprep.subr.bf16.mxu0 0
      %2358 = vmatpush1.bf16.msra.mxu0 %v2352
      %2359 = vmatprep.subr.bf16.mxu0 0
      %2360 = vmatpush1.bf16.msra.mxu0 0
      %2361 = vmatprep.subr.bf16.mxu0 0
      %2362 = vmatpush1.bf16.msra.mxu0 0
      %2363 = vmatprep.subr.bf16.mxu0 0
      %2364 = vmatpush1.bf16.msra.mxu0 0
      %2365 = vmatprep.subr.bf16.mxu0 0
      %2366 = vmatpush1.bf16.msra.mxu0 0
      %2367 = vmatprep.subr.bf16.mxu0 0
      %2368 = vmatpush1.bf16.msra.mxu0 0
      %2369 = vmatprep.subr.bf16.mxu0 0
      %2370 = vmatpush1.bf16.msra.mxu0 0
      %2371 = vmatprep.subr.bf16.mxu0 0
      %2372 = vmatpush1.bf16.msra.mxu0 0
      %2373 = vmatprep.subr.bf16.mxu0 0
      %2374 = vmatpush1.bf16.msra.mxu0 0
      %2375 = vmatprep.subr.bf16.mxu0 0
      %2376 = vmatpush1.bf16.msra.mxu0 0
      %2377 = vmatprep.subr.bf16.mxu0 0
      %2378 = vmatpush1.bf16.msra.mxu0 0
      %2379 = vmatprep.subr.bf16.mxu0 0
      %2380 = vmatpush1.bf16.msra.mxu0 0
      %2381 = vmatprep.subr.bf16.mxu0 0
      %2382 = vmatpush1.bf16.msra.mxu0 0
      %2383 = vmatprep.subr.bf16.mxu0 0
      %2384 = vmatpush1.bf16.msra.mxu0 0
      %2385 = vmatprep.subr.bf16.mxu0 0
      %2386 = vmatpush1.bf16.msra.mxu0 0
      %2387 = vmatprep.subr.bf16.mxu0 0
      %2388 = vmatpush1.bf16.msra.mxu0 0
      %2389 = vmatprep.mubr.bf16.mxu0 0
      %2390 = vmatmul.mubr.bf16.gmra.mrb[0].mxu0 %v2355
      %v2391 = vpop.f32.mrb[0].mxu0
      %v2392 = vadd.f32 0.0, %v2391
      %v2393 = vpop.f32.mrb[0].mxu0
      %v2394 = vpop.f32.mrb[0].mxu0
      %v2395 = vadd.f32 0.0, %v2394
      %v2396 = vpop.f32.mrb[0].mxu0
      %2397 = vdwg.mxu0
      %v2398 = vadd.f32 %v2336, %v2392
      %v2399 = vadd.f32 %v2337, %v2395
      %v2400 = vld [vmem:[%s1154] sm:$0xf]
      %v2401 = vld [vmem:[%s1154 + $0x4] sm:$0xf]
      %v2402 = vld [vmem:[%s1154 + $0x8] sm:$0x1]
      %s2403 = scalar_lea.vmem %s1297, 128
      %v2404 = vld [vmem:[%s2403] sm:$0xf]
      %v2405 = vld [vmem:[%s2403 + $0x4] sm:$0xf]
      %v2409 = vunpack.c.l.b16 %v2400
      %v2410 = vunpack.c.l.b16 %v2401
      %v2411 = vunpack.c.l.b16 %v2402
      %v2412 = vpack.c.b16 %v2410, %v2409
      %v2413 = vpack.c.b16 %v2411, %v2411
      %v2415 = vshrl.u32 %v2412, 16
      %v2417 = vshll.u32 %v2412, 16
      %v2419 = vrot.slane %v2417, 1
      %v2420 = vor.u32 %v2415, %v2419
      %v2422 = vshll.u32 %v2413, 16
      %v2424 = vrot.slane %v2422, 1
      %v2425 = vsel %vm1451, %v2420, %v2424
      %v2428 = vunpack.c.l.b16 %v2404
      %v2429 = vunpack.c.l.b16 %v2405
      %v2430 = vpack.c.b16 %v2429, %v2428
      %v2433 = vsel %vm1337, %v2425, 0
      %2435 = vmatprep.subr.bf16.mxu0 0
      %2436 = vmatpush1.bf16.msra.mxu0 %v2430
      %2437 = vmatprep.subr.bf16.mxu0 0
      %2438 = vmatpush1.bf16.msra.mxu0 0
      %2439 = vmatprep.subr.bf16.mxu0 0
      %2440 = vmatpush1.bf16.msra.mxu0 0
      %2441 = vmatprep.subr.bf16.mxu0 0
      %2442 = vmatpush1.bf16.msra.mxu0 0
      %2443 = vmatprep.subr.bf16.mxu0 0
      %2444 = vmatpush1.bf16.msra.mxu0 0
      %2445 = vmatprep.subr.bf16.mxu0 0
      %2446 = vmatpush1.bf16.msra.mxu0 0
      %2447 = vmatprep.subr.bf16.mxu0 0
      %2448 = vmatpush1.bf16.msra.mxu0 0
      %2449 = vmatprep.subr.bf16.mxu0 0
      %2450 = vmatpush1.bf16.msra.mxu0 0
      %2451 = vmatprep.subr.bf16.mxu0 0
      %2452 = vmatpush1.bf16.msra.mxu0 0
      %2453 = vmatprep.subr.bf16.mxu0 0
      %2454 = vmatpush1.bf16.msra.mxu0 0
      %2455 = vmatprep.subr.bf16.mxu0 0
      %2456 = vmatpush1.bf16.msra.mxu0 0
      %2457 = vmatprep.subr.bf16.mxu0 0
      %2458 = vmatpush1.bf16.msra.mxu0 0
      %2459 = vmatprep.subr.bf16.mxu0 0
      %2460 = vmatpush1.bf16.msra.mxu0 0
      %2461 = vmatprep.subr.bf16.mxu0 0
      %2462 = vmatpush1.bf16.msra.mxu0 0
      %2463 = vmatprep.subr.bf16.mxu0 0
      %2464 = vmatpush1.bf16.msra.mxu0 0
      %2465 = vmatprep.subr.bf16.mxu0 0
      %2466 = vmatpush1.bf16.msra.mxu0 0
      %2467 = vmatprep.mubr.bf16.mxu0 0
      %2468 = vmatmul.mubr.bf16.gmra.mrb[0].mxu0 %v2433
      %v2469 = vpop.f32.mrb[0].mxu0
      %v2470 = vadd.f32 0.0, %v2469
      %v2471 = vpop.f32.mrb[0].mxu0
      %v2472 = vpop.f32.mrb[0].mxu0
      %v2473 = vadd.f32 0.0, %v2472
      %v2474 = vpop.f32.mrb[0].mxu0
      %2475 = vdwg.mxu0
      %v2476 = vadd.f32 %v2398, %v2470
      %v2477 = vadd.f32 %v2399, %v2473
      %v2478 = vld [vmem:[%s1169] sm:$0xf]
      %v2479 = vld [vmem:[%s1169 + $0x4] sm:$0xf]
      %v2480 = vld [vmem:[%s1169 + $0x8] sm:$0x1]
      %s2481 = scalar_lea.vmem %s1297, 136
      %v2482 = vld [vmem:[%s2481] sm:$0xf]
      %v2483 = vld [vmem:[%s2481 + $0x4] sm:$0xf]
      %v2487 = vunpack.c.l.b16 %v2478
      %v2488 = vunpack.c.l.b16 %v2479
      %v2489 = vunpack.c.l.b16 %v2480
      %v2490 = vpack.c.b16 %v2488, %v2487
      %v2491 = vpack.c.b16 %v2489, %v2489
      %v2493 = vshrl.u32 %v2490, 16
      %v2495 = vshll.u32 %v2490, 16
      %v2497 = vrot.slane %v2495, 1
      %v2498 = vor.u32 %v2493, %v2497
      %v2500 = vshll.u32 %v2491, 16
      %v2502 = vrot.slane %v2500, 1
      %v2503 = vsel %vm1451, %v2498, %v2502
      %v2506 = vunpack.c.l.b16 %v2482
      %v2507 = vunpack.c.l.b16 %v2483
      %v2508 = vpack.c.b16 %v2507, %v2506
      %v2511 = vsel %vm1337, %v2503, 0
      %2513 = vmatprep.subr.bf16.mxu0 0
      %2514 = vmatpush1.bf16.msra.mxu0 %v2508
      %2515 = vmatprep.subr.bf16.mxu0 0
      %2516 = vmatpush1.bf16.msra.mxu0 0
      %2517 = vmatprep.subr.bf16.mxu0 0
      %2518 = vmatpush1.bf16.msra.mxu0 0
      %2519 = vmatprep.subr.bf16.mxu0 0
      %2520 = vmatpush1.bf16.msra.mxu0 0
      %2521 = vmatprep.subr.bf16.mxu0 0
      %2522 = vmatpush1.bf16.msra.mxu0 0
      %2523 = vmatprep.subr.bf16.mxu0 0
      %2524 = vmatpush1.bf16.msra.mxu0 0
      %2525 = vmatprep.subr.bf16.mxu0 0
      %2526 = vmatpush1.bf16.msra.mxu0 0
      %2527 = vmatprep.subr.bf16.mxu0 0
      %2528 = vmatpush1.bf16.msra.mxu0 0
      %2529 = vmatprep.subr.bf16.mxu0 0
      %2530 = vmatpush1.bf16.msra.mxu0 0
      %2531 = vmatprep.subr.bf16.mxu0 0
      %2532 = vmatpush1.bf16.msra.mxu0 0
      %2533 = vmatprep.subr.bf16.mxu0 0
      %2534 = vmatpush1.bf16.msra.mxu0 0
      %2535 = vmatprep.subr.bf16.mxu0 0
      %2536 = vmatpush1.bf16.msra.mxu0 0
      %2537 = vmatprep.subr.bf16.mxu0 0
      %2538 = vmatpush1.bf16.msra.mxu0 0
      %2539 = vmatprep.subr.bf16.mxu0 0
      %2540 = vmatpush1.bf16.msra.mxu0 0
      %2541 = vmatprep.subr.bf16.mxu0 0
      %2542 = vmatpush1.bf16.msra.mxu0 0
      %2543 = vmatprep.subr.bf16.mxu0 0
      %2544 = vmatpush1.bf16.msra.mxu0 0
      %2545 = vmatprep.mubr.bf16.mxu0 0
      %2546 = vmatmul.mubr.bf16.gmra.mrb[0].mxu0 %v2511
      %v2547 = vpop.f32.mrb[0].mxu0
      %v2548 = vadd.f32 0.0, %v2547
      %v2549 = vpop.f32.mrb[0].mxu0
      %v2550 = vpop.f32.mrb[0].mxu0
      %v2551 = vadd.f32 0.0, %v2550
      %v2552 = vpop.f32.mrb[0].mxu0
      %2553 = vdwg.mxu0
      %v2554 = vadd.f32 %v2476, %v2548
      %v2555 = vadd.f32 %v2477, %v2551
      %v2556 = vld [vmem:[%s1154] sm:$0xe]
      %s2557 = scalar_lea.vmem %s1297, 144
      %v2558 = vld [vmem:[%s2557] sm:$0xf]
      %v2559 = vld [vmem:[%s2557 + $0x4] sm:$0xf]
      %v2561 = vunpack.c.l.b16 %v2556
      %v2562 = vpack.c.b16 %v2410, %v2561
      %v2563 = vrot.slane %v2562, 1
      %v2564 = vrot.slane %v2413, 1
      %v2565 = vsel %vm1601, %v2563, %v2564
      %v2568 = vunpack.c.l.b16 %v2558
      %v2569 = vunpack.c.l.b16 %v2559
      %v2570 = vpack.c.b16 %v2569, %v2568
      %v2573 = vsel %vm1337, %v2565, 0
      %2575 = vmatprep.subr.bf16.mxu0 0
      %2576 = vmatpush1.bf16.msra.mxu0 %v2570
      %2577 = vmatprep.subr.bf16.mxu0 0
      %2578 = vmatpush1.bf16.msra.mxu0 0
      %2579 = vmatprep.subr.bf16.mxu0 0
      %2580 = vmatpush1.bf16.msra.mxu0 0
      %2581 = vmatprep.subr.bf16.mxu0 0
      %2582 = vmatpush1.bf16.msra.mxu0 0
      %2583 = vmatprep.subr.bf16.mxu0 0
      %2584 = vmatpush1.bf16.msra.mxu0 0
      %2585 = vmatprep.subr.bf16.mxu0 0
      %2586 = vmatpush1.bf16.msra.mxu0 0
      %2587 = vmatprep.subr.bf16.mxu0 0
      %2588 = vmatpush1.bf16.msra.mxu0 0
      %2589 = vmatprep.subr.bf16.mxu0 0
      %2590 = vmatpush1.bf16.msra.mxu0 0
      %2591 = vmatprep.subr.bf16.mxu0 0
      %2592 = vmatpush1.bf16.msra.mxu0 0
      %2593 = vmatprep.subr.bf16.mxu0 0
      %2594 = vmatpush1.bf16.msra.mxu0 0
      %2595 = vmatprep.subr.bf16.mxu0 0
      %2596 = vmatpush1.bf16.msra.mxu0 0
      %2597 = vmatprep.subr.bf16.mxu0 0
      %2598 = vmatpush1.bf16.msra.mxu0 0
      %2599 = vmatprep.subr.bf16.mxu0 0
      %2600 = vmatpush1.bf16.msra.mxu0 0
      %2601 = vmatprep.subr.bf16.mxu0 0
      %2602 = vmatpush1.bf16.msra.mxu0 0
      %2603 = vmatprep.subr.bf16.mxu0 0
      %2604 = vmatpush1.bf16.msra.mxu0 0
      %2605 = vmatprep.subr.bf16.mxu0 0
      %2606 = vmatpush1.bf16.msra.mxu0 0
      %2607 = vmatprep.mubr.bf16.mxu0 0
      %2608 = vmatmul.mubr.bf16.gmra.mrb[0].mxu0 %v2573
      %v2609 = vpop.f32.mrb[0].mxu0
      %v2610 = vadd.f32 0.0, %v2609
      %v2611 = vpop.f32.mrb[0].mxu0
      %v2612 = vpop.f32.mrb[0].mxu0
      %v2613 = vadd.f32 0.0, %v2612
      %v2614 = vpop.f32.mrb[0].mxu0
      %2615 = vdwg.mxu0
      %v2616 = vadd.f32 %v2554, %v2610
      %v2617 = vadd.f32 %v2555, %v2613
      %v2618 = vld [vmem:[%s1169] sm:$0xe]
      %s2619 = scalar_lea.vmem %s1297, 152
      %v2620 = vld [vmem:[%s2619] sm:$0xf]
      %v2621 = vld [vmem:[%s2619 + $0x4] sm:$0xf]
      %v2623 = vunpack.c.l.b16 %v2618
      %v2624 = vpack.c.b16 %v2488, %v2623
      %v2625 = vrot.slane %v2624, 1
      %v2626 = vrot.slane %v2491, 1
      %v2627 = vsel %vm1601, %v2625, %v2626
      %v2630 = vunpack.c.l.b16 %v2620
      %v2631 = vunpack.c.l.b16 %v2621
      %v2632 = vpack.c.b16 %v2631, %v2630
      %v2635 = vsel %vm1337, %v2627, 0
      %2637 = vmatprep.subr.bf16.mxu0 0
      %2638 = vmatpush1.bf16.msra.mxu0 %v2632
      %2639 = vmatprep.subr.bf16.mxu0 0
      %2640 = vmatpush1.bf16.msra.mxu0 0
      %2641 = vmatprep.subr.bf16.mxu0 0
      %2642 = vmatpush1.bf16.msra.mxu0 0
      %2643 = vmatprep.subr.bf16.mxu0 0
      %2644 = vmatpush1.bf16.msra.mxu0 0
      %2645 = vmatprep.subr.bf16.mxu0 0
      %2646 = vmatpush1.bf16.msra.mxu0 0
      %2647 = vmatprep.subr.bf16.mxu0 0
      %2648 = vmatpush1.bf16.msra.mxu0 0
      %2649 = vmatprep.subr.bf16.mxu0 0
      %2650 = vmatpush1.bf16.msra.mxu0 0
      %2651 = vmatprep.subr.bf16.mxu0 0
      %2652 = vmatpush1.bf16.msra.mxu0 0
      %2653 = vmatprep.subr.bf16.mxu0 0
      %2654 = vmatpush1.bf16.msra.mxu0 0
      %2655 = vmatprep.subr.bf16.mxu0 0
      %2656 = vmatpush1.bf16.msra.mxu0 0
      %2657 = vmatprep.subr.bf16.mxu0 0
      %2658 = vmatpush1.bf16.msra.mxu0 0
      %2659 = vmatprep.subr.bf16.mxu0 0
      %2660 = vmatpush1.bf16.msra.mxu0 0
      %2661 = vmatprep.subr.bf16.mxu0 0
      %2662 = vmatpush1.bf16.msra.mxu0 0
      %2663 = vmatprep.subr.bf16.mxu0 0
      %2664 = vmatpush1.bf16.msra.mxu0 0
      %2665 = vmatprep.subr.bf16.mxu0 0
      %2666 = vmatpush1.bf16.msra.mxu0 0
      %2667 = vmatprep.subr.bf16.mxu0 0
      %2668 = vmatpush1.bf16.msra.mxu0 0
      %2669 = vmatprep.mubr.bf16.mxu0 0
      %2670 = vmatmul.mubr.bf16.gmra.mrb[0].mxu0 %v2635
      %v2671 = vpop.f32.mrb[0].mxu0
      %v2672 = vadd.f32 0.0, %v2671
      %v2673 = vpop.f32.mrb[0].mxu0
      %v2674 = vpop.f32.mrb[0].mxu0
      %v2675 = vadd.f32 0.0, %v2674
      %v2676 = vpop.f32.mrb[0].mxu0
      %2677 = vdwg.mxu0
      %v2678 = vadd.f32 %v2616, %v2672
      %v2679 = vadd.f32 %v2617, %v2675
      %v2680 = vld [vmem:[%s1154 + $0x8] sm:$0x3]
      %s2681 = scalar_lea.vmem %s1297, 160
      %v2682 = vld [vmem:[%s2681] sm:$0xf]
      %v2683 = vld [vmem:[%s2681 + $0x4] sm:$0xf]
      %v2685 = vunpack.c.l.b16 %v2680
      %v2686 = vpack.c.b16 %v2685, %v2685
      %v2688 = vshrl.u32 %v2562, 16
      %v2690 = vrot.slane %v2688, 1
      %v2691 = vshll.u32 %v2562, 16
      %v2693 = vrot.slane %v2691, 2
      %v2694 = vor.u32 %v2690, %v2693
      %v2696 = vshrl.u32 %v2686, 16
      %v2698 = vrot.slane %v2696, 1
      %v2699 = vshll.u32 %v2686, 16
      %v2701 = vrot.slane %v2699, 2
      %v2702 = vor.u32 %v2698, %v2701
      %v2703 = vsel %vm1726, %v2694, %v2702
      %v2706 = vunpack.c.l.b16 %v2682
      %v2707 = vunpack.c.l.b16 %v2683
      %v2708 = vpack.c.b16 %v2707, %v2706
      %v2711 = vsel %vm1337, %v2703, 0
      %2713 = vmatprep.subr.bf16.mxu0 0
      %2714 = vmatpush1.bf16.msra.mxu0 %v2708
      %2715 = vmatprep.subr.bf16.mxu0 0
      %2716 = vmatpush1.bf16.msra.mxu0 0
      %2717 = vmatprep.subr.bf16.mxu0 0
      %2718 = vmatpush1.bf16.msra.mxu0 0
      %2719 = vmatprep.subr.bf16.mxu0 0
      %2720 = vmatpush1.bf16.msra.mxu0 0
      %2721 = vmatprep.subr.bf16.mxu0 0
      %2722 = vmatpush1.bf16.msra.mxu0 0
      %2723 = vmatprep.subr.bf16.mxu0 0
      %2724 = vmatpush1.bf16.msra.mxu0 0
      %2725 = vmatprep.subr.bf16.mxu0 0
      %2726 = vmatpush1.bf16.msra.mxu0 0
      %2727 = vmatprep.subr.bf16.mxu0 0
      %2728 = vmatpush1.bf16.msra.mxu0 0
      %2729 = vmatprep.subr.bf16.mxu0 0
      %2730 = vmatpush1.bf16.msra.mxu0 0
      %2731 = vmatprep.subr.bf16.mxu0 0
      %2732 = vmatpush1.bf16.msra.mxu0 0
      %2733 = vmatprep.subr.bf16.mxu0 0
      %2734 = vmatpush1.bf16.msra.mxu0 0
      %2735 = vmatprep.subr.bf16.mxu0 0
      %2736 = vmatpush1.bf16.msra.mxu0 0
      %2737 = vmatprep.subr.bf16.mxu0 0
      %2738 = vmatpush1.bf16.msra.mxu0 0
      %2739 = vmatprep.subr.bf16.mxu0 0
      %2740 = vmatpush1.bf16.msra.mxu0 0
      %2741 = vmatprep.subr.bf16.mxu0 0
      %2742 = vmatpush1.bf16.msra.mxu0 0
      %2743 = vmatprep.subr.bf16.mxu0 0
      %2744 = vmatpush1.bf16.msra.mxu0 0
      %2745 = vmatprep.mubr.bf16.mxu0 0
      %2746 = vmatmul.mubr.bf16.gmra.mrb[0].mxu0 %v2711
      %v2747 = vpop.f32.mrb[0].mxu0
      %v2748 = vadd.f32 0.0, %v2747
      %v2749 = vpop.f32.mrb[0].mxu0
      %v2750 = vpop.f32.mrb[0].mxu0
      %v2751 = vadd.f32 0.0, %v2750
      %v2752 = vpop.f32.mrb[0].mxu0
      %2753 = vdwg.mxu0
      %v2754 = vadd.f32 %v2678, %v2748
      %v2755 = vadd.f32 %v2679, %v2751
      %v2756 = vld [vmem:[%s1184] sm:$0xf]
      %v2757 = vld [vmem:[%s1184 + $0x4] sm:$0xf]
      %s2758 = scalar_lea.vmem %s1297, 168
      %v2759 = vld [vmem:[%s2758] sm:$0xf]
      %v2760 = vld [vmem:[%s2758 + $0x4] sm:$0xf]
      %v2763 = vunpack.c.l.b16 %v2756
      %v2764 = vunpack.c.l.b16 %v2757
      %v2765 = vpack.c.b16 %v2764, %v2763
      %v2768 = vunpack.c.l.b16 %v2759
      %v2769 = vunpack.c.l.b16 %v2760
      %v2770 = vpack.c.b16 %v2769, %v2768
      %v2773 = vsel %vm1337, %v2765, 0
      %2775 = vmatprep.subr.bf16.mxu0 0
      %2776 = vmatpush1.bf16.msra.mxu0 %v2770
      %2777 = vmatprep.subr.bf16.mxu0 0
      %2778 = vmatpush1.bf16.msra.mxu0 0
      %2779 = vmatprep.subr.bf16.mxu0 0
      %2780 = vmatpush1.bf16.msra.mxu0 0
      %2781 = vmatprep.subr.bf16.mxu0 0
      %2782 = vmatpush1.bf16.msra.mxu0 0
      %2783 = vmatprep.subr.bf16.mxu0 0
      %2784 = vmatpush1.bf16.msra.mxu0 0
      %2785 = vmatprep.subr.bf16.mxu0 0
      %2786 = vmatpush1.bf16.msra.mxu0 0
      %2787 = vmatprep.subr.bf16.mxu0 0
      %2788 = vmatpush1.bf16.msra.mxu0 0
      %2789 = vmatprep.subr.bf16.mxu0 0
      %2790 = vmatpush1.bf16.msra.mxu0 0
      %2791 = vmatprep.subr.bf16.mxu0 0
      %2792 = vmatpush1.bf16.msra.mxu0 0
      %2793 = vmatprep.subr.bf16.mxu0 0
      %2794 = vmatpush1.bf16.msra.mxu0 0
      %2795 = vmatprep.subr.bf16.mxu0 0
      %2796 = vmatpush1.bf16.msra.mxu0 0
      %2797 = vmatprep.subr.bf16.mxu0 0
      %2798 = vmatpush1.bf16.msra.mxu0 0
      %2799 = vmatprep.subr.bf16.mxu0 0
      %2800 = vmatpush1.bf16.msra.mxu0 0
      %2801 = vmatprep.subr.bf16.mxu0 0
      %2802 = vmatpush1.bf16.msra.mxu0 0
      %2803 = vmatprep.subr.bf16.mxu0 0
      %2804 = vmatpush1.bf16.msra.mxu0 0
      %2805 = vmatprep.subr.bf16.mxu0 0
      %2806 = vmatpush1.bf16.msra.mxu0 0
      %2807 = vmatprep.mubr.bf16.mxu0 0
      %2808 = vmatmul.mubr.bf16.gmra.mrb[0].mxu0 %v2773
      %v2809 = vpop.f32.mrb[0].mxu0
      %v2810 = vadd.f32 0.0, %v2809
      %v2811 = vpop.f32.mrb[0].mxu0
      %v2812 = vpop.f32.mrb[0].mxu0
      %v2813 = vadd.f32 0.0, %v2812
      %v2814 = vpop.f32.mrb[0].mxu0
      %2815 = vdwg.mxu0
      %v2816 = vadd.f32 %v2754, %v2810
      %v2817 = vadd.f32 %v2755, %v2813
      %v2818 = vld [vmem:[%s1199] sm:$0xf]
      %v2819 = vld [vmem:[%s1199 + $0x4] sm:$0xf]
      %s2820 = scalar_lea.vmem %s1297, 176
      %v2821 = vld [vmem:[%s2820] sm:$0xf]
      %v2822 = vld [vmem:[%s2820 + $0x4] sm:$0xf]
      %v2825 = vunpack.c.l.b16 %v2818
      %v2826 = vunpack.c.l.b16 %v2819
      %v2827 = vpack.c.b16 %v2826, %v2825
      %v2830 = vunpack.c.l.b16 %v2821
      %v2831 = vunpack.c.l.b16 %v2822
      %v2832 = vpack.c.b16 %v2831, %v2830
      %v2835 = vsel %vm1337, %v2827, 0
      %2837 = vmatprep.subr.bf16.mxu0 0
      %2838 = vmatpush1.bf16.msra.mxu0 %v2832
      %2839 = vmatprep.subr.bf16.mxu0 0
      %2840 = vmatpush1.bf16.msra.mxu0 0
      %2841 = vmatprep.subr.bf16.mxu0 0
      %2842 = vmatpush1.bf16.msra.mxu0 0
      %2843 = vmatprep.subr.bf16.mxu0 0
      %2844 = vmatpush1.bf16.msra.mxu0 0
      %2845 = vmatprep.subr.bf16.mxu0 0
      %2846 = vmatpush1.bf16.msra.mxu0 0
      %2847 = vmatprep.subr.bf16.mxu0 0
      %2848 = vmatpush1.bf16.msra.mxu0 0
      %2849 = vmatprep.subr.bf16.mxu0 0
      %2850 = vmatpush1.bf16.msra.mxu0 0
      %2851 = vmatprep.subr.bf16.mxu0 0
      %2852 = vmatpush1.bf16.msra.mxu0 0
      %2853 = vmatprep.subr.bf16.mxu0 0
      %2854 = vmatpush1.bf16.msra.mxu0 0
      %2855 = vmatprep.subr.bf16.mxu0 0
      %2856 = vmatpush1.bf16.msra.mxu0 0
      %2857 = vmatprep.subr.bf16.mxu0 0
      %2858 = vmatpush1.bf16.msra.mxu0 0
      %2859 = vmatprep.subr.bf16.mxu0 0
      %2860 = vmatpush1.bf16.msra.mxu0 0
      %2861 = vmatprep.subr.bf16.mxu0 0
      %2862 = vmatpush1.bf16.msra.mxu0 0
      %2863 = vmatprep.subr.bf16.mxu0 0
      %2864 = vmatpush1.bf16.msra.mxu0 0
      %2865 = vmatprep.subr.bf16.mxu0 0
      %2866 = vmatpush1.bf16.msra.mxu0 0
      %2867 = vmatprep.subr.bf16.mxu0 0
      %2868 = vmatpush1.bf16.msra.mxu0 0
      %2869 = vmatprep.mubr.bf16.mxu0 0
      %2870 = vmatmul.mubr.bf16.gmra.mrb[0].mxu0 %v2835
      %v2871 = vpop.f32.mrb[0].mxu0
      %v2872 = vadd.f32 0.0, %v2871
      %v2873 = vpop.f32.mrb[0].mxu0
      %v2874 = vpop.f32.mrb[0].mxu0
      %v2875 = vadd.f32 0.0, %v2874
      %v2876 = vpop.f32.mrb[0].mxu0
      %2877 = vdwg.mxu0
      %v2878 = vadd.f32 %v2816, %v2872
      %v2879 = vadd.f32 %v2817, %v2875
      %v2880 = vld [vmem:[%s1184] sm:$0xf]
      %v2881 = vld [vmem:[%s1184 + $0x4] sm:$0xf]
      %v2882 = vld [vmem:[%s1184 + $0x8] sm:$0x1]
      %s2883 = scalar_lea.vmem %s1297, 184
      %v2884 = vld [vmem:[%s2883] sm:$0xf]
      %v2885 = vld [vmem:[%s2883 + $0x4] sm:$0xf]
      %v2889 = vunpack.c.l.b16 %v2880
      %v2890 = vunpack.c.l.b16 %v2881
      %v2891 = vunpack.c.l.b16 %v2882
      %v2892 = vpack.c.b16 %v2890, %v2889
      %v2893 = vpack.c.b16 %v2891, %v2891
      %v2895 = vshrl.u32 %v2892, 16
      %v2897 = vshll.u32 %v2892, 16
      %v2899 = vrot.slane %v2897, 1
      %v2900 = vor.u32 %v2895, %v2899
      %v2902 = vshll.u32 %v2893, 16
      %v2904 = vrot.slane %v2902, 1
      %v2905 = vsel %vm1451, %v2900, %v2904
      %v2908 = vunpack.c.l.b16 %v2884
      %v2909 = vunpack.c.l.b16 %v2885
      %v2910 = vpack.c.b16 %v2909, %v2908
      %v2913 = vsel %vm1337, %v2905, 0
      %2915 = vmatprep.subr.bf16.mxu0 0
      %2916 = vmatpush1.bf16.msra.mxu0 %v2910
      %2917 = vmatprep.subr.bf16.mxu0 0
      %2918 = vmatpush1.bf16.msra.mxu0 0
      %2919 = vmatprep.subr.bf16.mxu0 0
      %2920 = vmatpush1.bf16.msra.mxu0 0
      %2921 = vmatprep.subr.bf16.mxu0 0
      %2922 = vmatpush1.bf16.msra.mxu0 0
      %2923 = vmatprep.subr.bf16.mxu0 0
      %2924 = vmatpush1.bf16.msra.mxu0 0
      %2925 = vmatprep.subr.bf16.mxu0 0
      %2926 = vmatpush1.bf16.msra.mxu0 0
      %2927 = vmatprep.subr.bf16.mxu0 0
      %2928 = vmatpush1.bf16.msra.mxu0 0
      %2929 = vmatprep.subr.bf16.mxu0 0
      %2930 = vmatpush1.bf16.msra.mxu0 0
      %2931 = vmatprep.subr.bf16.mxu0 0
      %2932 = vmatpush1.bf16.msra.mxu0 0
      %2933 = vmatprep.subr.bf16.mxu0 0
      %2934 = vmatpush1.bf16.msra.mxu0 0
      %2935 = vmatprep.subr.bf16.mxu0 0
      %2936 = vmatpush1.bf16.msra.mxu0 0
      %2937 = vmatprep.subr.bf16.mxu0 0
      %2938 = vmatpush1.bf16.msra.mxu0 0
      %2939 = vmatprep.subr.bf16.mxu0 0
      %2940 = vmatpush1.bf16.msra.mxu0 0
      %2941 = vmatprep.subr.bf16.mxu0 0
      %2942 = vmatpush1.bf16.msra.mxu0 0
      %2943 = vmatprep.subr.bf16.mxu0 0
      %2944 = vmatpush1.bf16.msra.mxu0 0
      %2945 = vmatprep.subr.bf16.mxu0 0
      %2946 = vmatpush1.bf16.msra.mxu0 0
      %2947 = vmatprep.mubr.bf16.mxu0 0
      %2948 = vmatmul.mubr.bf16.gmra.mrb[0].mxu0 %v2913
      %v2949 = vpop.f32.mrb[0].mxu0
      %v2950 = vadd.f32 0.0, %v2949
      %v2951 = vpop.f32.mrb[0].mxu0
      %v2952 = vpop.f32.mrb[0].mxu0
      %v2953 = vadd.f32 0.0, %v2952
      %v2954 = vpop.f32.mrb[0].mxu0
      %2955 = vdwg.mxu0
      %v2956 = vadd.f32 %v2878, %v2950
      %v2957 = vadd.f32 %v2879, %v2953
      %v2958 = vld [vmem:[%s1199] sm:$0xf]
      %v2959 = vld [vmem:[%s1199 + $0x4] sm:$0xf]
      %v2960 = vld [vmem:[%s1199 + $0x8] sm:$0x1]
      %s2961 = scalar_lea.vmem %s1297, 192
      %v2962 = vld [vmem:[%s2961] sm:$0xf]
      %v2963 = vld [vmem:[%s2961 + $0x4] sm:$0xf]
      %v2967 = vunpack.c.l.b16 %v2958
      %v2968 = vunpack.c.l.b16 %v2959
      %v2969 = vunpack.c.l.b16 %v2960
      %v2970 = vpack.c.b16 %v2968, %v2967
      %v2971 = vpack.c.b16 %v2969, %v2969
      %v2973 = vshrl.u32 %v2970, 16
      %v2975 = vshll.u32 %v2970, 16
      %v2977 = vrot.slane %v2975, 1
      %v2978 = vor.u32 %v2973, %v2977
      %v2980 = vshll.u32 %v2971, 16
      %v2982 = vrot.slane %v2980, 1
      %v2983 = vsel %vm1451, %v2978, %v2982
      %v2986 = vunpack.c.l.b16 %v2962
      %v2987 = vunpack.c.l.b16 %v2963
      %v2988 = vpack.c.b16 %v2987, %v2986
      %v2991 = vsel %vm1337, %v2983, 0
      %2993 = vmatprep.subr.bf16.mxu0 0
      %2994 = vmatpush1.bf16.msra.mxu0 %v2988
      %2995 = vmatprep.subr.bf16.mxu0 0
      %2996 = vmatpush1.bf16.msra.mxu0 0
      %2997 = vmatprep.subr.bf16.mxu0 0
      %2998 = vmatpush1.bf16.msra.mxu0 0
      %2999 = vmatprep.subr.bf16.mxu0 0
      %3000 = vmatpush1.bf16.msra.mxu0 0
      %3001 = vmatprep.subr.bf16.mxu0 0
      %3002 = vmatpush1.bf16.msra.mxu0 0
      %3003 = vmatprep.subr.bf16.mxu0 0
      %3004 = vmatpush1.bf16.msra.mxu0 0
      %3005 = vmatprep.subr.bf16.mxu0 0
      %3006 = vmatpush1.bf16.msra.mxu0 0
      %3007 = vmatprep.subr.bf16.mxu0 0
      %3008 = vmatpush1.bf16.msra.mxu0 0
      %3009 = vmatprep.subr.bf16.mxu0 0
      %3010 = vmatpush1.bf16.msra.mxu0 0
      %3011 = vmatprep.subr.bf16.mxu0 0
      %3012 = vmatpush1.bf16.msra.mxu0 0
      %3013 = vmatprep.subr.bf16.mxu0 0
      %3014 = vmatpush1.bf16.msra.mxu0 0
      %3015 = vmatprep.subr.bf16.mxu0 0
      %3016 = vmatpush1.bf16.msra.mxu0 0
      %3017 = vmatprep.subr.bf16.mxu0 0
      %3018 = vmatpush1.bf16.msra.mxu0 0
      %3019 = vmatprep.subr.bf16.mxu0 0
      %3020 = vmatpush1.bf16.msra.mxu0 0
      %3021 = vmatprep.subr.bf16.mxu0 0
      %3022 = vmatpush1.bf16.msra.mxu0 0
      %3023 = vmatprep.subr.bf16.mxu0 0
      %3024 = vmatpush1.bf16.msra.mxu0 0
      %3025 = vmatprep.mubr.bf16.mxu0 0
      %3026 = vmatmul.mubr.bf16.gmra.mrb[0].mxu0 %v2991
      %v3027 = vpop.f32.mrb[0].mxu0
      %v3028 = vadd.f32 0.0, %v3027
      %v3029 = vpop.f32.mrb[0].mxu0
      %v3030 = vpop.f32.mrb[0].mxu0
      %v3031 = vadd.f32 0.0, %v3030
      %v3032 = vpop.f32.mrb[0].mxu0
      %3033 = vdwg.mxu0
      %v3034 = vadd.f32 %v2956, %v3028
      %v3035 = vadd.f32 %v2957, %v3031
      %v3036 = vld [vmem:[%s1184] sm:$0xe]
      %s3037 = scalar_lea.vmem %s1297, 200
      %v3038 = vld [vmem:[%s3037] sm:$0xf]
      %v3039 = vld [vmem:[%s3037 + $0x4] sm:$0xf]
      %v3041 = vunpack.c.l.b16 %v3036
      %v3042 = vpack.c.b16 %v2890, %v3041
      %v3043 = vrot.slane %v3042, 1
      %v3044 = vrot.slane %v2893, 1
      %v3045 = vsel %vm1601, %v3043, %v3044
      %v3048 = vunpack.c.l.b16 %v3038
      %v3049 = vunpack.c.l.b16 %v3039
      %v3050 = vpack.c.b16 %v3049, %v3048
      %v3053 = vsel %vm1337, %v3045, 0
      %3055 = vmatprep.subr.bf16.mxu0 0
      %3056 = vmatpush1.bf16.msra.mxu0 %v3050
      %3057 = vmatprep.subr.bf16.mxu0 0
      %3058 = vmatpush1.bf16.msra.mxu0 0
      %3059 = vmatprep.subr.bf16.mxu0 0
      %3060 = vmatpush1.bf16.msra.mxu0 0
      %3061 = vmatprep.subr.bf16.mxu0 0
      %3062 = vmatpush1.bf16.msra.mxu0 0
      %3063 = vmatprep.subr.bf16.mxu0 0
      %3064 = vmatpush1.bf16.msra.mxu0 0
      %3065 = vmatprep.subr.bf16.mxu0 0
      %3066 = vmatpush1.bf16.msra.mxu0 0
      %3067 = vmatprep.subr.bf16.mxu0 0
      %3068 = vmatpush1.bf16.msra.mxu0 0
      %3069 = vmatprep.subr.bf16.mxu0 0
      %3070 = vmatpush1.bf16.msra.mxu0 0
      %3071 = vmatprep.subr.bf16.mxu0 0
      %3072 = vmatpush1.bf16.msra.mxu0 0
      %3073 = vmatprep.subr.bf16.mxu0 0
      %3074 = vmatpush1.bf16.msra.mxu0 0
      %3075 = vmatprep.subr.bf16.mxu0 0
      %3076 = vmatpush1.bf16.msra.mxu0 0
      %3077 = vmatprep.subr.bf16.mxu0 0
      %3078 = vmatpush1.bf16.msra.mxu0 0
      %3079 = vmatprep.subr.bf16.mxu0 0
      %3080 = vmatpush1.bf16.msra.mxu0 0
      %3081 = vmatprep.subr.bf16.mxu0 0
      %3082 = vmatpush1.bf16.msra.mxu0 0
      %3083 = vmatprep.subr.bf16.mxu0 0
      %3084 = vmatpush1.bf16.msra.mxu0 0
      %3085 = vmatprep.subr.bf16.mxu0 0
      %3086 = vmatpush1.bf16.msra.mxu0 0
      %3087 = vmatprep.mubr.bf16.mxu0 0
      %3088 = vmatmul.mubr.bf16.gmra.mrb[0].mxu0 %v3053
      %v3089 = vpop.f32.mrb[0].mxu0
      %v3090 = vadd.f32 0.0, %v3089
      %v3091 = vpop.f32.mrb[0].mxu0
      %v3092 = vpop.f32.mrb[0].mxu0
      %v3093 = vadd.f32 0.0, %v3092
      %v3094 = vpop.f32.mrb[0].mxu0
      %3095 = vdwg.mxu0
      %v3096 = vadd.f32 %v3034, %v3090
      %v3097 = vadd.f32 %v3035, %v3093
      %v3098 = vld [vmem:[%s1199] sm:$0xe]
      %s3099 = scalar_lea.vmem %s1297, 208
      %v3100 = vld [vmem:[%s3099] sm:$0xf]
      %v3101 = vld [vmem:[%s3099 + $0x4] sm:$0xf]
      %v3103 = vunpack.c.l.b16 %v3098
      %v3104 = vpack.c.b16 %v2968, %v3103
      %v3105 = vrot.slane %v3104, 1
      %v3106 = vrot.slane %v2971, 1
      %v3107 = vsel %vm1601, %v3105, %v3106
      %v3110 = vunpack.c.l.b16 %v3100
      %v3111 = vunpack.c.l.b16 %v3101
      %v3112 = vpack.c.b16 %v3111, %v3110
      %v3115 = vsel %vm1337, %v3107, 0
      %3117 = vmatprep.subr.bf16.mxu0 0
      %3118 = vmatpush1.bf16.msra.mxu0 %v3112
      %3119 = vmatprep.subr.bf16.mxu0 0
      %3120 = vmatpush1.bf16.msra.mxu0 0
      %3121 = vmatprep.subr.bf16.mxu0 0
      %3122 = vmatpush1.bf16.msra.mxu0 0
      %3123 = vmatprep.subr.bf16.mxu0 0
      %3124 = vmatpush1.bf16.msra.mxu0 0
      %3125 = vmatprep.subr.bf16.mxu0 0
      %3126 = vmatpush1.bf16.msra.mxu0 0
      %3127 = vmatprep.subr.bf16.mxu0 0
      %3128 = vmatpush1.bf16.msra.mxu0 0
      %3129 = vmatprep.subr.bf16.mxu0 0
      %3130 = vmatpush1.bf16.msra.mxu0 0
      %3131 = vmatprep.subr.bf16.mxu0 0
      %3132 = vmatpush1.bf16.msra.mxu0 0
      %3133 = vmatprep.subr.bf16.mxu0 0
      %3134 = vmatpush1.bf16.msra.mxu0 0
      %3135 = vmatprep.subr.bf16.mxu0 0
      %3136 = vmatpush1.bf16.msra.mxu0 0
      %3137 = vmatprep.subr.bf16.mxu0 0
      %3138 = vmatpush1.bf16.msra.mxu0 0
      %3139 = vmatprep.subr.bf16.mxu0 0
      %3140 = vmatpush1.bf16.msra.mxu0 0
      %3141 = vmatprep.subr.bf16.mxu0 0
      %3142 = vmatpush1.bf16.msra.mxu0 0
      %3143 = vmatprep.subr.bf16.mxu0 0
      %3144 = vmatpush1.bf16.msra.mxu0 0
      %3145 = vmatprep.subr.bf16.mxu0 0
      %3146 = vmatpush1.bf16.msra.mxu0 0
      %3147 = vmatprep.subr.bf16.mxu0 0
      %3148 = vmatpush1.bf16.msra.mxu0 0
      %3149 = vmatprep.mubr.bf16.mxu0 0
      %3150 = vmatmul.mubr.bf16.gmra.mrb[0].mxu0 %v3115
      %v3151 = vpop.f32.mrb[0].mxu0
      %v3152 = vadd.f32 0.0, %v3151
      %v3153 = vpop.f32.mrb[0].mxu0
      %v3154 = vpop.f32.mrb[0].mxu0
      %v3155 = vadd.f32 0.0, %v3154
      %v3156 = vpop.f32.mrb[0].mxu0
      %3157 = vdwg.mxu0
      %v3158 = vadd.f32 %v3096, %v3152
      %v3159 = vadd.f32 %v3097, %v3155
      %v3160 = vld [vmem:[%s1184 + $0x8] sm:$0x3]
      %s3161 = scalar_lea.vmem %s1297, 216
      %v3162 = vld [vmem:[%s3161] sm:$0xf]
      %v3163 = vld [vmem:[%s3161 + $0x4] sm:$0xf]
      %v3165 = vunpack.c.l.b16 %v3160
      %v3166 = vpack.c.b16 %v3165, %v3165
      %v3168 = vshrl.u32 %v3042, 16
      %v3170 = vrot.slane %v3168, 1
      %v3171 = vshll.u32 %v3042, 16
      %v3173 = vrot.slane %v3171, 2
      %v3174 = vor.u32 %v3170, %v3173
      %v3176 = vshrl.u32 %v3166, 16
      %v3178 = vrot.slane %v3176, 1
      %v3179 = vshll.u32 %v3166, 16
      %v3181 = vrot.slane %v3179, 2
      %v3182 = vor.u32 %v3178, %v3181
      %v3183 = vsel %vm1726, %v3174, %v3182
      %v3186 = vunpack.c.l.b16 %v3162
      %v3187 = vunpack.c.l.b16 %v3163
      %v3188 = vpack.c.b16 %v3187, %v3186
      %v3191 = vsel %vm1337, %v3183, 0
      %3193 = vmatprep.subr.bf16.mxu0 0
      %3194 = vmatpush1.bf16.msra.mxu0 %v3188
      %3195 = vmatprep.subr.bf16.mxu0 0
      %3196 = vmatpush1.bf16.msra.mxu0 0
      %3197 = vmatprep.subr.bf16.mxu0 0
      %3198 = vmatpush1.bf16.msra.mxu0 0
      %3199 = vmatprep.subr.bf16.mxu0 0
      %3200 = vmatpush1.bf16.msra.mxu0 0
      %3201 = vmatprep.subr.bf16.mxu0 0
      %3202 = vmatpush1.bf16.msra.mxu0 0
      %3203 = vmatprep.subr.bf16.mxu0 0
      %3204 = vmatpush1.bf16.msra.mxu0 0
      %3205 = vmatprep.subr.bf16.mxu0 0
      %3206 = vmatpush1.bf16.msra.mxu0 0
      %3207 = vmatprep.subr.bf16.mxu0 0
      %3208 = vmatpush1.bf16.msra.mxu0 0
      %3209 = vmatprep.subr.bf16.mxu0 0
      %3210 = vmatpush1.bf16.msra.mxu0 0
      %3211 = vmatprep.subr.bf16.mxu0 0
      %3212 = vmatpush1.bf16.msra.mxu0 0
      %3213 = vmatprep.subr.bf16.mxu0 0
      %3214 = vmatpush1.bf16.msra.mxu0 0
      %3215 = vmatprep.subr.bf16.mxu0 0
      %3216 = vmatpush1.bf16.msra.mxu0 0
      %3217 = vmatprep.subr.bf16.mxu0 0
      %3218 = vmatpush1.bf16.msra.mxu0 0
      %3219 = vmatprep.subr.bf16.mxu0 0
      %3220 = vmatpush1.bf16.msra.mxu0 0
      %3221 = vmatprep.subr.bf16.mxu0 0
      %3222 = vmatpush1.bf16.msra.mxu0 0
      %3223 = vmatprep.subr.bf16.mxu0 0
      %3224 = vmatpush1.bf16.msra.mxu0 0
      %3225 = vmatprep.mubr.bf16.mxu0 0
      %3226 = vmatmul.mubr.bf16.gmra.mrb[0].mxu0 %v3191
      %v3227 = vpop.f32.mrb[0].mxu0
      %v3228 = vadd.f32 0.0, %v3227
      %v3229 = vpop.f32.mrb[0].mxu0
      %v3230 = vpop.f32.mrb[0].mxu0
      %v3231 = vadd.f32 0.0, %v3230
      %v3232 = vpop.f32.mrb[0].mxu0
      %3233 = vdwg.mxu0
      %v3234 = vadd.f32 %v3158, %v3228
      %v3235 = vadd.f32 %v3159, %v3231
      %v3236 = vld [vmem:[%s1214] sm:$0xf]
      %v3237 = vld [vmem:[%s1214 + $0x4] sm:$0xf]
      %s3238 = scalar_lea.vmem %s1297, 224
      %v3239 = vld [vmem:[%s3238] sm:$0xf]
      %v3240 = vld [vmem:[%s3238 + $0x4] sm:$0xf]
      %v3243 = vunpack.c.l.b16 %v3236
      %v3244 = vunpack.c.l.b16 %v3237
      %v3245 = vpack.c.b16 %v3244, %v3243
      %v3248 = vunpack.c.l.b16 %v3239
      %v3249 = vunpack.c.l.b16 %v3240
      %v3250 = vpack.c.b16 %v3249, %v3248
      %v3253 = vsel %vm1337, %v3245, 0
      %3255 = vmatprep.subr.bf16.mxu0 0
      %3256 = vmatpush1.bf16.msra.mxu0 %v3250
      %3257 = vmatprep.subr.bf16.mxu0 0
      %3258 = vmatpush1.bf16.msra.mxu0 0
      %3259 = vmatprep.subr.bf16.mxu0 0
      %3260 = vmatpush1.bf16.msra.mxu0 0
      %3261 = vmatprep.subr.bf16.mxu0 0
      %3262 = vmatpush1.bf16.msra.mxu0 0
      %3263 = vmatprep.subr.bf16.mxu0 0
      %3264 = vmatpush1.bf16.msra.mxu0 0
      %3265 = vmatprep.subr.bf16.mxu0 0
      %3266 = vmatpush1.bf16.msra.mxu0 0
      %3267 = vmatprep.subr.bf16.mxu0 0
      %3268 = vmatpush1.bf16.msra.mxu0 0
      %3269 = vmatprep.subr.bf16.mxu0 0
      %3270 = vmatpush1.bf16.msra.mxu0 0
      %3271 = vmatprep.subr.bf16.mxu0 0
      %3272 = vmatpush1.bf16.msra.mxu0 0
      %3273 = vmatprep.subr.bf16.mxu0 0
      %3274 = vmatpush1.bf16.msra.mxu0 0
      %3275 = vmatprep.subr.bf16.mxu0 0
      %3276 = vmatpush1.bf16.msra.mxu0 0
      %3277 = vmatprep.subr.bf16.mxu0 0
      %3278 = vmatpush1.bf16.msra.mxu0 0
      %3279 = vmatprep.subr.bf16.mxu0 0
      %3280 = vmatpush1.bf16.msra.mxu0 0
      %3281 = vmatprep.subr.bf16.mxu0 0
      %3282 = vmatpush1.bf16.msra.mxu0 0
      %3283 = vmatprep.subr.bf16.mxu0 0
      %3284 = vmatpush1.bf16.msra.mxu0 0
      %3285 = vmatprep.subr.bf16.mxu0 0
      %3286 = vmatpush1.bf16.msra.mxu0 0
      %3287 = vmatprep.mubr.bf16.mxu0 0
      %3288 = vmatmul.mubr.bf16.gmra.mrb[0].mxu0 %v3253
      %v3289 = vpop.f32.mrb[0].mxu0
      %v3290 = vadd.f32 0.0, %v3289
      %v3291 = vpop.f32.mrb[0].mxu0
      %v3292 = vpop.f32.mrb[0].mxu0
      %v3293 = vadd.f32 0.0, %v3292
      %v3294 = vpop.f32.mrb[0].mxu0
      %3295 = vdwg.mxu0
      %v3296 = vadd.f32 %v3234, %v3290
      %v3297 = vadd.f32 %v3235, %v3293
      %v3298 = vld [vmem:[%s1229] sm:$0xf]
      %v3299 = vld [vmem:[%s1229 + $0x4] sm:$0xf]
      %s3300 = scalar_lea.vmem %s1297, 232
      %v3301 = vld [vmem:[%s3300] sm:$0xf]
      %v3302 = vld [vmem:[%s3300 + $0x4] sm:$0xf]
      %v3305 = vunpack.c.l.b16 %v3298
      %v3306 = vunpack.c.l.b16 %v3299
      %v3307 = vpack.c.b16 %v3306, %v3305
      %v3310 = vunpack.c.l.b16 %v3301
      %v3311 = vunpack.c.l.b16 %v3302
      %v3312 = vpack.c.b16 %v3311, %v3310
      %v3315 = vsel %vm1337, %v3307, 0
      %3317 = vmatprep.subr.bf16.mxu0 0
      %3318 = vmatpush1.bf16.msra.mxu0 %v3312
      %3319 = vmatprep.subr.bf16.mxu0 0
      %3320 = vmatpush1.bf16.msra.mxu0 0
      %3321 = vmatprep.subr.bf16.mxu0 0
      %3322 = vmatpush1.bf16.msra.mxu0 0
      %3323 = vmatprep.subr.bf16.mxu0 0
      %3324 = vmatpush1.bf16.msra.mxu0 0
      %3325 = vmatprep.subr.bf16.mxu0 0
      %3326 = vmatpush1.bf16.msra.mxu0 0
      %3327 = vmatprep.subr.bf16.mxu0 0
      %3328 = vmatpush1.bf16.msra.mxu0 0
      %3329 = vmatprep.subr.bf16.mxu0 0
      %3330 = vmatpush1.bf16.msra.mxu0 0
      %3331 = vmatprep.subr.bf16.mxu0 0
      %3332 = vmatpush1.bf16.msra.mxu0 0
      %3333 = vmatprep.subr.bf16.mxu0 0
      %3334 = vmatpush1.bf16.msra.mxu0 0
      %3335 = vmatprep.subr.bf16.mxu0 0
      %3336 = vmatpush1.bf16.msra.mxu0 0
      %3337 = vmatprep.subr.bf16.mxu0 0
      %3338 = vmatpush1.bf16.msra.mxu0 0
      %3339 = vmatprep.subr.bf16.mxu0 0
      %3340 = vmatpush1.bf16.msra.mxu0 0
      %3341 = vmatprep.subr.bf16.mxu0 0
      %3342 = vmatpush1.bf16.msra.mxu0 0
      %3343 = vmatprep.subr.bf16.mxu0 0
      %3344 = vmatpush1.bf16.msra.mxu0 0
      %3345 = vmatprep.subr.bf16.mxu0 0
      %3346 = vmatpush1.bf16.msra.mxu0 0
      %3347 = vmatprep.subr.bf16.mxu0 0
      %3348 = vmatpush1.bf16.msra.mxu0 0
      %3349 = vmatprep.mubr.bf16.mxu0 0
      %3350 = vmatmul.mubr.bf16.gmra.mrb[0].mxu0 %v3315
      %v3351 = vpop.f32.mrb[0].mxu0
      %v3352 = vadd.f32 0.0, %v3351
      %v3353 = vpop.f32.mrb[0].mxu0
      %v3354 = vpop.f32.mrb[0].mxu0
      %v3355 = vadd.f32 0.0, %v3354
      %v3356 = vpop.f32.mrb[0].mxu0
      %3357 = vdwg.mxu0
      %v3358 = vadd.f32 %v3296, %v3352
      %v3359 = vadd.f32 %v3297, %v3355
      %v3360 = vld [vmem:[%s1214] sm:$0xf]
      %v3361 = vld [vmem:[%s1214 + $0x4] sm:$0xf]
      %v3362 = vld [vmem:[%s1214 + $0x8] sm:$0x1]
      %s3363 = scalar_lea.vmem %s1297, 240
      %v3364 = vld [vmem:[%s3363] sm:$0xf]
      %v3365 = vld [vmem:[%s3363 + $0x4] sm:$0xf]
      %v3369 = vunpack.c.l.b16 %v3360
      %v3370 = vunpack.c.l.b16 %v3361
      %v3371 = vunpack.c.l.b16 %v3362
      %v3372 = vpack.c.b16 %v3370, %v3369
      %v3373 = vpack.c.b16 %v3371, %v3371
      %v3375 = vshrl.u32 %v3372, 16
      %v3377 = vshll.u32 %v3372, 16
      %v3379 = vrot.slane %v3377, 1
      %v3380 = vor.u32 %v3375, %v3379
      %v3382 = vshll.u32 %v3373, 16
      %v3384 = vrot.slane %v3382, 1
      %v3385 = vsel %vm1451, %v3380, %v3384
      %v3388 = vunpack.c.l.b16 %v3364
      %v3389 = vunpack.c.l.b16 %v3365
      %v3390 = vpack.c.b16 %v3389, %v3388
      %v3393 = vsel %vm1337, %v3385, 0
      %3395 = vmatprep.subr.bf16.mxu0 0
      %3396 = vmatpush1.bf16.msra.mxu0 %v3390
      %3397 = vmatprep.subr.bf16.mxu0 0
      %3398 = vmatpush1.bf16.msra.mxu0 0
      %3399 = vmatprep.subr.bf16.mxu0 0
      %3400 = vmatpush1.bf16.msra.mxu0 0
      %3401 = vmatprep.subr.bf16.mxu0 0
      %3402 = vmatpush1.bf16.msra.mxu0 0
      %3403 = vmatprep.subr.bf16.mxu0 0
      %3404 = vmatpush1.bf16.msra.mxu0 0
      %3405 = vmatprep.subr.bf16.mxu0 0
      %3406 = vmatpush1.bf16.msra.mxu0 0
      %3407 = vmatprep.subr.bf16.mxu0 0
      %3408 = vmatpush1.bf16.msra.mxu0 0
      %3409 = vmatprep.subr.bf16.mxu0 0
      %3410 = vmatpush1.bf16.msra.mxu0 0
      %3411 = vmatprep.subr.bf16.mxu0 0
      %3412 = vmatpush1.bf16.msra.mxu0 0
      %3413 = vmatprep.subr.bf16.mxu0 0
      %3414 = vmatpush1.bf16.msra.mxu0 0
      %3415 = vmatprep.subr.bf16.mxu0 0
      %3416 = vmatpush1.bf16.msra.mxu0 0
      %3417 = vmatprep.subr.bf16.mxu0 0
      %3418 = vmatpush1.bf16.msra.mxu0 0
      %3419 = vmatprep.subr.bf16.mxu0 0
      %3420 = vmatpush1.bf16.msra.mxu0 0
      %3421 = vmatprep.subr.bf16.mxu0 0
      %3422 = vmatpush1.bf16.msra.mxu0 0
      %3423 = vmatprep.subr.bf16.mxu0 0
      %3424 = vmatpush1.bf16.msra.mxu0 0
      %3425 = vmatprep.subr.bf16.mxu0 0
      %3426 = vmatpush1.bf16.msra.mxu0 0
      %3427 = vmatprep.mubr.bf16.mxu0 0
      %3428 = vmatmul.mubr.bf16.gmra.mrb[0].mxu0 %v3393
      %v3429 = vpop.f32.mrb[0].mxu0
      %v3430 = vadd.f32 0.0, %v3429
      %v3431 = vpop.f32.mrb[0].mxu0
      %v3432 = vpop.f32.mrb[0].mxu0
      %v3433 = vadd.f32 0.0, %v3432
      %v3434 = vpop.f32.mrb[0].mxu0
      %3435 = vdwg.mxu0
      %v3436 = vadd.f32 %v3358, %v3430
      %v3437 = vadd.f32 %v3359, %v3433
      %v3438 = vld [vmem:[%s1229] sm:$0xf]
      %v3439 = vld [vmem:[%s1229 + $0x4] sm:$0xf]
      %v3440 = vld [vmem:[%s1229 + $0x8] sm:$0x1]
      %s3441 = scalar_lea.vmem %s1297, 248
      %v3442 = vld [vmem:[%s3441] sm:$0xf]
      %v3443 = vld [vmem:[%s3441 + $0x4] sm:$0xf]
      %v3447 = vunpack.c.l.b16 %v3438
      %v3448 = vunpack.c.l.b16 %v3439
      %v3449 = vunpack.c.l.b16 %v3440
      %v3450 = vpack.c.b16 %v3448, %v3447
      %v3451 = vpack.c.b16 %v3449, %v3449
      %v3453 = vshrl.u32 %v3450, 16
      %v3455 = vshll.u32 %v3450, 16
      %v3457 = vrot.slane %v3455, 1
      %v3458 = vor.u32 %v3453, %v3457
      %v3460 = vshll.u32 %v3451, 16
      %v3462 = vrot.slane %v3460, 1
      %v3463 = vsel %vm1451, %v3458, %v3462
      %v3466 = vunpack.c.l.b16 %v3442
      %v3467 = vunpack.c.l.b16 %v3443
      %v3468 = vpack.c.b16 %v3467, %v3466
      %v3471 = vsel %vm1337, %v3463, 0
      %3473 = vmatprep.subr.bf16.mxu0 0
      %3474 = vmatpush1.bf16.msra.mxu0 %v3468
      %3475 = vmatprep.subr.bf16.mxu0 0
      %3476 = vmatpush1.bf16.msra.mxu0 0
      %3477 = vmatprep.subr.bf16.mxu0 0
      %3478 = vmatpush1.bf16.msra.mxu0 0
      %3479 = vmatprep.subr.bf16.mxu0 0
      %3480 = vmatpush1.bf16.msra.mxu0 0
      %3481 = vmatprep.subr.bf16.mxu0 0
      %3482 = vmatpush1.bf16.msra.mxu0 0
      %3483 = vmatprep.subr.bf16.mxu0 0
      %3484 = vmatpush1.bf16.msra.mxu0 0
      %3485 = vmatprep.subr.bf16.mxu0 0
      %3486 = vmatpush1.bf16.msra.mxu0 0
      %3487 = vmatprep.subr.bf16.mxu0 0
      %3488 = vmatpush1.bf16.msra.mxu0 0
      %3489 = vmatprep.subr.bf16.mxu0 0
      %3490 = vmatpush1.bf16.msra.mxu0 0
      %3491 = vmatprep.subr.bf16.mxu0 0
      %3492 = vmatpush1.bf16.msra.mxu0 0
      %3493 = vmatprep.subr.bf16.mxu0 0
      %3494 = vmatpush1.bf16.msra.mxu0 0
      %3495 = vmatprep.subr.bf16.mxu0 0
      %3496 = vmatpush1.bf16.msra.mxu0 0
      %3497 = vmatprep.subr.bf16.mxu0 0
      %3498 = vmatpush1.bf16.msra.mxu0 0
      %3499 = vmatprep.subr.bf16.mxu0 0
      %3500 = vmatpush1.bf16.msra.mxu0 0
      %3501 = vmatprep.subr.bf16.mxu0 0
      %3502 = vmatpush1.bf16.msra.mxu0 0
      %3503 = vmatprep.subr.bf16.mxu0 0
      %3504 = vmatpush1.bf16.msra.mxu0 0
      %3505 = vmatprep.mubr.bf16.mxu0 0
      %3506 = vmatmul.mubr.bf16.gmra.mrb[0].mxu0 %v3471
      %v3507 = vpop.f32.mrb[0].mxu0
      %v3508 = vadd.f32 0.0, %v3507
      %v3509 = vpop.f32.mrb[0].mxu0
      %v3510 = vpop.f32.mrb[0].mxu0
      %v3511 = vadd.f32 0.0, %v3510
      %v3512 = vpop.f32.mrb[0].mxu0
      %3513 = vdwg.mxu0
      %v3514 = vadd.f32 %v3436, %v3508
      %v3515 = vadd.f32 %v3437, %v3511
      %v3516 = vld [vmem:[%s1214] sm:$0xe]
      %s3517 = scalar_lea.vmem %s1297, 256
      %v3518 = vld [vmem:[%s3517] sm:$0xf]
      %v3519 = vld [vmem:[%s3517 + $0x4] sm:$0xf]
      %v3521 = vunpack.c.l.b16 %v3516
      %v3522 = vpack.c.b16 %v3370, %v3521
      %v3523 = vrot.slane %v3522, 1
      %v3524 = vrot.slane %v3373, 1
      %v3525 = vsel %vm1601, %v3523, %v3524
      %v3528 = vunpack.c.l.b16 %v3518
      %v3529 = vunpack.c.l.b16 %v3519
      %v3530 = vpack.c.b16 %v3529, %v3528
      %v3533 = vsel %vm1337, %v3525, 0
      %3535 = vmatprep.subr.bf16.mxu0 0
      %3536 = vmatpush1.bf16.msra.mxu0 %v3530
      %3537 = vmatprep.subr.bf16.mxu0 0
      %3538 = vmatpush1.bf16.msra.mxu0 0
      %3539 = vmatprep.subr.bf16.mxu0 0
      %3540 = vmatpush1.bf16.msra.mxu0 0
      %3541 = vmatprep.subr.bf16.mxu0 0
      %3542 = vmatpush1.bf16.msra.mxu0 0
      %3543 = vmatprep.subr.bf16.mxu0 0
      %3544 = vmatpush1.bf16.msra.mxu0 0
      %3545 = vmatprep.subr.bf16.mxu0 0
      %3546 = vmatpush1.bf16.msra.mxu0 0
      %3547 = vmatprep.subr.bf16.mxu0 0
      %3548 = vmatpush1.bf16.msra.mxu0 0
      %3549 = vmatprep.subr.bf16.mxu0 0
      %3550 = vmatpush1.bf16.msra.mxu0 0
      %3551 = vmatprep.subr.bf16.mxu0 0
      %3552 = vmatpush1.bf16.msra.mxu0 0
      %3553 = vmatprep.subr.bf16.mxu0 0
      %3554 = vmatpush1.bf16.msra.mxu0 0
      %3555 = vmatprep.subr.bf16.mxu0 0
      %3556 = vmatpush1.bf16.msra.mxu0 0
      %3557 = vmatprep.subr.bf16.mxu0 0
      %3558 = vmatpush1.bf16.msra.mxu0 0
      %3559 = vmatprep.subr.bf16.mxu0 0
      %3560 = vmatpush1.bf16.msra.mxu0 0
      %3561 = vmatprep.subr.bf16.mxu0 0
      %3562 = vmatpush1.bf16.msra.mxu0 0
      %3563 = vmatprep.subr.bf16.mxu0 0
      %3564 = vmatpush1.bf16.msra.mxu0 0
      %3565 = vmatprep.subr.bf16.mxu0 0
      %3566 = vmatpush1.bf16.msra.mxu0 0
      %3567 = vmatprep.mubr.bf16.mxu0 0
      %3568 = vmatmul.mubr.bf16.gmra.mrb[0].mxu0 %v3533
      %v3569 = vpop.f32.mrb[0].mxu0
      %v3570 = vadd.f32 0.0, %v3569
      %v3571 = vpop.f32.mrb[0].mxu0
      %v3572 = vpop.f32.mrb[0].mxu0
      %v3573 = vadd.f32 0.0, %v3572
      %v3574 = vpop.f32.mrb[0].mxu0
      %3575 = vdwg.mxu0
      %v3576 = vadd.f32 %v3514, %v3570
      %v3577 = vadd.f32 %v3515, %v3573
      %v3578 = vld [vmem:[%s1229] sm:$0xe]
      %s3579 = scalar_lea.vmem %s1297, 264
      %v3580 = vld [vmem:[%s3579] sm:$0xf]
      %v3581 = vld [vmem:[%s3579 + $0x4] sm:$0xf]
      %v3583 = vunpack.c.l.b16 %v3578
      %v3584 = vpack.c.b16 %v3448, %v3583
      %v3585 = vrot.slane %v3584, 1
      %v3586 = vrot.slane %v3451, 1
      %v3587 = vsel %vm1601, %v3585, %v3586
      %v3590 = vunpack.c.l.b16 %v3580
      %v3591 = vunpack.c.l.b16 %v3581
      %v3592 = vpack.c.b16 %v3591, %v3590
      %v3595 = vsel %vm1337, %v3587, 0
      %3597 = vmatprep.subr.bf16.mxu0 0
      %3598 = vmatpush1.bf16.msra.mxu0 %v3592
      %3599 = vmatprep.subr.bf16.mxu0 0
      %3600 = vmatpush1.bf16.msra.mxu0 0
      %3601 = vmatprep.subr.bf16.mxu0 0
      %3602 = vmatpush1.bf16.msra.mxu0 0
      %3603 = vmatprep.subr.bf16.mxu0 0
      %3604 = vmatpush1.bf16.msra.mxu0 0
      %3605 = vmatprep.subr.bf16.mxu0 0
      %3606 = vmatpush1.bf16.msra.mxu0 0
      %3607 = vmatprep.subr.bf16.mxu0 0
      %3608 = vmatpush1.bf16.msra.mxu0 0
      %3609 = vmatprep.subr.bf16.mxu0 0
      %3610 = vmatpush1.bf16.msra.mxu0 0
      %3611 = vmatprep.subr.bf16.mxu0 0
      %3612 = vmatpush1.bf16.msra.mxu0 0
      %3613 = vmatprep.subr.bf16.mxu0 0
      %3614 = vmatpush1.bf16.msra.mxu0 0
      %3615 = vmatprep.subr.bf16.mxu0 0
      %3616 = vmatpush1.bf16.msra.mxu0 0
      %3617 = vmatprep.subr.bf16.mxu0 0
      %3618 = vmatpush1.bf16.msra.mxu0 0
      %3619 = vmatprep.subr.bf16.mxu0 0
      %3620 = vmatpush1.bf16.msra.mxu0 0
      %3621 = vmatprep.subr.bf16.mxu0 0
      %3622 = vmatpush1.bf16.msra.mxu0 0
      %3623 = vmatprep.subr.bf16.mxu0 0
      %3624 = vmatpush1.bf16.msra.mxu0 0
      %3625 = vmatprep.subr.bf16.mxu0 0
      %3626 = vmatpush1.bf16.msra.mxu0 0
      %3627 = vmatprep.subr.bf16.mxu0 0
      %3628 = vmatpush1.bf16.msra.mxu0 0
      %3629 = vmatprep.mubr.bf16.mxu0 0
      %3630 = vmatmul.mubr.bf16.gmra.mrb[0].mxu0 %v3595
      %v3631 = vpop.f32.mrb[0].mxu0
      %v3632 = vadd.f32 0.0, %v3631
      %v3633 = vpop.f32.mrb[0].mxu0
      %v3634 = vpop.f32.mrb[0].mxu0
      %v3635 = vadd.f32 0.0, %v3634
      %v3636 = vpop.f32.mrb[0].mxu0
      %3637 = vdwg.mxu0
      %v3638 = vadd.f32 %v3576, %v3632
      %v3639 = vadd.f32 %v3577, %v3635
      %v3640 = vld [vmem:[%s1214 + $0x8] sm:$0x3]
      %s3641 = scalar_lea.vmem %s1297, 272
      %v3642 = vld [vmem:[%s3641] sm:$0xf]
      %v3643 = vld [vmem:[%s3641 + $0x4] sm:$0xf]
      %v3645 = vunpack.c.l.b16 %v3640
      %v3646 = vpack.c.b16 %v3645, %v3645
      %v3648 = vshrl.u32 %v3522, 16
      %v3650 = vrot.slane %v3648, 1
      %v3651 = vshll.u32 %v3522, 16
      %v3653 = vrot.slane %v3651, 2
      %v3654 = vor.u32 %v3650, %v3653
      %v3656 = vshrl.u32 %v3646, 16
      %v3658 = vrot.slane %v3656, 1
      %v3659 = vshll.u32 %v3646, 16
      %v3661 = vrot.slane %v3659, 2
      %v3662 = vor.u32 %v3658, %v3661
      %v3663 = vsel %vm1726, %v3654, %v3662
      %v3666 = vunpack.c.l.b16 %v3642
      %v3667 = vunpack.c.l.b16 %v3643
      %v3668 = vpack.c.b16 %v3667, %v3666
      %v3671 = vsel %vm1337, %v3663, 0
      %3673 = vmatprep.subr.bf16.mxu0 0
      %3674 = vmatpush1.bf16.msra.mxu0 %v3668
      %3675 = vmatprep.subr.bf16.mxu0 0
      %3676 = vmatpush1.bf16.msra.mxu0 0
      %3677 = vmatprep.subr.bf16.mxu0 0
      %3678 = vmatpush1.bf16.msra.mxu0 0
      %3679 = vmatprep.subr.bf16.mxu0 0
      %3680 = vmatpush1.bf16.msra.mxu0 0
      %3681 = vmatprep.subr.bf16.mxu0 0
      %3682 = vmatpush1.bf16.msra.mxu0 0
      %3683 = vmatprep.subr.bf16.mxu0 0
      %3684 = vmatpush1.bf16.msra.mxu0 0
      %3685 = vmatprep.subr.bf16.mxu0 0
      %3686 = vmatpush1.bf16.msra.mxu0 0
      %3687 = vmatprep.subr.bf16.mxu0 0
      %3688 = vmatpush1.bf16.msra.mxu0 0
      %3689 = vmatprep.subr.bf16.mxu0 0
      %3690 = vmatpush1.bf16.msra.mxu0 0
      %3691 = vmatprep.subr.bf16.mxu0 0
      %3692 = vmatpush1.bf16.msra.mxu0 0
      %3693 = vmatprep.subr.bf16.mxu0 0
      %3694 = vmatpush1.bf16.msra.mxu0 0
      %3695 = vmatprep.subr.bf16.mxu0 0
      %3696 = vmatpush1.bf16.msra.mxu0 0
      %3697 = vmatprep.subr.bf16.mxu0 0
      %3698 = vmatpush1.bf16.msra.mxu0 0
      %3699 = vmatprep.subr.bf16.mxu0 0
      %3700 = vmatpush1.bf16.msra.mxu0 0
      %3701 = vmatprep.subr.bf16.mxu0 0
      %3702 = vmatpush1.bf16.msra.mxu0 0
      %3703 = vmatprep.subr.bf16.mxu0 0
      %3704 = vmatpush1.bf16.msra.mxu0 0
      %3705 = vmatprep.mubr.bf16.mxu0 0
      %3706 = vmatmul.mubr.bf16.gmra.mrb[0].mxu0 %v3671
      %v3707 = vpop.f32.mrb[0].mxu0
      %v3708 = vadd.f32 0.0, %v3707
      %v3709 = vpop.f32.mrb[0].mxu0
      %v3710 = vpop.f32.mrb[0].mxu0
      %v3711 = vadd.f32 0.0, %v3710
      %v3712 = vpop.f32.mrb[0].mxu0
      %3713 = vdwg.mxu0
      %v3714 = vadd.f32 %v3638, %v3708
      %v3715 = vadd.f32 %v3639, %v3711
      %v3716 = vld [vmem:[%s1244] sm:$0xf]
      %v3717 = vld [vmem:[%s1244 + $0x4] sm:$0xf]
      %s3718 = scalar_lea.vmem %s1297, 280
      %v3719 = vld [vmem:[%s3718] sm:$0xf]
      %v3720 = vld [vmem:[%s3718 + $0x4] sm:$0xf]
      %v3723 = vunpack.c.l.b16 %v3716
      %v3724 = vunpack.c.l.b16 %v3717
      %v3725 = vpack.c.b16 %v3724, %v3723
      %v3728 = vunpack.c.l.b16 %v3719
      %v3729 = vunpack.c.l.b16 %v3720
      %v3730 = vpack.c.b16 %v3729, %v3728
      %v3733 = vsel %vm1337, %v3725, 0
      %3735 = vmatprep.subr.bf16.mxu0 0
      %3736 = vmatpush1.bf16.msra.mxu0 %v3730
      %3737 = vmatprep.subr.bf16.mxu0 0
      %3738 = vmatpush1.bf16.msra.mxu0 0
      %3739 = vmatprep.subr.bf16.mxu0 0
      %3740 = vmatpush1.bf16.msra.mxu0 0
      %3741 = vmatprep.subr.bf16.mxu0 0
      %3742 = vmatpush1.bf16.msra.mxu0 0
      %3743 = vmatprep.subr.bf16.mxu0 0
      %3744 = vmatpush1.bf16.msra.mxu0 0
      %3745 = vmatprep.subr.bf16.mxu0 0
      %3746 = vmatpush1.bf16.msra.mxu0 0
      %3747 = vmatprep.subr.bf16.mxu0 0
      %3748 = vmatpush1.bf16.msra.mxu0 0
      %3749 = vmatprep.subr.bf16.mxu0 0
      %3750 = vmatpush1.bf16.msra.mxu0 0
      %3751 = vmatprep.subr.bf16.mxu0 0
      %3752 = vmatpush1.bf16.msra.mxu0 0
      %3753 = vmatprep.subr.bf16.mxu0 0
      %3754 = vmatpush1.bf16.msra.mxu0 0
      %3755 = vmatprep.subr.bf16.mxu0 0
      %3756 = vmatpush1.bf16.msra.mxu0 0
      %3757 = vmatprep.subr.bf16.mxu0 0
      %3758 = vmatpush1.bf16.msra.mxu0 0
      %3759 = vmatprep.subr.bf16.mxu0 0
      %3760 = vmatpush1.bf16.msra.mxu0 0
      %3761 = vmatprep.subr.bf16.mxu0 0
      %3762 = vmatpush1.bf16.msra.mxu0 0
      %3763 = vmatprep.subr.bf16.mxu0 0
      %3764 = vmatpush1.bf16.msra.mxu0 0
      %3765 = vmatprep.subr.bf16.mxu0 0
      %3766 = vmatpush1.bf16.msra.mxu0 0
      %3767 = vmatprep.mubr.bf16.mxu0 0
      %3768 = vmatmul.mubr.bf16.gmra.mrb[0].mxu0 %v3733
      %v3769 = vpop.f32.mrb[0].mxu0
      %v3770 = vadd.f32 0.0, %v3769
      %v3771 = vpop.f32.mrb[0].mxu0
      %v3772 = vpop.f32.mrb[0].mxu0
      %v3773 = vadd.f32 0.0, %v3772
      %v3774 = vpop.f32.mrb[0].mxu0
      %3775 = vdwg.mxu0
      %v3776 = vadd.f32 %v3714, %v3770
      %v3777 = vadd.f32 %v3715, %v3773
      %v3778 = vld [vmem:[%s1259] sm:$0xf]
      %v3779 = vld [vmem:[%s1259 + $0x4] sm:$0xf]
      %s3780 = scalar_lea.vmem %s1297, 288
      %v3781 = vld [vmem:[%s3780] sm:$0xf]
      %v3782 = vld [vmem:[%s3780 + $0x4] sm:$0xf]
      %v3785 = vunpack.c.l.b16 %v3778
      %v3786 = vunpack.c.l.b16 %v3779
      %v3787 = vpack.c.b16 %v3786, %v3785
      %v3790 = vunpack.c.l.b16 %v3781
      %v3791 = vunpack.c.l.b16 %v3782
      %v3792 = vpack.c.b16 %v3791, %v3790
      %v3795 = vsel %vm1337, %v3787, 0
      %3797 = vmatprep.subr.bf16.mxu0 0
      %3798 = vmatpush1.bf16.msra.mxu0 %v3792
      %3799 = vmatprep.subr.bf16.mxu0 0
      %3800 = vmatpush1.bf16.msra.mxu0 0
      %3801 = vmatprep.subr.bf16.mxu0 0
      %3802 = vmatpush1.bf16.msra.mxu0 0
      %3803 = vmatprep.subr.bf16.mxu0 0
      %3804 = vmatpush1.bf16.msra.mxu0 0
      %3805 = vmatprep.subr.bf16.mxu0 0
      %3806 = vmatpush1.bf16.msra.mxu0 0
      %3807 = vmatprep.subr.bf16.mxu0 0
      %3808 = vmatpush1.bf16.msra.mxu0 0
      %3809 = vmatprep.subr.bf16.mxu0 0
      %3810 = vmatpush1.bf16.msra.mxu0 0
      %3811 = vmatprep.subr.bf16.mxu0 0
      %3812 = vmatpush1.bf16.msra.mxu0 0
      %3813 = vmatprep.subr.bf16.mxu0 0
      %3814 = vmatpush1.bf16.msra.mxu0 0
      %3815 = vmatprep.subr.bf16.mxu0 0
      %3816 = vmatpush1.bf16.msra.mxu0 0
      %3817 = vmatprep.subr.bf16.mxu0 0
      %3818 = vmatpush1.bf16.msra.mxu0 0
      %3819 = vmatprep.subr.bf16.mxu0 0
      %3820 = vmatpush1.bf16.msra.mxu0 0
      %3821 = vmatprep.subr.bf16.mxu0 0
      %3822 = vmatpush1.bf16.msra.mxu0 0
      %3823 = vmatprep.subr.bf16.mxu0 0
      %3824 = vmatpush1.bf16.msra.mxu0 0
      %3825 = vmatprep.subr.bf16.mxu0 0
      %3826 = vmatpush1.bf16.msra.mxu0 0
      %3827 = vmatprep.subr.bf16.mxu0 0
      %3828 = vmatpush1.bf16.msra.mxu0 0
      %3829 = vmatprep.mubr.bf16.mxu0 0
      %3830 = vmatmul.mubr.bf16.gmra.mrb[0].mxu0 %v3795
      %v3831 = vpop.f32.mrb[0].mxu0
      %v3832 = vadd.f32 0.0, %v3831
      %v3833 = vpop.f32.mrb[0].mxu0
      %v3834 = vpop.f32.mrb[0].mxu0
      %v3835 = vadd.f32 0.0, %v3834
      %v3836 = vpop.f32.mrb[0].mxu0
      %3837 = vdwg.mxu0
      %v3838 = vadd.f32 %v3776, %v3832
      %v3839 = vadd.f32 %v3777, %v3835
      %v3840 = vld [vmem:[%s1244] sm:$0xf]
      %v3841 = vld [vmem:[%s1244 + $0x4] sm:$0xf]
      %v3842 = vld [vmem:[%s1244 + $0x8] sm:$0x1]
      %s3843 = scalar_lea.vmem %s1297, 296
      %v3844 = vld [vmem:[%s3843] sm:$0xf]
      %v3845 = vld [vmem:[%s3843 + $0x4] sm:$0xf]
      %v3849 = vunpack.c.l.b16 %v3840
      %v3850 = vunpack.c.l.b16 %v3841
      %v3851 = vunpack.c.l.b16 %v3842
      %v3852 = vpack.c.b16 %v3850, %v3849
      %v3853 = vpack.c.b16 %v3851, %v3851
      %v3855 = vshrl.u32 %v3852, 16
      %v3857 = vshll.u32 %v3852, 16
      %v3859 = vrot.slane %v3857, 1
      %v3860 = vor.u32 %v3855, %v3859
      %v3862 = vshll.u32 %v3853, 16
      %v3864 = vrot.slane %v3862, 1
      %v3865 = vsel %vm1451, %v3860, %v3864
      %v3868 = vunpack.c.l.b16 %v3844
      %v3869 = vunpack.c.l.b16 %v3845
      %v3870 = vpack.c.b16 %v3869, %v3868
      %v3873 = vsel %vm1337, %v3865, 0
      %3875 = vmatprep.subr.bf16.mxu0 0
      %3876 = vmatpush1.bf16.msra.mxu0 %v3870
      %3877 = vmatprep.subr.bf16.mxu0 0
      %3878 = vmatpush1.bf16.msra.mxu0 0
      %3879 = vmatprep.subr.bf16.mxu0 0
      %3880 = vmatpush1.bf16.msra.mxu0 0
      %3881 = vmatprep.subr.bf16.mxu0 0
      %3882 = vmatpush1.bf16.msra.mxu0 0
      %3883 = vmatprep.subr.bf16.mxu0 0
      %3884 = vmatpush1.bf16.msra.mxu0 0
      %3885 = vmatprep.subr.bf16.mxu0 0
      %3886 = vmatpush1.bf16.msra.mxu0 0
      %3887 = vmatprep.subr.bf16.mxu0 0
      %3888 = vmatpush1.bf16.msra.mxu0 0
      %3889 = vmatprep.subr.bf16.mxu0 0
      %3890 = vmatpush1.bf16.msra.mxu0 0
      %3891 = vmatprep.subr.bf16.mxu0 0
      %3892 = vmatpush1.bf16.msra.mxu0 0
      %3893 = vmatprep.subr.bf16.mxu0 0
      %3894 = vmatpush1.bf16.msra.mxu0 0
      %3895 = vmatprep.subr.bf16.mxu0 0
      %3896 = vmatpush1.bf16.msra.mxu0 0
      %3897 = vmatprep.subr.bf16.mxu0 0
      %3898 = vmatpush1.bf16.msra.mxu0 0
      %3899 = vmatprep.subr.bf16.mxu0 0
      %3900 = vmatpush1.bf16.msra.mxu0 0
      %3901 = vmatprep.subr.bf16.mxu0 0
      %3902 = vmatpush1.bf16.msra.mxu0 0
      %3903 = vmatprep.subr.bf16.mxu0 0
      %3904 = vmatpush1.bf16.msra.mxu0 0
      %3905 = vmatprep.subr.bf16.mxu0 0
      %3906 = vmatpush1.bf16.msra.mxu0 0
      %3907 = vmatprep.mubr.bf16.mxu0 0
      %3908 = vmatmul.mubr.bf16.gmra.mrb[0].mxu0 %v3873
      %v3909 = vpop.f32.mrb[0].mxu0
      %v3910 = vadd.f32 0.0, %v3909
      %v3911 = vpop.f32.mrb[0].mxu0
      %v3912 = vpop.f32.mrb[0].mxu0
      %v3913 = vadd.f32 0.0, %v3912
      %v3914 = vpop.f32.mrb[0].mxu0
      %3915 = vdwg.mxu0
      %v3916 = vadd.f32 %v3838, %v3910
      %v3917 = vadd.f32 %v3839, %v3913
      %v3918 = vld [vmem:[%s1259] sm:$0xf]
      %v3919 = vld [vmem:[%s1259 + $0x4] sm:$0xf]
      %v3920 = vld [vmem:[%s1259 + $0x8] sm:$0x1]
      %s3921 = scalar_lea.vmem %s1297, 304
      %v3922 = vld [vmem:[%s3921] sm:$0xf]
      %v3923 = vld [vmem:[%s3921 + $0x4] sm:$0xf]
      %v3927 = vunpack.c.l.b16 %v3918
      %v3928 = vunpack.c.l.b16 %v3919
      %v3929 = vunpack.c.l.b16 %v3920
      %v3930 = vpack.c.b16 %v3928, %v3927
      %v3931 = vpack.c.b16 %v3929, %v3929
      %v3933 = vshrl.u32 %v3930, 16
      %v3935 = vshll.u32 %v3930, 16
      %v3937 = vrot.slane %v3935, 1
      %v3938 = vor.u32 %v3933, %v3937
      %v3940 = vshll.u32 %v3931, 16
      %v3942 = vrot.slane %v3940, 1
      %v3943 = vsel %vm1451, %v3938, %v3942
      %v3946 = vunpack.c.l.b16 %v3922
      %v3947 = vunpack.c.l.b16 %v3923
      %v3948 = vpack.c.b16 %v3947, %v3946
      %v3951 = vsel %vm1337, %v3943, 0
      %3953 = vmatprep.subr.bf16.mxu0 0
      %3954 = vmatpush1.bf16.msra.mxu0 %v3948
      %3955 = vmatprep.subr.bf16.mxu0 0
      %3956 = vmatpush1.bf16.msra.mxu0 0
      %3957 = vmatprep.subr.bf16.mxu0 0
      %3958 = vmatpush1.bf16.msra.mxu0 0
      %3959 = vmatprep.subr.bf16.mxu0 0
      %3960 = vmatpush1.bf16.msra.mxu0 0
      %3961 = vmatprep.subr.bf16.mxu0 0
      %3962 = vmatpush1.bf16.msra.mxu0 0
      %3963 = vmatprep.subr.bf16.mxu0 0
      %3964 = vmatpush1.bf16.msra.mxu0 0
      %3965 = vmatprep.subr.bf16.mxu0 0
      %3966 = vmatpush1.bf16.msra.mxu0 0
      %3967 = vmatprep.subr.bf16.mxu0 0
      %3968 = vmatpush1.bf16.msra.mxu0 0
      %3969 = vmatprep.subr.bf16.mxu0 0
      %3970 = vmatpush1.bf16.msra.mxu0 0
      %3971 = vmatprep.subr.bf16.mxu0 0
      %3972 = vmatpush1.bf16.msra.mxu0 0
      %3973 = vmatprep.subr.bf16.mxu0 0
      %3974 = vmatpush1.bf16.msra.mxu0 0
      %3975 = vmatprep.subr.bf16.mxu0 0
      %3976 = vmatpush1.bf16.msra.mxu0 0
      %3977 = vmatprep.subr.bf16.mxu0 0
      %3978 = vmatpush1.bf16.msra.mxu0 0
      %3979 = vmatprep.subr.bf16.mxu0 0
      %3980 = vmatpush1.bf16.msra.mxu0 0
      %3981 = vmatprep.subr.bf16.mxu0 0
      %3982 = vmatpush1.bf16.msra.mxu0 0
      %3983 = vmatprep.subr.bf16.mxu0 0
      %3984 = vmatpush1.bf16.msra.mxu0 0
      %3985 = vmatprep.mubr.bf16.mxu0 0
      %3986 = vmatmul.mubr.bf16.gmra.mrb[0].mxu0 %v3951
      %v3987 = vpop.f32.mrb[0].mxu0
      %v3988 = vadd.f32 0.0, %v3987
      %v3989 = vpop.f32.mrb[0].mxu0
      %v3990 = vpop.f32.mrb[0].mxu0
      %v3991 = vadd.f32 0.0, %v3990
      %v3992 = vpop.f32.mrb[0].mxu0
      %3993 = vdwg.mxu0
      %v3994 = vadd.f32 %v3916, %v3988
      %v3995 = vadd.f32 %v3917, %v3991
      %v3996 = vld [vmem:[%s1244] sm:$0xe]
      %s3997 = scalar_lea.vmem %s1297, 312
      %v3998 = vld [vmem:[%s3997] sm:$0xf]
      %v3999 = vld [vmem:[%s3997 + $0x4] sm:$0xf]
      %v4001 = vunpack.c.l.b16 %v3996
      %v4002 = vpack.c.b16 %v3850, %v4001
      %v4003 = vrot.slane %v4002, 1
      %v4004 = vrot.slane %v3853, 1
      %v4005 = vsel %vm1601, %v4003, %v4004
      %v4008 = vunpack.c.l.b16 %v3998
      %v4009 = vunpack.c.l.b16 %v3999
      %v4010 = vpack.c.b16 %v4009, %v4008
      %v4013 = vsel %vm1337, %v4005, 0
      %4015 = vmatprep.subr.bf16.mxu0 0
      %4016 = vmatpush1.bf16.msra.mxu0 %v4010
      %4017 = vmatprep.subr.bf16.mxu0 0
      %4018 = vmatpush1.bf16.msra.mxu0 0
      %4019 = vmatprep.subr.bf16.mxu0 0
      %4020 = vmatpush1.bf16.msra.mxu0 0
      %4021 = vmatprep.subr.bf16.mxu0 0
      %4022 = vmatpush1.bf16.msra.mxu0 0
      %4023 = vmatprep.subr.bf16.mxu0 0
      %4024 = vmatpush1.bf16.msra.mxu0 0
      %4025 = vmatprep.subr.bf16.mxu0 0
      %4026 = vmatpush1.bf16.msra.mxu0 0
      %4027 = vmatprep.subr.bf16.mxu0 0
      %4028 = vmatpush1.bf16.msra.mxu0 0
      %4029 = vmatprep.subr.bf16.mxu0 0
      %4030 = vmatpush1.bf16.msra.mxu0 0
      %4031 = vmatprep.subr.bf16.mxu0 0
      %4032 = vmatpush1.bf16.msra.mxu0 0
      %4033 = vmatprep.subr.bf16.mxu0 0
      %4034 = vmatpush1.bf16.msra.mxu0 0
      %4035 = vmatprep.subr.bf16.mxu0 0
      %4036 = vmatpush1.bf16.msra.mxu0 0
      %4037 = vmatprep.subr.bf16.mxu0 0
      %4038 = vmatpush1.bf16.msra.mxu0 0
      %4039 = vmatprep.subr.bf16.mxu0 0
      %4040 = vmatpush1.bf16.msra.mxu0 0
      %4041 = vmatprep.subr.bf16.mxu0 0
      %4042 = vmatpush1.bf16.msra.mxu0 0
      %4043 = vmatprep.subr.bf16.mxu0 0
      %4044 = vmatpush1.bf16.msra.mxu0 0
      %4045 = vmatprep.subr.bf16.mxu0 0
      %4046 = vmatpush1.bf16.msra.mxu0 0
      %4047 = vmatprep.mubr.bf16.mxu0 0
      %4048 = vmatmul.mubr.bf16.gmra.mrb[0].mxu0 %v4013
      %v4049 = vpop.f32.mrb[0].mxu0
      %v4050 = vadd.f32 0.0, %v4049
      %v4051 = vpop.f32.mrb[0].mxu0
      %v4052 = vpop.f32.mrb[0].mxu0
      %v4053 = vadd.f32 0.0, %v4052
      %v4054 = vpop.f32.mrb[0].mxu0
      %4055 = vdwg.mxu0
      %v4056 = vadd.f32 %v3994, %v4050
      %v4057 = vadd.f32 %v3995, %v4053
      %v4058 = vld [vmem:[%s1259] sm:$0xe]
      %s4059 = scalar_lea.vmem %s1297, 320
      %v4060 = vld [vmem:[%s4059] sm:$0xf]
      %v4061 = vld [vmem:[%s4059 + $0x4] sm:$0xf]
      %v4063 = vunpack.c.l.b16 %v4058
      %v4064 = vpack.c.b16 %v3928, %v4063
      %v4065 = vrot.slane %v4064, 1
      %v4066 = vrot.slane %v3931, 1
      %v4067 = vsel %vm1601, %v4065, %v4066
      %v4070 = vunpack.c.l.b16 %v4060
      %v4071 = vunpack.c.l.b16 %v4061
      %v4072 = vpack.c.b16 %v4071, %v4070
      %v4075 = vsel %vm1337, %v4067, 0
      %4077 = vmatprep.subr.bf16.mxu0 0
      %4078 = vmatpush1.bf16.msra.mxu0 %v4072
      %4079 = vmatprep.subr.bf16.mxu0 0
      %4080 = vmatpush1.bf16.msra.mxu0 0
      %4081 = vmatprep.subr.bf16.mxu0 0
      %4082 = vmatpush1.bf16.msra.mxu0 0
      %4083 = vmatprep.subr.bf16.mxu0 0
      %4084 = vmatpush1.bf16.msra.mxu0 0
      %4085 = vmatprep.subr.bf16.mxu0 0
      %4086 = vmatpush1.bf16.msra.mxu0 0
      %4087 = vmatprep.subr.bf16.mxu0 0
      %4088 = vmatpush1.bf16.msra.mxu0 0
      %4089 = vmatprep.subr.bf16.mxu0 0
      %4090 = vmatpush1.bf16.msra.mxu0 0
      %4091 = vmatprep.subr.bf16.mxu0 0
      %4092 = vmatpush1.bf16.msra.mxu0 0
      %4093 = vmatprep.subr.bf16.mxu0 0
      %4094 = vmatpush1.bf16.msra.mxu0 0
      %4095 = vmatprep.subr.bf16.mxu0 0
      %4096 = vmatpush1.bf16.msra.mxu0 0
      %4097 = vmatprep.subr.bf16.mxu0 0
      %4098 = vmatpush1.bf16.msra.mxu0 0
      %4099 = vmatprep.subr.bf16.mxu0 0
      %4100 = vmatpush1.bf16.msra.mxu0 0
      %4101 = vmatprep.subr.bf16.mxu0 0
      %4102 = vmatpush1.bf16.msra.mxu0 0
      %4103 = vmatprep.subr.bf16.mxu0 0
      %4104 = vmatpush1.bf16.msra.mxu0 0
      %4105 = vmatprep.subr.bf16.mxu0 0
      %4106 = vmatpush1.bf16.msra.mxu0 0
      %4107 = vmatprep.subr.bf16.mxu0 0
      %4108 = vmatpush1.bf16.msra.mxu0 0
      %4109 = vmatprep.mubr.bf16.mxu0 0
      %4110 = vmatmul.mubr.bf16.gmra.mrb[0].mxu0 %v4075
      %v4111 = vpop.f32.mrb[0].mxu0
      %v4112 = vadd.f32 0.0, %v4111
      %v4113 = vpop.f32.mrb[0].mxu0
      %v4114 = vpop.f32.mrb[0].mxu0
      %v4115 = vadd.f32 0.0, %v4114
      %v4116 = vpop.f32.mrb[0].mxu0
      %4117 = vdwg.mxu0
      %v4118 = vadd.f32 %v4056, %v4112
      %v4119 = vadd.f32 %v4057, %v4115
      %v4120 = vld [vmem:[%s1244 + $0x8] sm:$0x3]
      %s4121 = scalar_lea.vmem %s1297, 328
      %v4122 = vld [vmem:[%s4121] sm:$0xf]
      %v4123 = vld [vmem:[%s4121 + $0x4] sm:$0xf]
      %v4125 = vunpack.c.l.b16 %v4120
      %v4126 = vpack.c.b16 %v4125, %v4125
      %v4128 = vshrl.u32 %v4002, 16
      %v4130 = vrot.slane %v4128, 1
      %v4131 = vshll.u32 %v4002, 16
      %v4133 = vrot.slane %v4131, 2
      %v4134 = vor.u32 %v4130, %v4133
      %v4136 = vshrl.u32 %v4126, 16
      %v4138 = vrot.slane %v4136, 1
      %v4139 = vshll.u32 %v4126, 16
      %v4141 = vrot.slane %v4139, 2
      %v4142 = vor.u32 %v4138, %v4141
      %v4143 = vsel %vm1726, %v4134, %v4142
      %v4146 = vunpack.c.l.b16 %v4122
      %v4147 = vunpack.c.l.b16 %v4123
      %v4148 = vpack.c.b16 %v4147, %v4146
      %v4151 = vsel %vm1337, %v4143, 0
      %4153 = vmatprep.subr.bf16.mxu0 0
      %4154 = vmatpush1.bf16.msra.mxu0 %v4148
      %4155 = vmatprep.subr.bf16.mxu0 0
      %4156 = vmatpush1.bf16.msra.mxu0 0
      %4157 = vmatprep.subr.bf16.mxu0 0
      %4158 = vmatpush1.bf16.msra.mxu0 0
      %4159 = vmatprep.subr.bf16.mxu0 0
      %4160 = vmatpush1.bf16.msra.mxu0 0
      %4161 = vmatprep.subr.bf16.mxu0 0
      %4162 = vmatpush1.bf16.msra.mxu0 0
      %4163 = vmatprep.subr.bf16.mxu0 0
      %4164 = vmatpush1.bf16.msra.mxu0 0
      %4165 = vmatprep.subr.bf16.mxu0 0
      %4166 = vmatpush1.bf16.msra.mxu0 0
      %4167 = vmatprep.subr.bf16.mxu0 0
      %4168 = vmatpush1.bf16.msra.mxu0 0
      %4169 = vmatprep.subr.bf16.mxu0 0
      %4170 = vmatpush1.bf16.msra.mxu0 0
      %4171 = vmatprep.subr.bf16.mxu0 0
      %4172 = vmatpush1.bf16.msra.mxu0 0
      %4173 = vmatprep.subr.bf16.mxu0 0
      %4174 = vmatpush1.bf16.msra.mxu0 0
      %4175 = vmatprep.subr.bf16.mxu0 0
      %4176 = vmatpush1.bf16.msra.mxu0 0
      %4177 = vmatprep.subr.bf16.mxu0 0
      %4178 = vmatpush1.bf16.msra.mxu0 0
      %4179 = vmatprep.subr.bf16.mxu0 0
      %4180 = vmatpush1.bf16.msra.mxu0 0
      %4181 = vmatprep.subr.bf16.mxu0 0
      %4182 = vmatpush1.bf16.msra.mxu0 0
      %4183 = vmatprep.subr.bf16.mxu0 0
      %4184 = vmatpush1.bf16.msra.mxu0 0
      %4185 = vmatprep.mubr.bf16.mxu0 0
      %4186 = vmatmul.mubr.bf16.gmra.mrb[0].mxu0 %v4151
      %v4187 = vpop.f32.mrb[0].mxu0
      %v4188 = vadd.f32 0.0, %v4187
      %v4189 = vpop.f32.mrb[0].mxu0
      %v4190 = vpop.f32.mrb[0].mxu0
      %v4191 = vadd.f32 0.0, %v4190
      %v4192 = vpop.f32.mrb[0].mxu0
      %4193 = vdwg.mxu0
      %v4194 = vadd.f32 %v4118, %v4188
      %v4195 = vadd.f32 %v4119, %v4191
      %v4196 = vld [vmem:[%s1274] sm:$0xf]
      %v4197 = vld [vmem:[%s1274 + $0x4] sm:$0xf]
      %s4198 = scalar_lea.vmem %s1297, 336
      %v4199 = vld [vmem:[%s4198] sm:$0xf]
      %v4200 = vld [vmem:[%s4198 + $0x4] sm:$0xf]
      %v4203 = vunpack.c.l.b16 %v4196
      %v4204 = vunpack.c.l.b16 %v4197
      %v4205 = vpack.c.b16 %v4204, %v4203
      %v4208 = vunpack.c.l.b16 %v4199
      %v4209 = vunpack.c.l.b16 %v4200
      %v4210 = vpack.c.b16 %v4209, %v4208
      %v4213 = vsel %vm1337, %v4205, 0
      %4215 = vmatprep.subr.bf16.mxu0 0
      %4216 = vmatpush1.bf16.msra.mxu0 %v4210
      %4217 = vmatprep.subr.bf16.mxu0 0
      %4218 = vmatpush1.bf16.msra.mxu0 0
      %4219 = vmatprep.subr.bf16.mxu0 0
      %4220 = vmatpush1.bf16.msra.mxu0 0
      %4221 = vmatprep.subr.bf16.mxu0 0
      %4222 = vmatpush1.bf16.msra.mxu0 0
      %4223 = vmatprep.subr.bf16.mxu0 0
      %4224 = vmatpush1.bf16.msra.mxu0 0
      %4225 = vmatprep.subr.bf16.mxu0 0
      %4226 = vmatpush1.bf16.msra.mxu0 0
      %4227 = vmatprep.subr.bf16.mxu0 0
      %4228 = vmatpush1.bf16.msra.mxu0 0
      %4229 = vmatprep.subr.bf16.mxu0 0
      %4230 = vmatpush1.bf16.msra.mxu0 0
      %4231 = vmatprep.subr.bf16.mxu0 0
      %4232 = vmatpush1.bf16.msra.mxu0 0
      %4233 = vmatprep.subr.bf16.mxu0 0
      %4234 = vmatpush1.bf16.msra.mxu0 0
      %4235 = vmatprep.subr.bf16.mxu0 0
      %4236 = vmatpush1.bf16.msra.mxu0 0
      %4237 = vmatprep.subr.bf16.mxu0 0
      %4238 = vmatpush1.bf16.msra.mxu0 0
      %4239 = vmatprep.subr.bf16.mxu0 0
      %4240 = vmatpush1.bf16.msra.mxu0 0
      %4241 = vmatprep.subr.bf16.mxu0 0
      %4242 = vmatpush1.bf16.msra.mxu0 0
      %4243 = vmatprep.subr.bf16.mxu0 0
      %4244 = vmatpush1.bf16.msra.mxu0 0
      %4245 = vmatprep.subr.bf16.mxu0 0
      %4246 = vmatpush1.bf16.msra.mxu0 0
      %4247 = vmatprep.mubr.bf16.mxu0 0
      %4248 = vmatmul.mubr.bf16.gmra.mrb[0].mxu0 %v4213
      %v4249 = vpop.f32.mrb[0].mxu0
      %v4250 = vadd.f32 0.0, %v4249
      %v4251 = vpop.f32.mrb[0].mxu0
      %v4252 = vpop.f32.mrb[0].mxu0
      %v4253 = vadd.f32 0.0, %v4252
      %v4254 = vpop.f32.mrb[0].mxu0
      %4255 = vdwg.mxu0
      %v4256 = vadd.f32 %v4194, %v4250
      %v4257 = vadd.f32 %v4195, %v4253
      %v4258 = vld [vmem:[%s1289] sm:$0xf]
      %v4259 = vld [vmem:[%s1289 + $0x4] sm:$0xf]
      %s4260 = scalar_lea.vmem %s1297, 344
      %v4261 = vld [vmem:[%s4260] sm:$0xf]
      %v4262 = vld [vmem:[%s4260 + $0x4] sm:$0xf]
      %v4265 = vunpack.c.l.b16 %v4258
      %v4266 = vunpack.c.l.b16 %v4259
      %v4267 = vpack.c.b16 %v4266, %v4265
      %v4270 = vunpack.c.l.b16 %v4261
      %v4271 = vunpack.c.l.b16 %v4262
      %v4272 = vpack.c.b16 %v4271, %v4270
      %v4275 = vsel %vm1337, %v4267, 0
      %4277 = vmatprep.subr.bf16.mxu0 0
      %4278 = vmatpush1.bf16.msra.mxu0 %v4272
      %4279 = vmatprep.subr.bf16.mxu0 0
      %4280 = vmatpush1.bf16.msra.mxu0 0
      %4281 = vmatprep.subr.bf16.mxu0 0
      %4282 = vmatpush1.bf16.msra.mxu0 0
      %4283 = vmatprep.subr.bf16.mxu0 0
      %4284 = vmatpush1.bf16.msra.mxu0 0
      %4285 = vmatprep.subr.bf16.mxu0 0
      %4286 = vmatpush1.bf16.msra.mxu0 0
      %4287 = vmatprep.subr.bf16.mxu0 0
      %4288 = vmatpush1.bf16.msra.mxu0 0
      %4289 = vmatprep.subr.bf16.mxu0 0
      %4290 = vmatpush1.bf16.msra.mxu0 0
      %4291 = vmatprep.subr.bf16.mxu0 0
      %4292 = vmatpush1.bf16.msra.mxu0 0
      %4293 = vmatprep.subr.bf16.mxu0 0
      %4294 = vmatpush1.bf16.msra.mxu0 0
      %4295 = vmatprep.subr.bf16.mxu0 0
      %4296 = vmatpush1.bf16.msra.mxu0 0
      %4297 = vmatprep.subr.bf16.mxu0 0
      %4298 = vmatpush1.bf16.msra.mxu0 0
      %4299 = vmatprep.subr.bf16.mxu0 0
      %4300 = vmatpush1.bf16.msra.mxu0 0
      %4301 = vmatprep.subr.bf16.mxu0 0
      %4302 = vmatpush1.bf16.msra.mxu0 0
      %4303 = vmatprep.subr.bf16.mxu0 0
      %4304 = vmatpush1.bf16.msra.mxu0 0
      %4305 = vmatprep.subr.bf16.mxu0 0
      %4306 = vmatpush1.bf16.msra.mxu0 0
      %4307 = vmatprep.subr.bf16.mxu0 0
      %4308 = vmatpush1.bf16.msra.mxu0 0
      %4309 = vmatprep.mubr.bf16.mxu0 0
      %4310 = vmatmul.mubr.bf16.gmra.mrb[0].mxu0 %v4275
      %v4311 = vpop.f32.mrb[0].mxu0
      %v4312 = vadd.f32 0.0, %v4311
      %v4313 = vpop.f32.mrb[0].mxu0
      %v4314 = vpop.f32.mrb[0].mxu0
      %v4315 = vadd.f32 0.0, %v4314
      %v4316 = vpop.f32.mrb[0].mxu0
      %4317 = vdwg.mxu0
      %v4318 = vadd.f32 %v4256, %v4312
      %v4319 = vadd.f32 %v4257, %v4315
      %v4320 = vld [vmem:[%s1274] sm:$0xf]
      %v4321 = vld [vmem:[%s1274 + $0x4] sm:$0xf]
      %v4322 = vld [vmem:[%s1274 + $0x8] sm:$0x1]
      %s4323 = scalar_lea.vmem %s1297, 352
      %v4324 = vld [vmem:[%s4323] sm:$0xf]
      %v4325 = vld [vmem:[%s4323 + $0x4] sm:$0xf]
      %v4329 = vunpack.c.l.b16 %v4320
      %v4330 = vunpack.c.l.b16 %v4321
      %v4331 = vunpack.c.l.b16 %v4322
      %v4332 = vpack.c.b16 %v4330, %v4329
      %v4333 = vpack.c.b16 %v4331, %v4331
      %v4335 = vshrl.u32 %v4332, 16
      %v4337 = vshll.u32 %v4332, 16
      %v4339 = vrot.slane %v4337, 1
      %v4340 = vor.u32 %v4335, %v4339
      %v4342 = vshll.u32 %v4333, 16
      %v4344 = vrot.slane %v4342, 1
      %v4345 = vsel %vm1451, %v4340, %v4344
      %v4348 = vunpack.c.l.b16 %v4324
      %v4349 = vunpack.c.l.b16 %v4325
      %v4350 = vpack.c.b16 %v4349, %v4348
      %v4353 = vsel %vm1337, %v4345, 0
      %4355 = vmatprep.subr.bf16.mxu0 0
      %4356 = vmatpush1.bf16.msra.mxu0 %v4350
      %4357 = vmatprep.subr.bf16.mxu0 0
      %4358 = vmatpush1.bf16.msra.mxu0 0
      %4359 = vmatprep.subr.bf16.mxu0 0
      %4360 = vmatpush1.bf16.msra.mxu0 0
      %4361 = vmatprep.subr.bf16.mxu0 0
      %4362 = vmatpush1.bf16.msra.mxu0 0
      %4363 = vmatprep.subr.bf16.mxu0 0
      %4364 = vmatpush1.bf16.msra.mxu0 0
      %4365 = vmatprep.subr.bf16.mxu0 0
      %4366 = vmatpush1.bf16.msra.mxu0 0
      %4367 = vmatprep.subr.bf16.mxu0 0
      %4368 = vmatpush1.bf16.msra.mxu0 0
      %4369 = vmatprep.subr.bf16.mxu0 0
      %4370 = vmatpush1.bf16.msra.mxu0 0
      %4371 = vmatprep.subr.bf16.mxu0 0
      %4372 = vmatpush1.bf16.msra.mxu0 0
      %4373 = vmatprep.subr.bf16.mxu0 0
      %4374 = vmatpush1.bf16.msra.mxu0 0
      %4375 = vmatprep.subr.bf16.mxu0 0
      %4376 = vmatpush1.bf16.msra.mxu0 0
      %4377 = vmatprep.subr.bf16.mxu0 0
      %4378 = vmatpush1.bf16.msra.mxu0 0
      %4379 = vmatprep.subr.bf16.mxu0 0
      %4380 = vmatpush1.bf16.msra.mxu0 0
      %4381 = vmatprep.subr.bf16.mxu0 0
      %4382 = vmatpush1.bf16.msra.mxu0 0
      %4383 = vmatprep.subr.bf16.mxu0 0
      %4384 = vmatpush1.bf16.msra.mxu0 0
      %4385 = vmatprep.subr.bf16.mxu0 0
      %4386 = vmatpush1.bf16.msra.mxu0 0
      %4387 = vmatprep.mubr.bf16.mxu0 0
      %4388 = vmatmul.mubr.bf16.gmra.mrb[0].mxu0 %v4353
      %v4389 = vpop.f32.mrb[0].mxu0
      %v4390 = vadd.f32 0.0, %v4389
      %v4391 = vpop.f32.mrb[0].mxu0
      %v4392 = vpop.f32.mrb[0].mxu0
      %v4393 = vadd.f32 0.0, %v4392
      %v4394 = vpop.f32.mrb[0].mxu0
      %4395 = vdwg.mxu0
      %v4396 = vadd.f32 %v4318, %v4390
      %v4397 = vadd.f32 %v4319, %v4393
      %v4398 = vld [vmem:[%s1289] sm:$0xf]
      %v4399 = vld [vmem:[%s1289 + $0x4] sm:$0xf]
      %v4400 = vld [vmem:[%s1289 + $0x8] sm:$0x1]
      %s4401 = scalar_lea.vmem %s1297, 360
      %v4402 = vld [vmem:[%s4401] sm:$0xf]
      %v4403 = vld [vmem:[%s4401 + $0x4] sm:$0xf]
      %v4407 = vunpack.c.l.b16 %v4398
      %v4408 = vunpack.c.l.b16 %v4399
      %v4409 = vunpack.c.l.b16 %v4400
      %v4410 = vpack.c.b16 %v4408, %v4407
      %v4411 = vpack.c.b16 %v4409, %v4409
      %v4413 = vshrl.u32 %v4410, 16
      %v4415 = vshll.u32 %v4410, 16
      %v4417 = vrot.slane %v4415, 1
      %v4418 = vor.u32 %v4413, %v4417
      %v4420 = vshll.u32 %v4411, 16
      %v4422 = vrot.slane %v4420, 1
      %v4423 = vsel %vm1451, %v4418, %v4422
      %v4426 = vunpack.c.l.b16 %v4402
      %v4427 = vunpack.c.l.b16 %v4403
      %v4428 = vpack.c.b16 %v4427, %v4426
      %v4431 = vsel %vm1337, %v4423, 0
      %4433 = vmatprep.subr.bf16.mxu0 0
      %4434 = vmatpush1.bf16.msra.mxu0 %v4428
      %4435 = vmatprep.subr.bf16.mxu0 0
      %4436 = vmatpush1.bf16.msra.mxu0 0
      %4437 = vmatprep.subr.bf16.mxu0 0
      %4438 = vmatpush1.bf16.msra.mxu0 0
      %4439 = vmatprep.subr.bf16.mxu0 0
      %4440 = vmatpush1.bf16.msra.mxu0 0
      %4441 = vmatprep.subr.bf16.mxu0 0
      %4442 = vmatpush1.bf16.msra.mxu0 0
      %4443 = vmatprep.subr.bf16.mxu0 0
      %4444 = vmatpush1.bf16.msra.mxu0 0
      %4445 = vmatprep.subr.bf16.mxu0 0
      %4446 = vmatpush1.bf16.msra.mxu0 0
      %4447 = vmatprep.subr.bf16.mxu0 0
      %4448 = vmatpush1.bf16.msra.mxu0 0
      %4449 = vmatprep.subr.bf16.mxu0 0
      %4450 = vmatpush1.bf16.msra.mxu0 0
      %4451 = vmatprep.subr.bf16.mxu0 0
      %4452 = vmatpush1.bf16.msra.mxu0 0
      %4453 = vmatprep.subr.bf16.mxu0 0
      %4454 = vmatpush1.bf16.msra.mxu0 0
      %4455 = vmatprep.subr.bf16.mxu0 0
      %4456 = vmatpush1.bf16.msra.mxu0 0
      %4457 = vmatprep.subr.bf16.mxu0 0
      %4458 = vmatpush1.bf16.msra.mxu0 0
      %4459 = vmatprep.subr.bf16.mxu0 0
      %4460 = vmatpush1.bf16.msra.mxu0 0
      %4461 = vmatprep.subr.bf16.mxu0 0
      %4462 = vmatpush1.bf16.msra.mxu0 0
      %4463 = vmatprep.subr.bf16.mxu0 0
      %4464 = vmatpush1.bf16.msra.mxu0 0
      %4465 = vmatprep.mubr.bf16.mxu0 0
      %4466 = vmatmul.mubr.bf16.gmra.mrb[0].mxu0 %v4431
      %v4467 = vpop.f32.mrb[0].mxu0
      %v4468 = vadd.f32 0.0, %v4467
      %v4469 = vpop.f32.mrb[0].mxu0
      %v4470 = vpop.f32.mrb[0].mxu0
      %v4471 = vadd.f32 0.0, %v4470
      %v4472 = vpop.f32.mrb[0].mxu0
      %4473 = vdwg.mxu0
      %v4474 = vadd.f32 %v4396, %v4468
      %v4475 = vadd.f32 %v4397, %v4471
      %v4476 = vld [vmem:[%s1274] sm:$0xe]
      %s4477 = scalar_lea.vmem %s1297, 368
      %v4478 = vld [vmem:[%s4477] sm:$0xf]
      %v4479 = vld [vmem:[%s4477 + $0x4] sm:$0xf]
      %v4481 = vunpack.c.l.b16 %v4476
      %v4482 = vpack.c.b16 %v4330, %v4481
      %v4483 = vrot.slane %v4482, 1
      %v4484 = vrot.slane %v4333, 1
      %v4485 = vsel %vm1601, %v4483, %v4484
      %v4488 = vunpack.c.l.b16 %v4478
      %v4489 = vunpack.c.l.b16 %v4479
      %v4490 = vpack.c.b16 %v4489, %v4488
      %v4493 = vsel %vm1337, %v4485, 0
      %4495 = vmatprep.subr.bf16.mxu0 0
      %4496 = vmatpush1.bf16.msra.mxu0 %v4490
      %4497 = vmatprep.subr.bf16.mxu0 0
      %4498 = vmatpush1.bf16.msra.mxu0 0
      %4499 = vmatprep.subr.bf16.mxu0 0
      %4500 = vmatpush1.bf16.msra.mxu0 0
      %4501 = vmatprep.subr.bf16.mxu0 0
      %4502 = vmatpush1.bf16.msra.mxu0 0
      %4503 = vmatprep.subr.bf16.mxu0 0
      %4504 = vmatpush1.bf16.msra.mxu0 0
      %4505 = vmatprep.subr.bf16.mxu0 0
      %4506 = vmatpush1.bf16.msra.mxu0 0
      %4507 = vmatprep.subr.bf16.mxu0 0
      %4508 = vmatpush1.bf16.msra.mxu0 0
      %4509 = vmatprep.subr.bf16.mxu0 0
      %4510 = vmatpush1.bf16.msra.mxu0 0
      %4511 = vmatprep.subr.bf16.mxu0 0
      %4512 = vmatpush1.bf16.msra.mxu0 0
      %4513 = vmatprep.subr.bf16.mxu0 0
      %4514 = vmatpush1.bf16.msra.mxu0 0
      %4515 = vmatprep.subr.bf16.mxu0 0
      %4516 = vmatpush1.bf16.msra.mxu0 0
      %4517 = vmatprep.subr.bf16.mxu0 0
      %4518 = vmatpush1.bf16.msra.mxu0 0
      %4519 = vmatprep.subr.bf16.mxu0 0
      %4520 = vmatpush1.bf16.msra.mxu0 0
      %4521 = vmatprep.subr.bf16.mxu0 0
      %4522 = vmatpush1.bf16.msra.mxu0 0
      %4523 = vmatprep.subr.bf16.mxu0 0
      %4524 = vmatpush1.bf16.msra.mxu0 0
      %4525 = vmatprep.subr.bf16.mxu0 0
      %4526 = vmatpush1.bf16.msra.mxu0 0
      %4527 = vmatprep.mubr.bf16.mxu0 0
      %4528 = vmatmul.mubr.bf16.gmra.mrb[0].mxu0 %v4493
      %v4529 = vpop.f32.mrb[0].mxu0
      %v4530 = vadd.f32 0.0, %v4529
      %v4531 = vpop.f32.mrb[0].mxu0
      %v4532 = vpop.f32.mrb[0].mxu0
      %v4533 = vadd.f32 0.0, %v4532
      %v4534 = vpop.f32.mrb[0].mxu0
      %4535 = vdwg.mxu0
      %v4536 = vadd.f32 %v4474, %v4530
      %v4537 = vadd.f32 %v4475, %v4533
      %v4538 = vld [vmem:[%s1289] sm:$0xe]
      %s4539 = scalar_lea.vmem %s1297, 376
      %v4540 = vld [vmem:[%s4539] sm:$0xf]
      %v4541 = vld [vmem:[%s4539 + $0x4] sm:$0xf]
      %v4543 = vunpack.c.l.b16 %v4538
      %v4544 = vpack.c.b16 %v4408, %v4543
      %v4545 = vrot.slane %v4544, 1
      %v4546 = vrot.slane %v4411, 1
      %v4547 = vsel %vm1601, %v4545, %v4546
      %v4550 = vunpack.c.l.b16 %v4540
      %v4551 = vunpack.c.l.b16 %v4541
      %v4552 = vpack.c.b16 %v4551, %v4550
      %v4555 = vsel %vm1337, %v4547, 0
      %4557 = vmatprep.subr.bf16.mxu0 0
      %4558 = vmatpush1.bf16.msra.mxu0 %v4552
      %4559 = vmatprep.subr.bf16.mxu0 0
      %4560 = vmatpush1.bf16.msra.mxu0 0
      %4561 = vmatprep.subr.bf16.mxu0 0
      %4562 = vmatpush1.bf16.msra.mxu0 0
      %4563 = vmatprep.subr.bf16.mxu0 0
      %4564 = vmatpush1.bf16.msra.mxu0 0
      %4565 = vmatprep.subr.bf16.mxu0 0
      %4566 = vmatpush1.bf16.msra.mxu0 0
      %4567 = vmatprep.subr.bf16.mxu0 0
      %4568 = vmatpush1.bf16.msra.mxu0 0
      %4569 = vmatprep.subr.bf16.mxu0 0
      %4570 = vmatpush1.bf16.msra.mxu0 0
      %4571 = vmatprep.subr.bf16.mxu0 0
      %4572 = vmatpush1.bf16.msra.mxu0 0
      %4573 = vmatprep.subr.bf16.mxu0 0
      %4574 = vmatpush1.bf16.msra.mxu0 0
      %4575 = vmatprep.subr.bf16.mxu0 0
      %4576 = vmatpush1.bf16.msra.mxu0 0
      %4577 = vmatprep.subr.bf16.mxu0 0
      %4578 = vmatpush1.bf16.msra.mxu0 0
      %4579 = vmatprep.subr.bf16.mxu0 0
      %4580 = vmatpush1.bf16.msra.mxu0 0
      %4581 = vmatprep.subr.bf16.mxu0 0
      %4582 = vmatpush1.bf16.msra.mxu0 0
      %4583 = vmatprep.subr.bf16.mxu0 0
      %4584 = vmatpush1.bf16.msra.mxu0 0
      %4585 = vmatprep.subr.bf16.mxu0 0
      %4586 = vmatpush1.bf16.msra.mxu0 0
      %4587 = vmatprep.subr.bf16.mxu0 0
      %4588 = vmatpush1.bf16.msra.mxu0 0
      %4589 = vmatprep.mubr.bf16.mxu0 0
      %4590 = vmatmul.mubr.bf16.gmra.mrb[0].mxu0 %v4555
      %v4591 = vpop.f32.mrb[0].mxu0
      %v4592 = vadd.f32 0.0, %v4591
      %v4593 = vpop.f32.mrb[0].mxu0
      %v4594 = vpop.f32.mrb[0].mxu0
      %v4595 = vadd.f32 0.0, %v4594
      %v4596 = vpop.f32.mrb[0].mxu0
      %4597 = vdwg.mxu0
      %v4598 = vadd.f32 %v4536, %v4592
      %v4599 = vadd.f32 %v4537, %v4595
      %v4600 = vld [vmem:[%s1274 + $0x8] sm:$0x3]
      %s4601 = scalar_lea.vmem %s1297, 384
      %v4602 = vld [vmem:[%s4601] sm:$0xf]
      %v4603 = vld [vmem:[%s4601 + $0x4] sm:$0xf]
      %v4605 = vunpack.c.l.b16 %v4600
      %v4606 = vpack.c.b16 %v4605, %v4605
      %v4608 = vshrl.u32 %v4482, 16
      %v4610 = vrot.slane %v4608, 1
      %v4611 = vshll.u32 %v4482, 16
      %v4613 = vrot.slane %v4611, 2
      %v4614 = vor.u32 %v4610, %v4613
      %v4616 = vshrl.u32 %v4606, 16
      %v4618 = vrot.slane %v4616, 1
      %v4619 = vshll.u32 %v4606, 16
      %v4621 = vrot.slane %v4619, 2
      %v4622 = vor.u32 %v4618, %v4621
      %v4623 = vsel %vm1726, %v4614, %v4622
      %v4626 = vunpack.c.l.b16 %v4602
      %v4627 = vunpack.c.l.b16 %v4603
      %v4628 = vpack.c.b16 %v4627, %v4626
      %v4631 = vsel %vm1337, %v4623, 0
      %4633 = vmatprep.subr.bf16.mxu0 0
      %4634 = vmatpush1.bf16.msra.mxu0 %v4628
      %4635 = vmatprep.subr.bf16.mxu0 0
      %4636 = vmatpush1.bf16.msra.mxu0 0
      %4637 = vmatprep.subr.bf16.mxu0 0
      %4638 = vmatpush1.bf16.msra.mxu0 0
      %4639 = vmatprep.subr.bf16.mxu0 0
      %4640 = vmatpush1.bf16.msra.mxu0 0
      %4641 = vmatprep.subr.bf16.mxu0 0
      %4642 = vmatpush1.bf16.msra.mxu0 0
      %4643 = vmatprep.subr.bf16.mxu0 0
      %4644 = vmatpush1.bf16.msra.mxu0 0
      %4645 = vmatprep.subr.bf16.mxu0 0
      %4646 = vmatpush1.bf16.msra.mxu0 0
      %4647 = vmatprep.subr.bf16.mxu0 0
      %4648 = vmatpush1.bf16.msra.mxu0 0
      %4649 = vmatprep.subr.bf16.mxu0 0
      %4650 = vmatpush1.bf16.msra.mxu0 0
      %4651 = vmatprep.subr.bf16.mxu0 0
      %4652 = vmatpush1.bf16.msra.mxu0 0
      %4653 = vmatprep.subr.bf16.mxu0 0
      %4654 = vmatpush1.bf16.msra.mxu0 0
      %4655 = vmatprep.subr.bf16.mxu0 0
      %4656 = vmatpush1.bf16.msra.mxu0 0
      %4657 = vmatprep.subr.bf16.mxu0 0
      %4658 = vmatpush1.bf16.msra.mxu0 0
      %4659 = vmatprep.subr.bf16.mxu0 0
      %4660 = vmatpush1.bf16.msra.mxu0 0
      %4661 = vmatprep.subr.bf16.mxu0 0
      %4662 = vmatpush1.bf16.msra.mxu0 0
      %4663 = vmatprep.subr.bf16.mxu0 0
      %4664 = vmatpush1.bf16.msra.mxu0 0
      %4665 = vmatprep.mubr.bf16.mxu0 0
      %4666 = vmatmul.mubr.bf16.gmra.mrb[0].mxu0 %v4631
      %v4667 = vpop.f32.mrb[0].mxu0
      %v4668 = vadd.f32 0.0, %v4667
      %v4669 = vpop.f32.mrb[0].mxu0
      %v4670 = vpop.f32.mrb[0].mxu0
      %v4671 = vadd.f32 0.0, %v4670
      %v4672 = vpop.f32.mrb[0].mxu0
      %4673 = vdwg.mxu0
      %v4674 = vadd.f32 %v4598, %v4668
      %v4675 = vadd.f32 %v4599, %v4671
      %v4676 = vld [vmem:[#allocation2] sm:$0xff]
      %v4677 = vld [vmem:[#allocation2 + $0x8] sm:$0xff]
      %v4678 = vadd.f32 %v4676, %v4674
      %v4679 = vadd.f32 %v4677, %v4675
      %vm4680 = vcmask 64512
      %4681 = vst.msk [vmem:[#allocation2] sm:$0xff] %vm4680, %v4678
      %4682 = vst.msk [vmem:[#allocation2 + $0x8] sm:$0xff] %vm4680, %v4679
      %s4683 = scalar_lea.vmem %s1097, 12
      %v4684 = vld [vmem:[%s4683] sm:$0xf]
      %v4685 = vld [vmem:[%s4683 + $0x4] sm:$0xf]
      %v4686 = vld [vmem:[%s1297] sm:$0xf]
      %v4687 = vld [vmem:[%s1297 + $0x4] sm:$0xf]
      %s4688 = scalar_lea.vmem %s1110, 12
      %v4689 = vld [vmem:[%s4688] sm:$0xf]
      %v4690 = vld [vmem:[%s4688 + $0x4] sm:$0xf]
      %v4691 = vld [vmem:[%s1323] sm:$0xf]
      %v4692 = vld [vmem:[%s1323 + $0x4] sm:$0xf]
      %v4695 = vunpack.c.l.b16 %v4689
      %v4696 = vunpack.c.l.b16 %v4690
      %v4697 = vpack.c.b16 %v4696, %v4695
      %v4700 = vunpack.c.l.b16 %v4691
      %v4701 = vunpack.c.l.b16 %v4692
      %v4702 = vpack.c.b16 %v4701, %v4700
      %v4705 = vsel %vm1337, %v4697, 0
      %4707 = vmatprep.subr.bf16.mxu0 0
      %4708 = vmatpush1.bf16.msra.mxu0 %v4702
      %4709 = vmatprep.subr.bf16.mxu0 0
      %4710 = vmatpush1.bf16.msra.mxu0 0
      %4711 = vmatprep.subr.bf16.mxu0 0
      %4712 = vmatpush1.bf16.msra.mxu0 0
      %4713 = vmatprep.subr.bf16.mxu0 0
      %4714 = vmatpush1.bf16.msra.mxu0 0
      %4715 = vmatprep.subr.bf16.mxu0 0
      %4716 = vmatpush1.bf16.msra.mxu0 0
      %4717 = vmatprep.subr.bf16.mxu0 0
      %4718 = vmatpush1.bf16.msra.mxu0 0
      %4719 = vmatprep.subr.bf16.mxu0 0
      %4720 = vmatpush1.bf16.msra.mxu0 0
      %4721 = vmatprep.subr.bf16.mxu0 0
      %4722 = vmatpush1.bf16.msra.mxu0 0
      %4723 = vmatprep.subr.bf16.mxu0 0
      %4724 = vmatpush1.bf16.msra.mxu0 0
      %4725 = vmatprep.subr.bf16.mxu0 0
      %4726 = vmatpush1.bf16.msra.mxu0 0
      %4727 = vmatprep.subr.bf16.mxu0 0
      %4728 = vmatpush1.bf16.msra.mxu0 0
      %4729 = vmatprep.subr.bf16.mxu0 0
      %4730 = vmatpush1.bf16.msra.mxu0 0
      %4731 = vmatprep.subr.bf16.mxu0 0
      %4732 = vmatpush1.bf16.msra.mxu0 0
      %4733 = vmatprep.subr.bf16.mxu0 0
      %4734 = vmatpush1.bf16.msra.mxu0 0
      %4735 = vmatprep.subr.bf16.mxu0 0
      %4736 = vmatpush1.bf16.msra.mxu0 0
      %4737 = vmatprep.subr.bf16.mxu0 0
      %4738 = vmatpush1.bf16.msra.mxu0 0
      %4739 = vmatprep.mubr.bf16.mxu0 0
      %4740 = vmatmul.mubr.bf16.gmra.mrb[0].mxu0 %v4705
      %v4741 = vpop.f32.mrb[0].mxu0
      %v4742 = vadd.f32 0.0, %v4741
      %v4743 = vpop.f32.mrb[0].mxu0
      %v4744 = vpop.f32.mrb[0].mxu0
      %v4745 = vadd.f32 0.0, %v4744
      %v4746 = vpop.f32.mrb[0].mxu0
      %4747 = vdwg.mxu0
      %v4750 = vunpack.c.l.b16 %v4684
      %v4751 = vunpack.c.l.b16 %v4685
      %v4752 = vpack.c.b16 %v4751, %v4750
      %v4755 = vunpack.c.l.b16 %v4686
      %v4756 = vunpack.c.l.b16 %v4687
      %v4757 = vpack.c.b16 %v4756, %v4755
      %v4760 = vsel %vm1337, %v4752, 0
      %4762 = vmatprep.subr.bf16.mxu0 0
      %4763 = vmatpush1.bf16.msra.mxu0 %v4757
      %4764 = vmatprep.subr.bf16.mxu0 0
      %4765 = vmatpush1.bf16.msra.mxu0 0
      %4766 = vmatprep.subr.bf16.mxu0 0
      %4767 = vmatpush1.bf16.msra.mxu0 0
      %4768 = vmatprep.subr.bf16.mxu0 0
      %4769 = vmatpush1.bf16.msra.mxu0 0
      %4770 = vmatprep.subr.bf16.mxu0 0
      %4771 = vmatpush1.bf16.msra.mxu0 0
      %4772 = vmatprep.subr.bf16.mxu0 0
      %4773 = vmatpush1.bf16.msra.mxu0 0
      %4774 = vmatprep.subr.bf16.mxu0 0
      %4775 = vmatpush1.bf16.msra.mxu0 0
      %4776 = vmatprep.subr.bf16.mxu0 0
      %4777 = vmatpush1.bf16.msra.mxu0 0
      %4778 = vmatprep.subr.bf16.mxu0 0
      %4779 = vmatpush1.bf16.msra.mxu0 0
      %4780 = vmatprep.subr.bf16.mxu0 0
      %4781 = vmatpush1.bf16.msra.mxu0 0
      %4782 = vmatprep.subr.bf16.mxu0 0
      %4783 = vmatpush1.bf16.msra.mxu0 0
      %4784 = vmatprep.subr.bf16.mxu0 0
      %4785 = vmatpush1.bf16.msra.mxu0 0
      %4786 = vmatprep.subr.bf16.mxu0 0
      %4787 = vmatpush1.bf16.msra.mxu0 0
      %4788 = vmatprep.subr.bf16.mxu0 0
      %4789 = vmatpush1.bf16.msra.mxu0 0
      %4790 = vmatprep.subr.bf16.mxu0 0
      %4791 = vmatpush1.bf16.msra.mxu0 0
      %4792 = vmatprep.subr.bf16.mxu0 0
      %4793 = vmatpush1.bf16.msra.mxu0 0
      %4794 = vmatprep.mubr.bf16.mxu0 0
      %4795 = vmatmul.mubr.bf16.gmra.mrb[0].mxu0 %v4760
      %v4796 = vpop.f32.mrb[0].mxu0
      %v4797 = vadd.f32 %v4742, %v4796
      %v4798 = vpop.f32.mrb[0].mxu0
      %v4799 = vpop.f32.mrb[0].mxu0
      %v4800 = vadd.f32 %v4745, %v4799
      %v4801 = vpop.f32.mrb[0].mxu0
      %4802 = vdwg.mxu0
      %v4803 = vld [vmem:[%s4683] sm:$0xf]
      %v4804 = vld [vmem:[%s4683 + $0x4] sm:$0xf]
      %v4805 = vld [vmem:[%s4683 + $0x8] sm:$0x1]
      %v4806 = vld [vmem:[%s1440] sm:$0xf]
      %v4807 = vld [vmem:[%s1440 + $0x4] sm:$0xf]
      %v4811 = vunpack.c.l.b16 %v4803
      %v4812 = vunpack.c.l.b16 %v4804
      %v4813 = vunpack.c.l.b16 %v4805
      %v4814 = vpack.c.b16 %v4812, %v4811
      %v4815 = vpack.c.b16 %v4813, %v4813
      %v4817 = vshrl.u32 %v4814, 16
      %v4819 = vshll.u32 %v4814, 16
      %v4821 = vrot.slane %v4819, 1
      %v4822 = vor.u32 %v4817, %v4821
      %v4824 = vshll.u32 %v4815, 16
      %v4826 = vrot.slane %v4824, 1
      %v4827 = vsel %vm1451, %v4822, %v4826
      %v4830 = vunpack.c.l.b16 %v4806
      %v4831 = vunpack.c.l.b16 %v4807
      %v4832 = vpack.c.b16 %v4831, %v4830
      %v4835 = vsel %vm1337, %v4827, 0
      %4837 = vmatprep.subr.bf16.mxu0 0
      %4838 = vmatpush1.bf16.msra.mxu0 %v4832
      %4839 = vmatprep.subr.bf16.mxu0 0
      %4840 = vmatpush1.bf16.msra.mxu0 0
      %4841 = vmatprep.subr.bf16.mxu0 0
      %4842 = vmatpush1.bf16.msra.mxu0 0
      %4843 = vmatprep.subr.bf16.mxu0 0
      %4844 = vmatpush1.bf16.msra.mxu0 0
      %4845 = vmatprep.subr.bf16.mxu0 0
      %4846 = vmatpush1.bf16.msra.mxu0 0
      %4847 = vmatprep.subr.bf16.mxu0 0
      %4848 = vmatpush1.bf16.msra.mxu0 0
      %4849 = vmatprep.subr.bf16.mxu0 0
      %4850 = vmatpush1.bf16.msra.mxu0 0
      %4851 = vmatprep.subr.bf16.mxu0 0
      %4852 = vmatpush1.bf16.msra.mxu0 0
      %4853 = vmatprep.subr.bf16.mxu0 0
      %4854 = vmatpush1.bf16.msra.mxu0 0
      %4855 = vmatprep.subr.bf16.mxu0 0
      %4856 = vmatpush1.bf16.msra.mxu0 0
      %4857 = vmatprep.subr.bf16.mxu0 0
      %4858 = vmatpush1.bf16.msra.mxu0 0
      %4859 = vmatprep.subr.bf16.mxu0 0
      %4860 = vmatpush1.bf16.msra.mxu0 0
      %4861 = vmatprep.subr.bf16.mxu0 0
      %4862 = vmatpush1.bf16.msra.mxu0 0
      %4863 = vmatprep.subr.bf16.mxu0 0
      %4864 = vmatpush1.bf16.msra.mxu0 0
      %4865 = vmatprep.subr.bf16.mxu0 0
      %4866 = vmatpush1.bf16.msra.mxu0 0
      %4867 = vmatprep.subr.bf16.mxu0 0
      %4868 = vmatpush1.bf16.msra.mxu0 0
      %4869 = vmatprep.mubr.bf16.mxu0 0
      %4870 = vmatmul.mubr.bf16.gmra.mrb[0].mxu0 %v4835
      %v4871 = vpop.f32.mrb[0].mxu0
      %v4872 = vadd.f32 0.0, %v4871
      %v4873 = vpop.f32.mrb[0].mxu0
      %v4874 = vpop.f32.mrb[0].mxu0
      %v4875 = vadd.f32 0.0, %v4874
      %v4876 = vpop.f32.mrb[0].mxu0
      %4877 = vdwg.mxu0
      %v4878 = vadd.f32 %v4797, %v4872
      %v4879 = vadd.f32 %v4800, %v4875
      %v4880 = vld [vmem:[%s4688] sm:$0xf]
      %v4881 = vld [vmem:[%s4688 + $0x4] sm:$0xf]
      %v4882 = vld [vmem:[%s4688 + $0x8] sm:$0x1]
      %v4883 = vld [vmem:[%s1519] sm:$0xf]
      %v4884 = vld [vmem:[%s1519 + $0x4] sm:$0xf]
      %v4888 = vunpack.c.l.b16 %v4880
      %v4889 = vunpack.c.l.b16 %v4881
      %v4890 = vunpack.c.l.b16 %v4882
      %v4891 = vpack.c.b16 %v4889, %v4888
      %v4892 = vpack.c.b16 %v4890, %v4890
      %v4894 = vshrl.u32 %v4891, 16
      %v4896 = vshll.u32 %v4891, 16
      %v4898 = vrot.slane %v4896, 1
      %v4899 = vor.u32 %v4894, %v4898
      %v4901 = vshll.u32 %v4892, 16
      %v4903 = vrot.slane %v4901, 1
      %v4904 = vsel %vm1451, %v4899, %v4903
      %v4907 = vunpack.c.l.b16 %v4883
      %v4908 = vunpack.c.l.b16 %v4884
      %v4909 = vpack.c.b16 %v4908, %v4907
      %v4912 = vsel %vm1337, %v4904, 0
      %4914 = vmatprep.subr.bf16.mxu0 0
      %4915 = vmatpush1.bf16.msra.mxu0 %v4909
      %4916 = vmatprep.subr.bf16.mxu0 0
      %4917 = vmatpush1.bf16.msra.mxu0 0
      %4918 = vmatprep.subr.bf16.mxu0 0
      %4919 = vmatpush1.bf16.msra.mxu0 0
      %4920 = vmatprep.subr.bf16.mxu0 0
      %4921 = vmatpush1.bf16.msra.mxu0 0
      %4922 = vmatprep.subr.bf16.mxu0 0
      %4923 = vmatpush1.bf16.msra.mxu0 0
      %4924 = vmatprep.subr.bf16.mxu0 0
      %4925 = vmatpush1.bf16.msra.mxu0 0
      %4926 = vmatprep.subr.bf16.mxu0 0
      %4927 = vmatpush1.bf16.msra.mxu0 0
      %4928 = vmatprep.subr.bf16.mxu0 0
      %4929 = vmatpush1.bf16.msra.mxu0 0
      %4930 = vmatprep.subr.bf16.mxu0 0
      %4931 = vmatpush1.bf16.msra.mxu0 0
      %4932 = vmatprep.subr.bf16.mxu0 0
      %4933 = vmatpush1.bf16.msra.mxu0 0
      %4934 = vmatprep.subr.bf16.mxu0 0
      %4935 = vmatpush1.bf16.msra.mxu0 0
      %4936 = vmatprep.subr.bf16.mxu0 0
      %4937 = vmatpush1.bf16.msra.mxu0 0
      %4938 = vmatprep.subr.bf16.mxu0 0
      %4939 = vmatpush1.bf16.msra.mxu0 0
      %4940 = vmatprep.subr.bf16.mxu0 0
      %4941 = vmatpush1.bf16.msra.mxu0 0
      %4942 = vmatprep.subr.bf16.mxu0 0
      %4943 = vmatpush1.bf16.msra.mxu0 0
      %4944 = vmatprep.subr.bf16.mxu0 0
      %4945 = vmatpush1.bf16.msra.mxu0 0
      %4946 = vmatprep.mubr.bf16.mxu0 0
      %4947 = vmatmul.mubr.bf16.gmra.mrb[0].mxu0 %v4912
      %v4948 = vpop.f32.mrb[0].mxu0
      %v4949 = vadd.f32 0.0, %v4948
      %v4950 = vpop.f32.mrb[0].mxu0
      %v4951 = vpop.f32.mrb[0].mxu0
      %v4952 = vadd.f32 0.0, %v4951
      %v4953 = vpop.f32.mrb[0].mxu0
      %4954 = vdwg.mxu0
      %v4955 = vadd.f32 %v4878, %v4949
      %v4956 = vadd.f32 %v4879, %v4952
      %v4957 = vld [vmem:[%s4683] sm:$0xe]
      %v4958 = vld [vmem:[%s1595] sm:$0xf]
      %v4959 = vld [vmem:[%s1595 + $0x4] sm:$0xf]
      %v4961 = vunpack.c.l.b16 %v4957
      %v4962 = vpack.c.b16 %v4812, %v4961
      %v4963 = vrot.slane %v4962, 1
      %v4964 = vrot.slane %v4815, 1
      %v4965 = vsel %vm1601, %v4963, %v4964
      %v4968 = vunpack.c.l.b16 %v4958
      %v4969 = vunpack.c.l.b16 %v4959
      %v4970 = vpack.c.b16 %v4969, %v4968
      %v4973 = vsel %vm1337, %v4965, 0
      %4975 = vmatprep.subr.bf16.mxu0 0
      %4976 = vmatpush1.bf16.msra.mxu0 %v4970
      %4977 = vmatprep.subr.bf16.mxu0 0
      %4978 = vmatpush1.bf16.msra.mxu0 0
      %4979 = vmatprep.subr.bf16.mxu0 0
      %4980 = vmatpush1.bf16.msra.mxu0 0
      %4981 = vmatprep.subr.bf16.mxu0 0
      %4982 = vmatpush1.bf16.msra.mxu0 0
      %4983 = vmatprep.subr.bf16.mxu0 0
      %4984 = vmatpush1.bf16.msra.mxu0 0
      %4985 = vmatprep.subr.bf16.mxu0 0
      %4986 = vmatpush1.bf16.msra.mxu0 0
      %4987 = vmatprep.subr.bf16.mxu0 0
      %4988 = vmatpush1.bf16.msra.mxu0 0
      %4989 = vmatprep.subr.bf16.mxu0 0
      %4990 = vmatpush1.bf16.msra.mxu0 0
      %4991 = vmatprep.subr.bf16.mxu0 0
      %4992 = vmatpush1.bf16.msra.mxu0 0
      %4993 = vmatprep.subr.bf16.mxu0 0
      %4994 = vmatpush1.bf16.msra.mxu0 0
      %4995 = vmatprep.subr.bf16.mxu0 0
      %4996 = vmatpush1.bf16.msra.mxu0 0
      %4997 = vmatprep.subr.bf16.mxu0 0
      %4998 = vmatpush1.bf16.msra.mxu0 0
      %4999 = vmatprep.subr.bf16.mxu0 0
      %5000 = vmatpush1.bf16.msra.mxu0 0
      %5001 = vmatprep.subr.bf16.mxu0 0
      %5002 = vmatpush1.bf16.msra.mxu0 0
      %5003 = vmatprep.subr.bf16.mxu0 0
      %5004 = vmatpush1.bf16.msra.mxu0 0
      %5005 = vmatprep.subr.bf16.mxu0 0
      %5006 = vmatpush1.bf16.msra.mxu0 0
      %5007 = vmatprep.mubr.bf16.mxu0 0
      %5008 = vmatmul.mubr.bf16.gmra.mrb[0].mxu0 %v4973
      %v5009 = vpop.f32.mrb[0].mxu0
      %v5010 = vadd.f32 0.0, %v5009
      %v5011 = vpop.f32.mrb[0].mxu0
      %v5012 = vpop.f32.mrb[0].mxu0
      %v5013 = vadd.f32 0.0, %v5012
      %v5014 = vpop.f32.mrb[0].mxu0
      %5015 = vdwg.mxu0
      %v5016 = vadd.f32 %v4955, %v5010
      %v5017 = vadd.f32 %v4956, %v5013
      %v5018 = vld [vmem:[%s4688] sm:$0xe]
      %v5019 = vld [vmem:[%s1658] sm:$0xf]
      %v5020 = vld [vmem:[%s1658 + $0x4] sm:$0xf]
      %v5022 = vunpack.c.l.b16 %v5018
      %v5023 = vpack.c.b16 %v4889, %v5022
      %v5024 = vrot.slane %v5023, 1
      %v5025 = vrot.slane %v4892, 1
      %v5026 = vsel %vm1601, %v5024, %v5025
      %v5029 = vunpack.c.l.b16 %v5019
      %v5030 = vunpack.c.l.b16 %v5020
      %v5031 = vpack.c.b16 %v5030, %v5029
      %v5034 = vsel %vm1337, %v5026, 0
      %5036 = vmatprep.subr.bf16.mxu0 0
      %5037 = vmatpush1.bf16.msra.mxu0 %v5031
      %5038 = vmatprep.subr.bf16.mxu0 0
      %5039 = vmatpush1.bf16.msra.mxu0 0
      %5040 = vmatprep.subr.bf16.mxu0 0
      %5041 = vmatpush1.bf16.msra.mxu0 0
      %5042 = vmatprep.subr.bf16.mxu0 0
      %5043 = vmatpush1.bf16.msra.mxu0 0
      %5044 = vmatprep.subr.bf16.mxu0 0
      %5045 = vmatpush1.bf16.msra.mxu0 0
      %5046 = vmatprep.subr.bf16.mxu0 0
      %5047 = vmatpush1.bf16.msra.mxu0 0
      %5048 = vmatprep.subr.bf16.mxu0 0
      %5049 = vmatpush1.bf16.msra.mxu0 0
      %5050 = vmatprep.subr.bf16.mxu0 0
      %5051 = vmatpush1.bf16.msra.mxu0 0
      %5052 = vmatprep.subr.bf16.mxu0 0
      %5053 = vmatpush1.bf16.msra.mxu0 0
      %5054 = vmatprep.subr.bf16.mxu0 0
      %5055 = vmatpush1.bf16.msra.mxu0 0
      %5056 = vmatprep.subr.bf16.mxu0 0
      %5057 = vmatpush1.bf16.msra.mxu0 0
      %5058 = vmatprep.subr.bf16.mxu0 0
      %5059 = vmatpush1.bf16.msra.mxu0 0
      %5060 = vmatprep.subr.bf16.mxu0 0
      %5061 = vmatpush1.bf16.msra.mxu0 0
      %5062 = vmatprep.subr.bf16.mxu0 0
      %5063 = vmatpush1.bf16.msra.mxu0 0
      %5064 = vmatprep.subr.bf16.mxu0 0
      %5065 = vmatpush1.bf16.msra.mxu0 0
      %5066 = vmatprep.subr.bf16.mxu0 0
      %5067 = vmatpush1.bf16.msra.mxu0 0
      %5068 = vmatprep.mubr.bf16.mxu0 0
      %5069 = vmatmul.mubr.bf16.gmra.mrb[0].mxu0 %v5034
      %v5070 = vpop.f32.mrb[0].mxu0
      %v5071 = vadd.f32 0.0, %v5070
      %v5072 = vpop.f32.mrb[0].mxu0
      %v5073 = vpop.f32.mrb[0].mxu0
      %v5074 = vadd.f32 0.0, %v5073
      %v5075 = vpop.f32.mrb[0].mxu0
      %5076 = vdwg.mxu0
      %v5077 = vadd.f32 %v5016, %v5071
      %v5078 = vadd.f32 %v5017, %v5074
      %v5079 = vld [vmem:[%s4683 + $0x8] sm:$0x3]
      %v5080 = vld [vmem:[%s1720] sm:$0xf]
      %v5081 = vld [vmem:[%s1720 + $0x4] sm:$0xf]
      %v5083 = vunpack.c.l.b16 %v5079
      %v5084 = vpack.c.b16 %v5083, %v5083
      %v5086 = vshrl.u32 %v4962, 16
      %v5088 = vrot.slane %v5086, 1
      %v5089 = vshll.u32 %v4962, 16
      %v5091 = vrot.slane %v5089, 2
      %v5092 = vor.u32 %v5088, %v5091
      %v5094 = vshrl.u32 %v5084, 16
      %v5096 = vrot.slane %v5094, 1
      %v5097 = vshll.u32 %v5084, 16
      %v5099 = vrot.slane %v5097, 2
      %v5100 = vor.u32 %v5096, %v5099
      %v5101 = vsel %vm1726, %v5092, %v5100
      %v5104 = vunpack.c.l.b16 %v5080
      %v5105 = vunpack.c.l.b16 %v5081
      %v5106 = vpack.c.b16 %v5105, %v5104
      %v5109 = vsel %vm1337, %v5101, 0
      %5111 = vmatprep.subr.bf16.mxu0 0
      %5112 = vmatpush1.bf16.msra.mxu0 %v5106
      %5113 = vmatprep.subr.bf16.mxu0 0
      %5114 = vmatpush1.bf16.msra.mxu0 0
      %5115 = vmatprep.subr.bf16.mxu0 0
      %5116 = vmatpush1.bf16.msra.mxu0 0
      %5117 = vmatprep.subr.bf16.mxu0 0
      %5118 = vmatpush1.bf16.msra.mxu0 0
      %5119 = vmatprep.subr.bf16.mxu0 0
      %5120 = vmatpush1.bf16.msra.mxu0 0
      %5121 = vmatprep.subr.bf16.mxu0 0
      %5122 = vmatpush1.bf16.msra.mxu0 0
      %5123 = vmatprep.subr.bf16.mxu0 0
      %5124 = vmatpush1.bf16.msra.mxu0 0
      %5125 = vmatprep.subr.bf16.mxu0 0
      %5126 = vmatpush1.bf16.msra.mxu0 0
      %5127 = vmatprep.subr.bf16.mxu0 0
      %5128 = vmatpush1.bf16.msra.mxu0 0
      %5129 = vmatprep.subr.bf16.mxu0 0
      %5130 = vmatpush1.bf16.msra.mxu0 0
      %5131 = vmatprep.subr.bf16.mxu0 0
      %5132 = vmatpush1.bf16.msra.mxu0 0
      %5133 = vmatprep.subr.bf16.mxu0 0
      %5134 = vmatpush1.bf16.msra.mxu0 0
      %5135 = vmatprep.subr.bf16.mxu0 0
      %5136 = vmatpush1.bf16.msra.mxu0 0
      %5137 = vmatprep.subr.bf16.mxu0 0
      %5138 = vmatpush1.bf16.msra.mxu0 0
      %5139 = vmatprep.subr.bf16.mxu0 0
      %5140 = vmatpush1.bf16.msra.mxu0 0
      %5141 = vmatprep.subr.bf16.mxu0 0
      %5142 = vmatpush1.bf16.msra.mxu0 0
      %5143 = vmatprep.mubr.bf16.mxu0 0
      %5144 = vmatmul.mubr.bf16.gmra.mrb[0].mxu0 %v5109
      %v5145 = vpop.f32.mrb[0].mxu0
      %v5146 = vadd.f32 0.0, %v5145
      %v5147 = vpop.f32.mrb[0].mxu0
      %v5148 = vpop.f32.mrb[0].mxu0
      %v5149 = vadd.f32 0.0, %v5148
      %v5150 = vpop.f32.mrb[0].mxu0
      %5151 = vdwg.mxu0
      %v5152 = vadd.f32 %v5077, %v5146
      %v5153 = vadd.f32 %v5078, %v5149
      %s5154 = scalar_lea.vmem %s1124, 12
      %v5155 = vld [vmem:[%s5154] sm:$0xf]
      %v5156 = vld [vmem:[%s5154 + $0x4] sm:$0xf]
      %v5157 = vld [vmem:[%s1798] sm:$0xf]
      %v5158 = vld [vmem:[%s1798 + $0x4] sm:$0xf]
      %v5161 = vunpack.c.l.b16 %v5155
      %v5162 = vunpack.c.l.b16 %v5156
      %v5163 = vpack.c.b16 %v5162, %v5161
      %v5166 = vunpack.c.l.b16 %v5157
      %v5167 = vunpack.c.l.b16 %v5158
      %v5168 = vpack.c.b16 %v5167, %v5166
      %v5171 = vsel %vm1337, %v5163, 0
      %5173 = vmatprep.subr.bf16.mxu0 0
      %5174 = vmatpush1.bf16.msra.mxu0 %v5168
      %5175 = vmatprep.subr.bf16.mxu0 0
      %5176 = vmatpush1.bf16.msra.mxu0 0
      %5177 = vmatprep.subr.bf16.mxu0 0
      %5178 = vmatpush1.bf16.msra.mxu0 0
      %5179 = vmatprep.subr.bf16.mxu0 0
      %5180 = vmatpush1.bf16.msra.mxu0 0
      %5181 = vmatprep.subr.bf16.mxu0 0
      %5182 = vmatpush1.bf16.msra.mxu0 0
      %5183 = vmatprep.subr.bf16.mxu0 0
      %5184 = vmatpush1.bf16.msra.mxu0 0
      %5185 = vmatprep.subr.bf16.mxu0 0
      %5186 = vmatpush1.bf16.msra.mxu0 0
      %5187 = vmatprep.subr.bf16.mxu0 0
      %5188 = vmatpush1.bf16.msra.mxu0 0
      %5189 = vmatprep.subr.bf16.mxu0 0
      %5190 = vmatpush1.bf16.msra.mxu0 0
      %5191 = vmatprep.subr.bf16.mxu0 0
      %5192 = vmatpush1.bf16.msra.mxu0 0
      %5193 = vmatprep.subr.bf16.mxu0 0
      %5194 = vmatpush1.bf16.msra.mxu0 0
      %5195 = vmatprep.subr.bf16.mxu0 0
      %5196 = vmatpush1.bf16.msra.mxu0 0
      %5197 = vmatprep.subr.bf16.mxu0 0
      %5198 = vmatpush1.bf16.msra.mxu0 0
      %5199 = vmatprep.subr.bf16.mxu0 0
      %5200 = vmatpush1.bf16.msra.mxu0 0
      %5201 = vmatprep.subr.bf16.mxu0 0
      %5202 = vmatpush1.bf16.msra.mxu0 0
      %5203 = vmatprep.subr.bf16.mxu0 0
      %5204 = vmatpush1.bf16.msra.mxu0 0
      %5205 = vmatprep.mubr.bf16.mxu0 0
      %5206 = vmatmul.mubr.bf16.gmra.mrb[0].mxu0 %v5171
      %v5207 = vpop.f32.mrb[0].mxu0
      %v5208 = vadd.f32 0.0, %v5207
      %v5209 = vpop.f32.mrb[0].mxu0
      %v5210 = vpop.f32.mrb[0].mxu0
      %v5211 = vadd.f32 0.0, %v5210
      %v5212 = vpop.f32.mrb[0].mxu0
      %5213 = vdwg.mxu0
      %v5214 = vadd.f32 %v5152, %v5208
      %v5215 = vadd.f32 %v5153, %v5211
      %s5216 = scalar_lea.vmem %s1139, 12
      %v5217 = vld [vmem:[%s5216] sm:$0xf]
      %v5218 = vld [vmem:[%s5216 + $0x4] sm:$0xf]
      %v5219 = vld [vmem:[%s1860] sm:$0xf]
      %v5220 = vld [vmem:[%s1860 + $0x4] sm:$0xf]
      %v5223 = vunpack.c.l.b16 %v5217
      %v5224 = vunpack.c.l.b16 %v5218
      %v5225 = vpack.c.b16 %v5224, %v5223
      %v5228 = vunpack.c.l.b16 %v5219
      %v5229 = vunpack.c.l.b16 %v5220
      %v5230 = vpack.c.b16 %v5229, %v5228
      %v5233 = vsel %vm1337, %v5225, 0
      %5235 = vmatprep.subr.bf16.mxu0 0
      %5236 = vmatpush1.bf16.msra.mxu0 %v5230
      %5237 = vmatprep.subr.bf16.mxu0 0
      %5238 = vmatpush1.bf16.msra.mxu0 0
      %5239 = vmatprep.subr.bf16.mxu0 0
      %5240 = vmatpush1.bf16.msra.mxu0 0
      %5241 = vmatprep.subr.bf16.mxu0 0
      %5242 = vmatpush1.bf16.msra.mxu0 0
      %5243 = vmatprep.subr.bf16.mxu0 0
      %5244 = vmatpush1.bf16.msra.mxu0 0
      %5245 = vmatprep.subr.bf16.mxu0 0
      %5246 = vmatpush1.bf16.msra.mxu0 0
      %5247 = vmatprep.subr.bf16.mxu0 0
      %5248 = vmatpush1.bf16.msra.mxu0 0
      %5249 = vmatprep.subr.bf16.mxu0 0
      %5250 = vmatpush1.bf16.msra.mxu0 0
      %5251 = vmatprep.subr.bf16.mxu0 0
      %5252 = vmatpush1.bf16.msra.mxu0 0
      %5253 = vmatprep.subr.bf16.mxu0 0
      %5254 = vmatpush1.bf16.msra.mxu0 0
      %5255 = vmatprep.subr.bf16.mxu0 0
      %5256 = vmatpush1.bf16.msra.mxu0 0
      %5257 = vmatprep.subr.bf16.mxu0 0
      %5258 = vmatpush1.bf16.msra.mxu0 0
      %5259 = vmatprep.subr.bf16.mxu0 0
      %5260 = vmatpush1.bf16.msra.mxu0 0
      %5261 = vmatprep.subr.bf16.mxu0 0
      %5262 = vmatpush1.bf16.msra.mxu0 0
      %5263 = vmatprep.subr.bf16.mxu0 0
      %5264 = vmatpush1.bf16.msra.mxu0 0
      %5265 = vmatprep.subr.bf16.mxu0 0
      %5266 = vmatpush1.bf16.msra.mxu0 0
      %5267 = vmatprep.mubr.bf16.mxu0 0
      %5268 = vmatmul.mubr.bf16.gmra.mrb[0].mxu0 %v5233
      %v5269 = vpop.f32.mrb[0].mxu0
      %v5270 = vadd.f32 0.0, %v5269
      %v5271 = vpop.f32.mrb[0].mxu0
      %v5272 = vpop.f32.mrb[0].mxu0
      %v5273 = vadd.f32 0.0, %v5272
      %v5274 = vpop.f32.mrb[0].mxu0
      %5275 = vdwg.mxu0
      %v5276 = vadd.f32 %v5214, %v5270
      %v5277 = vadd.f32 %v5215, %v5273
      %v5278 = vld [vmem:[%s5154] sm:$0xf]
      %v5279 = vld [vmem:[%s5154 + $0x4] sm:$0xf]
      %v5280 = vld [vmem:[%s5154 + $0x8] sm:$0x1]
      %v5281 = vld [vmem:[%s1923] sm:$0xf]
      %v5282 = vld [vmem:[%s1923 + $0x4] sm:$0xf]
      %v5286 = vunpack.c.l.b16 %v5278
      %v5287 = vunpack.c.l.b16 %v5279
      %v5288 = vunpack.c.l.b16 %v5280
      %v5289 = vpack.c.b16 %v5287, %v5286
      %v5290 = vpack.c.b16 %v5288, %v5288
      %v5292 = vshrl.u32 %v5289, 16
      %v5294 = vshll.u32 %v5289, 16
      %v5296 = vrot.slane %v5294, 1
      %v5297 = vor.u32 %v5292, %v5296
      %v5299 = vshll.u32 %v5290, 16
      %v5301 = vrot.slane %v5299, 1
      %v5302 = vsel %vm1451, %v5297, %v5301
      %v5305 = vunpack.c.l.b16 %v5281
      %v5306 = vunpack.c.l.b16 %v5282
      %v5307 = vpack.c.b16 %v5306, %v5305
      %v5310 = vsel %vm1337, %v5302, 0
      %5312 = vmatprep.subr.bf16.mxu0 0
      %5313 = vmatpush1.bf16.msra.mxu0 %v5307
      %5314 = vmatprep.subr.bf16.mxu0 0
      %5315 = vmatpush1.bf16.msra.mxu0 0
      %5316 = vmatprep.subr.bf16.mxu0 0
      %5317 = vmatpush1.bf16.msra.mxu0 0
      %5318 = vmatprep.subr.bf16.mxu0 0
      %5319 = vmatpush1.bf16.msra.mxu0 0
      %5320 = vmatprep.subr.bf16.mxu0 0
      %5321 = vmatpush1.bf16.msra.mxu0 0
      %5322 = vmatprep.subr.bf16.mxu0 0
      %5323 = vmatpush1.bf16.msra.mxu0 0
      %5324 = vmatprep.subr.bf16.mxu0 0
      %5325 = vmatpush1.bf16.msra.mxu0 0
      %5326 = vmatprep.subr.bf16.mxu0 0
      %5327 = vmatpush1.bf16.msra.mxu0 0
      %5328 = vmatprep.subr.bf16.mxu0 0
      %5329 = vmatpush1.bf16.msra.mxu0 0
      %5330 = vmatprep.subr.bf16.mxu0 0
      %5331 = vmatpush1.bf16.msra.mxu0 0
      %5332 = vmatprep.subr.bf16.mxu0 0
      %5333 = vmatpush1.bf16.msra.mxu0 0
      %5334 = vmatprep.subr.bf16.mxu0 0
      %5335 = vmatpush1.bf16.msra.mxu0 0
      %5336 = vmatprep.subr.bf16.mxu0 0
      %5337 = vmatpush1.bf16.msra.mxu0 0
      %5338 = vmatprep.subr.bf16.mxu0 0
      %5339 = vmatpush1.bf16.msra.mxu0 0
      %5340 = vmatprep.subr.bf16.mxu0 0
      %5341 = vmatpush1.bf16.msra.mxu0 0
      %5342 = vmatprep.subr.bf16.mxu0 0
      %5343 = vmatpush1.bf16.msra.mxu0 0
      %5344 = vmatprep.mubr.bf16.mxu0 0
      %5345 = vmatmul.mubr.bf16.gmra.mrb[0].mxu0 %v5310
      %v5346 = vpop.f32.mrb[0].mxu0
      %v5347 = vadd.f32 0.0, %v5346
      %v5348 = vpop.f32.mrb[0].mxu0
      %v5349 = vpop.f32.mrb[0].mxu0
      %v5350 = vadd.f32 0.0, %v5349
      %v5351 = vpop.f32.mrb[0].mxu0
      %5352 = vdwg.mxu0
      %v5353 = vadd.f32 %v5276, %v5347
      %v5354 = vadd.f32 %v5277, %v5350
      %v5355 = vld [vmem:[%s5216] sm:$0xf]
      %v5356 = vld [vmem:[%s5216 + $0x4] sm:$0xf]
      %v5357 = vld [vmem:[%s5216 + $0x8] sm:$0x1]
      %v5358 = vld [vmem:[%s2001] sm:$0xf]
      %v5359 = vld [vmem:[%s2001 + $0x4] sm:$0xf]
      %v5363 = vunpack.c.l.b16 %v5355
      %v5364 = vunpack.c.l.b16 %v5356
      %v5365 = vunpack.c.l.b16 %v5357
      %v5366 = vpack.c.b16 %v5364, %v5363
      %v5367 = vpack.c.b16 %v5365, %v5365
      %v5369 = vshrl.u32 %v5366, 16
      %v5371 = vshll.u32 %v5366, 16
      %v5373 = vrot.slane %v5371, 1
      %v5374 = vor.u32 %v5369, %v5373
      %v5376 = vshll.u32 %v5367, 16
      %v5378 = vrot.slane %v5376, 1
      %v5379 = vsel %vm1451, %v5374, %v5378
      %v5382 = vunpack.c.l.b16 %v5358
      %v5383 = vunpack.c.l.b16 %v5359
      %v5384 = vpack.c.b16 %v5383, %v5382
      %v5387 = vsel %vm1337, %v5379, 0
      %5389 = vmatprep.subr.bf16.mxu0 0
      %5390 = vmatpush1.bf16.msra.mxu0 %v5384
      %5391 = vmatprep.subr.bf16.mxu0 0
      %5392 = vmatpush1.bf16.msra.mxu0 0
      %5393 = vmatprep.subr.bf16.mxu0 0
      %5394 = vmatpush1.bf16.msra.mxu0 0
      %5395 = vmatprep.subr.bf16.mxu0 0
      %5396 = vmatpush1.bf16.msra.mxu0 0
      %5397 = vmatprep.subr.bf16.mxu0 0
      %5398 = vmatpush1.bf16.msra.mxu0 0
      %5399 = vmatprep.subr.bf16.mxu0 0
      %5400 = vmatpush1.bf16.msra.mxu0 0
      %5401 = vmatprep.subr.bf16.mxu0 0
      %5402 = vmatpush1.bf16.msra.mxu0 0
      %5403 = vmatprep.subr.bf16.mxu0 0
      %5404 = vmatpush1.bf16.msra.mxu0 0
      %5405 = vmatprep.subr.bf16.mxu0 0
      %5406 = vmatpush1.bf16.msra.mxu0 0
      %5407 = vmatprep.subr.bf16.mxu0 0
      %5408 = vmatpush1.bf16.msra.mxu0 0
      %5409 = vmatprep.subr.bf16.mxu0 0
      %5410 = vmatpush1.bf16.msra.mxu0 0
      %5411 = vmatprep.subr.bf16.mxu0 0
      %5412 = vmatpush1.bf16.msra.mxu0 0
      %5413 = vmatprep.subr.bf16.mxu0 0
      %5414 = vmatpush1.bf16.msra.mxu0 0
      %5415 = vmatprep.subr.bf16.mxu0 0
      %5416 = vmatpush1.bf16.msra.mxu0 0
      %5417 = vmatprep.subr.bf16.mxu0 0
      %5418 = vmatpush1.bf16.msra.mxu0 0
      %5419 = vmatprep.subr.bf16.mxu0 0
      %5420 = vmatpush1.bf16.msra.mxu0 0
      %5421 = vmatprep.mubr.bf16.mxu0 0
      %5422 = vmatmul.mubr.bf16.gmra.mrb[0].mxu0 %v5387
      %v5423 = vpop.f32.mrb[0].mxu0
      %v5424 = vadd.f32 0.0, %v5423
      %v5425 = vpop.f32.mrb[0].mxu0
      %v5426 = vpop.f32.mrb[0].mxu0
      %v5427 = vadd.f32 0.0, %v5426
      %v5428 = vpop.f32.mrb[0].mxu0
      %5429 = vdwg.mxu0
      %v5430 = vadd.f32 %v5353, %v5424
      %v5431 = vadd.f32 %v5354, %v5427
      %v5432 = vld [vmem:[%s5154] sm:$0xe]
      %v5433 = vld [vmem:[%s2077] sm:$0xf]
      %v5434 = vld [vmem:[%s2077 + $0x4] sm:$0xf]
      %v5436 = vunpack.c.l.b16 %v5432
      %v5437 = vpack.c.b16 %v5287, %v5436
      %v5438 = vrot.slane %v5437, 1
      %v5439 = vrot.slane %v5290, 1
      %v5440 = vsel %vm1601, %v5438, %v5439
      %v5443 = vunpack.c.l.b16 %v5433
      %v5444 = vunpack.c.l.b16 %v5434
      %v5445 = vpack.c.b16 %v5444, %v5443
      %v5448 = vsel %vm1337, %v5440, 0
      %5450 = vmatprep.subr.bf16.mxu0 0
      %5451 = vmatpush1.bf16.msra.mxu0 %v5445
      %5452 = vmatprep.subr.bf16.mxu0 0
      %5453 = vmatpush1.bf16.msra.mxu0 0
      %5454 = vmatprep.subr.bf16.mxu0 0
      %5455 = vmatpush1.bf16.msra.mxu0 0
      %5456 = vmatprep.subr.bf16.mxu0 0
      %5457 = vmatpush1.bf16.msra.mxu0 0
      %5458 = vmatprep.subr.bf16.mxu0 0
      %5459 = vmatpush1.bf16.msra.mxu0 0
      %5460 = vmatprep.subr.bf16.mxu0 0
      %5461 = vmatpush1.bf16.msra.mxu0 0
      %5462 = vmatprep.subr.bf16.mxu0 0
      %5463 = vmatpush1.bf16.msra.mxu0 0
      %5464 = vmatprep.subr.bf16.mxu0 0
      %5465 = vmatpush1.bf16.msra.mxu0 0
      %5466 = vmatprep.subr.bf16.mxu0 0
      %5467 = vmatpush1.bf16.msra.mxu0 0
      %5468 = vmatprep.subr.bf16.mxu0 0
      %5469 = vmatpush1.bf16.msra.mxu0 0
      %5470 = vmatprep.subr.bf16.mxu0 0
      %5471 = vmatpush1.bf16.msra.mxu0 0
      %5472 = vmatprep.subr.bf16.mxu0 0
      %5473 = vmatpush1.bf16.msra.mxu0 0
      %5474 = vmatprep.subr.bf16.mxu0 0
      %5475 = vmatpush1.bf16.msra.mxu0 0
      %5476 = vmatprep.subr.bf16.mxu0 0
      %5477 = vmatpush1.bf16.msra.mxu0 0
      %5478 = vmatprep.subr.bf16.mxu0 0
      %5479 = vmatpush1.bf16.msra.mxu0 0
      %5480 = vmatprep.subr.bf16.mxu0 0
      %5481 = vmatpush1.bf16.msra.mxu0 0
      %5482 = vmatprep.mubr.bf16.mxu0 0
      %5483 = vmatmul.mubr.bf16.gmra.mrb[0].mxu0 %v5448
      %v5484 = vpop.f32.mrb[0].mxu0
      %v5485 = vadd.f32 0.0, %v5484
      %v5486 = vpop.f32.mrb[0].mxu0
      %v5487 = vpop.f32.mrb[0].mxu0
      %v5488 = vadd.f32 0.0, %v5487
      %v5489 = vpop.f32.mrb[0].mxu0
      %5490 = vdwg.mxu0
      %v5491 = vadd.f32 %v5430, %v5485
      %v5492 = vadd.f32 %v5431, %v5488
      %v5493 = vld [vmem:[%s5216] sm:$0xe]
      %v5494 = vld [vmem:[%s2139] sm:$0xf]
      %v5495 = vld [vmem:[%s2139 + $0x4] sm:$0xf]
      %v5497 = vunpack.c.l.b16 %v5493
      %v5498 = vpack.c.b16 %v5364, %v5497
      %v5499 = vrot.slane %v5498, 1
      %v5500 = vrot.slane %v5367, 1
      %v5501 = vsel %vm1601, %v5499, %v5500
      %v5504 = vunpack.c.l.b16 %v5494
      %v5505 = vunpack.c.l.b16 %v5495
      %v5506 = vpack.c.b16 %v5505, %v5504
      %v5509 = vsel %vm1337, %v5501, 0
      %5511 = vmatprep.subr.bf16.mxu0 0
      %5512 = vmatpush1.bf16.msra.mxu0 %v5506
      %5513 = vmatprep.subr.bf16.mxu0 0
      %5514 = vmatpush1.bf16.msra.mxu0 0
      %5515 = vmatprep.subr.bf16.mxu0 0
      %5516 = vmatpush1.bf16.msra.mxu0 0
      %5517 = vmatprep.subr.bf16.mxu0 0
      %5518 = vmatpush1.bf16.msra.mxu0 0
      %5519 = vmatprep.subr.bf16.mxu0 0
      %5520 = vmatpush1.bf16.msra.mxu0 0
      %5521 = vmatprep.subr.bf16.mxu0 0
      %5522 = vmatpush1.bf16.msra.mxu0 0
      %5523 = vmatprep.subr.bf16.mxu0 0
      %5524 = vmatpush1.bf16.msra.mxu0 0
      %5525 = vmatprep.subr.bf16.mxu0 0
      %5526 = vmatpush1.bf16.msra.mxu0 0
      %5527 = vmatprep.subr.bf16.mxu0 0
      %5528 = vmatpush1.bf16.msra.mxu0 0
      %5529 = vmatprep.subr.bf16.mxu0 0
      %5530 = vmatpush1.bf16.msra.mxu0 0
      %5531 = vmatprep.subr.bf16.mxu0 0
      %5532 = vmatpush1.bf16.msra.mxu0 0
      %5533 = vmatprep.subr.bf16.mxu0 0
      %5534 = vmatpush1.bf16.msra.mxu0 0
      %5535 = vmatprep.subr.bf16.mxu0 0
      %5536 = vmatpush1.bf16.msra.mxu0 0
      %5537 = vmatprep.subr.bf16.mxu0 0
      %5538 = vmatpush1.bf16.msra.mxu0 0
      %5539 = vmatprep.subr.bf16.mxu0 0
      %5540 = vmatpush1.bf16.msra.mxu0 0
      %5541 = vmatprep.subr.bf16.mxu0 0
      %5542 = vmatpush1.bf16.msra.mxu0 0
      %5543 = vmatprep.mubr.bf16.mxu0 0
      %5544 = vmatmul.mubr.bf16.gmra.mrb[0].mxu0 %v5509
      %v5545 = vpop.f32.mrb[0].mxu0
      %v5546 = vadd.f32 0.0, %v5545
      %v5547 = vpop.f32.mrb[0].mxu0
      %v5548 = vpop.f32.mrb[0].mxu0
      %v5549 = vadd.f32 0.0, %v5548
      %v5550 = vpop.f32.mrb[0].mxu0
      %5551 = vdwg.mxu0
      %v5552 = vadd.f32 %v5491, %v5546
      %v5553 = vadd.f32 %v5492, %v5549
      %v5554 = vld [vmem:[%s5154 + $0x8] sm:$0x3]
      %v5555 = vld [vmem:[%s2201] sm:$0xf]
      %v5556 = vld [vmem:[%s2201 + $0x4] sm:$0xf]
      %v5558 = vunpack.c.l.b16 %v5554
      %v5559 = vpack.c.b16 %v5558, %v5558
      %v5561 = vshrl.u32 %v5437, 16
      %v5563 = vrot.slane %v5561, 1
      %v5564 = vshll.u32 %v5437, 16
      %v5566 = vrot.slane %v5564, 2
      %v5567 = vor.u32 %v5563, %v5566
      %v5569 = vshrl.u32 %v5559, 16
      %v5571 = vrot.slane %v5569, 1
      %v5572 = vshll.u32 %v5559, 16
      %v5574 = vrot.slane %v5572, 2
      %v5575 = vor.u32 %v5571, %v5574
      %v5576 = vsel %vm1726, %v5567, %v5575
      %v5579 = vunpack.c.l.b16 %v5555
      %v5580 = vunpack.c.l.b16 %v5556
      %v5581 = vpack.c.b16 %v5580, %v5579
      %v5584 = vsel %vm1337, %v5576, 0
      %5586 = vmatprep.subr.bf16.mxu0 0
      %5587 = vmatpush1.bf16.msra.mxu0 %v5581
      %5588 = vmatprep.subr.bf16.mxu0 0
      %5589 = vmatpush1.bf16.msra.mxu0 0
      %5590 = vmatprep.subr.bf16.mxu0 0
      %5591 = vmatpush1.bf16.msra.mxu0 0
      %5592 = vmatprep.subr.bf16.mxu0 0
      %5593 = vmatpush1.bf16.msra.mxu0 0
      %5594 = vmatprep.subr.bf16.mxu0 0
      %5595 = vmatpush1.bf16.msra.mxu0 0
      %5596 = vmatprep.subr.bf16.mxu0 0
      %5597 = vmatpush1.bf16.msra.mxu0 0
      %5598 = vmatprep.subr.bf16.mxu0 0
      %5599 = vmatpush1.bf16.msra.mxu0 0
      %5600 = vmatprep.subr.bf16.mxu0 0
      %5601 = vmatpush1.bf16.msra.mxu0 0
      %5602 = vmatprep.subr.bf16.mxu0 0
      %5603 = vmatpush1.bf16.msra.mxu0 0
      %5604 = vmatprep.subr.bf16.mxu0 0
      %5605 = vmatpush1.bf16.msra.mxu0 0
      %5606 = vmatprep.subr.bf16.mxu0 0
      %5607 = vmatpush1.bf16.msra.mxu0 0
      %5608 = vmatprep.subr.bf16.mxu0 0
      %5609 = vmatpush1.bf16.msra.mxu0 0
      %5610 = vmatprep.subr.bf16.mxu0 0
      %5611 = vmatpush1.bf16.msra.mxu0 0
      %5612 = vmatprep.subr.bf16.mxu0 0
      %5613 = vmatpush1.bf16.msra.mxu0 0
      %5614 = vmatprep.subr.bf16.mxu0 0
      %5615 = vmatpush1.bf16.msra.mxu0 0
      %5616 = vmatprep.subr.bf16.mxu0 0
      %5617 = vmatpush1.bf16.msra.mxu0 0
      %5618 = vmatprep.mubr.bf16.mxu0 0
      %5619 = vmatmul.mubr.bf16.gmra.mrb[0].mxu0 %v5584
      %v5620 = vpop.f32.mrb[0].mxu0
      %v5621 = vadd.f32 0.0, %v5620
      %v5622 = vpop.f32.mrb[0].mxu0
      %v5623 = vpop.f32.mrb[0].mxu0
      %v5624 = vadd.f32 0.0, %v5623
      %v5625 = vpop.f32.mrb[0].mxu0
      %5626 = vdwg.mxu0
      %v5627 = vadd.f32 %v5552, %v5621
      %v5628 = vadd.f32 %v5553, %v5624
      %s5629 = scalar_lea.vmem %s1154, 12
      %v5630 = vld [vmem:[%s5629] sm:$0xf]
      %v5631 = vld [vmem:[%s5629 + $0x4] sm:$0xf]
      %v5632 = vld [vmem:[%s2278] sm:$0xf]
      %v5633 = vld [vmem:[%s2278 + $0x4] sm:$0xf]
      %v5636 = vunpack.c.l.b16 %v5630
      %v5637 = vunpack.c.l.b16 %v5631
      %v5638 = vpack.c.b16 %v5637, %v5636
      %v5641 = vunpack.c.l.b16 %v5632
      %v5642 = vunpack.c.l.b16 %v5633
      %v5643 = vpack.c.b16 %v5642, %v5641
      %v5646 = vsel %vm1337, %v5638, 0
      %5648 = vmatprep.subr.bf16.mxu0 0
      %5649 = vmatpush1.bf16.msra.mxu0 %v5643
      %5650 = vmatprep.subr.bf16.mxu0 0
      %5651 = vmatpush1.bf16.msra.mxu0 0
      %5652 = vmatprep.subr.bf16.mxu0 0
      %5653 = vmatpush1.bf16.msra.mxu0 0
      %5654 = vmatprep.subr.bf16.mxu0 0
      %5655 = vmatpush1.bf16.msra.mxu0 0
      %5656 = vmatprep.subr.bf16.mxu0 0
      %5657 = vmatpush1.bf16.msra.mxu0 0
      %5658 = vmatprep.subr.bf16.mxu0 0
      %5659 = vmatpush1.bf16.msra.mxu0 0
      %5660 = vmatprep.subr.bf16.mxu0 0
      %5661 = vmatpush1.bf16.msra.mxu0 0
      %5662 = vmatprep.subr.bf16.mxu0 0
      %5663 = vmatpush1.bf16.msra.mxu0 0
      %5664 = vmatprep.subr.bf16.mxu0 0
      %5665 = vmatpush1.bf16.msra.mxu0 0
      %5666 = vmatprep.subr.bf16.mxu0 0
      %5667 = vmatpush1.bf16.msra.mxu0 0
      %5668 = vmatprep.subr.bf16.mxu0 0
      %5669 = vmatpush1.bf16.msra.mxu0 0
      %5670 = vmatprep.subr.bf16.mxu0 0
      %5671 = vmatpush1.bf16.msra.mxu0 0
      %5672 = vmatprep.subr.bf16.mxu0 0
      %5673 = vmatpush1.bf16.msra.mxu0 0
      %5674 = vmatprep.subr.bf16.mxu0 0
      %5675 = vmatpush1.bf16.msra.mxu0 0
      %5676 = vmatprep.subr.bf16.mxu0 0
      %5677 = vmatpush1.bf16.msra.mxu0 0
      %5678 = vmatprep.subr.bf16.mxu0 0
      %5679 = vmatpush1.bf16.msra.mxu0 0
      %5680 = vmatprep.mubr.bf16.mxu0 0
      %5681 = vmatmul.mubr.bf16.gmra.mrb[0].mxu0 %v5646
      %v5682 = vpop.f32.mrb[0].mxu0
      %v5683 = vadd.f32 0.0, %v5682
      %v5684 = vpop.f32.mrb[0].mxu0
      %v5685 = vpop.f32.mrb[0].mxu0
      %v5686 = vadd.f32 0.0, %v5685
      %v5687 = vpop.f32.mrb[0].mxu0
      %5688 = vdwg.mxu0
      %v5689 = vadd.f32 %v5627, %v5683
      %v5690 = vadd.f32 %v5628, %v5686
      %s5691 = scalar_lea.vmem %s1169, 12
      %v5692 = vld [vmem:[%s5691] sm:$0xf]
      %v5693 = vld [vmem:[%s5691 + $0x4] sm:$0xf]
      %v5694 = vld [vmem:[%s2340] sm:$0xf]
      %v5695 = vld [vmem:[%s2340 + $0x4] sm:$0xf]
      %v5698 = vunpack.c.l.b16 %v5692
      %v5699 = vunpack.c.l.b16 %v5693
      %v5700 = vpack.c.b16 %v5699, %v5698
      %v5703 = vunpack.c.l.b16 %v5694
      %v5704 = vunpack.c.l.b16 %v5695
      %v5705 = vpack.c.b16 %v5704, %v5703
      %v5708 = vsel %vm1337, %v5700, 0
      %5710 = vmatprep.subr.bf16.mxu0 0
      %5711 = vmatpush1.bf16.msra.mxu0 %v5705
      %5712 = vmatprep.subr.bf16.mxu0 0
      %5713 = vmatpush1.bf16.msra.mxu0 0
      %5714 = vmatprep.subr.bf16.mxu0 0
      %5715 = vmatpush1.bf16.msra.mxu0 0
      %5716 = vmatprep.subr.bf16.mxu0 0
      %5717 = vmatpush1.bf16.msra.mxu0 0
      %5718 = vmatprep.subr.bf16.mxu0 0
      %5719 = vmatpush1.bf16.msra.mxu0 0
      %5720 = vmatprep.subr.bf16.mxu0 0
      %5721 = vmatpush1.bf16.msra.mxu0 0
      %5722 = vmatprep.subr.bf16.mxu0 0
      %5723 = vmatpush1.bf16.msra.mxu0 0
      %5724 = vmatprep.subr.bf16.mxu0 0
      %5725 = vmatpush1.bf16.msra.mxu0 0
      %5726 = vmatprep.subr.bf16.mxu0 0
      %5727 = vmatpush1.bf16.msra.mxu0 0
      %5728 = vmatprep.subr.bf16.mxu0 0
      %5729 = vmatpush1.bf16.msra.mxu0 0
      %5730 = vmatprep.subr.bf16.mxu0 0
      %5731 = vmatpush1.bf16.msra.mxu0 0
      %5732 = vmatprep.subr.bf16.mxu0 0
      %5733 = vmatpush1.bf16.msra.mxu0 0
      %5734 = vmatprep.subr.bf16.mxu0 0
      %5735 = vmatpush1.bf16.msra.mxu0 0
      %5736 = vmatprep.subr.bf16.mxu0 0
      %5737 = vmatpush1.bf16.msra.mxu0 0
      %5738 = vmatprep.subr.bf16.mxu0 0
      %5739 = vmatpush1.bf16.msra.mxu0 0
      %5740 = vmatprep.subr.bf16.mxu0 0
      %5741 = vmatpush1.bf16.msra.mxu0 0
      %5742 = vmatprep.mubr.bf16.mxu0 0
      %5743 = vmatmul.mubr.bf16.gmra.mrb[0].mxu0 %v5708
      %v5744 = vpop.f32.mrb[0].mxu0
      %v5745 = vadd.f32 0.0, %v5744
      %v5746 = vpop.f32.mrb[0].mxu0
      %v5747 = vpop.f32.mrb[0].mxu0
      %v5748 = vadd.f32 0.0, %v5747
      %v5749 = vpop.f32.mrb[0].mxu0
      %5750 = vdwg.mxu0
      %v5751 = vadd.f32 %v5689, %v5745
      %v5752 = vadd.f32 %v5690, %v5748
      %v5753 = vld [vmem:[%s5629] sm:$0xf]
      %v5754 = vld [vmem:[%s5629 + $0x4] sm:$0xf]
      %v5755 = vld [vmem:[%s5629 + $0x8] sm:$0x1]
      %v5756 = vld [vmem:[%s2403] sm:$0xf]
      %v5757 = vld [vmem:[%s2403 + $0x4] sm:$0xf]
      %v5761 = vunpack.c.l.b16 %v5753
      %v5762 = vunpack.c.l.b16 %v5754
      %v5763 = vunpack.c.l.b16 %v5755
      %v5764 = vpack.c.b16 %v5762, %v5761
      %v5765 = vpack.c.b16 %v5763, %v5763
      %v5767 = vshrl.u32 %v5764, 16
      %v5769 = vshll.u32 %v5764, 16
      %v5771 = vrot.slane %v5769, 1
      %v5772 = vor.u32 %v5767, %v5771
      %v5774 = vshll.u32 %v5765, 16
      %v5776 = vrot.slane %v5774, 1
      %v5777 = vsel %vm1451, %v5772, %v5776
      %v5780 = vunpack.c.l.b16 %v5756
      %v5781 = vunpack.c.l.b16 %v5757
      %v5782 = vpack.c.b16 %v5781, %v5780
      %v5785 = vsel %vm1337, %v5777, 0
      %5787 = vmatprep.subr.bf16.mxu0 0
      %5788 = vmatpush1.bf16.msra.mxu0 %v5782
      %5789 = vmatprep.subr.bf16.mxu0 0
      %5790 = vmatpush1.bf16.msra.mxu0 0
      %5791 = vmatprep.subr.bf16.mxu0 0
      %5792 = vmatpush1.bf16.msra.mxu0 0
      %5793 = vmatprep.subr.bf16.mxu0 0
      %5794 = vmatpush1.bf16.msra.mxu0 0
      %5795 = vmatprep.subr.bf16.mxu0 0
      %5796 = vmatpush1.bf16.msra.mxu0 0
      %5797 = vmatprep.subr.bf16.mxu0 0
      %5798 = vmatpush1.bf16.msra.mxu0 0
      %5799 = vmatprep.subr.bf16.mxu0 0
      %5800 = vmatpush1.bf16.msra.mxu0 0
      %5801 = vmatprep.subr.bf16.mxu0 0
      %5802 = vmatpush1.bf16.msra.mxu0 0
      %5803 = vmatprep.subr.bf16.mxu0 0
      %5804 = vmatpush1.bf16.msra.mxu0 0
      %5805 = vmatprep.subr.bf16.mxu0 0
      %5806 = vmatpush1.bf16.msra.mxu0 0
      %5807 = vmatprep.subr.bf16.mxu0 0
      %5808 = vmatpush1.bf16.msra.mxu0 0
      %5809 = vmatprep.subr.bf16.mxu0 0
      %5810 = vmatpush1.bf16.msra.mxu0 0
      %5811 = vmatprep.subr.bf16.mxu0 0
      %5812 = vmatpush1.bf16.msra.mxu0 0
      %5813 = vmatprep.subr.bf16.mxu0 0
      %5814 = vmatpush1.bf16.msra.mxu0 0
      %5815 = vmatprep.subr.bf16.mxu0 0
      %5816 = vmatpush1.bf16.msra.mxu0 0
      %5817 = vmatprep.subr.bf16.mxu0 0
      %5818 = vmatpush1.bf16.msra.mxu0 0
      %5819 = vmatprep.mubr.bf16.mxu0 0
      %5820 = vmatmul.mubr.bf16.gmra.mrb[0].mxu0 %v5785
      %v5821 = vpop.f32.mrb[0].mxu0
      %v5822 = vadd.f32 0.0, %v5821
      %v5823 = vpop.f32.mrb[0].mxu0
      %v5824 = vpop.f32.mrb[0].mxu0
      %v5825 = vadd.f32 0.0, %v5824
      %v5826 = vpop.f32.mrb[0].mxu0
      %5827 = vdwg.mxu0
      %v5828 = vadd.f32 %v5751, %v5822
      %v5829 = vadd.f32 %v5752, %v5825
      %v5830 = vld [vmem:[%s5691] sm:$0xf]
      %v5831 = vld [vmem:[%s5691 + $0x4] sm:$0xf]
      %v5832 = vld [vmem:[%s5691 + $0x8] sm:$0x1]
      %v5833 = vld [vmem:[%s2481] sm:$0xf]
      %v5834 = vld [vmem:[%s2481 + $0x4] sm:$0xf]
      %v5838 = vunpack.c.l.b16 %v5830
      %v5839 = vunpack.c.l.b16 %v5831
      %v5840 = vunpack.c.l.b16 %v5832
      %v5841 = vpack.c.b16 %v5839, %v5838
      %v5842 = vpack.c.b16 %v5840, %v5840
      %v5844 = vshrl.u32 %v5841, 16
      %v5846 = vshll.u32 %v5841, 16
      %v5848 = vrot.slane %v5846, 1
      %v5849 = vor.u32 %v5844, %v5848
      %v5851 = vshll.u32 %v5842, 16
      %v5853 = vrot.slane %v5851, 1
      %v5854 = vsel %vm1451, %v5849, %v5853
      %v5857 = vunpack.c.l.b16 %v5833
      %v5858 = vunpack.c.l.b16 %v5834
      %v5859 = vpack.c.b16 %v5858, %v5857
      %v5862 = vsel %vm1337, %v5854, 0
      %5864 = vmatprep.subr.bf16.mxu0 0
      %5865 = vmatpush1.bf16.msra.mxu0 %v5859
      %5866 = vmatprep.subr.bf16.mxu0 0
      %5867 = vmatpush1.bf16.msra.mxu0 0
      %5868 = vmatprep.subr.bf16.mxu0 0
      %5869 = vmatpush1.bf16.msra.mxu0 0
      %5870 = vmatprep.subr.bf16.mxu0 0
      %5871 = vmatpush1.bf16.msra.mxu0 0
      %5872 = vmatprep.subr.bf16.mxu0 0
      %5873 = vmatpush1.bf16.msra.mxu0 0
      %5874 = vmatprep.subr.bf16.mxu0 0
      %5875 = vmatpush1.bf16.msra.mxu0 0
      %5876 = vmatprep.subr.bf16.mxu0 0
      %5877 = vmatpush1.bf16.msra.mxu0 0
      %5878 = vmatprep.subr.bf16.mxu0 0
      %5879 = vmatpush1.bf16.msra.mxu0 0
      %5880 = vmatprep.subr.bf16.mxu0 0
      %5881 = vmatpush1.bf16.msra.mxu0 0
      %5882 = vmatprep.subr.bf16.mxu0 0
      %5883 = vmatpush1.bf16.msra.mxu0 0
      %5884 = vmatprep.subr.bf16.mxu0 0
      %5885 = vmatpush1.bf16.msra.mxu0 0
      %5886 = vmatprep.subr.bf16.mxu0 0
      %5887 = vmatpush1.bf16.msra.mxu0 0
      %5888 = vmatprep.subr.bf16.mxu0 0
      %5889 = vmatpush1.bf16.msra.mxu0 0
      %5890 = vmatprep.subr.bf16.mxu0 0
      %5891 = vmatpush1.bf16.msra.mxu0 0
      %5892 = vmatprep.subr.bf16.mxu0 0
      %5893 = vmatpush1.bf16.msra.mxu0 0
      %5894 = vmatprep.subr.bf16.mxu0 0
      %5895 = vmatpush1.bf16.msra.mxu0 0
      %5896 = vmatprep.mubr.bf16.mxu0 0
      %5897 = vmatmul.mubr.bf16.gmra.mrb[0].mxu0 %v5862
      %v5898 = vpop.f32.mrb[0].mxu0
      %v5899 = vadd.f32 0.0, %v5898
      %v5900 = vpop.f32.mrb[0].mxu0
      %v5901 = vpop.f32.mrb[0].mxu0
      %v5902 = vadd.f32 0.0, %v5901
      %v5903 = vpop.f32.mrb[0].mxu0
      %5904 = vdwg.mxu0
      %v5905 = vadd.f32 %v5828, %v5899
      %v5906 = vadd.f32 %v5829, %v5902
      %v5907 = vld [vmem:[%s5629] sm:$0xe]
      %v5908 = vld [vmem:[%s2557] sm:$0xf]
      %v5909 = vld [vmem:[%s2557 + $0x4] sm:$0xf]
      %v5911 = vunpack.c.l.b16 %v5907
      %v5912 = vpack.c.b16 %v5762, %v5911
      %v5913 = vrot.slane %v5912, 1
      %v5914 = vrot.slane %v5765, 1
      %v5915 = vsel %vm1601, %v5913, %v5914
      %v5918 = vunpack.c.l.b16 %v5908
      %v5919 = vunpack.c.l.b16 %v5909
      %v5920 = vpack.c.b16 %v5919, %v5918
      %v5923 = vsel %vm1337, %v5915, 0
      %5925 = vmatprep.subr.bf16.mxu0 0
      %5926 = vmatpush1.bf16.msra.mxu0 %v5920
      %5927 = vmatprep.subr.bf16.mxu0 0
      %5928 = vmatpush1.bf16.msra.mxu0 0
      %5929 = vmatprep.subr.bf16.mxu0 0
      %5930 = vmatpush1.bf16.msra.mxu0 0
      %5931 = vmatprep.subr.bf16.mxu0 0
      %5932 = vmatpush1.bf16.msra.mxu0 0
      %5933 = vmatprep.subr.bf16.mxu0 0
      %5934 = vmatpush1.bf16.msra.mxu0 0
      %5935 = vmatprep.subr.bf16.mxu0 0
      %5936 = vmatpush1.bf16.msra.mxu0 0
      %5937 = vmatprep.subr.bf16.mxu0 0
      %5938 = vmatpush1.bf16.msra.mxu0 0
      %5939 = vmatprep.subr.bf16.mxu0 0
      %5940 = vmatpush1.bf16.msra.mxu0 0
      %5941 = vmatprep.subr.bf16.mxu0 0
      %5942 = vmatpush1.bf16.msra.mxu0 0
      %5943 = vmatprep.subr.bf16.mxu0 0
      %5944 = vmatpush1.bf16.msra.mxu0 0
      %5945 = vmatprep.subr.bf16.mxu0 0
      %5946 = vmatpush1.bf16.msra.mxu0 0
      %5947 = vmatprep.subr.bf16.mxu0 0
      %5948 = vmatpush1.bf16.msra.mxu0 0
      %5949 = vmatprep.subr.bf16.mxu0 0
      %5950 = vmatpush1.bf16.msra.mxu0 0
      %5951 = vmatprep.subr.bf16.mxu0 0
      %5952 = vmatpush1.bf16.msra.mxu0 0
      %5953 = vmatprep.subr.bf16.mxu0 0
      %5954 = vmatpush1.bf16.msra.mxu0 0
      %5955 = vmatprep.subr.bf16.mxu0 0
      %5956 = vmatpush1.bf16.msra.mxu0 0
      %5957 = vmatprep.mubr.bf16.mxu0 0
      %5958 = vmatmul.mubr.bf16.gmra.mrb[0].mxu0 %v5923
      %v5959 = vpop.f32.mrb[0].mxu0
      %v5960 = vadd.f32 0.0, %v5959
      %v5961 = vpop.f32.mrb[0].mxu0
      %v5962 = vpop.f32.mrb[0].mxu0
      %v5963 = vadd.f32 0.0, %v5962
      %v5964 = vpop.f32.mrb[0].mxu0
      %5965 = vdwg.mxu0
      %v5966 = vadd.f32 %v5905, %v5960
      %v5967 = vadd.f32 %v5906, %v5963
      %v5968 = vld [vmem:[%s5691] sm:$0xe]
      %v5969 = vld [vmem:[%s2619] sm:$0xf]
      %v5970 = vld [vmem:[%s2619 + $0x4] sm:$0xf]
      %v5972 = vunpack.c.l.b16 %v5968
      %v5973 = vpack.c.b16 %v5839, %v5972
      %v5974 = vrot.slane %v5973, 1
      %v5975 = vrot.slane %v5842, 1
      %v5976 = vsel %vm1601, %v5974, %v5975
      %v5979 = vunpack.c.l.b16 %v5969
      %v5980 = vunpack.c.l.b16 %v5970
      %v5981 = vpack.c.b16 %v5980, %v5979
      %v5984 = vsel %vm1337, %v5976, 0
      %5986 = vmatprep.subr.bf16.mxu0 0
      %5987 = vmatpush1.bf16.msra.mxu0 %v5981
      %5988 = vmatprep.subr.bf16.mxu0 0
      %5989 = vmatpush1.bf16.msra.mxu0 0
      %5990 = vmatprep.subr.bf16.mxu0 0
      %5991 = vmatpush1.bf16.msra.mxu0 0
      %5992 = vmatprep.subr.bf16.mxu0 0
      %5993 = vmatpush1.bf16.msra.mxu0 0
      %5994 = vmatprep.subr.bf16.mxu0 0
      %5995 = vmatpush1.bf16.msra.mxu0 0
      %5996 = vmatprep.subr.bf16.mxu0 0
      %5997 = vmatpush1.bf16.msra.mxu0 0
      %5998 = vmatprep.subr.bf16.mxu0 0
      %5999 = vmatpush1.bf16.msra.mxu0 0
      %6000 = vmatprep.subr.bf16.mxu0 0
      %6001 = vmatpush1.bf16.msra.mxu0 0
      %6002 = vmatprep.subr.bf16.mxu0 0
      %6003 = vmatpush1.bf16.msra.mxu0 0
      %6004 = vmatprep.subr.bf16.mxu0 0
      %6005 = vmatpush1.bf16.msra.mxu0 0
      %6006 = vmatprep.subr.bf16.mxu0 0
      %6007 = vmatpush1.bf16.msra.mxu0 0
      %6008 = vmatprep.subr.bf16.mxu0 0
      %6009 = vmatpush1.bf16.msra.mxu0 0
      %6010 = vmatprep.subr.bf16.mxu0 0
      %6011 = vmatpush1.bf16.msra.mxu0 0
      %6012 = vmatprep.subr.bf16.mxu0 0
      %6013 = vmatpush1.bf16.msra.mxu0 0
      %6014 = vmatprep.subr.bf16.mxu0 0
      %6015 = vmatpush1.bf16.msra.mxu0 0
      %6016 = vmatprep.subr.bf16.mxu0 0
      %6017 = vmatpush1.bf16.msra.mxu0 0
      %6018 = vmatprep.mubr.bf16.mxu0 0
      %6019 = vmatmul.mubr.bf16.gmra.mrb[0].mxu0 %v5984
      %v6020 = vpop.f32.mrb[0].mxu0
      %v6021 = vadd.f32 0.0, %v6020
      %v6022 = vpop.f32.mrb[0].mxu0
      %v6023 = vpop.f32.mrb[0].mxu0
      %v6024 = vadd.f32 0.0, %v6023
      %v6025 = vpop.f32.mrb[0].mxu0
      %6026 = vdwg.mxu0
      %v6027 = vadd.f32 %v5966, %v6021
      %v6028 = vadd.f32 %v5967, %v6024
      %v6029 = vld [vmem:[%s5629 + $0x8] sm:$0x3]
      %v6030 = vld [vmem:[%s2681] sm:$0xf]
      %v6031 = vld [vmem:[%s2681 + $0x4] sm:$0xf]
      %v6033 = vunpack.c.l.b16 %v6029
      %v6034 = vpack.c.b16 %v6033, %v6033
      %v6036 = vshrl.u32 %v5912, 16
      %v6038 = vrot.slane %v6036, 1
      %v6039 = vshll.u32 %v5912, 16
      %v6041 = vrot.slane %v6039, 2
      %v6042 = vor.u32 %v6038, %v6041
      %v6044 = vshrl.u32 %v6034, 16
      %v6046 = vrot.slane %v6044, 1
      %v6047 = vshll.u32 %v6034, 16
      %v6049 = vrot.slane %v6047, 2
      %v6050 = vor.u32 %v6046, %v6049
      %v6051 = vsel %vm1726, %v6042, %v6050
      %v6054 = vunpack.c.l.b16 %v6030
      %v6055 = vunpack.c.l.b16 %v6031
      %v6056 = vpack.c.b16 %v6055, %v6054
      %v6059 = vsel %vm1337, %v6051, 0
      %6061 = vmatprep.subr.bf16.mxu0 0
      %6062 = vmatpush1.bf16.msra.mxu0 %v6056
      %6063 = vmatprep.subr.bf16.mxu0 0
      %6064 = vmatpush1.bf16.msra.mxu0 0
      %6065 = vmatprep.subr.bf16.mxu0 0
      %6066 = vmatpush1.bf16.msra.mxu0 0
      %6067 = vmatprep.subr.bf16.mxu0 0
      %6068 = vmatpush1.bf16.msra.mxu0 0
      %6069 = vmatprep.subr.bf16.mxu0 0
      %6070 = vmatpush1.bf16.msra.mxu0 0
      %6071 = vmatprep.subr.bf16.mxu0 0
      %6072 = vmatpush1.bf16.msra.mxu0 0
      %6073 = vmatprep.subr.bf16.mxu0 0
      %6074 = vmatpush1.bf16.msra.mxu0 0
      %6075 = vmatprep.subr.bf16.mxu0 0
      %6076 = vmatpush1.bf16.msra.mxu0 0
      %6077 = vmatprep.subr.bf16.mxu0 0
      %6078 = vmatpush1.bf16.msra.mxu0 0
      %6079 = vmatprep.subr.bf16.mxu0 0
      %6080 = vmatpush1.bf16.msra.mxu0 0
      %6081 = vmatprep.subr.bf16.mxu0 0
      %6082 = vmatpush1.bf16.msra.mxu0 0
      %6083 = vmatprep.subr.bf16.mxu0 0
      %6084 = vmatpush1.bf16.msra.mxu0 0
      %6085 = vmatprep.subr.bf16.mxu0 0
      %6086 = vmatpush1.bf16.msra.mxu0 0
      %6087 = vmatprep.subr.bf16.mxu0 0
      %6088 = vmatpush1.bf16.msra.mxu0 0
      %6089 = vmatprep.subr.bf16.mxu0 0
      %6090 = vmatpush1.bf16.msra.mxu0 0
      %6091 = vmatprep.subr.bf16.mxu0 0
      %6092 = vmatpush1.bf16.msra.mxu0 0
      %6093 = vmatprep.mubr.bf16.mxu0 0
      %6094 = vmatmul.mubr.bf16.gmra.mrb[0].mxu0 %v6059
      %v6095 = vpop.f32.mrb[0].mxu0
      %v6096 = vadd.f32 0.0, %v6095
      %v6097 = vpop.f32.mrb[0].mxu0
      %v6098 = vpop.f32.mrb[0].mxu0
      %v6099 = vadd.f32 0.0, %v6098
      %v6100 = vpop.f32.mrb[0].mxu0
      %6101 = vdwg.mxu0
      %v6102 = vadd.f32 %v6027, %v6096
      %v6103 = vadd.f32 %v6028, %v6099
      %s6104 = scalar_lea.vmem %s1184, 12
      %v6105 = vld [vmem:[%s6104] sm:$0xf]
      %v6106 = vld [vmem:[%s6104 + $0x4] sm:$0xf]
      %v6107 = vld [vmem:[%s2758] sm:$0xf]
      %v6108 = vld [vmem:[%s2758 + $0x4] sm:$0xf]
      %v6111 = vunpack.c.l.b16 %v6105
      %v6112 = vunpack.c.l.b16 %v6106
      %v6113 = vpack.c.b16 %v6112, %v6111
      %v6116 = vunpack.c.l.b16 %v6107
      %v6117 = vunpack.c.l.b16 %v6108
      %v6118 = vpack.c.b16 %v6117, %v6116
      %v6121 = vsel %vm1337, %v6113, 0
      %6123 = vmatprep.subr.bf16.mxu0 0
      %6124 = vmatpush1.bf16.msra.mxu0 %v6118
      %6125 = vmatprep.subr.bf16.mxu0 0
      %6126 = vmatpush1.bf16.msra.mxu0 0
      %6127 = vmatprep.subr.bf16.mxu0 0
      %6128 = vmatpush1.bf16.msra.mxu0 0
      %6129 = vmatprep.subr.bf16.mxu0 0
      %6130 = vmatpush1.bf16.msra.mxu0 0
      %6131 = vmatprep.subr.bf16.mxu0 0
      %6132 = vmatpush1.bf16.msra.mxu0 0
      %6133 = vmatprep.subr.bf16.mxu0 0
      %6134 = vmatpush1.bf16.msra.mxu0 0
      %6135 = vmatprep.subr.bf16.mxu0 0
      %6136 = vmatpush1.bf16.msra.mxu0 0
      %6137 = vmatprep.subr.bf16.mxu0 0
      %6138 = vmatpush1.bf16.msra.mxu0 0
      %6139 = vmatprep.subr.bf16.mxu0 0
      %6140 = vmatpush1.bf16.msra.mxu0 0
      %6141 = vmatprep.subr.bf16.mxu0 0
      %6142 = vmatpush1.bf16.msra.mxu0 0
      %6143 = vmatprep.subr.bf16.mxu0 0
      %6144 = vmatpush1.bf16.msra.mxu0 0
      %6145 = vmatprep.subr.bf16.mxu0 0
      %6146 = vmatpush1.bf16.msra.mxu0 0
      %6147 = vmatprep.subr.bf16.mxu0 0
      %6148 = vmatpush1.bf16.msra.mxu0 0
      %6149 = vmatprep.subr.bf16.mxu0 0
      %6150 = vmatpush1.bf16.msra.mxu0 0
      %6151 = vmatprep.subr.bf16.mxu0 0
      %6152 = vmatpush1.bf16.msra.mxu0 0
      %6153 = vmatprep.subr.bf16.mxu0 0
      %6154 = vmatpush1.bf16.msra.mxu0 0
      %6155 = vmatprep.mubr.bf16.mxu0 0
      %6156 = vmatmul.mubr.bf16.gmra.mrb[0].mxu0 %v6121
      %v6157 = vpop.f32.mrb[0].mxu0
      %v6158 = vadd.f32 0.0, %v6157
      %v6159 = vpop.f32.mrb[0].mxu0
      %v6160 = vpop.f32.mrb[0].mxu0
      %v6161 = vadd.f32 0.0, %v6160
      %v6162 = vpop.f32.mrb[0].mxu0
      %6163 = vdwg.mxu0
      %v6164 = vadd.f32 %v6102, %v6158
      %v6165 = vadd.f32 %v6103, %v6161
      %s6166 = scalar_lea.vmem %s1199, 12
      %v6167 = vld [vmem:[%s6166] sm:$0xf]
      %v6168 = vld [vmem:[%s6166 + $0x4] sm:$0xf]
      %v6169 = vld [vmem:[%s2820] sm:$0xf]
      %v6170 = vld [vmem:[%s2820 + $0x4] sm:$0xf]
      %v6173 = vunpack.c.l.b16 %v6167
      %v6174 = vunpack.c.l.b16 %v6168
      %v6175 = vpack.c.b16 %v6174, %v6173
      %v6178 = vunpack.c.l.b16 %v6169
      %v6179 = vunpack.c.l.b16 %v6170
      %v6180 = vpack.c.b16 %v6179, %v6178
      %v6183 = vsel %vm1337, %v6175, 0
      %6185 = vmatprep.subr.bf16.mxu0 0
      %6186 = vmatpush1.bf16.msra.mxu0 %v6180
      %6187 = vmatprep.subr.bf16.mxu0 0
      %6188 = vmatpush1.bf16.msra.mxu0 0
      %6189 = vmatprep.subr.bf16.mxu0 0
      %6190 = vmatpush1.bf16.msra.mxu0 0
      %6191 = vmatprep.subr.bf16.mxu0 0
      %6192 = vmatpush1.bf16.msra.mxu0 0
      %6193 = vmatprep.subr.bf16.mxu0 0
      %6194 = vmatpush1.bf16.msra.mxu0 0
      %6195 = vmatprep.subr.bf16.mxu0 0
      %6196 = vmatpush1.bf16.msra.mxu0 0
      %6197 = vmatprep.subr.bf16.mxu0 0
      %6198 = vmatpush1.bf16.msra.mxu0 0
      %6199 = vmatprep.subr.bf16.mxu0 0
      %6200 = vmatpush1.bf16.msra.mxu0 0
      %6201 = vmatprep.subr.bf16.mxu0 0
      %6202 = vmatpush1.bf16.msra.mxu0 0
      %6203 = vmatprep.subr.bf16.mxu0 0
      %6204 = vmatpush1.bf16.msra.mxu0 0
      %6205 = vmatprep.subr.bf16.mxu0 0
      %6206 = vmatpush1.bf16.msra.mxu0 0
      %6207 = vmatprep.subr.bf16.mxu0 0
      %6208 = vmatpush1.bf16.msra.mxu0 0
      %6209 = vmatprep.subr.bf16.mxu0 0
      %6210 = vmatpush1.bf16.msra.mxu0 0
      %6211 = vmatprep.subr.bf16.mxu0 0
      %6212 = vmatpush1.bf16.msra.mxu0 0
      %6213 = vmatprep.subr.bf16.mxu0 0
      %6214 = vmatpush1.bf16.msra.mxu0 0
      %6215 = vmatprep.subr.bf16.mxu0 0
      %6216 = vmatpush1.bf16.msra.mxu0 0
      %6217 = vmatprep.mubr.bf16.mxu0 0
      %6218 = vmatmul.mubr.bf16.gmra.mrb[0].mxu0 %v6183
      %v6219 = vpop.f32.mrb[0].mxu0
      %v6220 = vadd.f32 0.0, %v6219
      %v6221 = vpop.f32.mrb[0].mxu0
      %v6222 = vpop.f32.mrb[0].mxu0
      %v6223 = vadd.f32 0.0, %v6222
      %v6224 = vpop.f32.mrb[0].mxu0
      %6225 = vdwg.mxu0
      %v6226 = vadd.f32 %v6164, %v6220
      %v6227 = vadd.f32 %v6165, %v6223
      %v6228 = vld [vmem:[%s6104] sm:$0xf]
      %v6229 = vld [vmem:[%s6104 + $0x4] sm:$0xf]
      %v6230 = vld [vmem:[%s6104 + $0x8] sm:$0x1]
      %v6231 = vld [vmem:[%s2883] sm:$0xf]
      %v6232 = vld [vmem:[%s2883 + $0x4] sm:$0xf]
      %v6236 = vunpack.c.l.b16 %v6228
      %v6237 = vunpack.c.l.b16 %v6229
      %v6238 = vunpack.c.l.b16 %v6230
      %v6239 = vpack.c.b16 %v6237, %v6236
      %v6240 = vpack.c.b16 %v6238, %v6238
      %v6242 = vshrl.u32 %v6239, 16
      %v6244 = vshll.u32 %v6239, 16
      %v6246 = vrot.slane %v6244, 1
      %v6247 = vor.u32 %v6242, %v6246
      %v6249 = vshll.u32 %v6240, 16
      %v6251 = vrot.slane %v6249, 1
      %v6252 = vsel %vm1451, %v6247, %v6251
      %v6255 = vunpack.c.l.b16 %v6231
      %v6256 = vunpack.c.l.b16 %v6232
      %v6257 = vpack.c.b16 %v6256, %v6255
      %v6260 = vsel %vm1337, %v6252, 0
      %6262 = vmatprep.subr.bf16.mxu0 0
      %6263 = vmatpush1.bf16.msra.mxu0 %v6257
      %6264 = vmatprep.subr.bf16.mxu0 0
      %6265 = vmatpush1.bf16.msra.mxu0 0
      %6266 = vmatprep.subr.bf16.mxu0 0
      %6267 = vmatpush1.bf16.msra.mxu0 0
      %6268 = vmatprep.subr.bf16.mxu0 0
      %6269 = vmatpush1.bf16.msra.mxu0 0
      %6270 = vmatprep.subr.bf16.mxu0 0
      %6271 = vmatpush1.bf16.msra.mxu0 0
      %6272 = vmatprep.subr.bf16.mxu0 0
      %6273 = vmatpush1.bf16.msra.mxu0 0
      %6274 = vmatprep.subr.bf16.mxu0 0
      %6275 = vmatpush1.bf16.msra.mxu0 0
      %6276 = vmatprep.subr.bf16.mxu0 0
      %6277 = vmatpush1.bf16.msra.mxu0 0
      %6278 = vmatprep.subr.bf16.mxu0 0
      %6279 = vmatpush1.bf16.msra.mxu0 0
      %6280 = vmatprep.subr.bf16.mxu0 0
      %6281 = vmatpush1.bf16.msra.mxu0 0
      %6282 = vmatprep.subr.bf16.mxu0 0
      %6283 = vmatpush1.bf16.msra.mxu0 0
      %6284 = vmatprep.subr.bf16.mxu0 0
      %6285 = vmatpush1.bf16.msra.mxu0 0
      %6286 = vmatprep.subr.bf16.mxu0 0
      %6287 = vmatpush1.bf16.msra.mxu0 0
      %6288 = vmatprep.subr.bf16.mxu0 0
      %6289 = vmatpush1.bf16.msra.mxu0 0
      %6290 = vmatprep.subr.bf16.mxu0 0
      %6291 = vmatpush1.bf16.msra.mxu0 0
      %6292 = vmatprep.subr.bf16.mxu0 0
      %6293 = vmatpush1.bf16.msra.mxu0 0
      %6294 = vmatprep.mubr.bf16.mxu0 0
      %6295 = vmatmul.mubr.bf16.gmra.mrb[0].mxu0 %v6260
      %v6296 = vpop.f32.mrb[0].mxu0
      %v6297 = vadd.f32 0.0, %v6296
      %v6298 = vpop.f32.mrb[0].mxu0
      %v6299 = vpop.f32.mrb[0].mxu0
      %v6300 = vadd.f32 0.0, %v6299
      %v6301 = vpop.f32.mrb[0].mxu0
      %6302 = vdwg.mxu0
      %v6303 = vadd.f32 %v6226, %v6297
      %v6304 = vadd.f32 %v6227, %v6300
      %v6305 = vld [vmem:[%s6166] sm:$0xf]
      %v6306 = vld [vmem:[%s6166 + $0x4] sm:$0xf]
      %v6307 = vld [vmem:[%s6166 + $0x8] sm:$0x1]
      %v6308 = vld [vmem:[%s2961] sm:$0xf]
      %v6309 = vld [vmem:[%s2961 + $0x4] sm:$0xf]
      %v6313 = vunpack.c.l.b16 %v6305
      %v6314 = vunpack.c.l.b16 %v6306
      %v6315 = vunpack.c.l.b16 %v6307
      %v6316 = vpack.c.b16 %v6314, %v6313
      %v6317 = vpack.c.b16 %v6315, %v6315
      %v6319 = vshrl.u32 %v6316, 16
      %v6321 = vshll.u32 %v6316, 16
      %v6323 = vrot.slane %v6321, 1
      %v6324 = vor.u32 %v6319, %v6323
      %v6326 = vshll.u32 %v6317, 16
      %v6328 = vrot.slane %v6326, 1
      %v6329 = vsel %vm1451, %v6324, %v6328
      %v6332 = vunpack.c.l.b16 %v6308
      %v6333 = vunpack.c.l.b16 %v6309
      %v6334 = vpack.c.b16 %v6333, %v6332
      %v6337 = vsel %vm1337, %v6329, 0
      %6339 = vmatprep.subr.bf16.mxu0 0
      %6340 = vmatpush1.bf16.msra.mxu0 %v6334
      %6341 = vmatprep.subr.bf16.mxu0 0
      %6342 = vmatpush1.bf16.msra.mxu0 0
      %6343 = vmatprep.subr.bf16.mxu0 0
      %6344 = vmatpush1.bf16.msra.mxu0 0
      %6345 = vmatprep.subr.bf16.mxu0 0
      %6346 = vmatpush1.bf16.msra.mxu0 0
      %6347 = vmatprep.subr.bf16.mxu0 0
      %6348 = vmatpush1.bf16.msra.mxu0 0
      %6349 = vmatprep.subr.bf16.mxu0 0
      %6350 = vmatpush1.bf16.msra.mxu0 0
      %6351 = vmatprep.subr.bf16.mxu0 0
      %6352 = vmatpush1.bf16.msra.mxu0 0
      %6353 = vmatprep.subr.bf16.mxu0 0
      %6354 = vmatpush1.bf16.msra.mxu0 0
      %6355 = vmatprep.subr.bf16.mxu0 0
      %6356 = vmatpush1.bf16.msra.mxu0 0
      %6357 = vmatprep.subr.bf16.mxu0 0
      %6358 = vmatpush1.bf16.msra.mxu0 0
      %6359 = vmatprep.subr.bf16.mxu0 0
      %6360 = vmatpush1.bf16.msra.mxu0 0
      %6361 = vmatprep.subr.bf16.mxu0 0
      %6362 = vmatpush1.bf16.msra.mxu0 0
      %6363 = vmatprep.subr.bf16.mxu0 0
      %6364 = vmatpush1.bf16.msra.mxu0 0
      %6365 = vmatprep.subr.bf16.mxu0 0
      %6366 = vmatpush1.bf16.msra.mxu0 0
      %6367 = vmatprep.subr.bf16.mxu0 0
      %6368 = vmatpush1.bf16.msra.mxu0 0
      %6369 = vmatprep.subr.bf16.mxu0 0
      %6370 = vmatpush1.bf16.msra.mxu0 0
      %6371 = vmatprep.mubr.bf16.mxu0 0
      %6372 = vmatmul.mubr.bf16.gmra.mrb[0].mxu0 %v6337
      %v6373 = vpop.f32.mrb[0].mxu0
      %v6374 = vadd.f32 0.0, %v6373
      %v6375 = vpop.f32.mrb[0].mxu0
      %v6376 = vpop.f32.mrb[0].mxu0
      %v6377 = vadd.f32 0.0, %v6376
      %v6378 = vpop.f32.mrb[0].mxu0
      %6379 = vdwg.mxu0
      %v6380 = vadd.f32 %v6303, %v6374
      %v6381 = vadd.f32 %v6304, %v6377
      %v6382 = vld [vmem:[%s6104] sm:$0xe]
      %v6383 = vld [vmem:[%s3037] sm:$0xf]
      %v6384 = vld [vmem:[%s3037 + $0x4] sm:$0xf]
      %v6386 = vunpack.c.l.b16 %v6382
      %v6387 = vpack.c.b16 %v6237, %v6386
      %v6388 = vrot.slane %v6387, 1
      %v6389 = vrot.slane %v6240, 1
      %v6390 = vsel %vm1601, %v6388, %v6389
      %v6393 = vunpack.c.l.b16 %v6383
      %v6394 = vunpack.c.l.b16 %v6384
      %v6395 = vpack.c.b16 %v6394, %v6393
      %v6398 = vsel %vm1337, %v6390, 0
      %6400 = vmatprep.subr.bf16.mxu0 0
      %6401 = vmatpush1.bf16.msra.mxu0 %v6395
      %6402 = vmatprep.subr.bf16.mxu0 0
      %6403 = vmatpush1.bf16.msra.mxu0 0
      %6404 = vmatprep.subr.bf16.mxu0 0
      %6405 = vmatpush1.bf16.msra.mxu0 0
      %6406 = vmatprep.subr.bf16.mxu0 0
      %6407 = vmatpush1.bf16.msra.mxu0 0
      %6408 = vmatprep.subr.bf16.mxu0 0
      %6409 = vmatpush1.bf16.msra.mxu0 0
      %6410 = vmatprep.subr.bf16.mxu0 0
      %6411 = vmatpush1.bf16.msra.mxu0 0
      %6412 = vmatprep.subr.bf16.mxu0 0
      %6413 = vmatpush1.bf16.msra.mxu0 0
      %6414 = vmatprep.subr.bf16.mxu0 0
      %6415 = vmatpush1.bf16.msra.mxu0 0
      %6416 = vmatprep.subr.bf16.mxu0 0
      %6417 = vmatpush1.bf16.msra.mxu0 0
      %6418 = vmatprep.subr.bf16.mxu0 0
      %6419 = vmatpush1.bf16.msra.mxu0 0
      %6420 = vmatprep.subr.bf16.mxu0 0
      %6421 = vmatpush1.bf16.msra.mxu0 0
      %6422 = vmatprep.subr.bf16.mxu0 0
      %6423 = vmatpush1.bf16.msra.mxu0 0
      %6424 = vmatprep.subr.bf16.mxu0 0
      %6425 = vmatpush1.bf16.msra.mxu0 0
      %6426 = vmatprep.subr.bf16.mxu0 0
      %6427 = vmatpush1.bf16.msra.mxu0 0
      %6428 = vmatprep.subr.bf16.mxu0 0
      %6429 = vmatpush1.bf16.msra.mxu0 0
      %6430 = vmatprep.subr.bf16.mxu0 0
      %6431 = vmatpush1.bf16.msra.mxu0 0
      %6432 = vmatprep.mubr.bf16.mxu0 0
      %6433 = vmatmul.mubr.bf16.gmra.mrb[0].mxu0 %v6398
      %v6434 = vpop.f32.mrb[0].mxu0
      %v6435 = vadd.f32 0.0, %v6434
      %v6436 = vpop.f32.mrb[0].mxu0
      %v6437 = vpop.f32.mrb[0].mxu0
      %v6438 = vadd.f32 0.0, %v6437
      %v6439 = vpop.f32.mrb[0].mxu0
      %6440 = vdwg.mxu0
      %v6441 = vadd.f32 %v6380, %v6435
      %v6442 = vadd.f32 %v6381, %v6438
      %v6443 = vld [vmem:[%s6166] sm:$0xe]
      %v6444 = vld [vmem:[%s3099] sm:$0xf]
      %v6445 = vld [vmem:[%s3099 + $0x4] sm:$0xf]
      %v6447 = vunpack.c.l.b16 %v6443
      %v6448 = vpack.c.b16 %v6314, %v6447
      %v6449 = vrot.slane %v6448, 1
      %v6450 = vrot.slane %v6317, 1
      %v6451 = vsel %vm1601, %v6449, %v6450
      %v6454 = vunpack.c.l.b16 %v6444
      %v6455 = vunpack.c.l.b16 %v6445
      %v6456 = vpack.c.b16 %v6455, %v6454
      %v6459 = vsel %vm1337, %v6451, 0
      %6461 = vmatprep.subr.bf16.mxu0 0
      %6462 = vmatpush1.bf16.msra.mxu0 %v6456
      %6463 = vmatprep.subr.bf16.mxu0 0
      %6464 = vmatpush1.bf16.msra.mxu0 0
      %6465 = vmatprep.subr.bf16.mxu0 0
      %6466 = vmatpush1.bf16.msra.mxu0 0
      %6467 = vmatprep.subr.bf16.mxu0 0
      %6468 = vmatpush1.bf16.msra.mxu0 0
      %6469 = vmatprep.subr.bf16.mxu0 0
      %6470 = vmatpush1.bf16.msra.mxu0 0
      %6471 = vmatprep.subr.bf16.mxu0 0
      %6472 = vmatpush1.bf16.msra.mxu0 0
      %6473 = vmatprep.subr.bf16.mxu0 0
      %6474 = vmatpush1.bf16.msra.mxu0 0
      %6475 = vmatprep.subr.bf16.mxu0 0
      %6476 = vmatpush1.bf16.msra.mxu0 0
      %6477 = vmatprep.subr.bf16.mxu0 0
      %6478 = vmatpush1.bf16.msra.mxu0 0
      %6479 = vmatprep.subr.bf16.mxu0 0
      %6480 = vmatpush1.bf16.msra.mxu0 0
      %6481 = vmatprep.subr.bf16.mxu0 0
      %6482 = vmatpush1.bf16.msra.mxu0 0
      %6483 = vmatprep.subr.bf16.mxu0 0
      %6484 = vmatpush1.bf16.msra.mxu0 0
      %6485 = vmatprep.subr.bf16.mxu0 0
      %6486 = vmatpush1.bf16.msra.mxu0 0
      %6487 = vmatprep.subr.bf16.mxu0 0
      %6488 = vmatpush1.bf16.msra.mxu0 0
      %6489 = vmatprep.subr.bf16.mxu0 0
      %6490 = vmatpush1.bf16.msra.mxu0 0
      %6491 = vmatprep.subr.bf16.mxu0 0
      %6492 = vmatpush1.bf16.msra.mxu0 0
      %6493 = vmatprep.mubr.bf16.mxu0 0
      %6494 = vmatmul.mubr.bf16.gmra.mrb[0].mxu0 %v6459
      %v6495 = vpop.f32.mrb[0].mxu0
      %v6496 = vadd.f32 0.0, %v6495
      %v6497 = vpop.f32.mrb[0].mxu0
      %v6498 = vpop.f32.mrb[0].mxu0
      %v6499 = vadd.f32 0.0, %v6498
      %v6500 = vpop.f32.mrb[0].mxu0
      %6501 = vdwg.mxu0
      %v6502 = vadd.f32 %v6441, %v6496
      %v6503 = vadd.f32 %v6442, %v6499
      %v6504 = vld [vmem:[%s6104 + $0x8] sm:$0x3]
      %v6505 = vld [vmem:[%s3161] sm:$0xf]
      %v6506 = vld [vmem:[%s3161 + $0x4] sm:$0xf]
      %v6508 = vunpack.c.l.b16 %v6504
      %v6509 = vpack.c.b16 %v6508, %v6508
      %v6511 = vshrl.u32 %v6387, 16
      %v6513 = vrot.slane %v6511, 1
      %v6514 = vshll.u32 %v6387, 16
      %v6516 = vrot.slane %v6514, 2
      %v6517 = vor.u32 %v6513, %v6516
      %v6519 = vshrl.u32 %v6509, 16
      %v6521 = vrot.slane %v6519, 1
      %v6522 = vshll.u32 %v6509, 16
      %v6524 = vrot.slane %v6522, 2
      %v6525 = vor.u32 %v6521, %v6524
      %v6526 = vsel %vm1726, %v6517, %v6525
      %v6529 = vunpack.c.l.b16 %v6505
      %v6530 = vunpack.c.l.b16 %v6506
      %v6531 = vpack.c.b16 %v6530, %v6529
      %v6534 = vsel %vm1337, %v6526, 0
      %6536 = vmatprep.subr.bf16.mxu0 0
      %6537 = vmatpush1.bf16.msra.mxu0 %v6531
      %6538 = vmatprep.subr.bf16.mxu0 0
      %6539 = vmatpush1.bf16.msra.mxu0 0
      %6540 = vmatprep.subr.bf16.mxu0 0
      %6541 = vmatpush1.bf16.msra.mxu0 0
      %6542 = vmatprep.subr.bf16.mxu0 0
      %6543 = vmatpush1.bf16.msra.mxu0 0
      %6544 = vmatprep.subr.bf16.mxu0 0
      %6545 = vmatpush1.bf16.msra.mxu0 0
      %6546 = vmatprep.subr.bf16.mxu0 0
      %6547 = vmatpush1.bf16.msra.mxu0 0
      %6548 = vmatprep.subr.bf16.mxu0 0
      %6549 = vmatpush1.bf16.msra.mxu0 0
      %6550 = vmatprep.subr.bf16.mxu0 0
      %6551 = vmatpush1.bf16.msra.mxu0 0
      %6552 = vmatprep.subr.bf16.mxu0 0
      %6553 = vmatpush1.bf16.msra.mxu0 0
      %6554 = vmatprep.subr.bf16.mxu0 0
      %6555 = vmatpush1.bf16.msra.mxu0 0
      %6556 = vmatprep.subr.bf16.mxu0 0
      %6557 = vmatpush1.bf16.msra.mxu0 0
      %6558 = vmatprep.subr.bf16.mxu0 0
      %6559 = vmatpush1.bf16.msra.mxu0 0
      %6560 = vmatprep.subr.bf16.mxu0 0
      %6561 = vmatpush1.bf16.msra.mxu0 0
      %6562 = vmatprep.subr.bf16.mxu0 0
      %6563 = vmatpush1.bf16.msra.mxu0 0
      %6564 = vmatprep.subr.bf16.mxu0 0
      %6565 = vmatpush1.bf16.msra.mxu0 0
      %6566 = vmatprep.subr.bf16.mxu0 0
      %6567 = vmatpush1.bf16.msra.mxu0 0
      %6568 = vmatprep.mubr.bf16.mxu0 0
      %6569 = vmatmul.mubr.bf16.gmra.mrb[0].mxu0 %v6534
      %v6570 = vpop.f32.mrb[0].mxu0
      %v6571 = vadd.f32 0.0, %v6570
      %v6572 = vpop.f32.mrb[0].mxu0
      %v6573 = vpop.f32.mrb[0].mxu0
      %v6574 = vadd.f32 0.0, %v6573
      %v6575 = vpop.f32.mrb[0].mxu0
      %6576 = vdwg.mxu0
      %v6577 = vadd.f32 %v6502, %v6571
      %v6578 = vadd.f32 %v6503, %v6574
      %s6579 = scalar_lea.vmem %s1214, 12
      %v6580 = vld [vmem:[%s6579] sm:$0xf]
      %v6581 = vld [vmem:[%s6579 + $0x4] sm:$0xf]
      %v6582 = vld [vmem:[%s3238] sm:$0xf]
      %v6583 = vld [vmem:[%s3238 + $0x4] sm:$0xf]
      %v6586 = vunpack.c.l.b16 %v6580
      %v6587 = vunpack.c.l.b16 %v6581
      %v6588 = vpack.c.b16 %v6587, %v6586
      %v6591 = vunpack.c.l.b16 %v6582
      %v6592 = vunpack.c.l.b16 %v6583
      %v6593 = vpack.c.b16 %v6592, %v6591
      %v6596 = vsel %vm1337, %v6588, 0
      %6598 = vmatprep.subr.bf16.mxu0 0
      %6599 = vmatpush1.bf16.msra.mxu0 %v6593
      %6600 = vmatprep.subr.bf16.mxu0 0
      %6601 = vmatpush1.bf16.msra.mxu0 0
      %6602 = vmatprep.subr.bf16.mxu0 0
      %6603 = vmatpush1.bf16.msra.mxu0 0
      %6604 = vmatprep.subr.bf16.mxu0 0
      %6605 = vmatpush1.bf16.msra.mxu0 0
      %6606 = vmatprep.subr.bf16.mxu0 0
      %6607 = vmatpush1.bf16.msra.mxu0 0
      %6608 = vmatprep.subr.bf16.mxu0 0
      %6609 = vmatpush1.bf16.msra.mxu0 0
      %6610 = vmatprep.subr.bf16.mxu0 0
      %6611 = vmatpush1.bf16.msra.mxu0 0
      %6612 = vmatprep.subr.bf16.mxu0 0
      %6613 = vmatpush1.bf16.msra.mxu0 0
      %6614 = vmatprep.subr.bf16.mxu0 0
      %6615 = vmatpush1.bf16.msra.mxu0 0
      %6616 = vmatprep.subr.bf16.mxu0 0
      %6617 = vmatpush1.bf16.msra.mxu0 0
      %6618 = vmatprep.subr.bf16.mxu0 0
      %6619 = vmatpush1.bf16.msra.mxu0 0
      %6620 = vmatprep.subr.bf16.mxu0 0
      %6621 = vmatpush1.bf16.msra.mxu0 0
      %6622 = vmatprep.subr.bf16.mxu0 0
      %6623 = vmatpush1.bf16.msra.mxu0 0
      %6624 = vmatprep.subr.bf16.mxu0 0
      %6625 = vmatpush1.bf16.msra.mxu0 0
      %6626 = vmatprep.subr.bf16.mxu0 0
      %6627 = vmatpush1.bf16.msra.mxu0 0
      %6628 = vmatprep.subr.bf16.mxu0 0
      %6629 = vmatpush1.bf16.msra.mxu0 0
      %6630 = vmatprep.mubr.bf16.mxu0 0
      %6631 = vmatmul.mubr.bf16.gmra.mrb[0].mxu0 %v6596
      %v6632 = vpop.f32.mrb[0].mxu0
      %v6633 = vadd.f32 0.0, %v6632
      %v6634 = vpop.f32.mrb[0].mxu0
      %v6635 = vpop.f32.mrb[0].mxu0
      %v6636 = vadd.f32 0.0, %v6635
      %v6637 = vpop.f32.mrb[0].mxu0
      %6638 = vdwg.mxu0
      %v6639 = vadd.f32 %v6577, %v6633
      %v6640 = vadd.f32 %v6578, %v6636
      %s6641 = scalar_lea.vmem %s1229, 12
      %v6642 = vld [vmem:[%s6641] sm:$0xf]
      %v6643 = vld [vmem:[%s6641 + $0x4] sm:$0xf]
      %v6644 = vld [vmem:[%s3300] sm:$0xf]
      %v6645 = vld [vmem:[%s3300 + $0x4] sm:$0xf]
      %v6648 = vunpack.c.l.b16 %v6642
      %v6649 = vunpack.c.l.b16 %v6643
      %v6650 = vpack.c.b16 %v6649, %v6648
      %v6653 = vunpack.c.l.b16 %v6644
      %v6654 = vunpack.c.l.b16 %v6645
      %v6655 = vpack.c.b16 %v6654, %v6653
      %v6658 = vsel %vm1337, %v6650, 0
      %6660 = vmatprep.subr.bf16.mxu0 0
      %6661 = vmatpush1.bf16.msra.mxu0 %v6655
      %6662 = vmatprep.subr.bf16.mxu0 0
      %6663 = vmatpush1.bf16.msra.mxu0 0
      %6664 = vmatprep.subr.bf16.mxu0 0
      %6665 = vmatpush1.bf16.msra.mxu0 0
      %6666 = vmatprep.subr.bf16.mxu0 0
      %6667 = vmatpush1.bf16.msra.mxu0 0
      %6668 = vmatprep.subr.bf16.mxu0 0
      %6669 = vmatpush1.bf16.msra.mxu0 0
      %6670 = vmatprep.subr.bf16.mxu0 0
      %6671 = vmatpush1.bf16.msra.mxu0 0
      %6672 = vmatprep.subr.bf16.mxu0 0
      %6673 = vmatpush1.bf16.msra.mxu0 0
      %6674 = vmatprep.subr.bf16.mxu0 0
      %6675 = vmatpush1.bf16.msra.mxu0 0
      %6676 = vmatprep.subr.bf16.mxu0 0
      %6677 = vmatpush1.bf16.msra.mxu0 0
      %6678 = vmatprep.subr.bf16.mxu0 0
      %6679 = vmatpush1.bf16.msra.mxu0 0
      %6680 = vmatprep.subr.bf16.mxu0 0
      %6681 = vmatpush1.bf16.msra.mxu0 0
      %6682 = vmatprep.subr.bf16.mxu0 0
      %6683 = vmatpush1.bf16.msra.mxu0 0
      %6684 = vmatprep.subr.bf16.mxu0 0
      %6685 = vmatpush1.bf16.msra.mxu0 0
      %6686 = vmatprep.subr.bf16.mxu0 0
      %6687 = vmatpush1.bf16.msra.mxu0 0
      %6688 = vmatprep.subr.bf16.mxu0 0
      %6689 = vmatpush1.bf16.msra.mxu0 0
      %6690 = vmatprep.subr.bf16.mxu0 0
      %6691 = vmatpush1.bf16.msra.mxu0 0
      %6692 = vmatprep.mubr.bf16.mxu0 0
      %6693 = vmatmul.mubr.bf16.gmra.mrb[0].mxu0 %v6658
      %v6694 = vpop.f32.mrb[0].mxu0
      %v6695 = vadd.f32 0.0, %v6694
      %v6696 = vpop.f32.mrb[0].mxu0
      %v6697 = vpop.f32.mrb[0].mxu0
      %v6698 = vadd.f32 0.0, %v6697
      %v6699 = vpop.f32.mrb[0].mxu0
      %6700 = vdwg.mxu0
      %v6701 = vadd.f32 %v6639, %v6695
      %v6702 = vadd.f32 %v6640, %v6698
      %v6703 = vld [vmem:[%s6579] sm:$0xf]
      %v6704 = vld [vmem:[%s6579 + $0x4] sm:$0xf]
      %v6705 = vld [vmem:[%s6579 + $0x8] sm:$0x1]
      %v6706 = vld [vmem:[%s3363] sm:$0xf]
      %v6707 = vld [vmem:[%s3363 + $0x4] sm:$0xf]
      %v6711 = vunpack.c.l.b16 %v6703
      %v6712 = vunpack.c.l.b16 %v6704
      %v6713 = vunpack.c.l.b16 %v6705
      %v6714 = vpack.c.b16 %v6712, %v6711
      %v6715 = vpack.c.b16 %v6713, %v6713
      %v6717 = vshrl.u32 %v6714, 16
      %v6719 = vshll.u32 %v6714, 16
      %v6721 = vrot.slane %v6719, 1
      %v6722 = vor.u32 %v6717, %v6721
      %v6724 = vshll.u32 %v6715, 16
      %v6726 = vrot.slane %v6724, 1
      %v6727 = vsel %vm1451, %v6722, %v6726
      %v6730 = vunpack.c.l.b16 %v6706
      %v6731 = vunpack.c.l.b16 %v6707
      %v6732 = vpack.c.b16 %v6731, %v6730
      %v6735 = vsel %vm1337, %v6727, 0
      %6737 = vmatprep.subr.bf16.mxu0 0
      %6738 = vmatpush1.bf16.msra.mxu0 %v6732
      %6739 = vmatprep.subr.bf16.mxu0 0
      %6740 = vmatpush1.bf16.msra.mxu0 0
      %6741 = vmatprep.subr.bf16.mxu0 0
      %6742 = vmatpush1.bf16.msra.mxu0 0
      %6743 = vmatprep.subr.bf16.mxu0 0
      %6744 = vmatpush1.bf16.msra.mxu0 0
      %6745 = vmatprep.subr.bf16.mxu0 0
      %6746 = vmatpush1.bf16.msra.mxu0 0
      %6747 = vmatprep.subr.bf16.mxu0 0
      %6748 = vmatpush1.bf16.msra.mxu0 0
      %6749 = vmatprep.subr.bf16.mxu0 0
      %6750 = vmatpush1.bf16.msra.mxu0 0
      %6751 = vmatprep.subr.bf16.mxu0 0
      %6752 = vmatpush1.bf16.msra.mxu0 0
      %6753 = vmatprep.subr.bf16.mxu0 0
      %6754 = vmatpush1.bf16.msra.mxu0 0
      %6755 = vmatprep.subr.bf16.mxu0 0
      %6756 = vmatpush1.bf16.msra.mxu0 0
      %6757 = vmatprep.subr.bf16.mxu0 0
      %6758 = vmatpush1.bf16.msra.mxu0 0
      %6759 = vmatprep.subr.bf16.mxu0 0
      %6760 = vmatpush1.bf16.msra.mxu0 0
      %6761 = vmatprep.subr.bf16.mxu0 0
      %6762 = vmatpush1.bf16.msra.mxu0 0
      %6763 = vmatprep.subr.bf16.mxu0 0
      %6764 = vmatpush1.bf16.msra.mxu0 0
      %6765 = vmatprep.subr.bf16.mxu0 0
      %6766 = vmatpush1.bf16.msra.mxu0 0
      %6767 = vmatprep.subr.bf16.mxu0 0
      %6768 = vmatpush1.bf16.msra.mxu0 0
      %6769 = vmatprep.mubr.bf16.mxu0 0
      %6770 = vmatmul.mubr.bf16.gmra.mrb[0].mxu0 %v6735
      %v6771 = vpop.f32.mrb[0].mxu0
      %v6772 = vadd.f32 0.0, %v6771
      %v6773 = vpop.f32.mrb[0].mxu0
      %v6774 = vpop.f32.mrb[0].mxu0
      %v6775 = vadd.f32 0.0, %v6774
      %v6776 = vpop.f32.mrb[0].mxu0
      %6777 = vdwg.mxu0
      %v6778 = vadd.f32 %v6701, %v6772
      %v6779 = vadd.f32 %v6702, %v6775
      %v6780 = vld [vmem:[%s6641] sm:$0xf]
      %v6781 = vld [vmem:[%s6641 + $0x4] sm:$0xf]
      %v6782 = vld [vmem:[%s6641 + $0x8] sm:$0x1]
      %v6783 = vld [vmem:[%s3441] sm:$0xf]
      %v6784 = vld [vmem:[%s3441 + $0x4] sm:$0xf]
      %v6788 = vunpack.c.l.b16 %v6780
      %v6789 = vunpack.c.l.b16 %v6781
      %v6790 = vunpack.c.l.b16 %v6782
      %v6791 = vpack.c.b16 %v6789, %v6788
      %v6792 = vpack.c.b16 %v6790, %v6790
      %v6794 = vshrl.u32 %v6791, 16
      %v6796 = vshll.u32 %v6791, 16
      %v6798 = vrot.slane %v6796, 1
      %v6799 = vor.u32 %v6794, %v6798
      %v6801 = vshll.u32 %v6792, 16
      %v6803 = vrot.slane %v6801, 1
      %v6804 = vsel %vm1451, %v6799, %v6803
      %v6807 = vunpack.c.l.b16 %v6783
      %v6808 = vunpack.c.l.b16 %v6784
      %v6809 = vpack.c.b16 %v6808, %v6807
      %v6812 = vsel %vm1337, %v6804, 0
      %6814 = vmatprep.subr.bf16.mxu0 0
      %6815 = vmatpush1.bf16.msra.mxu0 %v6809
      %6816 = vmatprep.subr.bf16.mxu0 0
      %6817 = vmatpush1.bf16.msra.mxu0 0
      %6818 = vmatprep.subr.bf16.mxu0 0
      %6819 = vmatpush1.bf16.msra.mxu0 0
      %6820 = vmatprep.subr.bf16.mxu0 0
      %6821 = vmatpush1.bf16.msra.mxu0 0
      %6822 = vmatprep.subr.bf16.mxu0 0
      %6823 = vmatpush1.bf16.msra.mxu0 0
      %6824 = vmatprep.subr.bf16.mxu0 0
      %6825 = vmatpush1.bf16.msra.mxu0 0
      %6826 = vmatprep.subr.bf16.mxu0 0
      %6827 = vmatpush1.bf16.msra.mxu0 0
      %6828 = vmatprep.subr.bf16.mxu0 0
      %6829 = vmatpush1.bf16.msra.mxu0 0
      %6830 = vmatprep.subr.bf16.mxu0 0
      %6831 = vmatpush1.bf16.msra.mxu0 0
      %6832 = vmatprep.subr.bf16.mxu0 0
      %6833 = vmatpush1.bf16.msra.mxu0 0
      %6834 = vmatprep.subr.bf16.mxu0 0
      %6835 = vmatpush1.bf16.msra.mxu0 0
      %6836 = vmatprep.subr.bf16.mxu0 0
      %6837 = vmatpush1.bf16.msra.mxu0 0
      %6838 = vmatprep.subr.bf16.mxu0 0
      %6839 = vmatpush1.bf16.msra.mxu0 0
      %6840 = vmatprep.subr.bf16.mxu0 0
      %6841 = vmatpush1.bf16.msra.mxu0 0
      %6842 = vmatprep.subr.bf16.mxu0 0
      %6843 = vmatpush1.bf16.msra.mxu0 0
      %6844 = vmatprep.subr.bf16.mxu0 0
      %6845 = vmatpush1.bf16.msra.mxu0 0
      %6846 = vmatprep.mubr.bf16.mxu0 0
      %6847 = vmatmul.mubr.bf16.gmra.mrb[0].mxu0 %v6812
      %v6848 = vpop.f32.mrb[0].mxu0
      %v6849 = vadd.f32 0.0, %v6848
      %v6850 = vpop.f32.mrb[0].mxu0
      %v6851 = vpop.f32.mrb[0].mxu0
      %v6852 = vadd.f32 0.0, %v6851
      %v6853 = vpop.f32.mrb[0].mxu0
      %6854 = vdwg.mxu0
      %v6855 = vadd.f32 %v6778, %v6849
      %v6856 = vadd.f32 %v6779, %v6852
      %v6857 = vld [vmem:[%s6579] sm:$0xe]
      %v6858 = vld [vmem:[%s3517] sm:$0xf]
      %v6859 = vld [vmem:[%s3517 + $0x4] sm:$0xf]
      %v6861 = vunpack.c.l.b16 %v6857
      %v6862 = vpack.c.b16 %v6712, %v6861
      %v6863 = vrot.slane %v6862, 1
      %v6864 = vrot.slane %v6715, 1
      %v6865 = vsel %vm1601, %v6863, %v6864
      %v6868 = vunpack.c.l.b16 %v6858
      %v6869 = vunpack.c.l.b16 %v6859
      %v6870 = vpack.c.b16 %v6869, %v6868
      %v6873 = vsel %vm1337, %v6865, 0
      %6875 = vmatprep.subr.bf16.mxu0 0
      %6876 = vmatpush1.bf16.msra.mxu0 %v6870
      %6877 = vmatprep.subr.bf16.mxu0 0
      %6878 = vmatpush1.bf16.msra.mxu0 0
      %6879 = vmatprep.subr.bf16.mxu0 0
      %6880 = vmatpush1.bf16.msra.mxu0 0
      %6881 = vmatprep.subr.bf16.mxu0 0
      %6882 = vmatpush1.bf16.msra.mxu0 0
      %6883 = vmatprep.subr.bf16.mxu0 0
      %6884 = vmatpush1.bf16.msra.mxu0 0
      %6885 = vmatprep.subr.bf16.mxu0 0
      %6886 = vmatpush1.bf16.msra.mxu0 0
      %6887 = vmatprep.subr.bf16.mxu0 0
      %6888 = vmatpush1.bf16.msra.mxu0 0
      %6889 = vmatprep.subr.bf16.mxu0 0
      %6890 = vmatpush1.bf16.msra.mxu0 0
      %6891 = vmatprep.subr.bf16.mxu0 0
      %6892 = vmatpush1.bf16.msra.mxu0 0
      %6893 = vmatprep.subr.bf16.mxu0 0
      %6894 = vmatpush1.bf16.msra.mxu0 0
      %6895 = vmatprep.subr.bf16.mxu0 0
      %6896 = vmatpush1.bf16.msra.mxu0 0
      %6897 = vmatprep.subr.bf16.mxu0 0
      %6898 = vmatpush1.bf16.msra.mxu0 0
      %6899 = vmatprep.subr.bf16.mxu0 0
      %6900 = vmatpush1.bf16.msra.mxu0 0
      %6901 = vmatprep.subr.bf16.mxu0 0
      %6902 = vmatpush1.bf16.msra.mxu0 0
      %6903 = vmatprep.subr.bf16.mxu0 0
      %6904 = vmatpush1.bf16.msra.mxu0 0
      %6905 = vmatprep.subr.bf16.mxu0 0
      %6906 = vmatpush1.bf16.msra.mxu0 0
      %6907 = vmatprep.mubr.bf16.mxu0 0
      %6908 = vmatmul.mubr.bf16.gmra.mrb[0].mxu0 %v6873
      %v6909 = vpop.f32.mrb[0].mxu0
      %v6910 = vadd.f32 0.0, %v6909
      %v6911 = vpop.f32.mrb[0].mxu0
      %v6912 = vpop.f32.mrb[0].mxu0
      %v6913 = vadd.f32 0.0, %v6912
      %v6914 = vpop.f32.mrb[0].mxu0
      %6915 = vdwg.mxu0
      %v6916 = vadd.f32 %v6855, %v6910
      %v6917 = vadd.f32 %v6856, %v6913
      %v6918 = vld [vmem:[%s6641] sm:$0xe]
      %v6919 = vld [vmem:[%s3579] sm:$0xf]
      %v6920 = vld [vmem:[%s3579 + $0x4] sm:$0xf]
      %v6922 = vunpack.c.l.b16 %v6918
      %v6923 = vpack.c.b16 %v6789, %v6922
      %v6924 = vrot.slane %v6923, 1
      %v6925 = vrot.slane %v6792, 1
      %v6926 = vsel %vm1601, %v6924, %v6925
      %v6929 = vunpack.c.l.b16 %v6919
      %v6930 = vunpack.c.l.b16 %v6920
      %v6931 = vpack.c.b16 %v6930, %v6929
      %v6934 = vsel %vm1337, %v6926, 0
      %6936 = vmatprep.subr.bf16.mxu0 0
      %6937 = vmatpush1.bf16.msra.mxu0 %v6931
      %6938 = vmatprep.subr.bf16.mxu0 0
      %6939 = vmatpush1.bf16.msra.mxu0 0
      %6940 = vmatprep.subr.bf16.mxu0 0
      %6941 = vmatpush1.bf16.msra.mxu0 0
      %6942 = vmatprep.subr.bf16.mxu0 0
      %6943 = vmatpush1.bf16.msra.mxu0 0
      %6944 = vmatprep.subr.bf16.mxu0 0
      %6945 = vmatpush1.bf16.msra.mxu0 0
      %6946 = vmatprep.subr.bf16.mxu0 0
      %6947 = vmatpush1.bf16.msra.mxu0 0
      %6948 = vmatprep.subr.bf16.mxu0 0
      %6949 = vmatpush1.bf16.msra.mxu0 0
      %6950 = vmatprep.subr.bf16.mxu0 0
      %6951 = vmatpush1.bf16.msra.mxu0 0
      %6952 = vmatprep.subr.bf16.mxu0 0
      %6953 = vmatpush1.bf16.msra.mxu0 0
      %6954 = vmatprep.subr.bf16.mxu0 0
      %6955 = vmatpush1.bf16.msra.mxu0 0
      %6956 = vmatprep.subr.bf16.mxu0 0
      %6957 = vmatpush1.bf16.msra.mxu0 0
      %6958 = vmatprep.subr.bf16.mxu0 0
      %6959 = vmatpush1.bf16.msra.mxu0 0
      %6960 = vmatprep.subr.bf16.mxu0 0
      %6961 = vmatpush1.bf16.msra.mxu0 0
      %6962 = vmatprep.subr.bf16.mxu0 0
      %6963 = vmatpush1.bf16.msra.mxu0 0
      %6964 = vmatprep.subr.bf16.mxu0 0
      %6965 = vmatpush1.bf16.msra.mxu0 0
      %6966 = vmatprep.subr.bf16.mxu0 0
      %6967 = vmatpush1.bf16.msra.mxu0 0
      %6968 = vmatprep.mubr.bf16.mxu0 0
      %6969 = vmatmul.mubr.bf16.gmra.mrb[0].mxu0 %v6934
      %v6970 = vpop.f32.mrb[0].mxu0
      %v6971 = vadd.f32 0.0, %v6970
      %v6972 = vpop.f32.mrb[0].mxu0
      %v6973 = vpop.f32.mrb[0].mxu0
      %v6974 = vadd.f32 0.0, %v6973
      %v6975 = vpop.f32.mrb[0].mxu0
      %6976 = vdwg.mxu0
      %v6977 = vadd.f32 %v6916, %v6971
      %v6978 = vadd.f32 %v6917, %v6974
      %v6979 = vld [vmem:[%s6579 + $0x8] sm:$0x3]
      %v6980 = vld [vmem:[%s3641] sm:$0xf]
      %v6981 = vld [vmem:[%s3641 + $0x4] sm:$0xf]
      %v6983 = vunpack.c.l.b16 %v6979
      %v6984 = vpack.c.b16 %v6983, %v6983
      %v6986 = vshrl.u32 %v6862, 16
      %v6988 = vrot.slane %v6986, 1
      %v6989 = vshll.u32 %v6862, 16
      %v6991 = vrot.slane %v6989, 2
      %v6992 = vor.u32 %v6988, %v6991
      %v6994 = vshrl.u32 %v6984, 16
      %v6996 = vrot.slane %v6994, 1
      %v6997 = vshll.u32 %v6984, 16
      %v6999 = vrot.slane %v6997, 2
      %v7000 = vor.u32 %v6996, %v6999
      %v7001 = vsel %vm1726, %v6992, %v7000
      %v7004 = vunpack.c.l.b16 %v6980
      %v7005 = vunpack.c.l.b16 %v6981
      %v7006 = vpack.c.b16 %v7005, %v7004
      %v7009 = vsel %vm1337, %v7001, 0
      %7011 = vmatprep.subr.bf16.mxu0 0
      %7012 = vmatpush1.bf16.msra.mxu0 %v7006
      %7013 = vmatprep.subr.bf16.mxu0 0
      %7014 = vmatpush1.bf16.msra.mxu0 0
      %7015 = vmatprep.subr.bf16.mxu0 0
      %7016 = vmatpush1.bf16.msra.mxu0 0
      %7017 = vmatprep.subr.bf16.mxu0 0
      %7018 = vmatpush1.bf16.msra.mxu0 0
      %7019 = vmatprep.subr.bf16.mxu0 0
      %7020 = vmatpush1.bf16.msra.mxu0 0
      %7021 = vmatprep.subr.bf16.mxu0 0
      %7022 = vmatpush1.bf16.msra.mxu0 0
      %7023 = vmatprep.subr.bf16.mxu0 0
      %7024 = vmatpush1.bf16.msra.mxu0 0
      %7025 = vmatprep.subr.bf16.mxu0 0
      %7026 = vmatpush1.bf16.msra.mxu0 0
      %7027 = vmatprep.subr.bf16.mxu0 0
      %7028 = vmatpush1.bf16.msra.mxu0 0
      %7029 = vmatprep.subr.bf16.mxu0 0
      %7030 = vmatpush1.bf16.msra.mxu0 0
      %7031 = vmatprep.subr.bf16.mxu0 0
      %7032 = vmatpush1.bf16.msra.mxu0 0
      %7033 = vmatprep.subr.bf16.mxu0 0
      %7034 = vmatpush1.bf16.msra.mxu0 0
      %7035 = vmatprep.subr.bf16.mxu0 0
      %7036 = vmatpush1.bf16.msra.mxu0 0
      %7037 = vmatprep.subr.bf16.mxu0 0
      %7038 = vmatpush1.bf16.msra.mxu0 0
      %7039 = vmatprep.subr.bf16.mxu0 0
      %7040 = vmatpush1.bf16.msra.mxu0 0
      %7041 = vmatprep.subr.bf16.mxu0 0
      %7042 = vmatpush1.bf16.msra.mxu0 0
      %7043 = vmatprep.mubr.bf16.mxu0 0
      %7044 = vmatmul.mubr.bf16.gmra.mrb[0].mxu0 %v7009
      %v7045 = vpop.f32.mrb[0].mxu0
      %v7046 = vadd.f32 0.0, %v7045
      %v7047 = vpop.f32.mrb[0].mxu0
      %v7048 = vpop.f32.mrb[0].mxu0
      %v7049 = vadd.f32 0.0, %v7048
      %v7050 = vpop.f32.mrb[0].mxu0
      %7051 = vdwg.mxu0
      %v7052 = vadd.f32 %v6977, %v7046
      %v7053 = vadd.f32 %v6978, %v7049
      %s7054 = scalar_lea.vmem %s1244, 12
      %v7055 = vld [vmem:[%s7054] sm:$0xf]
      %v7056 = vld [vmem:[%s7054 + $0x4] sm:$0xf]
      %v7057 = vld [vmem:[%s3718] sm:$0xf]
      %v7058 = vld [vmem:[%s3718 + $0x4] sm:$0xf]
      %v7061 = vunpack.c.l.b16 %v7055
      %v7062 = vunpack.c.l.b16 %v7056
      %v7063 = vpack.c.b16 %v7062, %v7061
      %v7066 = vunpack.c.l.b16 %v7057
      %v7067 = vunpack.c.l.b16 %v7058
      %v7068 = vpack.c.b16 %v7067, %v7066
      %v7071 = vsel %vm1337, %v7063, 0
      %7073 = vmatprep.subr.bf16.mxu0 0
      %7074 = vmatpush1.bf16.msra.mxu0 %v7068
      %7075 = vmatprep.subr.bf16.mxu0 0
      %7076 = vmatpush1.bf16.msra.mxu0 0
      %7077 = vmatprep.subr.bf16.mxu0 0
      %7078 = vmatpush1.bf16.msra.mxu0 0
      %7079 = vmatprep.subr.bf16.mxu0 0
      %7080 = vmatpush1.bf16.msra.mxu0 0
      %7081 = vmatprep.subr.bf16.mxu0 0
      %7082 = vmatpush1.bf16.msra.mxu0 0
      %7083 = vmatprep.subr.bf16.mxu0 0
      %7084 = vmatpush1.bf16.msra.mxu0 0
      %7085 = vmatprep.subr.bf16.mxu0 0
      %7086 = vmatpush1.bf16.msra.mxu0 0
      %7087 = vmatprep.subr.bf16.mxu0 0
      %7088 = vmatpush1.bf16.msra.mxu0 0
      %7089 = vmatprep.subr.bf16.mxu0 0
      %7090 = vmatpush1.bf16.msra.mxu0 0
      %7091 = vmatprep.subr.bf16.mxu0 0
      %7092 = vmatpush1.bf16.msra.mxu0 0
      %7093 = vmatprep.subr.bf16.mxu0 0
      %7094 = vmatpush1.bf16.msra.mxu0 0
      %7095 = vmatprep.subr.bf16.mxu0 0
      %7096 = vmatpush1.bf16.msra.mxu0 0
      %7097 = vmatprep.subr.bf16.mxu0 0
      %7098 = vmatpush1.bf16.msra.mxu0 0
      %7099 = vmatprep.subr.bf16.mxu0 0
      %7100 = vmatpush1.bf16.msra.mxu0 0
      %7101 = vmatprep.subr.bf16.mxu0 0
      %7102 = vmatpush1.bf16.msra.mxu0 0
      %7103 = vmatprep.subr.bf16.mxu0 0
      %7104 = vmatpush1.bf16.msra.mxu0 0
      %7105 = vmatprep.mubr.bf16.mxu0 0
      %7106 = vmatmul.mubr.bf16.gmra.mrb[0].mxu0 %v7071
      %v7107 = vpop.f32.mrb[0].mxu0
      %v7108 = vadd.f32 0.0, %v7107
      %v7109 = vpop.f32.mrb[0].mxu0
      %v7110 = vpop.f32.mrb[0].mxu0
      %v7111 = vadd.f32 0.0, %v7110
      %v7112 = vpop.f32.mrb[0].mxu0
      %7113 = vdwg.mxu0
      %v7114 = vadd.f32 %v7052, %v7108
      %v7115 = vadd.f32 %v7053, %v7111
      %s7116 = scalar_lea.vmem %s1259, 12
      %v7117 = vld [vmem:[%s7116] sm:$0xf]
      %v7118 = vld [vmem:[%s7116 + $0x4] sm:$0xf]
      %v7119 = vld [vmem:[%s3780] sm:$0xf]
      %v7120 = vld [vmem:[%s3780 + $0x4] sm:$0xf]
      %v7123 = vunpack.c.l.b16 %v7117
      %v7124 = vunpack.c.l.b16 %v7118
      %v7125 = vpack.c.b16 %v7124, %v7123
      %v7128 = vunpack.c.l.b16 %v7119
      %v7129 = vunpack.c.l.b16 %v7120
      %v7130 = vpack.c.b16 %v7129, %v7128
      %v7133 = vsel %vm1337, %v7125, 0
      %7135 = vmatprep.subr.bf16.mxu0 0
      %7136 = vmatpush1.bf16.msra.mxu0 %v7130
      %7137 = vmatprep.subr.bf16.mxu0 0
      %7138 = vmatpush1.bf16.msra.mxu0 0
      %7139 = vmatprep.subr.bf16.mxu0 0
      %7140 = vmatpush1.bf16.msra.mxu0 0
      %7141 = vmatprep.subr.bf16.mxu0 0
      %7142 = vmatpush1.bf16.msra.mxu0 0
      %7143 = vmatprep.subr.bf16.mxu0 0
      %7144 = vmatpush1.bf16.msra.mxu0 0
      %7145 = vmatprep.subr.bf16.mxu0 0
      %7146 = vmatpush1.bf16.msra.mxu0 0
      %7147 = vmatprep.subr.bf16.mxu0 0
      %7148 = vmatpush1.bf16.msra.mxu0 0
      %7149 = vmatprep.subr.bf16.mxu0 0
      %7150 = vmatpush1.bf16.msra.mxu0 0
      %7151 = vmatprep.subr.bf16.mxu0 0
      %7152 = vmatpush1.bf16.msra.mxu0 0
      %7153 = vmatprep.subr.bf16.mxu0 0
      %7154 = vmatpush1.bf16.msra.mxu0 0
      %7155 = vmatprep.subr.bf16.mxu0 0
      %7156 = vmatpush1.bf16.msra.mxu0 0
      %7157 = vmatprep.subr.bf16.mxu0 0
      %7158 = vmatpush1.bf16.msra.mxu0 0
      %7159 = vmatprep.subr.bf16.mxu0 0
      %7160 = vmatpush1.bf16.msra.mxu0 0
      %7161 = vmatprep.subr.bf16.mxu0 0
      %7162 = vmatpush1.bf16.msra.mxu0 0
      %7163 = vmatprep.subr.bf16.mxu0 0
      %7164 = vmatpush1.bf16.msra.mxu0 0
      %7165 = vmatprep.subr.bf16.mxu0 0
      %7166 = vmatpush1.bf16.msra.mxu0 0
      %7167 = vmatprep.mubr.bf16.mxu0 0
      %7168 = vmatmul.mubr.bf16.gmra.mrb[0].mxu0 %v7133
      %v7169 = vpop.f32.mrb[0].mxu0
      %v7170 = vadd.f32 0.0, %v7169
      %v7171 = vpop.f32.mrb[0].mxu0
      %v7172 = vpop.f32.mrb[0].mxu0
      %v7173 = vadd.f32 0.0, %v7172
      %v7174 = vpop.f32.mrb[0].mxu0
      %7175 = vdwg.mxu0
      %v7176 = vadd.f32 %v7114, %v7170
      %v7177 = vadd.f32 %v7115, %v7173
      %v7178 = vld [vmem:[%s7054] sm:$0xf]
      %v7179 = vld [vmem:[%s7054 + $0x4] sm:$0xf]
      %v7180 = vld [vmem:[%s7054 + $0x8] sm:$0x1]
      %v7181 = vld [vmem:[%s3843] sm:$0xf]
      %v7182 = vld [vmem:[%s3843 + $0x4] sm:$0xf]
      %v7186 = vunpack.c.l.b16 %v7178
      %v7187 = vunpack.c.l.b16 %v7179
      %v7188 = vunpack.c.l.b16 %v7180
      %v7189 = vpack.c.b16 %v7187, %v7186
      %v7190 = vpack.c.b16 %v7188, %v7188
      %v7192 = vshrl.u32 %v7189, 16
      %v7194 = vshll.u32 %v7189, 16
      %v7196 = vrot.slane %v7194, 1
      %v7197 = vor.u32 %v7192, %v7196
      %v7199 = vshll.u32 %v7190, 16
      %v7201 = vrot.slane %v7199, 1
      %v7202 = vsel %vm1451, %v7197, %v7201
      %v7205 = vunpack.c.l.b16 %v7181
      %v7206 = vunpack.c.l.b16 %v7182
      %v7207 = vpack.c.b16 %v7206, %v7205
      %v7210 = vsel %vm1337, %v7202, 0
      %7212 = vmatprep.subr.bf16.mxu0 0
      %7213 = vmatpush1.bf16.msra.mxu0 %v7207
      %7214 = vmatprep.subr.bf16.mxu0 0
      %7215 = vmatpush1.bf16.msra.mxu0 0
      %7216 = vmatprep.subr.bf16.mxu0 0
      %7217 = vmatpush1.bf16.msra.mxu0 0
      %7218 = vmatprep.subr.bf16.mxu0 0
      %7219 = vmatpush1.bf16.msra.mxu0 0
      %7220 = vmatprep.subr.bf16.mxu0 0
      %7221 = vmatpush1.bf16.msra.mxu0 0
      %7222 = vmatprep.subr.bf16.mxu0 0
      %7223 = vmatpush1.bf16.msra.mxu0 0
      %7224 = vmatprep.subr.bf16.mxu0 0
      %7225 = vmatpush1.bf16.msra.mxu0 0
      %7226 = vmatprep.subr.bf16.mxu0 0
      %7227 = vmatpush1.bf16.msra.mxu0 0
      %7228 = vmatprep.subr.bf16.mxu0 0
      %7229 = vmatpush1.bf16.msra.mxu0 0
      %7230 = vmatprep.subr.bf16.mxu0 0
      %7231 = vmatpush1.bf16.msra.mxu0 0
      %7232 = vmatprep.subr.bf16.mxu0 0
      %7233 = vmatpush1.bf16.msra.mxu0 0
      %7234 = vmatprep.subr.bf16.mxu0 0
      %7235 = vmatpush1.bf16.msra.mxu0 0
      %7236 = vmatprep.subr.bf16.mxu0 0
      %7237 = vmatpush1.bf16.msra.mxu0 0
      %7238 = vmatprep.subr.bf16.mxu0 0
      %7239 = vmatpush1.bf16.msra.mxu0 0
      %7240 = vmatprep.subr.bf16.mxu0 0
      %7241 = vmatpush1.bf16.msra.mxu0 0
      %7242 = vmatprep.subr.bf16.mxu0 0
      %7243 = vmatpush1.bf16.msra.mxu0 0
      %7244 = vmatprep.mubr.bf16.mxu0 0
      %7245 = vmatmul.mubr.bf16.gmra.mrb[0].mxu0 %v7210
      %v7246 = vpop.f32.mrb[0].mxu0
      %v7247 = vadd.f32 0.0, %v7246
      %v7248 = vpop.f32.mrb[0].mxu0
      %v7249 = vpop.f32.mrb[0].mxu0
      %v7250 = vadd.f32 0.0, %v7249
      %v7251 = vpop.f32.mrb[0].mxu0
      %7252 = vdwg.mxu0
      %v7253 = vadd.f32 %v7176, %v7247
      %v7254 = vadd.f32 %v7177, %v7250
      %v7255 = vld [vmem:[%s7116] sm:$0xf]
      %v7256 = vld [vmem:[%s7116 + $0x4] sm:$0xf]
      %v7257 = vld [vmem:[%s7116 + $0x8] sm:$0x1]
      %v7258 = vld [vmem:[%s3921] sm:$0xf]
      %v7259 = vld [vmem:[%s3921 + $0x4] sm:$0xf]
      %v7263 = vunpack.c.l.b16 %v7255
      %v7264 = vunpack.c.l.b16 %v7256
      %v7265 = vunpack.c.l.b16 %v7257
      %v7266 = vpack.c.b16 %v7264, %v7263
      %v7267 = vpack.c.b16 %v7265, %v7265
      %v7269 = vshrl.u32 %v7266, 16
      %v7271 = vshll.u32 %v7266, 16
      %v7273 = vrot.slane %v7271, 1
      %v7274 = vor.u32 %v7269, %v7273
      %v7276 = vshll.u32 %v7267, 16
      %v7278 = vrot.slane %v7276, 1
      %v7279 = vsel %vm1451, %v7274, %v7278
      %v7282 = vunpack.c.l.b16 %v7258
      %v7283 = vunpack.c.l.b16 %v7259
      %v7284 = vpack.c.b16 %v7283, %v7282
      %v7287 = vsel %vm1337, %v7279, 0
      %7289 = vmatprep.subr.bf16.mxu0 0
      %7290 = vmatpush1.bf16.msra.mxu0 %v7284
      %7291 = vmatprep.subr.bf16.mxu0 0
      %7292 = vmatpush1.bf16.msra.mxu0 0
      %7293 = vmatprep.subr.bf16.mxu0 0
      %7294 = vmatpush1.bf16.msra.mxu0 0
      %7295 = vmatprep.subr.bf16.mxu0 0
      %7296 = vmatpush1.bf16.msra.mxu0 0
      %7297 = vmatprep.subr.bf16.mxu0 0
      %7298 = vmatpush1.bf16.msra.mxu0 0
      %7299 = vmatprep.subr.bf16.mxu0 0
      %7300 = vmatpush1.bf16.msra.mxu0 0
      %7301 = vmatprep.subr.bf16.mxu0 0
      %7302 = vmatpush1.bf16.msra.mxu0 0
      %7303 = vmatprep.subr.bf16.mxu0 0
      %7304 = vmatpush1.bf16.msra.mxu0 0
      %7305 = vmatprep.subr.bf16.mxu0 0
      %7306 = vmatpush1.bf16.msra.mxu0 0
      %7307 = vmatprep.subr.bf16.mxu0 0
      %7308 = vmatpush1.bf16.msra.mxu0 0
      %7309 = vmatprep.subr.bf16.mxu0 0
      %7310 = vmatpush1.bf16.msra.mxu0 0
      %7311 = vmatprep.subr.bf16.mxu0 0
      %7312 = vmatpush1.bf16.msra.mxu0 0
      %7313 = vmatprep.subr.bf16.mxu0 0
      %7314 = vmatpush1.bf16.msra.mxu0 0
      %7315 = vmatprep.subr.bf16.mxu0 0
      %7316 = vmatpush1.bf16.msra.mxu0 0
      %7317 = vmatprep.subr.bf16.mxu0 0
      %7318 = vmatpush1.bf16.msra.mxu0 0
      %7319 = vmatprep.subr.bf16.mxu0 0
      %7320 = vmatpush1.bf16.msra.mxu0 0
      %7321 = vmatprep.mubr.bf16.mxu0 0
      %7322 = vmatmul.mubr.bf16.gmra.mrb[0].mxu0 %v7287
      %v7323 = vpop.f32.mrb[0].mxu0
      %v7324 = vadd.f32 0.0, %v7323
      %v7325 = vpop.f32.mrb[0].mxu0
      %v7326 = vpop.f32.mrb[0].mxu0
      %v7327 = vadd.f32 0.0, %v7326
      %v7328 = vpop.f32.mrb[0].mxu0
      %7329 = vdwg.mxu0
      %v7330 = vadd.f32 %v7253, %v7324
      %v7331 = vadd.f32 %v7254, %v7327
      %v7332 = vld [vmem:[%s7054] sm:$0xe]
      %v7333 = vld [vmem:[%s3997] sm:$0xf]
      %v7334 = vld [vmem:[%s3997 + $0x4] sm:$0xf]
      %v7336 = vunpack.c.l.b16 %v7332
      %v7337 = vpack.c.b16 %v7187, %v7336
      %v7338 = vrot.slane %v7337, 1
      %v7339 = vrot.slane %v7190, 1
      %v7340 = vsel %vm1601, %v7338, %v7339
      %v7343 = vunpack.c.l.b16 %v7333
      %v7344 = vunpack.c.l.b16 %v7334
      %v7345 = vpack.c.b16 %v7344, %v7343
      %v7348 = vsel %vm1337, %v7340, 0
      %7350 = vmatprep.subr.bf16.mxu0 0
      %7351 = vmatpush1.bf16.msra.mxu0 %v7345
      %7352 = vmatprep.subr.bf16.mxu0 0
      %7353 = vmatpush1.bf16.msra.mxu0 0
      %7354 = vmatprep.subr.bf16.mxu0 0
      %7355 = vmatpush1.bf16.msra.mxu0 0
      %7356 = vmatprep.subr.bf16.mxu0 0
      %7357 = vmatpush1.bf16.msra.mxu0 0
      %7358 = vmatprep.subr.bf16.mxu0 0
      %7359 = vmatpush1.bf16.msra.mxu0 0
      %7360 = vmatprep.subr.bf16.mxu0 0
      %7361 = vmatpush1.bf16.msra.mxu0 0
      %7362 = vmatprep.subr.bf16.mxu0 0
      %7363 = vmatpush1.bf16.msra.mxu0 0
      %7364 = vmatprep.subr.bf16.mxu0 0
      %7365 = vmatpush1.bf16.msra.mxu0 0
      %7366 = vmatprep.subr.bf16.mxu0 0
      %7367 = vmatpush1.bf16.msra.mxu0 0
      %7368 = vmatprep.subr.bf16.mxu0 0
      %7369 = vmatpush1.bf16.msra.mxu0 0
      %7370 = vmatprep.subr.bf16.mxu0 0
      %7371 = vmatpush1.bf16.msra.mxu0 0
      %7372 = vmatprep.subr.bf16.mxu0 0
      %7373 = vmatpush1.bf16.msra.mxu0 0
      %7374 = vmatprep.subr.bf16.mxu0 0
      %7375 = vmatpush1.bf16.msra.mxu0 0
      %7376 = vmatprep.subr.bf16.mxu0 0
      %7377 = vmatpush1.bf16.msra.mxu0 0
      %7378 = vmatprep.subr.bf16.mxu0 0
      %7379 = vmatpush1.bf16.msra.mxu0 0
      %7380 = vmatprep.subr.bf16.mxu0 0
      %7381 = vmatpush1.bf16.msra.mxu0 0
      %7382 = vmatprep.mubr.bf16.mxu0 0
      %7383 = vmatmul.mubr.bf16.gmra.mrb[0].mxu0 %v7348
      %v7384 = vpop.f32.mrb[0].mxu0
      %v7385 = vadd.f32 0.0, %v7384
      %v7386 = vpop.f32.mrb[0].mxu0
      %v7387 = vpop.f32.mrb[0].mxu0
      %v7388 = vadd.f32 0.0, %v7387
      %v7389 = vpop.f32.mrb[0].mxu0
      %7390 = vdwg.mxu0
      %v7391 = vadd.f32 %v7330, %v7385
      %v7392 = vadd.f32 %v7331, %v7388
      %v7393 = vld [vmem:[%s7116] sm:$0xe]
      %v7394 = vld [vmem:[%s4059] sm:$0xf]
      %v7395 = vld [vmem:[%s4059 + $0x4] sm:$0xf]
      %v7397 = vunpack.c.l.b16 %v7393
      %v7398 = vpack.c.b16 %v7264, %v7397
      %v7399 = vrot.slane %v7398, 1
      %v7400 = vrot.slane %v7267, 1
      %v7401 = vsel %vm1601, %v7399, %v7400
      %v7404 = vunpack.c.l.b16 %v7394
      %v7405 = vunpack.c.l.b16 %v7395
      %v7406 = vpack.c.b16 %v7405, %v7404
      %v7409 = vsel %vm1337, %v7401, 0
      %7411 = vmatprep.subr.bf16.mxu0 0
      %7412 = vmatpush1.bf16.msra.mxu0 %v7406
      %7413 = vmatprep.subr.bf16.mxu0 0
      %7414 = vmatpush1.bf16.msra.mxu0 0
      %7415 = vmatprep.subr.bf16.mxu0 0
      %7416 = vmatpush1.bf16.msra.mxu0 0
      %7417 = vmatprep.subr.bf16.mxu0 0
      %7418 = vmatpush1.bf16.msra.mxu0 0
      %7419 = vmatprep.subr.bf16.mxu0 0
      %7420 = vmatpush1.bf16.msra.mxu0 0
      %7421 = vmatprep.subr.bf16.mxu0 0
      %7422 = vmatpush1.bf16.msra.mxu0 0
      %7423 = vmatprep.subr.bf16.mxu0 0
      %7424 = vmatpush1.bf16.msra.mxu0 0
      %7425 = vmatprep.subr.bf16.mxu0 0
      %7426 = vmatpush1.bf16.msra.mxu0 0
      %7427 = vmatprep.subr.bf16.mxu0 0
      %7428 = vmatpush1.bf16.msra.mxu0 0
      %7429 = vmatprep.subr.bf16.mxu0 0
      %7430 = vmatpush1.bf16.msra.mxu0 0
      %7431 = vmatprep.subr.bf16.mxu0 0
      %7432 = vmatpush1.bf16.msra.mxu0 0
      %7433 = vmatprep.subr.bf16.mxu0 0
      %7434 = vmatpush1.bf16.msra.mxu0 0
      %7435 = vmatprep.subr.bf16.mxu0 0
      %7436 = vmatpush1.bf16.msra.mxu0 0
      %7437 = vmatprep.subr.bf16.mxu0 0
      %7438 = vmatpush1.bf16.msra.mxu0 0
      %7439 = vmatprep.subr.bf16.mxu0 0
      %7440 = vmatpush1.bf16.msra.mxu0 0
      %7441 = vmatprep.subr.bf16.mxu0 0
      %7442 = vmatpush1.bf16.msra.mxu0 0
      %7443 = vmatprep.mubr.bf16.mxu0 0
      %7444 = vmatmul.mubr.bf16.gmra.mrb[0].mxu0 %v7409
      %v7445 = vpop.f32.mrb[0].mxu0
      %v7446 = vadd.f32 0.0, %v7445
      %v7447 = vpop.f32.mrb[0].mxu0
      %v7448 = vpop.f32.mrb[0].mxu0
      %v7449 = vadd.f32 0.0, %v7448
      %v7450 = vpop.f32.mrb[0].mxu0
      %7451 = vdwg.mxu0
      %v7452 = vadd.f32 %v7391, %v7446
      %v7453 = vadd.f32 %v7392, %v7449
      %v7454 = vld [vmem:[%s7054 + $0x8] sm:$0x3]
      %v7455 = vld [vmem:[%s4121] sm:$0xf]
      %v7456 = vld [vmem:[%s4121 + $0x4] sm:$0xf]
      %v7458 = vunpack.c.l.b16 %v7454
      %v7459 = vpack.c.b16 %v7458, %v7458
      %v7461 = vshrl.u32 %v7337, 16
      %v7463 = vrot.slane %v7461, 1
      %v7464 = vshll.u32 %v7337, 16
      %v7466 = vrot.slane %v7464, 2
      %v7467 = vor.u32 %v7463, %v7466
      %v7469 = vshrl.u32 %v7459, 16
      %v7471 = vrot.slane %v7469, 1
      %v7472 = vshll.u32 %v7459, 16
      %v7474 = vrot.slane %v7472, 2
      %v7475 = vor.u32 %v7471, %v7474
      %v7476 = vsel %vm1726, %v7467, %v7475
      %v7479 = vunpack.c.l.b16 %v7455
      %v7480 = vunpack.c.l.b16 %v7456
      %v7481 = vpack.c.b16 %v7480, %v7479
      %v7484 = vsel %vm1337, %v7476, 0
      %7486 = vmatprep.subr.bf16.mxu0 0
      %7487 = vmatpush1.bf16.msra.mxu0 %v7481
      %7488 = vmatprep.subr.bf16.mxu0 0
      %7489 = vmatpush1.bf16.msra.mxu0 0
      %7490 = vmatprep.subr.bf16.mxu0 0
      %7491 = vmatpush1.bf16.msra.mxu0 0
      %7492 = vmatprep.subr.bf16.mxu0 0
      %7493 = vmatpush1.bf16.msra.mxu0 0
      %7494 = vmatprep.subr.bf16.mxu0 0
      %7495 = vmatpush1.bf16.msra.mxu0 0
      %7496 = vmatprep.subr.bf16.mxu0 0
      %7497 = vmatpush1.bf16.msra.mxu0 0
      %7498 = vmatprep.subr.bf16.mxu0 0
      %7499 = vmatpush1.bf16.msra.mxu0 0
      %7500 = vmatprep.subr.bf16.mxu0 0
      %7501 = vmatpush1.bf16.msra.mxu0 0
      %7502 = vmatprep.subr.bf16.mxu0 0
      %7503 = vmatpush1.bf16.msra.mxu0 0
      %7504 = vmatprep.subr.bf16.mxu0 0
      %7505 = vmatpush1.bf16.msra.mxu0 0
      %7506 = vmatprep.subr.bf16.mxu0 0
      %7507 = vmatpush1.bf16.msra.mxu0 0
      %7508 = vmatprep.subr.bf16.mxu0 0
      %7509 = vmatpush1.bf16.msra.mxu0 0
      %7510 = vmatprep.subr.bf16.mxu0 0
      %7511 = vmatpush1.bf16.msra.mxu0 0
      %7512 = vmatprep.subr.bf16.mxu0 0
      %7513 = vmatpush1.bf16.msra.mxu0 0
      %7514 = vmatprep.subr.bf16.mxu0 0
      %7515 = vmatpush1.bf16.msra.mxu0 0
      %7516 = vmatprep.subr.bf16.mxu0 0
      %7517 = vmatpush1.bf16.msra.mxu0 0
      %7518 = vmatprep.mubr.bf16.mxu0 0
      %7519 = vmatmul.mubr.bf16.gmra.mrb[0].mxu0 %v7484
      %v7520 = vpop.f32.mrb[0].mxu0
      %v7521 = vadd.f32 0.0, %v7520
      %v7522 = vpop.f32.mrb[0].mxu0
      %v7523 = vpop.f32.mrb[0].mxu0
      %v7524 = vadd.f32 0.0, %v7523
      %v7525 = vpop.f32.mrb[0].mxu0
      %7526 = vdwg.mxu0
      %v7527 = vadd.f32 %v7452, %v7521
      %v7528 = vadd.f32 %v7453, %v7524
      %s7529 = scalar_lea.vmem %s1274, 12
      %v7530 = vld [vmem:[%s7529] sm:$0xf]
      %v7531 = vld [vmem:[%s7529 + $0x4] sm:$0xf]
      %v7532 = vld [vmem:[%s4198] sm:$0xf]
      %v7533 = vld [vmem:[%s4198 + $0x4] sm:$0xf]
      %v7536 = vunpack.c.l.b16 %v7530
      %v7537 = vunpack.c.l.b16 %v7531
      %v7538 = vpack.c.b16 %v7537, %v7536
      %v7541 = vunpack.c.l.b16 %v7532
      %v7542 = vunpack.c.l.b16 %v7533
      %v7543 = vpack.c.b16 %v7542, %v7541
      %v7546 = vsel %vm1337, %v7538, 0
      %7548 = vmatprep.subr.bf16.mxu0 0
      %7549 = vmatpush1.bf16.msra.mxu0 %v7543
      %7550 = vmatprep.subr.bf16.mxu0 0
      %7551 = vmatpush1.bf16.msra.mxu0 0
      %7552 = vmatprep.subr.bf16.mxu0 0
      %7553 = vmatpush1.bf16.msra.mxu0 0
      %7554 = vmatprep.subr.bf16.mxu0 0
      %7555 = vmatpush1.bf16.msra.mxu0 0
      %7556 = vmatprep.subr.bf16.mxu0 0
      %7557 = vmatpush1.bf16.msra.mxu0 0
      %7558 = vmatprep.subr.bf16.mxu0 0
      %7559 = vmatpush1.bf16.msra.mxu0 0
      %7560 = vmatprep.subr.bf16.mxu0 0
      %7561 = vmatpush1.bf16.msra.mxu0 0
      %7562 = vmatprep.subr.bf16.mxu0 0
      %7563 = vmatpush1.bf16.msra.mxu0 0
      %7564 = vmatprep.subr.bf16.mxu0 0
      %7565 = vmatpush1.bf16.msra.mxu0 0
      %7566 = vmatprep.subr.bf16.mxu0 0
      %7567 = vmatpush1.bf16.msra.mxu0 0
      %7568 = vmatprep.subr.bf16.mxu0 0
      %7569 = vmatpush1.bf16.msra.mxu0 0
      %7570 = vmatprep.subr.bf16.mxu0 0
      %7571 = vmatpush1.bf16.msra.mxu0 0
      %7572 = vmatprep.subr.bf16.mxu0 0
      %7573 = vmatpush1.bf16.msra.mxu0 0
      %7574 = vmatprep.subr.bf16.mxu0 0
      %7575 = vmatpush1.bf16.msra.mxu0 0
      %7576 = vmatprep.subr.bf16.mxu0 0
      %7577 = vmatpush1.bf16.msra.mxu0 0
      %7578 = vmatprep.subr.bf16.mxu0 0
      %7579 = vmatpush1.bf16.msra.mxu0 0
      %7580 = vmatprep.mubr.bf16.mxu0 0
      %7581 = vmatmul.mubr.bf16.gmra.mrb[0].mxu0 %v7546
      %v7582 = vpop.f32.mrb[0].mxu0
      %v7583 = vadd.f32 0.0, %v7582
      %v7584 = vpop.f32.mrb[0].mxu0
      %v7585 = vpop.f32.mrb[0].mxu0
      %v7586 = vadd.f32 0.0, %v7585
      %v7587 = vpop.f32.mrb[0].mxu0
      %7588 = vdwg.mxu0
      %v7589 = vadd.f32 %v7527, %v7583
      %v7590 = vadd.f32 %v7528, %v7586
      %s7591 = scalar_lea.vmem %s1289, 12
      %v7592 = vld [vmem:[%s7591] sm:$0xf]
      %v7593 = vld [vmem:[%s7591 + $0x4] sm:$0xf]
      %v7594 = vld [vmem:[%s4260] sm:$0xf]
      %v7595 = vld [vmem:[%s4260 + $0x4] sm:$0xf]
      %v7598 = vunpack.c.l.b16 %v7592
      %v7599 = vunpack.c.l.b16 %v7593
      %v7600 = vpack.c.b16 %v7599, %v7598
      %v7603 = vunpack.c.l.b16 %v7594
      %v7604 = vunpack.c.l.b16 %v7595
      %v7605 = vpack.c.b16 %v7604, %v7603
      %v7608 = vsel %vm1337, %v7600, 0
      %7610 = vmatprep.subr.bf16.mxu0 0
      %7611 = vmatpush1.bf16.msra.mxu0 %v7605
      %7612 = vmatprep.subr.bf16.mxu0 0
      %7613 = vmatpush1.bf16.msra.mxu0 0
      %7614 = vmatprep.subr.bf16.mxu0 0
      %7615 = vmatpush1.bf16.msra.mxu0 0
      %7616 = vmatprep.subr.bf16.mxu0 0
      %7617 = vmatpush1.bf16.msra.mxu0 0
      %7618 = vmatprep.subr.bf16.mxu0 0
      %7619 = vmatpush1.bf16.msra.mxu0 0
      %7620 = vmatprep.subr.bf16.mxu0 0
      %7621 = vmatpush1.bf16.msra.mxu0 0
      %7622 = vmatprep.subr.bf16.mxu0 0
      %7623 = vmatpush1.bf16.msra.mxu0 0
      %7624 = vmatprep.subr.bf16.mxu0 0
      %7625 = vmatpush1.bf16.msra.mxu0 0
      %7626 = vmatprep.subr.bf16.mxu0 0
      %7627 = vmatpush1.bf16.msra.mxu0 0
      %7628 = vmatprep.subr.bf16.mxu0 0
      %7629 = vmatpush1.bf16.msra.mxu0 0
      %7630 = vmatprep.subr.bf16.mxu0 0
      %7631 = vmatpush1.bf16.msra.mxu0 0
      %7632 = vmatprep.subr.bf16.mxu0 0
      %7633 = vmatpush1.bf16.msra.mxu0 0
      %7634 = vmatprep.subr.bf16.mxu0 0
      %7635 = vmatpush1.bf16.msra.mxu0 0
      %7636 = vmatprep.subr.bf16.mxu0 0
      %7637 = vmatpush1.bf16.msra.mxu0 0
      %7638 = vmatprep.subr.bf16.mxu0 0
      %7639 = vmatpush1.bf16.msra.mxu0 0
      %7640 = vmatprep.subr.bf16.mxu0 0
      %7641 = vmatpush1.bf16.msra.mxu0 0
      %7642 = vmatprep.mubr.bf16.mxu0 0
      %7643 = vmatmul.mubr.bf16.gmra.mrb[0].mxu0 %v7608
      %v7644 = vpop.f32.mrb[0].mxu0
      %v7645 = vadd.f32 0.0, %v7644
      %v7646 = vpop.f32.mrb[0].mxu0
      %v7647 = vpop.f32.mrb[0].mxu0
      %v7648 = vadd.f32 0.0, %v7647
      %v7649 = vpop.f32.mrb[0].mxu0
      %7650 = vdwg.mxu0
      %v7651 = vadd.f32 %v7589, %v7645
      %v7652 = vadd.f32 %v7590, %v7648
      %v7653 = vld [vmem:[%s7529] sm:$0xf]
      %v7654 = vld [vmem:[%s7529 + $0x4] sm:$0xf]
      %v7655 = vld [vmem:[%s7529 + $0x8] sm:$0x1]
      %v7656 = vld [vmem:[%s4323] sm:$0xf]
      %v7657 = vld [vmem:[%s4323 + $0x4] sm:$0xf]
      %v7661 = vunpack.c.l.b16 %v7653
      %v7662 = vunpack.c.l.b16 %v7654
      %v7663 = vunpack.c.l.b16 %v7655
      %v7664 = vpack.c.b16 %v7662, %v7661
      %v7665 = vpack.c.b16 %v7663, %v7663
      %v7667 = vshrl.u32 %v7664, 16
      %v7669 = vshll.u32 %v7664, 16
      %v7671 = vrot.slane %v7669, 1
      %v7672 = vor.u32 %v7667, %v7671
      %v7674 = vshll.u32 %v7665, 16
      %v7676 = vrot.slane %v7674, 1
      %v7677 = vsel %vm1451, %v7672, %v7676
      %v7680 = vunpack.c.l.b16 %v7656
      %v7681 = vunpack.c.l.b16 %v7657
      %v7682 = vpack.c.b16 %v7681, %v7680
      %v7685 = vsel %vm1337, %v7677, 0
      %7687 = vmatprep.subr.bf16.mxu0 0
      %7688 = vmatpush1.bf16.msra.mxu0 %v7682
      %7689 = vmatprep.subr.bf16.mxu0 0
      %7690 = vmatpush1.bf16.msra.mxu0 0
      %7691 = vmatprep.subr.bf16.mxu0 0
      %7692 = vmatpush1.bf16.msra.mxu0 0
      %7693 = vmatprep.subr.bf16.mxu0 0
      %7694 = vmatpush1.bf16.msra.mxu0 0
      %7695 = vmatprep.subr.bf16.mxu0 0
      %7696 = vmatpush1.bf16.msra.mxu0 0
      %7697 = vmatprep.subr.bf16.mxu0 0
      %7698 = vmatpush1.bf16.msra.mxu0 0
      %7699 = vmatprep.subr.bf16.mxu0 0
      %7700 = vmatpush1.bf16.msra.mxu0 0
      %7701 = vmatprep.subr.bf16.mxu0 0
      %7702 = vmatpush1.bf16.msra.mxu0 0
      %7703 = vmatprep.subr.bf16.mxu0 0
      %7704 = vmatpush1.bf16.msra.mxu0 0
      %7705 = vmatprep.subr.bf16.mxu0 0
      %7706 = vmatpush1.bf16.msra.mxu0 0
      %7707 = vmatprep.subr.bf16.mxu0 0
      %7708 = vmatpush1.bf16.msra.mxu0 0
      %7709 = vmatprep.subr.bf16.mxu0 0
      %7710 = vmatpush1.bf16.msra.mxu0 0
      %7711 = vmatprep.subr.bf16.mxu0 0
      %7712 = vmatpush1.bf16.msra.mxu0 0
      %7713 = vmatprep.subr.bf16.mxu0 0
      %7714 = vmatpush1.bf16.msra.mxu0 0
      %7715 = vmatprep.subr.bf16.mxu0 0
      %7716 = vmatpush1.bf16.msra.mxu0 0
      %7717 = vmatprep.subr.bf16.mxu0 0
      %7718 = vmatpush1.bf16.msra.mxu0 0
      %7719 = vmatprep.mubr.bf16.mxu0 0
      %7720 = vmatmul.mubr.bf16.gmra.mrb[0].mxu0 %v7685
      %v7721 = vpop.f32.mrb[0].mxu0
      %v7722 = vadd.f32 0.0, %v7721
      %v7723 = vpop.f32.mrb[0].mxu0
      %v7724 = vpop.f32.mrb[0].mxu0
      %v7725 = vadd.f32 0.0, %v7724
      %v7726 = vpop.f32.mrb[0].mxu0
      %7727 = vdwg.mxu0
      %v7728 = vadd.f32 %v7651, %v7722
      %v7729 = vadd.f32 %v7652, %v7725
      %v7730 = vld [vmem:[%s7591] sm:$0xf]
      %v7731 = vld [vmem:[%s7591 + $0x4] sm:$0xf]
      %v7732 = vld [vmem:[%s7591 + $0x8] sm:$0x1]
      %v7733 = vld [vmem:[%s4401] sm:$0xf]
      %v7734 = vld [vmem:[%s4401 + $0x4] sm:$0xf]
      %v7738 = vunpack.c.l.b16 %v7730
      %v7739 = vunpack.c.l.b16 %v7731
      %v7740 = vunpack.c.l.b16 %v7732
      %v7741 = vpack.c.b16 %v7739, %v7738
      %v7742 = vpack.c.b16 %v7740, %v7740
      %v7744 = vshrl.u32 %v7741, 16
      %v7746 = vshll.u32 %v7741, 16
      %v7748 = vrot.slane %v7746, 1
      %v7749 = vor.u32 %v7744, %v7748
      %v7751 = vshll.u32 %v7742, 16
      %v7753 = vrot.slane %v7751, 1
      %v7754 = vsel %vm1451, %v7749, %v7753
      %v7757 = vunpack.c.l.b16 %v7733
      %v7758 = vunpack.c.l.b16 %v7734
      %v7759 = vpack.c.b16 %v7758, %v7757
      %v7762 = vsel %vm1337, %v7754, 0
      %7764 = vmatprep.subr.bf16.mxu0 0
      %7765 = vmatpush1.bf16.msra.mxu0 %v7759
      %7766 = vmatprep.subr.bf16.mxu0 0
      %7767 = vmatpush1.bf16.msra.mxu0 0
      %7768 = vmatprep.subr.bf16.mxu0 0
      %7769 = vmatpush1.bf16.msra.mxu0 0
      %7770 = vmatprep.subr.bf16.mxu0 0
      %7771 = vmatpush1.bf16.msra.mxu0 0
      %7772 = vmatprep.subr.bf16.mxu0 0
      %7773 = vmatpush1.bf16.msra.mxu0 0
      %7774 = vmatprep.subr.bf16.mxu0 0
      %7775 = vmatpush1.bf16.msra.mxu0 0
      %7776 = vmatprep.subr.bf16.mxu0 0
      %7777 = vmatpush1.bf16.msra.mxu0 0
      %7778 = vmatprep.subr.bf16.mxu0 0
      %7779 = vmatpush1.bf16.msra.mxu0 0
      %7780 = vmatprep.subr.bf16.mxu0 0
      %7781 = vmatpush1.bf16.msra.mxu0 0
      %7782 = vmatprep.subr.bf16.mxu0 0
      %7783 = vmatpush1.bf16.msra.mxu0 0
      %7784 = vmatprep.subr.bf16.mxu0 0
      %7785 = vmatpush1.bf16.msra.mxu0 0
      %7786 = vmatprep.subr.bf16.mxu0 0
      %7787 = vmatpush1.bf16.msra.mxu0 0
      %7788 = vmatprep.subr.bf16.mxu0 0
      %7789 = vmatpush1.bf16.msra.mxu0 0
      %7790 = vmatprep.subr.bf16.mxu0 0
      %7791 = vmatpush1.bf16.msra.mxu0 0
      %7792 = vmatprep.subr.bf16.mxu0 0
      %7793 = vmatpush1.bf16.msra.mxu0 0
      %7794 = vmatprep.subr.bf16.mxu0 0
      %7795 = vmatpush1.bf16.msra.mxu0 0
      %7796 = vmatprep.mubr.bf16.mxu0 0
      %7797 = vmatmul.mubr.bf16.gmra.mrb[0].mxu0 %v7762
      %v7798 = vpop.f32.mrb[0].mxu0
      %v7799 = vadd.f32 0.0, %v7798
      %v7800 = vpop.f32.mrb[0].mxu0
      %v7801 = vpop.f32.mrb[0].mxu0
      %v7802 = vadd.f32 0.0, %v7801
      %v7803 = vpop.f32.mrb[0].mxu0
      %7804 = vdwg.mxu0
      %v7805 = vadd.f32 %v7728, %v7799
      %v7806 = vadd.f32 %v7729, %v7802
      %v7807 = vld [vmem:[%s7529] sm:$0xe]
      %v7808 = vld [vmem:[%s4477] sm:$0xf]
      %v7809 = vld [vmem:[%s4477 + $0x4] sm:$0xf]
      %v7811 = vunpack.c.l.b16 %v7807
      %v7812 = vpack.c.b16 %v7662, %v7811
      %v7813 = vrot.slane %v7812, 1
      %v7814 = vrot.slane %v7665, 1
      %v7815 = vsel %vm1601, %v7813, %v7814
      %v7818 = vunpack.c.l.b16 %v7808
      %v7819 = vunpack.c.l.b16 %v7809
      %v7820 = vpack.c.b16 %v7819, %v7818
      %v7823 = vsel %vm1337, %v7815, 0
      %7825 = vmatprep.subr.bf16.mxu0 0
      %7826 = vmatpush1.bf16.msra.mxu0 %v7820
      %7827 = vmatprep.subr.bf16.mxu0 0
      %7828 = vmatpush1.bf16.msra.mxu0 0
      %7829 = vmatprep.subr.bf16.mxu0 0
      %7830 = vmatpush1.bf16.msra.mxu0 0
      %7831 = vmatprep.subr.bf16.mxu0 0
      %7832 = vmatpush1.bf16.msra.mxu0 0
      %7833 = vmatprep.subr.bf16.mxu0 0
      %7834 = vmatpush1.bf16.msra.mxu0 0
      %7835 = vmatprep.subr.bf16.mxu0 0
      %7836 = vmatpush1.bf16.msra.mxu0 0
      %7837 = vmatprep.subr.bf16.mxu0 0
      %7838 = vmatpush1.bf16.msra.mxu0 0
      %7839 = vmatprep.subr.bf16.mxu0 0
      %7840 = vmatpush1.bf16.msra.mxu0 0
      %7841 = vmatprep.subr.bf16.mxu0 0
      %7842 = vmatpush1.bf16.msra.mxu0 0
      %7843 = vmatprep.subr.bf16.mxu0 0
      %7844 = vmatpush1.bf16.msra.mxu0 0
      %7845 = vmatprep.subr.bf16.mxu0 0
      %7846 = vmatpush1.bf16.msra.mxu0 0
      %7847 = vmatprep.subr.bf16.mxu0 0
      %7848 = vmatpush1.bf16.msra.mxu0 0
      %7849 = vmatprep.subr.bf16.mxu0 0
      %7850 = vmatpush1.bf16.msra.mxu0 0
      %7851 = vmatprep.subr.bf16.mxu0 0
      %7852 = vmatpush1.bf16.msra.mxu0 0
      %7853 = vmatprep.subr.bf16.mxu0 0
      %7854 = vmatpush1.bf16.msra.mxu0 0
      %7855 = vmatprep.subr.bf16.mxu0 0
      %7856 = vmatpush1.bf16.msra.mxu0 0
      %7857 = vmatprep.mubr.bf16.mxu0 0
      %7858 = vmatmul.mubr.bf16.gmra.mrb[0].mxu0 %v7823
      %v7859 = vpop.f32.mrb[0].mxu0
      %v7860 = vadd.f32 0.0, %v7859
      %v7861 = vpop.f32.mrb[0].mxu0
      %v7862 = vpop.f32.mrb[0].mxu0
      %v7863 = vadd.f32 0.0, %v7862
      %v7864 = vpop.f32.mrb[0].mxu0
      %7865 = vdwg.mxu0
      %v7866 = vadd.f32 %v7805, %v7860
      %v7867 = vadd.f32 %v7806, %v7863
      %v7868 = vld [vmem:[%s7591] sm:$0xe]
      %v7869 = vld [vmem:[%s4539] sm:$0xf]
      %v7870 = vld [vmem:[%s4539 + $0x4] sm:$0xf]
      %v7872 = vunpack.c.l.b16 %v7868
      %v7873 = vpack.c.b16 %v7739, %v7872
      %v7874 = vrot.slane %v7873, 1
      %v7875 = vrot.slane %v7742, 1
      %v7876 = vsel %vm1601, %v7874, %v7875
      %v7879 = vunpack.c.l.b16 %v7869
      %v7880 = vunpack.c.l.b16 %v7870
      %v7881 = vpack.c.b16 %v7880, %v7879
      %v7884 = vsel %vm1337, %v7876, 0
      %7886 = vmatprep.subr.bf16.mxu0 0
      %7887 = vmatpush1.bf16.msra.mxu0 %v7881
      %7888 = vmatprep.subr.bf16.mxu0 0
      %7889 = vmatpush1.bf16.msra.mxu0 0
      %7890 = vmatprep.subr.bf16.mxu0 0
      %7891 = vmatpush1.bf16.msra.mxu0 0
      %7892 = vmatprep.subr.bf16.mxu0 0
      %7893 = vmatpush1.bf16.msra.mxu0 0
      %7894 = vmatprep.subr.bf16.mxu0 0
      %7895 = vmatpush1.bf16.msra.mxu0 0
      %7896 = vmatprep.subr.bf16.mxu0 0
      %7897 = vmatpush1.bf16.msra.mxu0 0
      %7898 = vmatprep.subr.bf16.mxu0 0
      %7899 = vmatpush1.bf16.msra.mxu0 0
      %7900 = vmatprep.subr.bf16.mxu0 0
      %7901 = vmatpush1.bf16.msra.mxu0 0
      %7902 = vmatprep.subr.bf16.mxu0 0
      %7903 = vmatpush1.bf16.msra.mxu0 0
      %7904 = vmatprep.subr.bf16.mxu0 0
      %7905 = vmatpush1.bf16.msra.mxu0 0
      %7906 = vmatprep.subr.bf16.mxu0 0
      %7907 = vmatpush1.bf16.msra.mxu0 0
      %7908 = vmatprep.subr.bf16.mxu0 0
      %7909 = vmatpush1.bf16.msra.mxu0 0
      %7910 = vmatprep.subr.bf16.mxu0 0
      %7911 = vmatpush1.bf16.msra.mxu0 0
      %7912 = vmatprep.subr.bf16.mxu0 0
      %7913 = vmatpush1.bf16.msra.mxu0 0
      %7914 = vmatprep.subr.bf16.mxu0 0
      %7915 = vmatpush1.bf16.msra.mxu0 0
      %7916 = vmatprep.subr.bf16.mxu0 0
      %7917 = vmatpush1.bf16.msra.mxu0 0
      %7918 = vmatprep.mubr.bf16.mxu0 0
      %7919 = vmatmul.mubr.bf16.gmra.mrb[0].mxu0 %v7884
      %v7920 = vpop.f32.mrb[0].mxu0
      %v7921 = vadd.f32 0.0, %v7920
      %v7922 = vpop.f32.mrb[0].mxu0
      %v7923 = vpop.f32.mrb[0].mxu0
      %v7924 = vadd.f32 0.0, %v7923
      %v7925 = vpop.f32.mrb[0].mxu0
      %7926 = vdwg.mxu0
      %v7927 = vadd.f32 %v7866, %v7921
      %v7928 = vadd.f32 %v7867, %v7924
      %v7929 = vld [vmem:[%s7529 + $0x8] sm:$0x3]
      %v7930 = vld [vmem:[%s4601] sm:$0xf]
      %v7931 = vld [vmem:[%s4601 + $0x4] sm:$0xf]
      %v7933 = vunpack.c.l.b16 %v7929
      %v7934 = vpack.c.b16 %v7933, %v7933
      %v7936 = vshrl.u32 %v7812, 16
      %v7938 = vrot.slane %v7936, 1
      %v7939 = vshll.u32 %v7812, 16
      %v7941 = vrot.slane %v7939, 2
      %v7942 = vor.u32 %v7938, %v7941
      %v7944 = vshrl.u32 %v7934, 16
      %v7946 = vrot.slane %v7944, 1
      %v7947 = vshll.u32 %v7934, 16
      %v7949 = vrot.slane %v7947, 2
      %v7950 = vor.u32 %v7946, %v7949
      %v7951 = vsel %vm1726, %v7942, %v7950
      %v7954 = vunpack.c.l.b16 %v7930
      %v7955 = vunpack.c.l.b16 %v7931
      %v7956 = vpack.c.b16 %v7955, %v7954
      %v7959 = vsel %vm1337, %v7951, 0
      %7961 = vmatprep.subr.bf16.mxu0 0
      %7962 = vmatpush1.bf16.msra.mxu0 %v7956
      %7963 = vmatprep.subr.bf16.mxu0 0
      %7964 = vmatpush1.bf16.msra.mxu0 0
      %7965 = vmatprep.subr.bf16.mxu0 0
      %7966 = vmatpush1.bf16.msra.mxu0 0
      %7967 = vmatprep.subr.bf16.mxu0 0
      %7968 = vmatpush1.bf16.msra.mxu0 0
      %7969 = vmatprep.subr.bf16.mxu0 0
      %7970 = vmatpush1.bf16.msra.mxu0 0
      %7971 = vmatprep.subr.bf16.mxu0 0
      %7972 = vmatpush1.bf16.msra.mxu0 0
      %7973 = vmatprep.subr.bf16.mxu0 0
      %7974 = vmatpush1.bf16.msra.mxu0 0
      %7975 = vmatprep.subr.bf16.mxu0 0
      %7976 = vmatpush1.bf16.msra.mxu0 0
      %7977 = vmatprep.subr.bf16.mxu0 0
      %7978 = vmatpush1.bf16.msra.mxu0 0
      %7979 = vmatprep.subr.bf16.mxu0 0
      %7980 = vmatpush1.bf16.msra.mxu0 0
      %7981 = vmatprep.subr.bf16.mxu0 0
      %7982 = vmatpush1.bf16.msra.mxu0 0
      %7983 = vmatprep.subr.bf16.mxu0 0
      %7984 = vmatpush1.bf16.msra.mxu0 0
      %7985 = vmatprep.subr.bf16.mxu0 0
      %7986 = vmatpush1.bf16.msra.mxu0 0
      %7987 = vmatprep.subr.bf16.mxu0 0
      %7988 = vmatpush1.bf16.msra.mxu0 0
      %7989 = vmatprep.subr.bf16.mxu0 0
      %7990 = vmatpush1.bf16.msra.mxu0 0
      %7991 = vmatprep.subr.bf16.mxu0 0
      %7992 = vmatpush1.bf16.msra.mxu0 0
      %7993 = vmatprep.mubr.bf16.mxu0 0
      %7994 = vmatmul.mubr.bf16.gmra.mrb[0].mxu0 %v7959
      %v7995 = vpop.f32.mrb[0].mxu0
      %v7996 = vadd.f32 0.0, %v7995
      %v7997 = vpop.f32.mrb[0].mxu0
      %v7998 = vpop.f32.mrb[0].mxu0
      %v7999 = vadd.f32 0.0, %v7998
      %v8000 = vpop.f32.mrb[0].mxu0
      %8001 = vdwg.mxu0
      %v8002 = vadd.f32 %v7927, %v7996
      %v8003 = vadd.f32 %v7928, %v7999
      %s8004 = scalar_lea.vmem [#allocation2], 16
      %v8005 = vld [vmem:[%s8004] sm:$0xff]
      %v8006 = vld [vmem:[%s8004 + $0x8] sm:$0xff]
      %v8007 = vadd.f32 %v8005, %v8002
      %v8008 = vadd.f32 %v8006, %v8003
      %8009 = vst.msk [vmem:[%s8004] sm:$0xff] %vm4680, %v8007
      %8010 = vst.msk [vmem:[%s8004 + $0x8] sm:$0xff] %vm4680, %v8008
      %p8011 = scmp.eq.s32.totalorder %s34, 2
      // Predicated region
      $region89: #{conv3d_direct.1} parent=83 // pred_check
        %p8012 = pneg %p8011
      $region90: #{conv3d_direct.1} parent=83 // pred_check_branch
        %8014 = sbr.rel (%p8012) target = $region92
      $region91: #{conv3d_direct.1} parent=83 // pred_region
        %v8015 = vld [vmem:[#allocation2] sm:$0xff]
        %v8016 = vld [vmem:[#allocation2 + $0x8] sm:$0xff]
        %v8017 = vld [vmem:[#allocation2 + $0x10] sm:$0xff]
        %v8018 = vld [vmem:[#allocation2 + $0x18] sm:$0xff]
        %v8019 = vld [vmem:[%s15] sm:$0x1]
        %v8021 = vlaneseq
        %v8022 = vshrl.u32 %v8021, 7
        %v8023 = vsub.s32 0, %v8022
        %v8024 = vrot.slane %v8019, %v8023
        %v8026 = vadd.f32 %v8015, %v8024
        %v8027 = vadd.f32 %v8016, %v8024
        %v8028 = vadd.f32 %v8017, %v8024
        %v8029 = vadd.f32 %v8018, %v8024
        %v8030 = vmax.f32 %v8026, 0.0
        %v8031 = vmax.f32 %v8027, 0.0
        %v8032 = vmax.f32 %v8028, 0.0
        %v8033 = vmax.f32 %v8029, 0.0
        %v8034 = vpack.c.bf16 %v8031, %v8030
        %v8035 = vpack.c.bf16 %v8033, %v8032
        %v8038 = vunpack.c.l.b16 %v8034
        %v8039 = vunpack.c.h.b16 %v8034
        %v8040 = vunpack.c.l.b16 %v8035
        %v8041 = vunpack.c.h.b16 %v8035
        %v8042 = vpack.c.b16 %v8038, %v8038
        %v8043 = vpack.c.b16 %v8039, %v8039
        %v8044 = vpack.c.b16 %v8040, %v8040
        %v8045 = vpack.c.b16 %v8041, %v8041
        %vm8050 = vcmask 60416
        %8051 = vst.msk [vmem:[%s1306] sm:$0xf] %vm8050, %v8042
        %8052 = vst.msk [vmem:[%s1306 + $0x4] sm:$0xf] %vm8050, %v8043
        %8053 = vst.msk [vmem:[%s1306 + $0x8] sm:$0xf] %vm8050, %v8044
        %8054 = vst.msk [vmem:[%s1306 + $0xc] sm:$0xf] %vm8050, %v8045
      $region92: #{conv3d_direct.1} parent=83 // pred_fallthru
        _
      %p8055 = scmp.lt.s32.totalorder %s32, 7
      %s8056 = scalar_select %p8055, %s32, 7
      %p8057 = scmp.lt.s32.totalorder %s33, 15
      %s8058 = scalar_select %p8057, %s33, 15
      %s8059 = smul.addr %s8058, 4
      %s8060 = smul.addr %s8056, 64
      %s8061 = sadd.s32 %s8059, %s8060
      %s8062 = smul.addr %s8061, 4
      %s8063 = scalar_lea.vmem %s16, %s8062
      // Predicated region
      $region93: #{conv3d_direct.1} parent=83 // pred_check
        %p8064 = pneg %p585
      $region94: #{conv3d_direct.1} parent=83 // pred_check_branch
        %8066 = sbr.rel (%p8064) target = $region96
      $region95: #{conv3d_direct.1} parent=83 // pred_region
        _
      $region96: #{conv3d_direct.1} parent=83 // pred_fallthru
        _
    $region84: #{conv3d_direct.1} parent=5 // pred_fallthru
      _
    %p8067 = scmp.le.s32.totalorder 2, %s22
    // Predicated region
    $region97: #{conv3d_direct.1} parent=5 // pred_check
      %p8068 = pneg %p8067
    $region98: #{conv3d_direct.1} parent=5 // pred_check_branch
      %8070 = sbr.rel (%p8068) target = $region100
    $region99: #{conv3d_direct.1} parent=5 // pred_region
      %s8071 = ssub.s32 %s22, 2
      // Predicated region
      $region101: #{conv3d_direct.1} parent=99 // pred_check
        %p8072 = pneg %p591
      $region102: #{conv3d_direct.1} parent=99 // pred_check_branch
        %8074 = sbr.rel (%p8072) target = $region104
      $region103: #{conv3d_direct.1} parent=99 // pred_region
        %p8075 = scmp.lt.s32.totalorder %s35, 7
        %s8076 = scalar_select %p8075, %s35, 7
        %p8077 = scmp.lt.s32.totalorder %s36, 15
        %s8078 = scalar_select %p8077, %s36, 15
        %s8079 = smul.addr %s8078, 4
        %s8080 = smul.addr %s8076, 64
        %s8081 = sadd.s32 %s8079, %s8080
        %s8082 = smul.addr %s8081, 4
        %s8083 = scalar_lea.vmem %s16, %s8082
      $region104: #{conv3d_direct.1} parent=99 // pred_fallthru
        _
    $region100: #{conv3d_direct.1} parent=5 // pred_fallthru
      _
  $region6: #{conv3d_direct.1} parent=0 // loop_footer
    %s26 = sadd.s32 1, %s22
  $region7: #{conv3d_direct.1} parent=0 // loop_footer_branch
    %21 = sbr.rel target = $region3
  $region8: #{conv3d_direct.1} parent=0 // loop_exit
    _

</llo_original>
